<compile_context>
chip_gen: v7x
topology: tpu7x:2x2x1
jax: 0.10.0
libtpu: 0.0.40
codegen_flags: <defaults>
</compile_context>

<pallas_src>
import functools

import jax
import jax.numpy as jnp
from jax import lax
from jax.experimental import pallas as pl
from jax.experimental.pallas import tpu as pltpu

# Keeps exp(±logc) finite in f32/bf16 at chunk=32.
# TODO(synk): replace the clamp with a per-chunk renormalization for extreme decays (w < e^-2).
_LOGC_CLAMP = 70.0


def _wkv7_chunk_kernel(seq_len, r_ref, w_ref, k_ref, v_ref, a_ref, b_ref, s0_ref,
                       out_ref, s1_ref):
    """One (head-block, time-chunk) grid step.

    r/w/k/v/a/b/out refs: (HB, C, N); s0/s1 refs: (HB, N, N).
    """
    HB, C, N = r_ref.shape
    f32 = jnp.float32
    bf16 = jnp.bfloat16

    ci = pl.program_id(1)

    # The new-state output's block index is constant along the chunk axis, so it stays
    # VMEM-resident for the whole time sweep -> use it directly as the state accumulator.
    @pl.when(ci == 0)
    def _():
        s1_ref[...] = s0_ref[...]

    # (C, C) trace-time constants, hoisted out of the per-head loop.
    t_ids = lax.broadcasted_iota(jnp.int32, (C, C), 0)
    s_ids = lax.broadcasted_iota(jnp.int32, (C, C), 1)
    incl_mask = s_ids <= t_ids
    strict_mask = s_ids < t_ids
    tri = incl_mask.astype(f32)            # inclusive cumulative-sum operator
    eye_c = (s_ids == t_ids).astype(f32)

    # Ragged tail handled in-kernel (no wrapper-side pad/concat of the inputs).
    ragged = (seq_len % C) != 0
    if ragged:
        row = lax.broadcasted_iota(jnp.int32, (C, 1), 0)
        valid = (ci * C + row) < seq_len   # (C, 1)

    def mm_f32(x, y):   # small (C,C)-sized f32 matmuls that must stay accurate
        return jnp.dot(x, y, precision=lax.Precision.HIGHEST, preferred_element_type=f32)

    def mm(x, y):       # bf16 operands, f32 accumulation: x @ y
        return jnp.dot(x.astype(bf16), y.astype(bf16), preferred_element_type=f32)

    def mm_nt(x, y):    # bf16 operands, f32 accumulation: x @ y.T   (contract last dims)
        return lax.dot_general(x.astype(bf16), y.astype(bf16),
                               (((1,), (1,)), ((), ())), preferred_element_type=f32)

    def mm_tn(x, y):    # bf16 operands, f32 accumulation: x.T @ y   (contract first dims)
        return lax.dot_general(x.astype(bf16), y.astype(bf16),
                               (((0,), (0,)), ((), ())), preferred_element_type=f32)

    n_doubling = max(int(C - 1).bit_length(), 1)   # (I - L)^{-1} factors; L nilpotent

    def per_head(hb, carry):
        # Leading-axis dynamic index = cheap view; no sublane-strided extraction.
        r_h = r_ref[hb]
        w_h = w_ref[hb]
        k_h = k_ref[hb]
        v_h = v_ref[hb]
        a_h = a_ref[hb]
        b_h = b_ref[hb]
        if ragged:
            # Neutral steps past the end of the sequence: w=1, everything else 0.
            w_h = jnp.where(valid, w_h, 1.0)
            r_h = jnp.where(valid, r_h, 0.0)
            k_h = jnp.where(valid, k_h, 0.0)
            v_h = jnp.where(valid, v_h, 0.0)
            a_h = jnp.where(valid, a_h, 0.0)
            b_h = jnp.where(valid, b_h, 0.0)
        s0 = s1_ref[hb]                                  # (N, N) carried state, f32

        # Per-channel cumulative decay c_t = prod_{u<=t} w_u  (f32 throughout).
        # TODO(synk): if the caller can pass the raw log-decay, drop this jnp.log().
        logc = mm_f32(tri, jnp.log(w_h))                 # (C, N) inclusive cumsum over time
        logc = jnp.maximum(logc, -_LOGC_CLAMP)
        c_pos = jnp.exp(logc)
        c_neg = jnp.exp(-logc)

        a_t = a_h * c_pos      # ã_t = a_t * c_t   (absorbs the w_t of a' = w*a)
        b_t = b_h * c_neg      # b̃_s = b_s / c_s
        k_t = k_h * c_neg      # k̃_s = k_s / c_s
        r_t = r_h * c_pos      # r̃_t = r_t * c_t

        # Intra-chunk pairwise terms (C x C), causally masked.  bf16 in, f32 out.
        l_ab = jnp.where(strict_mask, mm_nt(a_t, b_t), 0.0)
        l_ak = jnp.where(strict_mask, mm_nt(a_t, k_t), 0.0)
        a_rb = jnp.where(incl_mask, mm_nt(r_t, b_t), 0.0)
        a_rk = jnp.where(incl_mask, mm_nt(r_t, k_t), 0.0)

        # (I - L_ab)^{-1} by Neumann doubling: (I+L)(I+L^2)(I+L^4)...  L strictly lower.
        # Kept f32: its error compounds into the carried state and the matmuls are tiny.
        inv = eye_c + l_ab
        lp = l_ab
        for _ in range(n_doubling - 1):
            lp = mm_f32(lp, lp)
            inv = mm_f32(inv, eye_c + lp)

        # u_t = S_{t-1} (w_t * a_t) for every t of the chunk, in closed form.
        u = mm(inv, mm(l_ak, v_h) + mm_nt(a_t, s0))            # (C, N)

        # Chunk outputs out_t = S_t r_t.
        out_h = mm_nt(r_t, s0) + mm(a_rb, u) + mm(a_rk, v_h)   # (C, N)
        out_ref[hb] = out_h.astype(out_ref.dtype)

        # End-of-chunk state S' = (S0 + U^T B̃ + V^T K̃) * c_C.
        c_last = c_pos[C - 1:C, :]                             # (1, N)
        s1_ref[hb] = ((s0 + mm_tn(u, b_t) + mm_tn(v_h, k_t)) * c_last).astype(s1_ref.dtype)
        return carry

    lax.fori_loop(0, HB, per_head, 0)


def _pick_heads_per_block(n_head, max_hb=16):
    """Largest divisor of n_head that is <= max_hb and leaves >= 2 head blocks (v7x megacore)."""
    if n_head <= 1:
        return 1
    best = 1
    for d in range(1, min(max_hb, n_head // 2) + 1):
        if n_head % d == 0:
            best = d
    return best


def wkv7(r, w, k, v, a, b, state, *, chunk=32, max_heads_per_block=16):
    """r/w/k/v/a/b: (T, H, N); state: (H, N, N). Returns (out (T,H,N), new_state (H,N,N))."""
    T, H, N = r.shape
    assert chunk % 8 == 0
    C = chunk if T >= chunk else T           # full-extent block when the sequence is short
    HB = _pick_heads_per_block(H, max_heads_per_block)

    # Head-major layout so the kernel's per-head access is a leading-axis view.
    rt, wt, kt, vt, at, bt = (jnp.transpose(x, (1, 0, 2)) for x in (r, w, k, v, a, b))

    vec_spec = pl.BlockSpec((HB, C, N), lambda h, c: (h, c, 0))
    st_spec = pl.BlockSpec((HB, N, N), lambda h, c: (h, 0, 0))

    out_t, new_state = pl.pallas_call(
        functools.partial(_wkv7_chunk_kernel, T),
        grid=(H // HB, pl.cdiv(T, C)),
        in_specs=[vec_spec] * 6 + [st_spec],
        out_specs=(vec_spec, st_spec),
        out_shape=(jax.ShapeDtypeStruct((H, T, N), r.dtype),
                   jax.ShapeDtypeStruct((H, N, N), state.dtype)),
        compiler_params=pltpu.CompilerParams(
            dimension_semantics=("parallel", "arbitrary")),
    )(rt, wt, kt, vt, at, bt, state)

    out = jnp.transpose(out_t, (1, 0, 2))
    return out, new_state


def _wkv7_reference(r, w, k, v, a, b, s0):
    """Pure-JAX per-timestep reference of the same recurrence (for correctness checking)."""
    prec = lax.Precision.HIGHEST

    def step(S, inp):
        rt, wt, kt, vt, at, bt = inp  # each (H, N)
        S = S * wt[:, None, :]
        sa = jnp.einsum('hij,hj->hi', S, at, precision=prec)
        S = S + sa[:, :, None] * bt[:, None, :] + vt[:, :, None] * kt[:, None, :]
        out = jnp.einsum('hij,hj->hi', S, rt, precision=prec)
        return S, out

    s_final, outs = lax.scan(step, s0, (r, w, k, v, a, b))
    return outs, s_final


if __name__ == "__main__":
    # seq_len deliberately not a multiple of the chunk to exercise the in-kernel ragged tail;
    # H=16 -> 2 head blocks of 8 (parallel axis), T=72 -> 3 time chunks of 32.
    T, H, N = 72, 16, 64

    key = jax.random.PRNGKey(0)
    kr, kw, kk, kv, ka, kb, ks = jax.random.split(key, 7)

    r = 0.5 * jax.random.normal(kr, (T, H, N), jnp.float32)
    # decay multiplier in (0, 1); moderate range typical of trained RWKV-7 decays
    w = jnp.exp(-jnp.exp(0.5 * jax.random.normal(kw, (T, H, N), jnp.float32) - 0.5))
    k = 0.5 * jax.random.normal(kk, (T, H, N), jnp.float32)
    v = 0.5 * jax.random.normal(kv, (T, H, N), jnp.float32)
    a = 0.3 * jax.random.normal(ka, (T, H, N), jnp.float32)
    b = 0.3 * jax.random.normal(kb, (T, H, N), jnp.float32)
    state = 0.1 * jax.random.normal(ks, (H, N, N), jnp.float32)

    out, new_state = jax.jit(wkv7)(r, w, k, v, a, b, state)
    jax.block_until_ready((out, new_state))

    ref_out, ref_state = _wkv7_reference(r, w, k, v, a, b, state)

    def max_rel_err(x, y):
        return float(jnp.max(jnp.abs(x - y)) / (jnp.max(jnp.abs(y)) + 1e-6))

    assert max_rel_err(out, ref_out) < 2e-2, "output mismatch vs reference"
    assert max_rel_err(new_state, ref_state) < 2e-2, "state mismatch vs reference"

    print("KERNEL_OK")
</pallas_src>

<mosaic_0001>
module attributes {stable_mosaic.version = 11 : i64} {
  func.func @_wkv7_chunk_kernel(%arg0: i32, %arg1: i32, %arg2: memref<8x32x64xf32, #tpu.memory_space<vmem>>, %arg3: memref<8x32x64xf32, #tpu.memory_space<vmem>>, %arg4: memref<8x32x64xf32, #tpu.memory_space<vmem>>, %arg5: memref<8x32x64xf32, #tpu.memory_space<vmem>>, %arg6: memref<8x32x64xf32, #tpu.memory_space<vmem>>, %arg7: memref<8x32x64xf32, #tpu.memory_space<vmem>>, %arg8: memref<8x64x64xf32, #tpu.memory_space<vmem>>, %arg9: memref<8x32x64xf32, #tpu.memory_space<vmem>>, %arg10: memref<8x64x64xf32, #tpu.memory_space<vmem>>) attributes {dimension_semantics = [#tpu.dimension_semantics<parallel>, #tpu.dimension_semantics<arbitrary>], iteration_bounds = array<i64: 2, 3>, scalar_prefetch = 0 : i64, scratch_operands = 0 : i64, tpu.core_type = #tpu.core_type<tc>, window_params = [{transform_indices = @transform_0, window_bounds = array<i64: 8, 32, 64>}, {transform_indices = @transform_1, window_bounds = array<i64: 8, 32, 64>}, {transform_indices = @transform_2, window_bounds = array<i64: 8, 32, 64>}, {transform_indices = @transform_3, window_bounds = array<i64: 8, 32, 64>}, {transform_indices = @transform_4, window_bounds = array<i64: 8, 32, 64>}, {transform_indices = @transform_5, window_bounds = array<i64: 8, 32, 64>}, {transform_indices = @transform_6, window_bounds = array<i64: 8, 64, 64>}, {transform_indices = @transform_7, window_bounds = array<i64: 8, 32, 64>}, {transform_indices = @transform_8, window_bounds = array<i64: 8, 64, 64>}]} {
    %c0_i32 = arith.constant 0 : i32
    %0 = arith.cmpi eq, %arg1, %c0_i32 : i32
    %1 = arith.extui %0 : i1 to i32
    %c0_i32_0 = arith.constant 0 : i32
    %2 = arith.cmpi ne, %1, %c0_i32_0 : i32
    scf.if %2 {
      %c0 = arith.constant 0 : index
      %c0_3 = arith.constant 0 : index
      %c0_4 = arith.constant 0 : index
      %19 = vector.load %arg8[%c0, %c0_3, %c0_4] : memref<8x64x64xf32, #tpu.memory_space<vmem>>, vector<8x64x64xf32>
      %c0_5 = arith.constant 0 : index
      %c0_6 = arith.constant 0 : index
      %c0_7 = arith.constant 0 : index
      %20 = vector.load %arg10[%c0_5, %c0_6, %c0_7] : memref<8x64x64xf32, #tpu.memory_space<vmem>>, vector<8x64x64xf32>
      tpu.vector_store %arg10[%c0_5, %c0_6, %c0_7], %19 {strides = array<i32>} : memref<8x64x64xf32, #tpu.memory_space<vmem>>, vector<8x64x64xf32>,
    } else {
    }
    %3 = tpu.iota {dimensions = array<i32: 0>} : vector<32x32xi32>
    %4 = tpu.iota {dimensions = array<i32: 1>} : vector<32x32xi32>
    %5 = arith.cmpi sle, %4, %3 : vector<32x32xi32>
    %6 = arith.cmpi slt, %4, %3 : vector<32x32xi32>
    %7 = arith.extui %5 : vector<32x32xi1> to vector<32x32xi32>
    %8 = arith.sitofp %7 : vector<32x32xi32> to vector<32x32xf32>
    %9 = arith.cmpi eq, %4, %3 : vector<32x32xi32>
    %10 = arith.extui %9 : vector<32x32xi1> to vector<32x32xi32>
    %11 = arith.sitofp %10 : vector<32x32xi32> to vector<32x32xf32>
    %12 = tpu.iota {dimensions = array<i32: 0>} : vector<32x1xi32>
    %c32_i32 = arith.constant 32 : i32
    %13 = arith.muli %arg1, %c32_i32 : i32
    %14 = vector.broadcast %13 : i32 to vector<32x1xi32>
    %15 = arith.addi %14, %12 : vector<32x1xi32>
    %c72_i32 = arith.constant 72 : i32
    %16 = vector.broadcast %c72_i32 : i32 to vector<32x1xi32>
    %17 = arith.cmpi slt, %15, %16 : vector<32x1xi32>
    %c0_i32_1 = arith.constant 0 : i32
    %c8_i32 = arith.constant 8 : i32
    %18 = arith.addi %c0_i32_1, %c8_i32 : i32
    %c1_i32 = arith.constant 1 : i32
    scf.for %arg11 = %c0_i32_1 to %18 step %c1_i32  : i32 {
      %19 = arith.index_cast %arg11 : i32 to index
      %c0 = arith.constant 0 : index
      %c0_3 = arith.constant 0 : index
      %20 = vector.load %arg2[%19, %c0, %c0_3] : memref<8x32x64xf32, #tpu.memory_space<vmem>>, vector<1x32x64xf32>
      %21 = vector.shape_cast %20 : vector<1x32x64xf32> to vector<32x64xf32>
      %22 = arith.index_cast %arg11 : i32 to index
      %c0_4 = arith.constant 0 : index
      %c0_5 = arith.constant 0 : index
      %23 = vector.load %arg3[%22, %c0_4, %c0_5] : memref<8x32x64xf32, #tpu.memory_space<vmem>>, vector<1x32x64xf32>
      %24 = vector.shape_cast %23 : vector<1x32x64xf32> to vector<32x64xf32>
      %25 = arith.index_cast %arg11 : i32 to index
      %c0_6 = arith.constant 0 : index
      %c0_7 = arith.constant 0 : index
      %26 = vector.load %arg4[%25, %c0_6, %c0_7] : memref<8x32x64xf32, #tpu.memory_space<vmem>>, vector<1x32x64xf32>
      %27 = vector.shape_cast %26 : vector<1x32x64xf32> to vector<32x64xf32>
      %28 = arith.index_cast %arg11 : i32 to index
      %c0_8 = arith.constant 0 : index
      %c0_9 = arith.constant 0 : index
      %29 = vector.load %arg5[%28, %c0_8, %c0_9] : memref<8x32x64xf32, #tpu.memory_space<vmem>>, vector<1x32x64xf32>
      %30 = vector.shape_cast %29 : vector<1x32x64xf32> to vector<32x64xf32>
      %31 = arith.index_cast %arg11 : i32 to index
      %c0_10 = arith.constant 0 : index
      %c0_11 = arith.constant 0 : index
      %32 = vector.load %arg6[%31, %c0_10, %c0_11] : memref<8x32x64xf32, #tpu.memory_space<vmem>>, vector<1x32x64xf32>
      %33 = vector.shape_cast %32 : vector<1x32x64xf32> to vector<32x64xf32>
      %34 = arith.index_cast %arg11 : i32 to index
      %c0_12 = arith.constant 0 : index
      %c0_13 = arith.constant 0 : index
      %35 = vector.load %arg7[%34, %c0_12, %c0_13] : memref<8x32x64xf32, #tpu.memory_space<vmem>>, vector<1x32x64xf32>
      %36 = vector.shape_cast %35 : vector<1x32x64xf32> to vector<32x64xf32>
      %cst = arith.constant 1.000000e+00 : f32
      %37 = vector.shape_cast %17 : vector<32x1xi1> to vector<32x1xi1>
      %38 = vector.broadcast %37 : vector<32x1xi1> to vector<32x64xi1>
      %39 = vector.broadcast %cst : f32 to vector<32x64xf32>
      %40 = arith.select %38, %24, %39 : vector<32x64xi1>, vector<32x64xf32>
      %cst_14 = arith.constant 0.000000e+00 : f32
      %41 = vector.shape_cast %17 : vector<32x1xi1> to vector<32x1xi1>
      %42 = vector.broadcast %41 : vector<32x1xi1> to vector<32x64xi1>
      %43 = vector.broadcast %cst_14 : f32 to vector<32x64xf32>
      %44 = arith.select %42, %21, %43 : vector<32x64xi1>, vector<32x64xf32>
      %cst_15 = arith.constant 0.000000e+00 : f32
      %45 = vector.shape_cast %17 : vector<32x1xi1> to vector<32x1xi1>
      %46 = vector.broadcast %45 : vector<32x1xi1> to vector<32x64xi1>
      %47 = vector.broadcast %cst_15 : f32 to vector<32x64xf32>
      %48 = arith.select %46, %27, %47 : vector<32x64xi1>, vector<32x64xf32>
      %cst_16 = arith.constant 0.000000e+00 : f32
      %49 = vector.shape_cast %17 : vector<32x1xi1> to vector<32x1xi1>
      %50 = vector.broadcast %49 : vector<32x1xi1> to vector<32x64xi1>
      %51 = vector.broadcast %cst_16 : f32 to vector<32x64xf32>
      %52 = arith.select %50, %30, %51 : vector<32x64xi1>, vector<32x64xf32>
      %cst_17 = arith.constant 0.000000e+00 : f32
      %53 = vector.shape_cast %17 : vector<32x1xi1> to vector<32x1xi1>
      %54 = vector.broadcast %53 : vector<32x1xi1> to vector<32x64xi1>
      %55 = vector.broadcast %cst_17 : f32 to vector<32x64xf32>
      %56 = arith.select %54, %33, %55 : vector<32x64xi1>, vector<32x64xf32>
      %cst_18 = arith.constant 0.000000e+00 : f32
      %57 = vector.shape_cast %17 : vector<32x1xi1> to vector<32x1xi1>
      %58 = vector.broadcast %57 : vector<32x1xi1> to vector<32x64xi1>
      %59 = vector.broadcast %cst_18 : f32 to vector<32x64xf32>
      %60 = arith.select %58, %36, %59 : vector<32x64xi1>, vector<32x64xf32>
      %61 = arith.index_cast %arg11 : i32 to index
      %c0_19 = arith.constant 0 : index
      %c0_20 = arith.constant 0 : index
      %62 = vector.load %arg10[%61, %c0_19, %c0_20] : memref<8x64x64xf32, #tpu.memory_space<vmem>>, vector<1x64x64xf32>
      %63 = vector.shape_cast %62 : vector<1x64x64xf32> to vector<64x64xf32>
      %64 = math.log %40 : vector<32x64xf32>
      %cst_21 = arith.constant dense<0.000000e+00> : vector<32x64xf32>
      %65 = tpu.matmul %8, %64, %cst_21 {dimension_numbers = #tpu.dot_dimension_numbers<[1], [0], [0], [1], [0, 0, 1, 1], [], []>, precision = #tpu.contract_precision<fp32>} : vector<32x32xf32>, vector<32x64xf32>, vector<32x64xf32> -> vector<32x64xf32>
      %cst_22 = arith.constant -7.000000e+01 : f32
      %66 = vector.broadcast %cst_22 : f32 to vector<32x64xf32>
      %67 = arith.maximumf %65, %66 : vector<32x64xf32>
      %68 = math.exp %67 : vector<32x64xf32>
      %cst_23 = arith.constant 0.000000e+00 : f32
      %69 = vector.broadcast %cst_23 : f32 to vector<32x64xf32>
      %70 = arith.subf %69, %67 : vector<32x64xf32>
      %71 = math.exp %70 : vector<32x64xf32>
      %72 = arith.mulf %56, %68 : vector<32x64xf32>
      %73 = arith.mulf %60, %71 : vector<32x64xf32>
      %74 = arith.mulf %48, %71 : vector<32x64xf32>
      %75 = arith.mulf %44, %68 : vector<32x64xf32>
      %76 = arith.truncf %72 : vector<32x64xf32> to vector<32x64xbf16>
      %77 = arith.truncf %73 : vector<32x64xf32> to vector<32x64xbf16>
      %cst_24 = arith.constant dense<0.000000e+00> : vector<32x32xf32>
      %78 = tpu.matmul %76, %77, %cst_24 {dimension_numbers = #tpu.dot_dimension_numbers<[1], [1], [0], [0], [0, 0, 1, 0], [], []>} : vector<32x64xbf16>, vector<32x64xbf16>, vector<32x32xf32> -> vector<32x32xf32>
      %cst_25 = arith.constant 0.000000e+00 : f32
      %79 = vector.broadcast %cst_25 : f32 to vector<32x32xf32>
      %80 = arith.select %6, %78, %79 : vector<32x32xi1>, vector<32x32xf32>
      %81 = arith.truncf %72 : vector<32x64xf32> to vector<32x64xbf16>
      %82 = arith.truncf %74 : vector<32x64xf32> to vector<32x64xbf16>
      %cst_26 = arith.constant dense<0.000000e+00> : vector<32x32xf32>
      %83 = tpu.matmul %81, %82, %cst_26 {dimension_numbers = #tpu.dot_dimension_numbers<[1], [1], [0], [0], [0, 0, 1, 0], [], []>} : vector<32x64xbf16>, vector<32x64xbf16>, vector<32x32xf32> -> vector<32x32xf32>
      %cst_27 = arith.constant 0.000000e+00 : f32
      %84 = vector.broadcast %cst_27 : f32 to vector<32x32xf32>
      %85 = arith.select %6, %83, %84 : vector<32x32xi1>, vector<32x32xf32>
      %86 = arith.truncf %75 : vector<32x64xf32> to vector<32x64xbf16>
      %87 = arith.truncf %73 : vector<32x64xf32> to vector<32x64xbf16>
      %cst_28 = arith.constant dense<0.000000e+00> : vector<32x32xf32>
      %88 = tpu.matmul %86, %87, %cst_28 {dimension_numbers = #tpu.dot_dimension_numbers<[1], [1], [0], [0], [0, 0, 1, 0], [], []>} : vector<32x64xbf16>, vector<32x64xbf16>, vector<32x32xf32> -> vector<32x32xf32>
      %cst_29 = arith.constant 0.000000e+00 : f32
      %89 = vector.broadcast %cst_29 : f32 to vector<32x32xf32>
      %90 = arith.select %5, %88, %89 : vector<32x32xi1>, vector<32x32xf32>
      %91 = arith.truncf %75 : vector<32x64xf32> to vector<32x64xbf16>
      %92 = arith.truncf %74 : vector<32x64xf32> to vector<32x64xbf16>
      %cst_30 = arith.constant dense<0.000000e+00> : vector<32x32xf32>
      %93 = tpu.matmul %91, %92, %cst_30 {dimension_numbers = #tpu.dot_dimension_numbers<[1], [1], [0], [0], [0, 0, 1, 0], [], []>} : vector<32x64xbf16>, vector<32x64xbf16>, vector<32x32xf32> -> vector<32x32xf32>
      %cst_31 = arith.constant 0.000000e+00 : f32
      %94 = vector.broadcast %cst_31 : f32 to vector<32x32xf32>
      %95 = arith.select %5, %93, %94 : vector<32x32xi1>, vector<32x32xf32>
      %96 = arith.addf %11, %80 : vector<32x32xf32>
      %cst_32 = arith.constant dense<0.000000e+00> : vector<32x32xf32>
      %97 = tpu.matmul %80, %80, %cst_32 {dimension_numbers = #tpu.dot_dimension_numbers<[1], [0], [0], [1], [0, 0, 1, 1], [], []>, precision = #tpu.contract_precision<fp32>} : vector<32x32xf32>, vector<32x32xf32>, vector<32x32xf32> -> vector<32x32xf32>
      %98 = arith.addf %11, %97 : vector<32x32xf32>
      %cst_33 = arith.constant dense<0.000000e+00> : vector<32x32xf32>
      %99 = tpu.matmul %96, %98, %cst_33 {dimension_numbers = #tpu.dot_dimension_numbers<[1], [0], [0], [1], [0, 0, 1, 1], [], []>, precision = #tpu.contract_precision<fp32>} : vector<32x32xf32>, vector<32x32xf32>, vector<32x32xf32> -> vector<32x32xf32>
      %cst_34 = arith.constant dense<0.000000e+00> : vector<32x32xf32>
      %100 = tpu.matmul %97, %97, %cst_34 {dimension_numbers = #tpu.dot_dimension_numbers<[1], [0], [0], [1], [0, 0, 1, 1], [], []>, precision = #tpu.contract_precision<fp32>} : vector<32x32xf32>, vector<32x32xf32>, vector<32x32xf32> -> vector<32x32xf32>
      %101 = arith.addf %11, %100 : vector<32x32xf32>
      %cst_35 = arith.constant dense<0.000000e+00> : vector<32x32xf32>
      %102 = tpu.matmul %99, %101, %cst_35 {dimension_numbers = #tpu.dot_dimension_numbers<[1], [0], [0], [1], [0, 0, 1, 1], [], []>, precision = #tpu.contract_precision<fp32>} : vector<32x32xf32>, vector<32x32xf32>, vector<32x32xf32> -> vector<32x32xf32>
      %cst_36 = arith.constant dense<0.000000e+00> : vector<32x32xf32>
      %103 = tpu.matmul %100, %100, %cst_36 {dimension_numbers = #tpu.dot_dimension_numbers<[1], [0], [0], [1], [0, 0, 1, 1], [], []>, precision = #tpu.contract_precision<fp32>} : vector<32x32xf32>, vector<32x32xf32>, vector<32x32xf32> -> vector<32x32xf32>
      %104 = arith.addf %11, %103 : vector<32x32xf32>
      %cst_37 = arith.constant dense<0.000000e+00> : vector<32x32xf32>
      %105 = tpu.matmul %102, %104, %cst_37 {dimension_numbers = #tpu.dot_dimension_numbers<[1], [0], [0], [1], [0, 0, 1, 1], [], []>, precision = #tpu.contract_precision<fp32>} : vector<32x32xf32>, vector<32x32xf32>, vector<32x32xf32> -> vector<32x32xf32>
      %cst_38 = arith.constant dense<0.000000e+00> : vector<32x32xf32>
      %106 = tpu.matmul %103, %103, %cst_38 {dimension_numbers = #tpu.dot_dimension_numbers<[1], [0], [0], [1], [0, 0, 1, 1], [], []>, precision = #tpu.contract_precision<fp32>} : vector<32x32xf32>, vector<32x32xf32>, vector<32x32xf32> -> vector<32x32xf32>
      %107 = arith.addf %11, %106 : vector<32x32xf32>
      %cst_39 = arith.constant dense<0.000000e+00> : vector<32x32xf32>
      %108 = tpu.matmul %105, %107, %cst_39 {dimension_numbers = #tpu.dot_dimension_numbers<[1], [0], [0], [1], [0, 0, 1, 1], [], []>, precision = #tpu.contract_precision<fp32>} : vector<32x32xf32>, vector<32x32xf32>, vector<32x32xf32> -> vector<32x32xf32>
      %109 = arith.truncf %85 : vector<32x32xf32> to vector<32x32xbf16>
      %110 = arith.truncf %52 : vector<32x64xf32> to vector<32x64xbf16>
      %cst_40 = arith.constant dense<0.000000e+00> : vector<32x64xf32>
      %111 = tpu.matmul %109, %110, %cst_40 {dimension_numbers = #tpu.dot_dimension_numbers<[1], [0], [0], [1], [0, 0, 1, 1], [], []>} : vector<32x32xbf16>, vector<32x64xbf16>, vector<32x64xf32> -> vector<32x64xf32>
      %112 = arith.truncf %72 : vector<32x64xf32> to vector<32x64xbf16>
      %113 = arith.truncf %63 : vector<64x64xf32> to vector<64x64xbf16>
      %cst_41 = arith.constant dense<0.000000e+00> : vector<32x64xf32>
      %114 = tpu.matmul %112, %113, %cst_41 {dimension_numbers = #tpu.dot_dimension_numbers<[1], [1], [0], [0], [0, 0, 1, 0], [], []>} : vector<32x64xbf16>, vector<64x64xbf16>, vector<32x64xf32> -> vector<32x64xf32>
      %115 = arith.addf %111, %114 : vector<32x64xf32>
      %116 = arith.truncf %108 : vector<32x32xf32> to vector<32x32xbf16>
      %117 = arith.truncf %115 : vector<32x64xf32> to vector<32x64xbf16>
      %cst_42 = arith.constant dense<0.000000e+00> : vector<32x64xf32>
      %118 = tpu.matmul %116, %117, %cst_42 {dimension_numbers = #tpu.dot_dimension_numbers<[1], [0], [0], [1], [0, 0, 1, 1], [], []>} : vector<32x32xbf16>, vector<32x64xbf16>, vector<32x64xf32> -> vector<32x64xf32>
      %119 = arith.truncf %75 : vector<32x64xf32> to vector<32x64xbf16>
      %120 = arith.truncf %63 : vector<64x64xf32> to vector<64x64xbf16>
      %cst_43 = arith.constant dense<0.000000e+00> : vector<32x64xf32>
      %121 = tpu.matmul %119, %120, %cst_43 {dimension_numbers = #tpu.dot_dimension_numbers<[1], [1], [0], [0], [0, 0, 1, 0], [], []>} : vector<32x64xbf16>, vector<64x64xbf16>, vector<32x64xf32> -> vector<32x64xf32>
      %122 = arith.truncf %90 : vector<32x32xf32> to vector<32x32xbf16>
      %123 = arith.truncf %118 : vector<32x64xf32> to vector<32x64xbf16>
      %cst_44 = arith.constant dense<0.000000e+00> : vector<32x64xf32>
      %124 = tpu.matmul %122, %123, %cst_44 {dimension_numbers = #tpu.dot_dimension_numbers<[1], [0], [0], [1], [0, 0, 1, 1], [], []>} : vector<32x32xbf16>, vector<32x64xbf16>, vector<32x64xf32> -> vector<32x64xf32>
      %125 = arith.addf %121, %124 : vector<32x64xf32>
      %126 = arith.truncf %95 : vector<32x32xf32> to vector<32x32xbf16>
      %127 = arith.truncf %52 : vector<32x64xf32> to vector<32x64xbf16>
      %cst_45 = arith.constant dense<0.000000e+00> : vector<32x64xf32>
      %128 = tpu.matmul %126, %127, %cst_45 {dimension_numbers = #tpu.dot_dimension_numbers<[1], [0], [0], [1], [0, 0, 1, 1], [], []>} : vector<32x32xbf16>, vector<32x64xbf16>, vector<32x64xf32> -> vector<32x64xf32>
      %129 = arith.addf %125, %128 : vector<32x64xf32>
      %130 = arith.index_cast %arg11 : i32 to index
      %c0_46 = arith.constant 0 : index
      %c0_47 = arith.constant 0 : index
      %131 = vector.load %arg9[%130, %c0_46, %c0_47] : memref<8x32x64xf32, #tpu.memory_space<vmem>>, vector<1x32x64xf32>
      %132 = vector.shape_cast %131 : vector<1x32x64xf32> to vector<32x64xf32>
      %133 = vector.shape_cast %129 : vector<32x64xf32> to vector<1x32x64xf32>
      tpu.vector_store %arg9[%130, %c0_46, %c0_47], %133 {strides = array<i32>} : memref<8x32x64xf32, #tpu.memory_space<vmem>>, vector<1x32x64xf32>,
      %134 = vector.extract_strided_slice %68 {offsets = [31, 0], sizes = [1, 64], strides = [1, 1]} : vector<32x64xf32> to vector<1x64xf32>
      %135 = arith.truncf %118 : vector<32x64xf32> to vector<32x64xbf16>
      %136 = arith.truncf %73 : vector<32x64xf32> to vector<32x64xbf16>
      %cst_48 = arith.constant dense<0.000000e+00> : vector<64x64xf32>
      %137 = tpu.matmul %135, %136, %cst_48 {dimension_numbers = #tpu.dot_dimension_numbers<[0], [0], [1], [1], [0, 1, 1, 1], [], []>} : vector<32x64xbf16>, vector<32x64xbf16>, vector<64x64xf32> -> vector<64x64xf32>
      %138 = arith.addf %63, %137 : vector<64x64xf32>
      %139 = arith.truncf %52 : vector<32x64xf32> to vector<32x64xbf16>
      %140 = arith.truncf %74 : vector<32x64xf32> to vector<32x64xbf16>
      %cst_49 = arith.constant dense<0.000000e+00> : vector<64x64xf32>
      %141 = tpu.matmul %139, %140, %cst_49 {dimension_numbers = #tpu.dot_dimension_numbers<[0], [0], [1], [1], [0, 1, 1, 1], [], []>} : vector<32x64xbf16>, vector<32x64xbf16>, vector<64x64xf32> -> vector<64x64xf32>
      %142 = arith.addf %138, %141 : vector<64x64xf32>
      %143 = vector.broadcast %134 : vector<1x64xf32> to vector<64x64xf32>
      %144 = arith.mulf %142, %143 : vector<64x64xf32>
      %145 = arith.index_cast %arg11 : i32 to index
      %c0_50 = arith.constant 0 : index
      %c0_51 = arith.constant 0 : index
      %146 = vector.load %arg10[%145, %c0_50, %c0_51] : memref<8x64x64xf32, #tpu.memory_space<vmem>>, vector<1x64x64xf32>
      %147 = vector.shape_cast %146 : vector<1x64x64xf32> to vector<64x64xf32>
      %148 = vector.shape_cast %144 : vector<64x64xf32> to vector<1x64x64xf32>
      tpu.vector_store %arg10[%145, %c0_50, %c0_51], %148 {strides = array<i32>} : memref<8x64x64xf32, #tpu.memory_space<vmem>>, vector<1x64x64xf32>,
    }
    %c8_i32_2 = arith.constant 8 : i32
    return
  }
  func.func @transform_0(%arg0: i32, %arg1: i32) -> (i32, i32, i32) {
    %c0_i32 = arith.constant 0 : i32
    %c0_i32_0 = arith.constant 0 : i32
    return %arg0, %arg1, %c0_i32 : i32, i32, i32
  }
  func.func @transform_1(%arg0: i32, %arg1: i32) -> (i32, i32, i32) {
    %c0_i32 = arith.constant 0 : i32
    %c0_i32_0 = arith.constant 0 : i32
    return %arg0, %arg1, %c0_i32 : i32, i32, i32
  }
  func.func @transform_2(%arg0: i32, %arg1: i32) -> (i32, i32, i32) {
    %c0_i32 = arith.constant 0 : i32
    %c0_i32_0 = arith.constant 0 : i32
    return %arg0, %arg1, %c0_i32 : i32, i32, i32
  }
  func.func @transform_3(%arg0: i32, %arg1: i32) -> (i32, i32, i32) {
    %c0_i32 = arith.constant 0 : i32
    %c0_i32_0 = arith.constant 0 : i32
    return %arg0, %arg1, %c0_i32 : i32, i32, i32
  }
  func.func @transform_4(%arg0: i32, %arg1: i32) -> (i32, i32, i32) {
    %c0_i32 = arith.constant 0 : i32
    %c0_i32_0 = arith.constant 0 : i32
    return %arg0, %arg1, %c0_i32 : i32, i32, i32
  }
  func.func @transform_5(%arg0: i32, %arg1: i32) -> (i32, i32, i32) {
    %c0_i32 = arith.constant 0 : i32
    %c0_i32_0 = arith.constant 0 : i32
    return %arg0, %arg1, %c0_i32 : i32, i32, i32
  }
  func.func @transform_6(%arg0: i32, %arg1: i32) -> (i32, i32, i32) {
    %c0_i32 = arith.constant 0 : i32
    %c0_i32_0 = arith.constant 0 : i32
    %c0_i32_1 = arith.constant 0 : i32
    return %arg0, %c0_i32, %c0_i32_0 : i32, i32, i32
  }
  func.func @transform_7(%arg0: i32, %arg1: i32) -> (i32, i32, i32) {
    %c0_i32 = arith.constant 0 : i32
    %c0_i32_0 = arith.constant 0 : i32
    return %arg0, %arg1, %c0_i32 : i32, i32, i32
  }
  func.func @transform_8(%arg0: i32, %arg1: i32) -> (i32, i32, i32) {
    %c0_i32 = arith.constant 0 : i32
    %c0_i32_0 = arith.constant 0 : i32
    %c0_i32_1 = arith.constant 0 : i32
    return %arg0, %c0_i32, %c0_i32_0 : i32, i32, i32
  }
}

</mosaic_0001>

<llo_original>
// kernel: wkv7.1
$region0: #{wkv7.1}
  #allocation0 [shape = 'u32[]', space=smem, size = 0x4, offset = 0x4, fixed_abs, tag = 'smem constant byte address 0x4 - core index']
  #allocation1 [shape = 'u32[144,128]{1,0:T(1,128)}', space=vmem, size = 0x12000, scoped, tag = 'internal scratch']
  %s0 = inlined_call_operand.vmem [shape: f32[16,72,64], index: 0, kind: input, shape index: {}]
  %s1 = inlined_call_operand.vmem [shape: f32[16,72,64], index: 1, kind: input, shape index: {}]
  %s2 = inlined_call_operand.vmem [shape: f32[16,72,64], index: 2, kind: input, shape index: {}]
  %s3 = inlined_call_operand.vmem [shape: f32[16,72,64], index: 3, kind: input, shape index: {}]
  %s4 = inlined_call_operand.vmem [shape: f32[16,72,64], index: 4, kind: input, shape index: {}]
  %s5 = inlined_call_operand.vmem [shape: f32[16,72,64], index: 5, kind: input, shape index: {}]
  %s6 = inlined_call_operand.vmem [shape: f32[16,64,64], index: 6, kind: input, shape index: {}]
  %s7 = inlined_call_operand.vmem [shape: f32[16,72,64], index: 7, kind: output, shape index: {0}]
  %s8 = inlined_call_operand.hbm [shape: f32[16,64,64], index: 8, kind: output, shape index: {1}]
  %9 = xla_tuple %s7, %s8
  %s10 = sld [smem:[#allocation0]]
  $region440: #{wkv7.1} parent=0
    _
  %s12 = ssub.s32 1, %s10
  %s13 = scalar_select 0, %s12, %s10
  $region1: #{wkv7.1} parent=0
    #allocation2 [shape = 'u8[262144]{0}', space=vmem, size = 0x40000, scoped, tag = 'input window, operand 0']
    #allocation3 [shape = 'u8[262144]{0}', space=vmem, size = 0x40000, scoped, tag = 'input window, operand 1']
    #allocation4 [shape = 'u8[262144]{0}', space=vmem, size = 0x40000, scoped, tag = 'input window, operand 2']
    #allocation5 [shape = 'u8[262144]{0}', space=vmem, size = 0x40000, scoped, tag = 'input window, operand 3']
    #allocation6 [shape = 'u8[262144]{0}', space=vmem, size = 0x40000, scoped, tag = 'input window, operand 4']
    #allocation7 [shape = 'u8[262144]{0}', space=vmem, size = 0x40000, scoped, tag = 'input window, operand 5']
    #allocation8 [shape = 'u8[262144]{0}', space=vmem, size = 0x40000, scoped, tag = 'output window, operand 0']
    #allocation9 [shape = 'u8[524288]{0}', space=vmem, size = 0x80000, scoped, tag = 'output window, operand 1']
    #allocation10 [shape = 's32[2]{0}', space=sflag, size = 0x8, scoped, tag = 'scoped memory for wkv7.1']
    %14 = vsyncpa [#allocation10], 0
    %s15 = scalar_lea.sflag [#allocation10], 1
    %16 = vsyncpa %s15, 0
    loop: start=0, step=1, limit=8
    $region2: #{wkv7.1} parent=1 // loop_pre_header
      _
    $region3: #{wkv7.1} parent=1 // loop_header
      %s18 = sphi 0, %s22
      %p19 = scmp.ge.s32.totalorder %s18, 8
      %s25 = sphi 0, %s37
      %s26 = sphi 0, %s33
      %s27 = sphi 0, %s25
      %s28 = sphi 0, %s26
      %s29 = sphi 0, %s27
      %s30 = sphi 0, %s28
      %s42 = sphi 0, %s44
      %s45 = sphi 0, %s42
      %s46 = sphi 0, %s45
      %s62 = sphi 0, %s46
      %s70 = sphi 0, %s72
      %s73 = sphi 0, %s70
      %s74 = sphi 0, %s73
      %s90 = sphi 0, %s74
      %s98 = sphi 0, %s100
      %s101 = sphi 0, %s98
      %s102 = sphi 0, %s101
      %s118 = sphi 0, %s102
      %s126 = sphi 0, %s128
      %s129 = sphi 0, %s126
      %s130 = sphi 0, %s129
      %s146 = sphi 0, %s130
      %s154 = sphi 0, %s156
      %s157 = sphi 0, %s154
      %s158 = sphi 0, %s157
      %s174 = sphi 0, %s158
      %s182 = sphi 0, %s184
      %s185 = sphi 0, %s182
      %s186 = sphi 0, %s185
      %s202 = sphi 0, %s186
      %s208 = sphi 0, %s210
      %s211 = sphi 0, %s208
      %s212 = sphi 0, %s211
      %s228 = sphi 0, %s212
      %s236 = sphi 0, %s238
      %s239 = sphi 0, %s236
      %s240 = sphi 0, %s239
      %s256 = sphi 0, %s240
      %s262 = sphi 0, %s264
      %s265 = sphi 0, %s262
      %s266 = sphi 0, %s265
      %s282 = sphi 0, %s266
    $region4: #{wkv7.1} parent=1 // loop_header_branch
      %21 = sbr.rel (%p19) target = $region8
    $region5: #{wkv7.1} parent=1 // loop_body
      %s23 = ssub.s32 %s18, 1
      %s24 = ssub.s32 %s18, 2
      %s31 = sadd.s32 1, %s26
      %p32 = scmp.ge.s32.totalorder %s31, 3
      %s33 = scalar_select %p32, 0, %s31
      %s34 = sadd.s32 1, %s25
      %s35 = scalar_select %p32, %s34, %s25
      %p36 = scmp.ge.s32.totalorder %s35, 2
      %s37 = scalar_select %p36, 0, %s35
      %s38 = ssub.s32 %s25, %s37
      %s39 = ssub.s32 %s26, %s33
      %s40 = sor.u32 %s38, %s39
      %p41 = scmp.eq.s32.totalorder %s40, 0
      %s43 = sadd.s32 %s42, 1
      %s44 = scalar_select %p41, %s42, %s43
      %p47 = pneg %p41
      %p48 = scmp.eq.s32.totalorder %s18, 5
      %p49 = por %p47, %p48
      %p50 = scmp.ne.s32.totalorder %s42, %s45
      %p51 = scmp.eq.s32.totalorder %s18, 0
      %p52 = por %p50, %p51
      %p53 = scmp.ne.s32.totalorder %s42, %s45
      %p54 = scmp.eq.s32.totalorder %s23, 5
      %p55 = por %p53, %p54
      %p56 = scmp.ne.s32.totalorder %s45, %s46
      %p57 = scmp.eq.s32.totalorder %s23, 0
      %p58 = por %p56, %p57
      %p59 = scmp.ne.s32.totalorder %s45, %s46
      %p60 = scmp.eq.s32.totalorder %s24, 5
      %p61 = por %p59, %p60
      %p63 = scmp.ne.s32.totalorder %s46, %s62
      %p64 = scmp.eq.s32.totalorder %s24, 0
      %p65 = por %p63, %p64
      %s66 = ssub.s32 %s25, %s37
      %s67 = ssub.s32 %s26, %s33
      %s68 = sor.u32 %s66, %s67
      %p69 = scmp.eq.s32.totalorder %s68, 0
      %s71 = sadd.s32 %s70, 1
      %s72 = scalar_select %p69, %s70, %s71
      %p75 = pneg %p69
      %p76 = scmp.eq.s32.totalorder %s18, 5
      %p77 = por %p75, %p76
      %p78 = scmp.ne.s32.totalorder %s70, %s73
      %p79 = scmp.eq.s32.totalorder %s18, 0
      %p80 = por %p78, %p79
      %p81 = scmp.ne.s32.totalorder %s70, %s73
      %p82 = scmp.eq.s32.totalorder %s23, 5
      %p83 = por %p81, %p82
      %p84 = scmp.ne.s32.totalorder %s73, %s74
      %p85 = scmp.eq.s32.totalorder %s23, 0
      %p86 = por %p84, %p85
      %p87 = scmp.ne.s32.totalorder %s73, %s74
      %p88 = scmp.eq.s32.totalorder %s24, 5
      %p89 = por %p87, %p88
      %p91 = scmp.ne.s32.totalorder %s74, %s90
      %p92 = scmp.eq.s32.totalorder %s24, 0
      %p93 = por %p91, %p92
      %s94 = ssub.s32 %s25, %s37
      %s95 = ssub.s32 %s26, %s33
      %s96 = sor.u32 %s94, %s95
      %p97 = scmp.eq.s32.totalorder %s96, 0
      %s99 = sadd.s32 %s98, 1
      %s100 = scalar_select %p97, %s98, %s99
      %p103 = pneg %p97
      %p104 = scmp.eq.s32.totalorder %s18, 5
      %p105 = por %p103, %p104
      %p106 = scmp.ne.s32.totalorder %s98, %s101
      %p107 = scmp.eq.s32.totalorder %s18, 0
      %p108 = por %p106, %p107
      %p109 = scmp.ne.s32.totalorder %s98, %s101
      %p110 = scmp.eq.s32.totalorder %s23, 5
      %p111 = por %p109, %p110
      %p112 = scmp.ne.s32.totalorder %s101, %s102
      %p113 = scmp.eq.s32.totalorder %s23, 0
      %p114 = por %p112, %p113
      %p115 = scmp.ne.s32.totalorder %s101, %s102
      %p116 = scmp.eq.s32.totalorder %s24, 5
      %p117 = por %p115, %p116
      %p119 = scmp.ne.s32.totalorder %s102, %s118
      %p120 = scmp.eq.s32.totalorder %s24, 0
      %p121 = por %p119, %p120
      %s122 = ssub.s32 %s25, %s37
      %s123 = ssub.s32 %s26, %s33
      %s124 = sor.u32 %s122, %s123
      %p125 = scmp.eq.s32.totalorder %s124, 0
      %s127 = sadd.s32 %s126, 1
      %s128 = scalar_select %p125, %s126, %s127
      %p131 = pneg %p125
      %p132 = scmp.eq.s32.totalorder %s18, 5
      %p133 = por %p131, %p132
      %p134 = scmp.ne.s32.totalorder %s126, %s129
      %p135 = scmp.eq.s32.totalorder %s18, 0
      %p136 = por %p134, %p135
      %p137 = scmp.ne.s32.totalorder %s126, %s129
      %p138 = scmp.eq.s32.totalorder %s23, 5
      %p139 = por %p137, %p138
      %p140 = scmp.ne.s32.totalorder %s129, %s130
      %p141 = scmp.eq.s32.totalorder %s23, 0
      %p142 = por %p140, %p141
      %p143 = scmp.ne.s32.totalorder %s129, %s130
      %p144 = scmp.eq.s32.totalorder %s24, 5
      %p145 = por %p143, %p144
      %p147 = scmp.ne.s32.totalorder %s130, %s146
      %p148 = scmp.eq.s32.totalorder %s24, 0
      %p149 = por %p147, %p148
      %s150 = ssub.s32 %s25, %s37
      %s151 = ssub.s32 %s26, %s33
      %s152 = sor.u32 %s150, %s151
      %p153 = scmp.eq.s32.totalorder %s152, 0
      %s155 = sadd.s32 %s154, 1
      %s156 = scalar_select %p153, %s154, %s155
      %p159 = pneg %p153
      %p160 = scmp.eq.s32.totalorder %s18, 5
      %p161 = por %p159, %p160
      %p162 = scmp.ne.s32.totalorder %s154, %s157
      %p163 = scmp.eq.s32.totalorder %s18, 0
      %p164 = por %p162, %p163
      %p165 = scmp.ne.s32.totalorder %s154, %s157
      %p166 = scmp.eq.s32.totalorder %s23, 5
      %p167 = por %p165, %p166
      %p168 = scmp.ne.s32.totalorder %s157, %s158
      %p169 = scmp.eq.s32.totalorder %s23, 0
      %p170 = por %p168, %p169
      %p171 = scmp.ne.s32.totalorder %s157, %s158
      %p172 = scmp.eq.s32.totalorder %s24, 5
      %p173 = por %p171, %p172
      %p175 = scmp.ne.s32.totalorder %s158, %s174
      %p176 = scmp.eq.s32.totalorder %s24, 0
      %p177 = por %p175, %p176
      %s178 = ssub.s32 %s25, %s37
      %s179 = ssub.s32 %s26, %s33
      %s180 = sor.u32 %s178, %s179
      %p181 = scmp.eq.s32.totalorder %s180, 0
      %s183 = sadd.s32 %s182, 1
      %s184 = scalar_select %p181, %s182, %s183
      %p187 = pneg %p181
      %p188 = scmp.eq.s32.totalorder %s18, 5
      %p189 = por %p187, %p188
      %p190 = scmp.ne.s32.totalorder %s182, %s185
      %p191 = scmp.eq.s32.totalorder %s18, 0
      %p192 = por %p190, %p191
      %p193 = scmp.ne.s32.totalorder %s182, %s185
      %p194 = scmp.eq.s32.totalorder %s23, 5
      %p195 = por %p193, %p194
      %p196 = scmp.ne.s32.totalorder %s185, %s186
      %p197 = scmp.eq.s32.totalorder %s23, 0
      %p198 = por %p196, %p197
      %p199 = scmp.ne.s32.totalorder %s185, %s186
      %p200 = scmp.eq.s32.totalorder %s24, 5
      %p201 = por %p199, %p200
      %p203 = scmp.ne.s32.totalorder %s186, %s202
      %p204 = scmp.eq.s32.totalorder %s24, 0
      %p205 = por %p203, %p204
      %s206 = ssub.s32 %s25, %s37
      %p207 = scmp.eq.s32.totalorder %s206, 0
      %s209 = sadd.s32 %s208, 1
      %s210 = scalar_select %p207, %s208, %s209
      %p213 = pneg %p207
      %p214 = scmp.eq.s32.totalorder %s18, 5
      %p215 = por %p213, %p214
      %p216 = scmp.ne.s32.totalorder %s208, %s211
      %p217 = scmp.eq.s32.totalorder %s18, 0
      %p218 = por %p216, %p217
      %p219 = scmp.ne.s32.totalorder %s208, %s211
      %p220 = scmp.eq.s32.totalorder %s23, 5
      %p221 = por %p219, %p220
      %p222 = scmp.ne.s32.totalorder %s211, %s212
      %p223 = scmp.eq.s32.totalorder %s23, 0
      %p224 = por %p222, %p223
      %p225 = scmp.ne.s32.totalorder %s211, %s212
      %p226 = scmp.eq.s32.totalorder %s24, 5
      %p227 = por %p225, %p226
      %p229 = scmp.ne.s32.totalorder %s212, %s228
      %p230 = scmp.eq.s32.totalorder %s24, 0
      %p231 = por %p229, %p230
      %s232 = ssub.s32 %s25, %s37
      %s233 = ssub.s32 %s26, %s33
      %s234 = sor.u32 %s232, %s233
      %p235 = scmp.eq.s32.totalorder %s234, 0
      %s237 = sadd.s32 %s236, 1
      %s238 = scalar_select %p235, %s236, %s237
      %p241 = pneg %p235
      %p242 = scmp.eq.s32.totalorder %s18, 5
      %p243 = por %p241, %p242
      %p244 = scmp.ne.s32.totalorder %s236, %s239
      %p245 = scmp.eq.s32.totalorder %s18, 0
      %p246 = por %p244, %p245
      %p247 = scmp.ne.s32.totalorder %s236, %s239
      %p248 = scmp.eq.s32.totalorder %s23, 5
      %p249 = por %p247, %p248
      %p250 = scmp.ne.s32.totalorder %s239, %s240
      %p251 = scmp.eq.s32.totalorder %s23, 0
      %p252 = por %p250, %p251
      %p253 = scmp.ne.s32.totalorder %s239, %s240
      %p254 = scmp.eq.s32.totalorder %s24, 5
      %p255 = por %p253, %p254
      %p257 = scmp.ne.s32.totalorder %s240, %s256
      %p258 = scmp.eq.s32.totalorder %s24, 0
      %p259 = por %p257, %p258
      %s260 = ssub.s32 %s25, %s37
      %p261 = scmp.eq.s32.totalorder %s260, 0
      %s263 = sadd.s32 %s262, 1
      %s264 = scalar_select %p261, %s262, %s263
      %p267 = pneg %p261
      %p268 = scmp.eq.s32.totalorder %s18, 5
      %p269 = por %p267, %p268
      %p270 = scmp.ne.s32.totalorder %s262, %s265
      %p271 = scmp.eq.s32.totalorder %s18, 0
      %p272 = por %p270, %p271
      %p273 = scmp.ne.s32.totalorder %s262, %s265
      %p274 = scmp.eq.s32.totalorder %s23, 5
      %p275 = por %p273, %p274
      %p276 = scmp.ne.s32.totalorder %s265, %s266
      %p277 = scmp.eq.s32.totalorder %s23, 0
      %p278 = por %p276, %p277
      %p279 = scmp.ne.s32.totalorder %s265, %s266
      %p280 = scmp.eq.s32.totalorder %s24, 5
      %p281 = por %p279, %p280
      %p283 = scmp.ne.s32.totalorder %s266, %s282
      %p284 = scmp.eq.s32.totalorder %s24, 0
      %p285 = por %p283, %p284
      %p286 = scmp.le.s32.totalorder 1, %s18
      %p287 = scmp.lt.s32.totalorder %s18, 7
      %p288 = pnand %p286, %p287
      %p289 = pneg %p288
      // Predicated region
      $region9: #{wkv7.1} parent=5 // pred_check
        _
      $region10: #{wkv7.1} parent=5 // pred_check_branch
        %291 = sbr.rel (%p288) target = $region12
      $region11: #{wkv7.1} parent=5 // pred_region
        %s292 = ssub.s32 %s18, 1
      $region12: #{wkv7.1} parent=5 // pred_fallthru
        _
      %p293 = scmp.lt.s32.totalorder %s18, 6
      // Predicated region
      $region13: #{wkv7.1} parent=5 // pred_check
        %p294 = pneg %p293
      $region14: #{wkv7.1} parent=5 // pred_check_branch
        %296 = sbr.rel (%p294) target = $region16
      $region15: #{wkv7.1} parent=5 // pred_region
        // Predicated region
        $region17: #{wkv7.1} parent=15 // pred_check
          %p297 = pneg %p52
        $region18: #{wkv7.1} parent=15 // pred_check_branch
          %299 = sbr.rel (%p297) target = $region20
        $region19: #{wkv7.1} parent=15 // pred_region
          %s300 = sand.u32 %s42, 1
          %s301 = sand.u32 %s42, 1
          %s302 = smul.addr %s301, 256
          %s303 = scalar_lea.vmem [#allocation2], %s302
          %s304 = smul.u32 8, %s25
          %s305 = smul.u32 4, %s26
          %s306 = ssub.s32 9, %s305
          %p307 = scmp.lt.s32.totalorder %s306, 4
          %s308 = scalar_select %p307, %s306, 4
          %s309 = smul.u32 1024, %s308
          %p310 = scmp.ne.s32.totalorder 0, %s309
          %s311 = smul.addr %s304, 9
          %s312 = sadd.s32 %s305, %s311
          %s313 = smul.addr %s312, 8
          %s314 = scalar_lea.vmem %s0, %s313
          // Predicated region
          $region21: #{wkv7.1} parent=19 // pred_check
            %p315 = pneg %p310
          $region22: #{wkv7.1} parent=19 // pred_check_branch
            %317 = sbr.rel (%p315) target = $region24
          $region23: #{wkv7.1} parent=19 // pred_region
            // Predicated region
            $region25: #{wkv7.1} parent=23 // pred_check
              _
            $region26: #{wkv7.1} parent=23 // pred_check_branch
              %319 = sbr.rel (0) target = $region28
            $region27: #{wkv7.1} parent=23 // pred_region
              // Predicated region
              $region47: #{wkv7.1} parent=27 // pred_check
                _
              $region48: #{wkv7.1} parent=27 // pred_check_branch
                %444 = sbr.rel (0) target = $region50
              $region49: #{wkv7.1} parent=27 // pred_region
                %s445 = sshrl.u32 %s308, 2
                // While loop
                $region51: #{wkv7.1} parent=49 // loop_pre_header
                  _
                $region52: #{wkv7.1} parent=49 // loop_header
                  %s447 = sphi 0, %s449
                  %p448 = scmp.ge.s32.totalorder %s447, %s445
                  %s452 = sphi 0, %s521
                  %s453 = sphi %s314, %s524
                  %s454 = sphi %s303, %s525
                $region53: #{wkv7.1} parent=49 // loop_header_branch
                  %451 = sbr.rel (%p448) target = $region57
                $region54: #{wkv7.1} parent=49 // loop_body
                  %v455 = vld [vmem:[%s453] sm:$0xff]
                  %456 = vst [vmem:[%s454] sm:$0xff] %v455
                  %v457 = vld [vmem:[%s453 + $0x8] sm:$0xff]
                  %458 = vst [vmem:[%s454 + $0x8] sm:$0xff] %v457
                  %v459 = vld [vmem:[%s453 + $0x10] sm:$0xff]
                  %460 = vst [vmem:[%s454 + $0x10] sm:$0xff] %v459
                  %v461 = vld [vmem:[%s453 + $0x18] sm:$0xff]
                  %462 = vst [vmem:[%s454 + $0x18] sm:$0xff] %v461
                  %v463 = vld [vmem:[%s453 + $0x48] sm:$0xff]
                  %464 = vst [vmem:[%s454 + $0x20] sm:$0xff] %v463
                  %v465 = vld [vmem:[%s453 + $0x50] sm:$0xff]
                  %466 = vst [vmem:[%s454 + $0x28] sm:$0xff] %v465
                  %v467 = vld [vmem:[%s453 + $0x58] sm:$0xff]
                  %468 = vst [vmem:[%s454 + $0x30] sm:$0xff] %v467
                  %v469 = vld [vmem:[%s453 + $0x60] sm:$0xff]
                  %470 = vst [vmem:[%s454 + $0x38] sm:$0xff] %v469
                  %v471 = vld [vmem:[%s453 + $0x90] sm:$0xff]
                  %472 = vst [vmem:[%s454 + $0x40] sm:$0xff] %v471
                  %v473 = vld [vmem:[%s453 + $0x98] sm:$0xff]
                  %474 = vst [vmem:[%s454 + $0x48] sm:$0xff] %v473
                  %v475 = vld [vmem:[%s453 + $0xa0] sm:$0xff]
                  %476 = vst [vmem:[%s454 + $0x50] sm:$0xff] %v475
                  %v477 = vld [vmem:[%s453 + $0xa8] sm:$0xff]
                  %478 = vst [vmem:[%s454 + $0x58] sm:$0xff] %v477
                  %v479 = vld [vmem:[%s453 + $0xd8] sm:$0xff]
                  %480 = vst [vmem:[%s454 + $0x60] sm:$0xff] %v479
                  %v481 = vld [vmem:[%s453 + $0xe0] sm:$0xff]
                  %482 = vst [vmem:[%s454 + $0x68] sm:$0xff] %v481
                  %v483 = vld [vmem:[%s453 + $0xe8] sm:$0xff]
                  %484 = vst [vmem:[%s454 + $0x70] sm:$0xff] %v483
                  %v485 = vld [vmem:[%s453 + $0xf0] sm:$0xff]
                  %486 = vst [vmem:[%s454 + $0x78] sm:$0xff] %v485
                  %v487 = vld [vmem:[%s453 + $0x120] sm:$0xff]
                  %488 = vst [vmem:[%s454 + $0x80] sm:$0xff] %v487
                  %v489 = vld [vmem:[%s453 + $0x128] sm:$0xff]
                  %490 = vst [vmem:[%s454 + $0x88] sm:$0xff] %v489
                  %v491 = vld [vmem:[%s453 + $0x130] sm:$0xff]
                  %492 = vst [vmem:[%s454 + $0x90] sm:$0xff] %v491
                  %v493 = vld [vmem:[%s453 + $0x138] sm:$0xff]
                  %494 = vst [vmem:[%s454 + $0x98] sm:$0xff] %v493
                  %v495 = vld [vmem:[%s453 + $0x168] sm:$0xff]
                  %496 = vst [vmem:[%s454 + $0xa0] sm:$0xff] %v495
                  %v497 = vld [vmem:[%s453 + $0x170] sm:$0xff]
                  %498 = vst [vmem:[%s454 + $0xa8] sm:$0xff] %v497
                  %v499 = vld [vmem:[%s453 + $0x178] sm:$0xff]
                  %500 = vst [vmem:[%s454 + $0xb0] sm:$0xff] %v499
                  %v501 = vld [vmem:[%s453 + $0x180] sm:$0xff]
                  %502 = vst [vmem:[%s454 + $0xb8] sm:$0xff] %v501
                  %v503 = vld [vmem:[%s453 + $0x1b0] sm:$0xff]
                  %504 = vst [vmem:[%s454 + $0xc0] sm:$0xff] %v503
                  %v505 = vld [vmem:[%s453 + $0x1b8] sm:$0xff]
                  %506 = vst [vmem:[%s454 + $0xc8] sm:$0xff] %v505
                  %v507 = vld [vmem:[%s453 + $0x1c0] sm:$0xff]
                  %508 = vst [vmem:[%s454 + $0xd0] sm:$0xff] %v507
                  %v509 = vld [vmem:[%s453 + $0x1c8] sm:$0xff]
                  %510 = vst [vmem:[%s454 + $0xd8] sm:$0xff] %v509
                  %v511 = vld [vmem:[%s453 + $0x1f8] sm:$0xff]
                  %512 = vst [vmem:[%s454 + $0xe0] sm:$0xff] %v511
                  %v513 = vld [vmem:[%s453 + $0x200] sm:$0xff]
                  %514 = vst [vmem:[%s454 + $0xe8] sm:$0xff] %v513
                  %v515 = vld [vmem:[%s453 + $0x208] sm:$0xff]
                  %516 = vst [vmem:[%s454 + $0xf0] sm:$0xff] %v515
                  %v517 = vld [vmem:[%s453 + $0x210] sm:$0xff]
                  %518 = vst [vmem:[%s454 + $0xf8] sm:$0xff] %v517
                  %s519 = sadd.s32 1, %s452
                  %p520 = scmp.ge.s32.totalorder %s519, %s445
                  %s521 = scalar_select %p520, 0, %s519
                  %s522 = smul.u32 %s521, 32
                  %s523 = smul.u32 %s521, 32
                  %s524 = scalar_lea.vmem %s314, %s522
                  %s525 = scalar_lea.vmem %s303, %s523 [#allocation2]
                $region55: #{wkv7.1} parent=49 // loop_footer
                  %s449 = sadd.s32 %s447, 1
                $region56: #{wkv7.1} parent=49 // loop_footer_branch
                  %446 = sbr.rel target = $region52
                $region57: #{wkv7.1} parent=49 // loop_exit
                  _
                %s526 = sshrl.u32 %s308, 2
                %s527 = sand.u32 %s308, 3
                %s528 = smul.u32 %s526, 4
                %s529 = smul.u32 8, %s528
                %s530 = scalar_lea.vmem %s314, %s529
                %s531 = smul.u32 8, %s528
                %s532 = scalar_lea.vmem %s303, %s531 [#allocation2]
                // While loop
                $region58: #{wkv7.1} parent=49 // loop_pre_header
                  _
                $region59: #{wkv7.1} parent=49 // loop_header
                  %s534 = sphi 0, %s536
                  %p535 = scmp.ge.s32.totalorder %s534, %s527
                  %s539 = sphi 0, %s560
                  %s540 = sphi %s530, %s563
                  %s541 = sphi %s532, %s564
                $region60: #{wkv7.1} parent=49 // loop_header_branch
                  %538 = sbr.rel (%p535) target = $region64
                $region61: #{wkv7.1} parent=49 // loop_body
                  %v542 = vld [vmem:[%s540] sm:$0xff]
                  %543 = vst [vmem:[%s541] sm:$0xff] %v542
                  %v544 = vld [vmem:[%s540 + $0x48] sm:$0xff]
                  %545 = vst [vmem:[%s541 + $0x20] sm:$0xff] %v544
                  %v546 = vld [vmem:[%s540 + $0x90] sm:$0xff]
                  %547 = vst [vmem:[%s541 + $0x40] sm:$0xff] %v546
                  %v548 = vld [vmem:[%s540 + $0xd8] sm:$0xff]
                  %549 = vst [vmem:[%s541 + $0x60] sm:$0xff] %v548
                  %v550 = vld [vmem:[%s540 + $0x120] sm:$0xff]
                  %551 = vst [vmem:[%s541 + $0x80] sm:$0xff] %v550
                  %v552 = vld [vmem:[%s540 + $0x168] sm:$0xff]
                  %553 = vst [vmem:[%s541 + $0xa0] sm:$0xff] %v552
                  %v554 = vld [vmem:[%s540 + $0x1b0] sm:$0xff]
                  %555 = vst [vmem:[%s541 + $0xc0] sm:$0xff] %v554
                  %v556 = vld [vmem:[%s540 + $0x1f8] sm:$0xff]
                  %557 = vst [vmem:[%s541 + $0xe0] sm:$0xff] %v556
                  %s558 = sadd.s32 1, %s539
                  %p559 = scmp.ge.s32.totalorder %s558, %s527
                  %s560 = scalar_select %p559, 0, %s558
                  %s561 = smul.u32 %s560, 8
                  %s562 = smul.u32 %s560, 8
                  %s563 = scalar_lea.vmem %s530, %s561
                  %s564 = scalar_lea.vmem %s532, %s562 [#allocation2]
                $region62: #{wkv7.1} parent=49 // loop_footer
                  %s536 = sadd.s32 %s534, 1
                $region63: #{wkv7.1} parent=49 // loop_footer_branch
                  %533 = sbr.rel target = $region59
                $region64: #{wkv7.1} parent=49 // loop_exit
                  _
              $region50: #{wkv7.1} parent=27 // pred_fallthru
                _
              // Predicated region
              $region65: #{wkv7.1} parent=27 // pred_check
                _
              $region66: #{wkv7.1} parent=27 // pred_check_branch
                %566 = sbr.rel target = $region68
              $region67: #{wkv7.1} parent=27 // pred_region
                _
              $region68: #{wkv7.1} parent=27 // pred_fallthru
                _
            $region28: #{wkv7.1} parent=23 // pred_fallthru
              _
            // Predicated region
            $region29: #{wkv7.1} parent=23 // pred_check
              _
            $region30: #{wkv7.1} parent=23 // pred_check_branch
              %321 = sbr.rel target = $region32
            $region31: #{wkv7.1} parent=23 // pred_region
              %s323 = sshrl.u32 %s308, 2
              // While loop
              $region33: #{wkv7.1} parent=31 // loop_pre_header
                _
              $region34: #{wkv7.1} parent=31 // loop_header
                %s325 = sphi 0, %s327
                %p326 = scmp.ge.s32.totalorder %s325, %s323
                %s330 = sphi 0, %s399
                %s331 = sphi %s314, %s402
                %s332 = sphi %s303, %s403
              $region35: #{wkv7.1} parent=31 // loop_header_branch
                %329 = sbr.rel (%p326) target = $region39
              $region36: #{wkv7.1} parent=31 // loop_body
                %v333 = vld [vmem:[%s331] sm:$0xff]
                %334 = vst [vmem:[%s332] sm:$0xff] %v333
                %v335 = vld [vmem:[%s331 + $0x8] sm:$0xff]
                %336 = vst [vmem:[%s332 + $0x8] sm:$0xff] %v335
                %v337 = vld [vmem:[%s331 + $0x10] sm:$0xff]
                %338 = vst [vmem:[%s332 + $0x10] sm:$0xff] %v337
                %v339 = vld [vmem:[%s331 + $0x18] sm:$0xff]
                %340 = vst [vmem:[%s332 + $0x18] sm:$0xff] %v339
                %v341 = vld [vmem:[%s331 + $0x48] sm:$0xff]
                %342 = vst [vmem:[%s332 + $0x20] sm:$0xff] %v341
                %v343 = vld [vmem:[%s331 + $0x50] sm:$0xff]
                %344 = vst [vmem:[%s332 + $0x28] sm:$0xff] %v343
                %v345 = vld [vmem:[%s331 + $0x58] sm:$0xff]
                %346 = vst [vmem:[%s332 + $0x30] sm:$0xff] %v345
                %v347 = vld [vmem:[%s331 + $0x60] sm:$0xff]
                %348 = vst [vmem:[%s332 + $0x38] sm:$0xff] %v347
                %v349 = vld [vmem:[%s331 + $0x90] sm:$0xff]
                %350 = vst [vmem:[%s332 + $0x40] sm:$0xff] %v349
                %v351 = vld [vmem:[%s331 + $0x98] sm:$0xff]
                %352 = vst [vmem:[%s332 + $0x48] sm:$0xff] %v351
                %v353 = vld [vmem:[%s331 + $0xa0] sm:$0xff]
                %354 = vst [vmem:[%s332 + $0x50] sm:$0xff] %v353
                %v355 = vld [vmem:[%s331 + $0xa8] sm:$0xff]
                %356 = vst [vmem:[%s332 + $0x58] sm:$0xff] %v355
                %v357 = vld [vmem:[%s331 + $0xd8] sm:$0xff]
                %358 = vst [vmem:[%s332 + $0x60] sm:$0xff] %v357
                %v359 = vld [vmem:[%s331 + $0xe0] sm:$0xff]
                %360 = vst [vmem:[%s332 + $0x68] sm:$0xff] %v359
                %v361 = vld [vmem:[%s331 + $0xe8] sm:$0xff]
                %362 = vst [vmem:[%s332 + $0x70] sm:$0xff] %v361
                %v363 = vld [vmem:[%s331 + $0xf0] sm:$0xff]
                %364 = vst [vmem:[%s332 + $0x78] sm:$0xff] %v363
                %v365 = vld [vmem:[%s331 + $0x120] sm:$0xff]
                %366 = vst [vmem:[%s332 + $0x80] sm:$0xff] %v365
                %v367 = vld [vmem:[%s331 + $0x128] sm:$0xff]
                %368 = vst [vmem:[%s332 + $0x88] sm:$0xff] %v367
                %v369 = vld [vmem:[%s331 + $0x130] sm:$0xff]
                %370 = vst [vmem:[%s332 + $0x90] sm:$0xff] %v369
                %v371 = vld [vmem:[%s331 + $0x138] sm:$0xff]
                %372 = vst [vmem:[%s332 + $0x98] sm:$0xff] %v371
                %v373 = vld [vmem:[%s331 + $0x168] sm:$0xff]
                %374 = vst [vmem:[%s332 + $0xa0] sm:$0xff] %v373
                %v375 = vld [vmem:[%s331 + $0x170] sm:$0xff]
                %376 = vst [vmem:[%s332 + $0xa8] sm:$0xff] %v375
                %v377 = vld [vmem:[%s331 + $0x178] sm:$0xff]
                %378 = vst [vmem:[%s332 + $0xb0] sm:$0xff] %v377
                %v379 = vld [vmem:[%s331 + $0x180] sm:$0xff]
                %380 = vst [vmem:[%s332 + $0xb8] sm:$0xff] %v379
                %v381 = vld [vmem:[%s331 + $0x1b0] sm:$0xff]
                %382 = vst [vmem:[%s332 + $0xc0] sm:$0xff] %v381
                %v383 = vld [vmem:[%s331 + $0x1b8] sm:$0xff]
                %384 = vst [vmem:[%s332 + $0xc8] sm:$0xff] %v383
                %v385 = vld [vmem:[%s331 + $0x1c0] sm:$0xff]
                %386 = vst [vmem:[%s332 + $0xd0] sm:$0xff] %v385
                %v387 = vld [vmem:[%s331 + $0x1c8] sm:$0xff]
                %388 = vst [vmem:[%s332 + $0xd8] sm:$0xff] %v387
                %v389 = vld [vmem:[%s331 + $0x1f8] sm:$0xff]
                %390 = vst [vmem:[%s332 + $0xe0] sm:$0xff] %v389
                %v391 = vld [vmem:[%s331 + $0x200] sm:$0xff]
                %392 = vst [vmem:[%s332 + $0xe8] sm:$0xff] %v391
                %v393 = vld [vmem:[%s331 + $0x208] sm:$0xff]
                %394 = vst [vmem:[%s332 + $0xf0] sm:$0xff] %v393
                %v395 = vld [vmem:[%s331 + $0x210] sm:$0xff]
                %396 = vst [vmem:[%s332 + $0xf8] sm:$0xff] %v395
                %s397 = sadd.s32 1, %s330
                %p398 = scmp.ge.s32.totalorder %s397, %s323
                %s399 = scalar_select %p398, 0, %s397
                %s400 = smul.u32 %s399, 32
                %s401 = smul.u32 %s399, 32
                %s402 = scalar_lea.vmem %s314, %s400
                %s403 = scalar_lea.vmem %s303, %s401 [#allocation2]
              $region37: #{wkv7.1} parent=31 // loop_footer
                %s327 = sadd.s32 %s325, 1
              $region38: #{wkv7.1} parent=31 // loop_footer_branch
                %324 = sbr.rel target = $region34
              $region39: #{wkv7.1} parent=31 // loop_exit
                _
              %s404 = sshrl.u32 %s308, 2
              %s405 = sand.u32 %s308, 3
              %s406 = smul.u32 %s404, 4
              %s407 = smul.u32 8, %s406
              %s408 = scalar_lea.vmem %s314, %s407
              %s409 = smul.u32 8, %s406
              %s410 = scalar_lea.vmem %s303, %s409 [#allocation2]
              // While loop
              $region40: #{wkv7.1} parent=31 // loop_pre_header
                _
              $region41: #{wkv7.1} parent=31 // loop_header
                %s412 = sphi 0, %s414
                %p413 = scmp.ge.s32.totalorder %s412, %s405
                %s417 = sphi 0, %s438
                %s418 = sphi %s408, %s441
                %s419 = sphi %s410, %s442
              $region42: #{wkv7.1} parent=31 // loop_header_branch
                %416 = sbr.rel (%p413) target = $region46
              $region43: #{wkv7.1} parent=31 // loop_body
                %v420 = vld [vmem:[%s418] sm:$0xff]
                %421 = vst [vmem:[%s419] sm:$0xff] %v420
                %v422 = vld [vmem:[%s418 + $0x48] sm:$0xff]
                %423 = vst [vmem:[%s419 + $0x20] sm:$0xff] %v422
                %v424 = vld [vmem:[%s418 + $0x90] sm:$0xff]
                %425 = vst [vmem:[%s419 + $0x40] sm:$0xff] %v424
                %v426 = vld [vmem:[%s418 + $0xd8] sm:$0xff]
                %427 = vst [vmem:[%s419 + $0x60] sm:$0xff] %v426
                %v428 = vld [vmem:[%s418 + $0x120] sm:$0xff]
                %429 = vst [vmem:[%s419 + $0x80] sm:$0xff] %v428
                %v430 = vld [vmem:[%s418 + $0x168] sm:$0xff]
                %431 = vst [vmem:[%s419 + $0xa0] sm:$0xff] %v430
                %v432 = vld [vmem:[%s418 + $0x1b0] sm:$0xff]
                %433 = vst [vmem:[%s419 + $0xc0] sm:$0xff] %v432
                %v434 = vld [vmem:[%s418 + $0x1f8] sm:$0xff]
                %435 = vst [vmem:[%s419 + $0xe0] sm:$0xff] %v434
                %s436 = sadd.s32 1, %s417
                %p437 = scmp.ge.s32.totalorder %s436, %s405
                %s438 = scalar_select %p437, 0, %s436
                %s439 = smul.u32 %s438, 8
                %s440 = smul.u32 %s438, 8
                %s441 = scalar_lea.vmem %s408, %s439
                %s442 = scalar_lea.vmem %s410, %s440 [#allocation2]
              $region44: #{wkv7.1} parent=31 // loop_footer
                %s414 = sadd.s32 %s412, 1
              $region45: #{wkv7.1} parent=31 // loop_footer_branch
                %411 = sbr.rel target = $region41
              $region46: #{wkv7.1} parent=31 // loop_exit
                _
            $region32: #{wkv7.1} parent=23 // pred_fallthru
              _
          $region24: #{wkv7.1} parent=19 // pred_fallthru
            _
          %567 = vnop
        $region20: #{wkv7.1} parent=15 // pred_fallthru
          _
        // Predicated region
        $region69: #{wkv7.1} parent=15 // pred_check
          %p568 = pneg %p80
        $region70: #{wkv7.1} parent=15 // pred_check_branch
          %570 = sbr.rel (%p568) target = $region72
        $region71: #{wkv7.1} parent=15 // pred_region
          %s571 = sand.u32 %s70, 1
          %s572 = sand.u32 %s70, 1
          %s573 = smul.addr %s572, 256
          %s574 = scalar_lea.vmem [#allocation3], %s573
          %s575 = smul.u32 8, %s25
          %s576 = smul.u32 4, %s26
          %s577 = ssub.s32 9, %s576
          %p578 = scmp.lt.s32.totalorder %s577, 4
          %s579 = scalar_select %p578, %s577, 4
          %s580 = smul.u32 1024, %s579
          %p581 = scmp.ne.s32.totalorder 0, %s580
          %s582 = smul.addr %s575, 9
          %s583 = sadd.s32 %s576, %s582
          %s584 = smul.addr %s583, 8
          %s585 = scalar_lea.vmem %s1, %s584
          // Predicated region
          $region73: #{wkv7.1} parent=71 // pred_check
            %p586 = pneg %p581
          $region74: #{wkv7.1} parent=71 // pred_check_branch
            %588 = sbr.rel (%p586) target = $region76
          $region75: #{wkv7.1} parent=71 // pred_region
            // Predicated region
            $region77: #{wkv7.1} parent=75 // pred_check
              _
            $region78: #{wkv7.1} parent=75 // pred_check_branch
              %590 = sbr.rel (0) target = $region80
            $region79: #{wkv7.1} parent=75 // pred_region
              // Predicated region
              $region99: #{wkv7.1} parent=79 // pred_check
                _
              $region100: #{wkv7.1} parent=79 // pred_check_branch
                %715 = sbr.rel (0) target = $region102
              $region101: #{wkv7.1} parent=79 // pred_region
                %s716 = sshrl.u32 %s579, 2
                // While loop
                $region103: #{wkv7.1} parent=101 // loop_pre_header
                  _
                $region104: #{wkv7.1} parent=101 // loop_header
                  %s718 = sphi 0, %s720
                  %p719 = scmp.ge.s32.totalorder %s718, %s716
                  %s723 = sphi 0, %s792
                  %s724 = sphi %s585, %s795
                  %s725 = sphi %s574, %s796
                $region105: #{wkv7.1} parent=101 // loop_header_branch
                  %722 = sbr.rel (%p719) target = $region109
                $region106: #{wkv7.1} parent=101 // loop_body
                  %v726 = vld [vmem:[%s724] sm:$0xff]
                  %727 = vst [vmem:[%s725] sm:$0xff] %v726
                  %v728 = vld [vmem:[%s724 + $0x8] sm:$0xff]
                  %729 = vst [vmem:[%s725 + $0x8] sm:$0xff] %v728
                  %v730 = vld [vmem:[%s724 + $0x10] sm:$0xff]
                  %731 = vst [vmem:[%s725 + $0x10] sm:$0xff] %v730
                  %v732 = vld [vmem:[%s724 + $0x18] sm:$0xff]
                  %733 = vst [vmem:[%s725 + $0x18] sm:$0xff] %v732
                  %v734 = vld [vmem:[%s724 + $0x48] sm:$0xff]
                  %735 = vst [vmem:[%s725 + $0x20] sm:$0xff] %v734
                  %v736 = vld [vmem:[%s724 + $0x50] sm:$0xff]
                  %737 = vst [vmem:[%s725 + $0x28] sm:$0xff] %v736
                  %v738 = vld [vmem:[%s724 + $0x58] sm:$0xff]
                  %739 = vst [vmem:[%s725 + $0x30] sm:$0xff] %v738
                  %v740 = vld [vmem:[%s724 + $0x60] sm:$0xff]
                  %741 = vst [vmem:[%s725 + $0x38] sm:$0xff] %v740
                  %v742 = vld [vmem:[%s724 + $0x90] sm:$0xff]
                  %743 = vst [vmem:[%s725 + $0x40] sm:$0xff] %v742
                  %v744 = vld [vmem:[%s724 + $0x98] sm:$0xff]
                  %745 = vst [vmem:[%s725 + $0x48] sm:$0xff] %v744
                  %v746 = vld [vmem:[%s724 + $0xa0] sm:$0xff]
                  %747 = vst [vmem:[%s725 + $0x50] sm:$0xff] %v746
                  %v748 = vld [vmem:[%s724 + $0xa8] sm:$0xff]
                  %749 = vst [vmem:[%s725 + $0x58] sm:$0xff] %v748
                  %v750 = vld [vmem:[%s724 + $0xd8] sm:$0xff]
                  %751 = vst [vmem:[%s725 + $0x60] sm:$0xff] %v750
                  %v752 = vld [vmem:[%s724 + $0xe0] sm:$0xff]
                  %753 = vst [vmem:[%s725 + $0x68] sm:$0xff] %v752
                  %v754 = vld [vmem:[%s724 + $0xe8] sm:$0xff]
                  %755 = vst [vmem:[%s725 + $0x70] sm:$0xff] %v754
                  %v756 = vld [vmem:[%s724 + $0xf0] sm:$0xff]
                  %757 = vst [vmem:[%s725 + $0x78] sm:$0xff] %v756
                  %v758 = vld [vmem:[%s724 + $0x120] sm:$0xff]
                  %759 = vst [vmem:[%s725 + $0x80] sm:$0xff] %v758
                  %v760 = vld [vmem:[%s724 + $0x128] sm:$0xff]
                  %761 = vst [vmem:[%s725 + $0x88] sm:$0xff] %v760
                  %v762 = vld [vmem:[%s724 + $0x130] sm:$0xff]
                  %763 = vst [vmem:[%s725 + $0x90] sm:$0xff] %v762
                  %v764 = vld [vmem:[%s724 + $0x138] sm:$0xff]
                  %765 = vst [vmem:[%s725 + $0x98] sm:$0xff] %v764
                  %v766 = vld [vmem:[%s724 + $0x168] sm:$0xff]
                  %767 = vst [vmem:[%s725 + $0xa0] sm:$0xff] %v766
                  %v768 = vld [vmem:[%s724 + $0x170] sm:$0xff]
                  %769 = vst [vmem:[%s725 + $0xa8] sm:$0xff] %v768
                  %v770 = vld [vmem:[%s724 + $0x178] sm:$0xff]
                  %771 = vst [vmem:[%s725 + $0xb0] sm:$0xff] %v770
                  %v772 = vld [vmem:[%s724 + $0x180] sm:$0xff]
                  %773 = vst [vmem:[%s725 + $0xb8] sm:$0xff] %v772
                  %v774 = vld [vmem:[%s724 + $0x1b0] sm:$0xff]
                  %775 = vst [vmem:[%s725 + $0xc0] sm:$0xff] %v774
                  %v776 = vld [vmem:[%s724 + $0x1b8] sm:$0xff]
                  %777 = vst [vmem:[%s725 + $0xc8] sm:$0xff] %v776
                  %v778 = vld [vmem:[%s724 + $0x1c0] sm:$0xff]
                  %779 = vst [vmem:[%s725 + $0xd0] sm:$0xff] %v778
                  %v780 = vld [vmem:[%s724 + $0x1c8] sm:$0xff]
                  %781 = vst [vmem:[%s725 + $0xd8] sm:$0xff] %v780
                  %v782 = vld [vmem:[%s724 + $0x1f8] sm:$0xff]
                  %783 = vst [vmem:[%s725 + $0xe0] sm:$0xff] %v782
                  %v784 = vld [vmem:[%s724 + $0x200] sm:$0xff]
                  %785 = vst [vmem:[%s725 + $0xe8] sm:$0xff] %v784
                  %v786 = vld [vmem:[%s724 + $0x208] sm:$0xff]
                  %787 = vst [vmem:[%s725 + $0xf0] sm:$0xff] %v786
                  %v788 = vld [vmem:[%s724 + $0x210] sm:$0xff]
                  %789 = vst [vmem:[%s725 + $0xf8] sm:$0xff] %v788
                  %s790 = sadd.s32 1, %s723
                  %p791 = scmp.ge.s32.totalorder %s790, %s716
                  %s792 = scalar_select %p791, 0, %s790
                  %s793 = smul.u32 %s792, 32
                  %s794 = smul.u32 %s792, 32
                  %s795 = scalar_lea.vmem %s585, %s793
                  %s796 = scalar_lea.vmem %s574, %s794 [#allocation3]
                $region107: #{wkv7.1} parent=101 // loop_footer
                  %s720 = sadd.s32 %s718, 1
                $region108: #{wkv7.1} parent=101 // loop_footer_branch
                  %717 = sbr.rel target = $region104
                $region109: #{wkv7.1} parent=101 // loop_exit
                  _
                %s797 = sshrl.u32 %s579, 2
                %s798 = sand.u32 %s579, 3
                %s799 = smul.u32 %s797, 4
                %s800 = smul.u32 8, %s799
                %s801 = scalar_lea.vmem %s585, %s800
                %s802 = smul.u32 8, %s799
                %s803 = scalar_lea.vmem %s574, %s802 [#allocation3]
                // While loop
                $region110: #{wkv7.1} parent=101 // loop_pre_header
                  _
                $region111: #{wkv7.1} parent=101 // loop_header
                  %s805 = sphi 0, %s807
                  %p806 = scmp.ge.s32.totalorder %s805, %s798
                  %s810 = sphi 0, %s831
                  %s811 = sphi %s801, %s834
                  %s812 = sphi %s803, %s835
                $region112: #{wkv7.1} parent=101 // loop_header_branch
                  %809 = sbr.rel (%p806) target = $region116
                $region113: #{wkv7.1} parent=101 // loop_body
                  %v813 = vld [vmem:[%s811] sm:$0xff]
                  %814 = vst [vmem:[%s812] sm:$0xff] %v813
                  %v815 = vld [vmem:[%s811 + $0x48] sm:$0xff]
                  %816 = vst [vmem:[%s812 + $0x20] sm:$0xff] %v815
                  %v817 = vld [vmem:[%s811 + $0x90] sm:$0xff]
                  %818 = vst [vmem:[%s812 + $0x40] sm:$0xff] %v817
                  %v819 = vld [vmem:[%s811 + $0xd8] sm:$0xff]
                  %820 = vst [vmem:[%s812 + $0x60] sm:$0xff] %v819
                  %v821 = vld [vmem:[%s811 + $0x120] sm:$0xff]
                  %822 = vst [vmem:[%s812 + $0x80] sm:$0xff] %v821
                  %v823 = vld [vmem:[%s811 + $0x168] sm:$0xff]
                  %824 = vst [vmem:[%s812 + $0xa0] sm:$0xff] %v823
                  %v825 = vld [vmem:[%s811 + $0x1b0] sm:$0xff]
                  %826 = vst [vmem:[%s812 + $0xc0] sm:$0xff] %v825
                  %v827 = vld [vmem:[%s811 + $0x1f8] sm:$0xff]
                  %828 = vst [vmem:[%s812 + $0xe0] sm:$0xff] %v827
                  %s829 = sadd.s32 1, %s810
                  %p830 = scmp.ge.s32.totalorder %s829, %s798
                  %s831 = scalar_select %p830, 0, %s829
                  %s832 = smul.u32 %s831, 8
                  %s833 = smul.u32 %s831, 8
                  %s834 = scalar_lea.vmem %s801, %s832
                  %s835 = scalar_lea.vmem %s803, %s833 [#allocation3]
                $region114: #{wkv7.1} parent=101 // loop_footer
                  %s807 = sadd.s32 %s805, 1
                $region115: #{wkv7.1} parent=101 // loop_footer_branch
                  %804 = sbr.rel target = $region111
                $region116: #{wkv7.1} parent=101 // loop_exit
                  _
              $region102: #{wkv7.1} parent=79 // pred_fallthru
                _
              // Predicated region
              $region117: #{wkv7.1} parent=79 // pred_check
                _
              $region118: #{wkv7.1} parent=79 // pred_check_branch
                %837 = sbr.rel target = $region120
              $region119: #{wkv7.1} parent=79 // pred_region
                _
              $region120: #{wkv7.1} parent=79 // pred_fallthru
                _
            $region80: #{wkv7.1} parent=75 // pred_fallthru
              _
            // Predicated region
            $region81: #{wkv7.1} parent=75 // pred_check
              _
            $region82: #{wkv7.1} parent=75 // pred_check_branch
              %592 = sbr.rel target = $region84
            $region83: #{wkv7.1} parent=75 // pred_region
              %s594 = sshrl.u32 %s579, 2
              // While loop
              $region85: #{wkv7.1} parent=83 // loop_pre_header
                _
              $region86: #{wkv7.1} parent=83 // loop_header
                %s596 = sphi 0, %s598
                %p597 = scmp.ge.s32.totalorder %s596, %s594
                %s601 = sphi 0, %s670
                %s602 = sphi %s585, %s673
                %s603 = sphi %s574, %s674
              $region87: #{wkv7.1} parent=83 // loop_header_branch
                %600 = sbr.rel (%p597) target = $region91
              $region88: #{wkv7.1} parent=83 // loop_body
                %v604 = vld [vmem:[%s602] sm:$0xff]
                %605 = vst [vmem:[%s603] sm:$0xff] %v604
                %v606 = vld [vmem:[%s602 + $0x8] sm:$0xff]
                %607 = vst [vmem:[%s603 + $0x8] sm:$0xff] %v606
                %v608 = vld [vmem:[%s602 + $0x10] sm:$0xff]
                %609 = vst [vmem:[%s603 + $0x10] sm:$0xff] %v608
                %v610 = vld [vmem:[%s602 + $0x18] sm:$0xff]
                %611 = vst [vmem:[%s603 + $0x18] sm:$0xff] %v610
                %v612 = vld [vmem:[%s602 + $0x48] sm:$0xff]
                %613 = vst [vmem:[%s603 + $0x20] sm:$0xff] %v612
                %v614 = vld [vmem:[%s602 + $0x50] sm:$0xff]
                %615 = vst [vmem:[%s603 + $0x28] sm:$0xff] %v614
                %v616 = vld [vmem:[%s602 + $0x58] sm:$0xff]
                %617 = vst [vmem:[%s603 + $0x30] sm:$0xff] %v616
                %v618 = vld [vmem:[%s602 + $0x60] sm:$0xff]
                %619 = vst [vmem:[%s603 + $0x38] sm:$0xff] %v618
                %v620 = vld [vmem:[%s602 + $0x90] sm:$0xff]
                %621 = vst [vmem:[%s603 + $0x40] sm:$0xff] %v620
                %v622 = vld [vmem:[%s602 + $0x98] sm:$0xff]
                %623 = vst [vmem:[%s603 + $0x48] sm:$0xff] %v622
                %v624 = vld [vmem:[%s602 + $0xa0] sm:$0xff]
                %625 = vst [vmem:[%s603 + $0x50] sm:$0xff] %v624
                %v626 = vld [vmem:[%s602 + $0xa8] sm:$0xff]
                %627 = vst [vmem:[%s603 + $0x58] sm:$0xff] %v626
                %v628 = vld [vmem:[%s602 + $0xd8] sm:$0xff]
                %629 = vst [vmem:[%s603 + $0x60] sm:$0xff] %v628
                %v630 = vld [vmem:[%s602 + $0xe0] sm:$0xff]
                %631 = vst [vmem:[%s603 + $0x68] sm:$0xff] %v630
                %v632 = vld [vmem:[%s602 + $0xe8] sm:$0xff]
                %633 = vst [vmem:[%s603 + $0x70] sm:$0xff] %v632
                %v634 = vld [vmem:[%s602 + $0xf0] sm:$0xff]
                %635 = vst [vmem:[%s603 + $0x78] sm:$0xff] %v634
                %v636 = vld [vmem:[%s602 + $0x120] sm:$0xff]
                %637 = vst [vmem:[%s603 + $0x80] sm:$0xff] %v636
                %v638 = vld [vmem:[%s602 + $0x128] sm:$0xff]
                %639 = vst [vmem:[%s603 + $0x88] sm:$0xff] %v638
                %v640 = vld [vmem:[%s602 + $0x130] sm:$0xff]
                %641 = vst [vmem:[%s603 + $0x90] sm:$0xff] %v640
                %v642 = vld [vmem:[%s602 + $0x138] sm:$0xff]
                %643 = vst [vmem:[%s603 + $0x98] sm:$0xff] %v642
                %v644 = vld [vmem:[%s602 + $0x168] sm:$0xff]
                %645 = vst [vmem:[%s603 + $0xa0] sm:$0xff] %v644
                %v646 = vld [vmem:[%s602 + $0x170] sm:$0xff]
                %647 = vst [vmem:[%s603 + $0xa8] sm:$0xff] %v646
                %v648 = vld [vmem:[%s602 + $0x178] sm:$0xff]
                %649 = vst [vmem:[%s603 + $0xb0] sm:$0xff] %v648
                %v650 = vld [vmem:[%s602 + $0x180] sm:$0xff]
                %651 = vst [vmem:[%s603 + $0xb8] sm:$0xff] %v650
                %v652 = vld [vmem:[%s602 + $0x1b0] sm:$0xff]
                %653 = vst [vmem:[%s603 + $0xc0] sm:$0xff] %v652
                %v654 = vld [vmem:[%s602 + $0x1b8] sm:$0xff]
                %655 = vst [vmem:[%s603 + $0xc8] sm:$0xff] %v654
                %v656 = vld [vmem:[%s602 + $0x1c0] sm:$0xff]
                %657 = vst [vmem:[%s603 + $0xd0] sm:$0xff] %v656
                %v658 = vld [vmem:[%s602 + $0x1c8] sm:$0xff]
                %659 = vst [vmem:[%s603 + $0xd8] sm:$0xff] %v658
                %v660 = vld [vmem:[%s602 + $0x1f8] sm:$0xff]
                %661 = vst [vmem:[%s603 + $0xe0] sm:$0xff] %v660
                %v662 = vld [vmem:[%s602 + $0x200] sm:$0xff]
                %663 = vst [vmem:[%s603 + $0xe8] sm:$0xff] %v662
                %v664 = vld [vmem:[%s602 + $0x208] sm:$0xff]
                %665 = vst [vmem:[%s603 + $0xf0] sm:$0xff] %v664
                %v666 = vld [vmem:[%s602 + $0x210] sm:$0xff]
                %667 = vst [vmem:[%s603 + $0xf8] sm:$0xff] %v666
                %s668 = sadd.s32 1, %s601
                %p669 = scmp.ge.s32.totalorder %s668, %s594
                %s670 = scalar_select %p669, 0, %s668
                %s671 = smul.u32 %s670, 32
                %s672 = smul.u32 %s670, 32
                %s673 = scalar_lea.vmem %s585, %s671
                %s674 = scalar_lea.vmem %s574, %s672 [#allocation3]
              $region89: #{wkv7.1} parent=83 // loop_footer
                %s598 = sadd.s32 %s596, 1
              $region90: #{wkv7.1} parent=83 // loop_footer_branch
                %595 = sbr.rel target = $region86
              $region91: #{wkv7.1} parent=83 // loop_exit
                _
              %s675 = sshrl.u32 %s579, 2
              %s676 = sand.u32 %s579, 3
              %s677 = smul.u32 %s675, 4
              %s678 = smul.u32 8, %s677
              %s679 = scalar_lea.vmem %s585, %s678
              %s680 = smul.u32 8, %s677
              %s681 = scalar_lea.vmem %s574, %s680 [#allocation3]
              // While loop
              $region92: #{wkv7.1} parent=83 // loop_pre_header
                _
              $region93: #{wkv7.1} parent=83 // loop_header
                %s683 = sphi 0, %s685
                %p684 = scmp.ge.s32.totalorder %s683, %s676
                %s688 = sphi 0, %s709
                %s689 = sphi %s679, %s712
                %s690 = sphi %s681, %s713
              $region94: #{wkv7.1} parent=83 // loop_header_branch
                %687 = sbr.rel (%p684) target = $region98
              $region95: #{wkv7.1} parent=83 // loop_body
                %v691 = vld [vmem:[%s689] sm:$0xff]
                %692 = vst [vmem:[%s690] sm:$0xff] %v691
                %v693 = vld [vmem:[%s689 + $0x48] sm:$0xff]
                %694 = vst [vmem:[%s690 + $0x20] sm:$0xff] %v693
                %v695 = vld [vmem:[%s689 + $0x90] sm:$0xff]
                %696 = vst [vmem:[%s690 + $0x40] sm:$0xff] %v695
                %v697 = vld [vmem:[%s689 + $0xd8] sm:$0xff]
                %698 = vst [vmem:[%s690 + $0x60] sm:$0xff] %v697
                %v699 = vld [vmem:[%s689 + $0x120] sm:$0xff]
                %700 = vst [vmem:[%s690 + $0x80] sm:$0xff] %v699
                %v701 = vld [vmem:[%s689 + $0x168] sm:$0xff]
                %702 = vst [vmem:[%s690 + $0xa0] sm:$0xff] %v701
                %v703 = vld [vmem:[%s689 + $0x1b0] sm:$0xff]
                %704 = vst [vmem:[%s690 + $0xc0] sm:$0xff] %v703
                %v705 = vld [vmem:[%s689 + $0x1f8] sm:$0xff]
                %706 = vst [vmem:[%s690 + $0xe0] sm:$0xff] %v705
                %s707 = sadd.s32 1, %s688
                %p708 = scmp.ge.s32.totalorder %s707, %s676
                %s709 = scalar_select %p708, 0, %s707
                %s710 = smul.u32 %s709, 8
                %s711 = smul.u32 %s709, 8
                %s712 = scalar_lea.vmem %s679, %s710
                %s713 = scalar_lea.vmem %s681, %s711 [#allocation3]
              $region96: #{wkv7.1} parent=83 // loop_footer
                %s685 = sadd.s32 %s683, 1
              $region97: #{wkv7.1} parent=83 // loop_footer_branch
                %682 = sbr.rel target = $region93
              $region98: #{wkv7.1} parent=83 // loop_exit
                _
            $region84: #{wkv7.1} parent=75 // pred_fallthru
              _
          $region76: #{wkv7.1} parent=71 // pred_fallthru
            _
          %838 = vnop
        $region72: #{wkv7.1} parent=15 // pred_fallthru
          _
        // Predicated region
        $region121: #{wkv7.1} parent=15 // pred_check
          %p839 = pneg %p108
        $region122: #{wkv7.1} parent=15 // pred_check_branch
          %841 = sbr.rel (%p839) target = $region124
        $region123: #{wkv7.1} parent=15 // pred_region
          %s842 = sand.u32 %s98, 1
          %s843 = sand.u32 %s98, 1
          %s844 = smul.addr %s843, 256
          %s845 = scalar_lea.vmem [#allocation4], %s844
          %s846 = smul.u32 8, %s25
          %s847 = smul.u32 4, %s26
          %s848 = ssub.s32 9, %s847
          %p849 = scmp.lt.s32.totalorder %s848, 4
          %s850 = scalar_select %p849, %s848, 4
          %s851 = smul.u32 1024, %s850
          %p852 = scmp.ne.s32.totalorder 0, %s851
          %s853 = smul.addr %s846, 9
          %s854 = sadd.s32 %s847, %s853
          %s855 = smul.addr %s854, 8
          %s856 = scalar_lea.vmem %s2, %s855
          // Predicated region
          $region125: #{wkv7.1} parent=123 // pred_check
            %p857 = pneg %p852
          $region126: #{wkv7.1} parent=123 // pred_check_branch
            %859 = sbr.rel (%p857) target = $region128
          $region127: #{wkv7.1} parent=123 // pred_region
            // Predicated region
            $region129: #{wkv7.1} parent=127 // pred_check
              _
            $region130: #{wkv7.1} parent=127 // pred_check_branch
              %861 = sbr.rel (0) target = $region132
            $region131: #{wkv7.1} parent=127 // pred_region
              // Predicated region
              $region151: #{wkv7.1} parent=131 // pred_check
                _
              $region152: #{wkv7.1} parent=131 // pred_check_branch
                %986 = sbr.rel (0) target = $region154
              $region153: #{wkv7.1} parent=131 // pred_region
                %s987 = sshrl.u32 %s850, 2
                // While loop
                $region155: #{wkv7.1} parent=153 // loop_pre_header
                  _
                $region156: #{wkv7.1} parent=153 // loop_header
                  %s989 = sphi 0, %s991
                  %p990 = scmp.ge.s32.totalorder %s989, %s987
                  %s994 = sphi 0, %s1063
                  %s995 = sphi %s856, %s1066
                  %s996 = sphi %s845, %s1067
                $region157: #{wkv7.1} parent=153 // loop_header_branch
                  %993 = sbr.rel (%p990) target = $region161
                $region158: #{wkv7.1} parent=153 // loop_body
                  %v997 = vld [vmem:[%s995] sm:$0xff]
                  %998 = vst [vmem:[%s996] sm:$0xff] %v997
                  %v999 = vld [vmem:[%s995 + $0x8] sm:$0xff]
                  %1000 = vst [vmem:[%s996 + $0x8] sm:$0xff] %v999
                  %v1001 = vld [vmem:[%s995 + $0x10] sm:$0xff]
                  %1002 = vst [vmem:[%s996 + $0x10] sm:$0xff] %v1001
                  %v1003 = vld [vmem:[%s995 + $0x18] sm:$0xff]
                  %1004 = vst [vmem:[%s996 + $0x18] sm:$0xff] %v1003
                  %v1005 = vld [vmem:[%s995 + $0x48] sm:$0xff]
                  %1006 = vst [vmem:[%s996 + $0x20] sm:$0xff] %v1005
                  %v1007 = vld [vmem:[%s995 + $0x50] sm:$0xff]
                  %1008 = vst [vmem:[%s996 + $0x28] sm:$0xff] %v1007
                  %v1009 = vld [vmem:[%s995 + $0x58] sm:$0xff]
                  %1010 = vst [vmem:[%s996 + $0x30] sm:$0xff] %v1009
                  %v1011 = vld [vmem:[%s995 + $0x60] sm:$0xff]
                  %1012 = vst [vmem:[%s996 + $0x38] sm:$0xff] %v1011
                  %v1013 = vld [vmem:[%s995 + $0x90] sm:$0xff]
                  %1014 = vst [vmem:[%s996 + $0x40] sm:$0xff] %v1013
                  %v1015 = vld [vmem:[%s995 + $0x98] sm:$0xff]
                  %1016 = vst [vmem:[%s996 + $0x48] sm:$0xff] %v1015
                  %v1017 = vld [vmem:[%s995 + $0xa0] sm:$0xff]
                  %1018 = vst [vmem:[%s996 + $0x50] sm:$0xff] %v1017
                  %v1019 = vld [vmem:[%s995 + $0xa8] sm:$0xff]
                  %1020 = vst [vmem:[%s996 + $0x58] sm:$0xff] %v1019
                  %v1021 = vld [vmem:[%s995 + $0xd8] sm:$0xff]
                  %1022 = vst [vmem:[%s996 + $0x60] sm:$0xff] %v1021
                  %v1023 = vld [vmem:[%s995 + $0xe0] sm:$0xff]
                  %1024 = vst [vmem:[%s996 + $0x68] sm:$0xff] %v1023
                  %v1025 = vld [vmem:[%s995 + $0xe8] sm:$0xff]
                  %1026 = vst [vmem:[%s996 + $0x70] sm:$0xff] %v1025
                  %v1027 = vld [vmem:[%s995 + $0xf0] sm:$0xff]
                  %1028 = vst [vmem:[%s996 + $0x78] sm:$0xff] %v1027
                  %v1029 = vld [vmem:[%s995 + $0x120] sm:$0xff]
                  %1030 = vst [vmem:[%s996 + $0x80] sm:$0xff] %v1029
                  %v1031 = vld [vmem:[%s995 + $0x128] sm:$0xff]
                  %1032 = vst [vmem:[%s996 + $0x88] sm:$0xff] %v1031
                  %v1033 = vld [vmem:[%s995 + $0x130] sm:$0xff]
                  %1034 = vst [vmem:[%s996 + $0x90] sm:$0xff] %v1033
                  %v1035 = vld [vmem:[%s995 + $0x138] sm:$0xff]
                  %1036 = vst [vmem:[%s996 + $0x98] sm:$0xff] %v1035
                  %v1037 = vld [vmem:[%s995 + $0x168] sm:$0xff]
                  %1038 = vst [vmem:[%s996 + $0xa0] sm:$0xff] %v1037
                  %v1039 = vld [vmem:[%s995 + $0x170] sm:$0xff]
                  %1040 = vst [vmem:[%s996 + $0xa8] sm:$0xff] %v1039
                  %v1041 = vld [vmem:[%s995 + $0x178] sm:$0xff]
                  %1042 = vst [vmem:[%s996 + $0xb0] sm:$0xff] %v1041
                  %v1043 = vld [vmem:[%s995 + $0x180] sm:$0xff]
                  %1044 = vst [vmem:[%s996 + $0xb8] sm:$0xff] %v1043
                  %v1045 = vld [vmem:[%s995 + $0x1b0] sm:$0xff]
                  %1046 = vst [vmem:[%s996 + $0xc0] sm:$0xff] %v1045
                  %v1047 = vld [vmem:[%s995 + $0x1b8] sm:$0xff]
                  %1048 = vst [vmem:[%s996 + $0xc8] sm:$0xff] %v1047
                  %v1049 = vld [vmem:[%s995 + $0x1c0] sm:$0xff]
                  %1050 = vst [vmem:[%s996 + $0xd0] sm:$0xff] %v1049
                  %v1051 = vld [vmem:[%s995 + $0x1c8] sm:$0xff]
                  %1052 = vst [vmem:[%s996 + $0xd8] sm:$0xff] %v1051
                  %v1053 = vld [vmem:[%s995 + $0x1f8] sm:$0xff]
                  %1054 = vst [vmem:[%s996 + $0xe0] sm:$0xff] %v1053
                  %v1055 = vld [vmem:[%s995 + $0x200] sm:$0xff]
                  %1056 = vst [vmem:[%s996 + $0xe8] sm:$0xff] %v1055
                  %v1057 = vld [vmem:[%s995 + $0x208] sm:$0xff]
                  %1058 = vst [vmem:[%s996 + $0xf0] sm:$0xff] %v1057
                  %v1059 = vld [vmem:[%s995 + $0x210] sm:$0xff]
                  %1060 = vst [vmem:[%s996 + $0xf8] sm:$0xff] %v1059
                  %s1061 = sadd.s32 1, %s994
                  %p1062 = scmp.ge.s32.totalorder %s1061, %s987
                  %s1063 = scalar_select %p1062, 0, %s1061
                  %s1064 = smul.u32 %s1063, 32
                  %s1065 = smul.u32 %s1063, 32
                  %s1066 = scalar_lea.vmem %s856, %s1064
                  %s1067 = scalar_lea.vmem %s845, %s1065 [#allocation4]
                $region159: #{wkv7.1} parent=153 // loop_footer
                  %s991 = sadd.s32 %s989, 1
                $region160: #{wkv7.1} parent=153 // loop_footer_branch
                  %988 = sbr.rel target = $region156
                $region161: #{wkv7.1} parent=153 // loop_exit
                  _
                %s1068 = sshrl.u32 %s850, 2
                %s1069 = sand.u32 %s850, 3
                %s1070 = smul.u32 %s1068, 4
                %s1071 = smul.u32 8, %s1070
                %s1072 = scalar_lea.vmem %s856, %s1071
                %s1073 = smul.u32 8, %s1070
                %s1074 = scalar_lea.vmem %s845, %s1073 [#allocation4]
                // While loop
                $region162: #{wkv7.1} parent=153 // loop_pre_header
                  _
                $region163: #{wkv7.1} parent=153 // loop_header
                  %s1076 = sphi 0, %s1078
                  %p1077 = scmp.ge.s32.totalorder %s1076, %s1069
                  %s1081 = sphi 0, %s1102
                  %s1082 = sphi %s1072, %s1105
                  %s1083 = sphi %s1074, %s1106
                $region164: #{wkv7.1} parent=153 // loop_header_branch
                  %1080 = sbr.rel (%p1077) target = $region168
                $region165: #{wkv7.1} parent=153 // loop_body
                  %v1084 = vld [vmem:[%s1082] sm:$0xff]
                  %1085 = vst [vmem:[%s1083] sm:$0xff] %v1084
                  %v1086 = vld [vmem:[%s1082 + $0x48] sm:$0xff]
                  %1087 = vst [vmem:[%s1083 + $0x20] sm:$0xff] %v1086
                  %v1088 = vld [vmem:[%s1082 + $0x90] sm:$0xff]
                  %1089 = vst [vmem:[%s1083 + $0x40] sm:$0xff] %v1088
                  %v1090 = vld [vmem:[%s1082 + $0xd8] sm:$0xff]
                  %1091 = vst [vmem:[%s1083 + $0x60] sm:$0xff] %v1090
                  %v1092 = vld [vmem:[%s1082 + $0x120] sm:$0xff]
                  %1093 = vst [vmem:[%s1083 + $0x80] sm:$0xff] %v1092
                  %v1094 = vld [vmem:[%s1082 + $0x168] sm:$0xff]
                  %1095 = vst [vmem:[%s1083 + $0xa0] sm:$0xff] %v1094
                  %v1096 = vld [vmem:[%s1082 + $0x1b0] sm:$0xff]
                  %1097 = vst [vmem:[%s1083 + $0xc0] sm:$0xff] %v1096
                  %v1098 = vld [vmem:[%s1082 + $0x1f8] sm:$0xff]
                  %1099 = vst [vmem:[%s1083 + $0xe0] sm:$0xff] %v1098
                  %s1100 = sadd.s32 1, %s1081
                  %p1101 = scmp.ge.s32.totalorder %s1100, %s1069
                  %s1102 = scalar_select %p1101, 0, %s1100
                  %s1103 = smul.u32 %s1102, 8
                  %s1104 = smul.u32 %s1102, 8
                  %s1105 = scalar_lea.vmem %s1072, %s1103
                  %s1106 = scalar_lea.vmem %s1074, %s1104 [#allocation4]
                $region166: #{wkv7.1} parent=153 // loop_footer
                  %s1078 = sadd.s32 %s1076, 1
                $region167: #{wkv7.1} parent=153 // loop_footer_branch
                  %1075 = sbr.rel target = $region163
                $region168: #{wkv7.1} parent=153 // loop_exit
                  _
              $region154: #{wkv7.1} parent=131 // pred_fallthru
                _
              // Predicated region
              $region169: #{wkv7.1} parent=131 // pred_check
                _
              $region170: #{wkv7.1} parent=131 // pred_check_branch
                %1108 = sbr.rel target = $region172
              $region171: #{wkv7.1} parent=131 // pred_region
                _
              $region172: #{wkv7.1} parent=131 // pred_fallthru
                _
            $region132: #{wkv7.1} parent=127 // pred_fallthru
              _
            // Predicated region
            $region133: #{wkv7.1} parent=127 // pred_check
              _
            $region134: #{wkv7.1} parent=127 // pred_check_branch
              %863 = sbr.rel target = $region136
            $region135: #{wkv7.1} parent=127 // pred_region
              %s865 = sshrl.u32 %s850, 2
              // While loop
              $region137: #{wkv7.1} parent=135 // loop_pre_header
                _
              $region138: #{wkv7.1} parent=135 // loop_header
                %s867 = sphi 0, %s869
                %p868 = scmp.ge.s32.totalorder %s867, %s865
                %s872 = sphi 0, %s941
                %s873 = sphi %s856, %s944
                %s874 = sphi %s845, %s945
              $region139: #{wkv7.1} parent=135 // loop_header_branch
                %871 = sbr.rel (%p868) target = $region143
              $region140: #{wkv7.1} parent=135 // loop_body
                %v875 = vld [vmem:[%s873] sm:$0xff]
                %876 = vst [vmem:[%s874] sm:$0xff] %v875
                %v877 = vld [vmem:[%s873 + $0x8] sm:$0xff]
                %878 = vst [vmem:[%s874 + $0x8] sm:$0xff] %v877
                %v879 = vld [vmem:[%s873 + $0x10] sm:$0xff]
                %880 = vst [vmem:[%s874 + $0x10] sm:$0xff] %v879
                %v881 = vld [vmem:[%s873 + $0x18] sm:$0xff]
                %882 = vst [vmem:[%s874 + $0x18] sm:$0xff] %v881
                %v883 = vld [vmem:[%s873 + $0x48] sm:$0xff]
                %884 = vst [vmem:[%s874 + $0x20] sm:$0xff] %v883
                %v885 = vld [vmem:[%s873 + $0x50] sm:$0xff]
                %886 = vst [vmem:[%s874 + $0x28] sm:$0xff] %v885
                %v887 = vld [vmem:[%s873 + $0x58] sm:$0xff]
                %888 = vst [vmem:[%s874 + $0x30] sm:$0xff] %v887
                %v889 = vld [vmem:[%s873 + $0x60] sm:$0xff]
                %890 = vst [vmem:[%s874 + $0x38] sm:$0xff] %v889
                %v891 = vld [vmem:[%s873 + $0x90] sm:$0xff]
                %892 = vst [vmem:[%s874 + $0x40] sm:$0xff] %v891
                %v893 = vld [vmem:[%s873 + $0x98] sm:$0xff]
                %894 = vst [vmem:[%s874 + $0x48] sm:$0xff] %v893
                %v895 = vld [vmem:[%s873 + $0xa0] sm:$0xff]
                %896 = vst [vmem:[%s874 + $0x50] sm:$0xff] %v895
                %v897 = vld [vmem:[%s873 + $0xa8] sm:$0xff]
                %898 = vst [vmem:[%s874 + $0x58] sm:$0xff] %v897
                %v899 = vld [vmem:[%s873 + $0xd8] sm:$0xff]
                %900 = vst [vmem:[%s874 + $0x60] sm:$0xff] %v899
                %v901 = vld [vmem:[%s873 + $0xe0] sm:$0xff]
                %902 = vst [vmem:[%s874 + $0x68] sm:$0xff] %v901
                %v903 = vld [vmem:[%s873 + $0xe8] sm:$0xff]
                %904 = vst [vmem:[%s874 + $0x70] sm:$0xff] %v903
                %v905 = vld [vmem:[%s873 + $0xf0] sm:$0xff]
                %906 = vst [vmem:[%s874 + $0x78] sm:$0xff] %v905
                %v907 = vld [vmem:[%s873 + $0x120] sm:$0xff]
                %908 = vst [vmem:[%s874 + $0x80] sm:$0xff] %v907
                %v909 = vld [vmem:[%s873 + $0x128] sm:$0xff]
                %910 = vst [vmem:[%s874 + $0x88] sm:$0xff] %v909
                %v911 = vld [vmem:[%s873 + $0x130] sm:$0xff]
                %912 = vst [vmem:[%s874 + $0x90] sm:$0xff] %v911
                %v913 = vld [vmem:[%s873 + $0x138] sm:$0xff]
                %914 = vst [vmem:[%s874 + $0x98] sm:$0xff] %v913
                %v915 = vld [vmem:[%s873 + $0x168] sm:$0xff]
                %916 = vst [vmem:[%s874 + $0xa0] sm:$0xff] %v915
                %v917 = vld [vmem:[%s873 + $0x170] sm:$0xff]
                %918 = vst [vmem:[%s874 + $0xa8] sm:$0xff] %v917
                %v919 = vld [vmem:[%s873 + $0x178] sm:$0xff]
                %920 = vst [vmem:[%s874 + $0xb0] sm:$0xff] %v919
                %v921 = vld [vmem:[%s873 + $0x180] sm:$0xff]
                %922 = vst [vmem:[%s874 + $0xb8] sm:$0xff] %v921
                %v923 = vld [vmem:[%s873 + $0x1b0] sm:$0xff]
                %924 = vst [vmem:[%s874 + $0xc0] sm:$0xff] %v923
                %v925 = vld [vmem:[%s873 + $0x1b8] sm:$0xff]
                %926 = vst [vmem:[%s874 + $0xc8] sm:$0xff] %v925
                %v927 = vld [vmem:[%s873 + $0x1c0] sm:$0xff]
                %928 = vst [vmem:[%s874 + $0xd0] sm:$0xff] %v927
                %v929 = vld [vmem:[%s873 + $0x1c8] sm:$0xff]
                %930 = vst [vmem:[%s874 + $0xd8] sm:$0xff] %v929
                %v931 = vld [vmem:[%s873 + $0x1f8] sm:$0xff]
                %932 = vst [vmem:[%s874 + $0xe0] sm:$0xff] %v931
                %v933 = vld [vmem:[%s873 + $0x200] sm:$0xff]
                %934 = vst [vmem:[%s874 + $0xe8] sm:$0xff] %v933
                %v935 = vld [vmem:[%s873 + $0x208] sm:$0xff]
                %936 = vst [vmem:[%s874 + $0xf0] sm:$0xff] %v935
                %v937 = vld [vmem:[%s873 + $0x210] sm:$0xff]
                %938 = vst [vmem:[%s874 + $0xf8] sm:$0xff] %v937
                %s939 = sadd.s32 1, %s872
                %p940 = scmp.ge.s32.totalorder %s939, %s865
                %s941 = scalar_select %p940, 0, %s939
                %s942 = smul.u32 %s941, 32
                %s943 = smul.u32 %s941, 32
                %s944 = scalar_lea.vmem %s856, %s942
                %s945 = scalar_lea.vmem %s845, %s943 [#allocation4]
              $region141: #{wkv7.1} parent=135 // loop_footer
                %s869 = sadd.s32 %s867, 1
              $region142: #{wkv7.1} parent=135 // loop_footer_branch
                %866 = sbr.rel target = $region138
              $region143: #{wkv7.1} parent=135 // loop_exit
                _
              %s946 = sshrl.u32 %s850, 2
              %s947 = sand.u32 %s850, 3
              %s948 = smul.u32 %s946, 4
              %s949 = smul.u32 8, %s948
              %s950 = scalar_lea.vmem %s856, %s949
              %s951 = smul.u32 8, %s948
              %s952 = scalar_lea.vmem %s845, %s951 [#allocation4]
              // While loop
              $region144: #{wkv7.1} parent=135 // loop_pre_header
                _
              $region145: #{wkv7.1} parent=135 // loop_header
                %s954 = sphi 0, %s956
                %p955 = scmp.ge.s32.totalorder %s954, %s947
                %s959 = sphi 0, %s980
                %s960 = sphi %s950, %s983
                %s961 = sphi %s952, %s984
              $region146: #{wkv7.1} parent=135 // loop_header_branch
                %958 = sbr.rel (%p955) target = $region150
              $region147: #{wkv7.1} parent=135 // loop_body
                %v962 = vld [vmem:[%s960] sm:$0xff]
                %963 = vst [vmem:[%s961] sm:$0xff] %v962
                %v964 = vld [vmem:[%s960 + $0x48] sm:$0xff]
                %965 = vst [vmem:[%s961 + $0x20] sm:$0xff] %v964
                %v966 = vld [vmem:[%s960 + $0x90] sm:$0xff]
                %967 = vst [vmem:[%s961 + $0x40] sm:$0xff] %v966
                %v968 = vld [vmem:[%s960 + $0xd8] sm:$0xff]
                %969 = vst [vmem:[%s961 + $0x60] sm:$0xff] %v968
                %v970 = vld [vmem:[%s960 + $0x120] sm:$0xff]
                %971 = vst [vmem:[%s961 + $0x80] sm:$0xff] %v970
                %v972 = vld [vmem:[%s960 + $0x168] sm:$0xff]
                %973 = vst [vmem:[%s961 + $0xa0] sm:$0xff] %v972
                %v974 = vld [vmem:[%s960 + $0x1b0] sm:$0xff]
                %975 = vst [vmem:[%s961 + $0xc0] sm:$0xff] %v974
                %v976 = vld [vmem:[%s960 + $0x1f8] sm:$0xff]
                %977 = vst [vmem:[%s961 + $0xe0] sm:$0xff] %v976
                %s978 = sadd.s32 1, %s959
                %p979 = scmp.ge.s32.totalorder %s978, %s947
                %s980 = scalar_select %p979, 0, %s978
                %s981 = smul.u32 %s980, 8
                %s982 = smul.u32 %s980, 8
                %s983 = scalar_lea.vmem %s950, %s981
                %s984 = scalar_lea.vmem %s952, %s982 [#allocation4]
              $region148: #{wkv7.1} parent=135 // loop_footer
                %s956 = sadd.s32 %s954, 1
              $region149: #{wkv7.1} parent=135 // loop_footer_branch
                %953 = sbr.rel target = $region145
              $region150: #{wkv7.1} parent=135 // loop_exit
                _
            $region136: #{wkv7.1} parent=127 // pred_fallthru
              _
          $region128: #{wkv7.1} parent=123 // pred_fallthru
            _
          %1109 = vnop
        $region124: #{wkv7.1} parent=15 // pred_fallthru
          _
        // Predicated region
        $region173: #{wkv7.1} parent=15 // pred_check
          %p1110 = pneg %p136
        $region174: #{wkv7.1} parent=15 // pred_check_branch
          %1112 = sbr.rel (%p1110) target = $region176
        $region175: #{wkv7.1} parent=15 // pred_region
          %s1113 = sand.u32 %s126, 1
          %s1114 = sand.u32 %s126, 1
          %s1115 = smul.addr %s1114, 256
          %s1116 = scalar_lea.vmem [#allocation5], %s1115
          %s1117 = smul.u32 8, %s25
          %s1118 = smul.u32 4, %s26
          %s1119 = ssub.s32 9, %s1118
          %p1120 = scmp.lt.s32.totalorder %s1119, 4
          %s1121 = scalar_select %p1120, %s1119, 4
          %s1122 = smul.u32 1024, %s1121
          %p1123 = scmp.ne.s32.totalorder 0, %s1122
          %s1124 = smul.addr %s1117, 9
          %s1125 = sadd.s32 %s1118, %s1124
          %s1126 = smul.addr %s1125, 8
          %s1127 = scalar_lea.vmem %s3, %s1126
          // Predicated region
          $region177: #{wkv7.1} parent=175 // pred_check
            %p1128 = pneg %p1123
          $region178: #{wkv7.1} parent=175 // pred_check_branch
            %1130 = sbr.rel (%p1128) target = $region180
          $region179: #{wkv7.1} parent=175 // pred_region
            // Predicated region
            $region181: #{wkv7.1} parent=179 // pred_check
              _
            $region182: #{wkv7.1} parent=179 // pred_check_branch
              %1132 = sbr.rel (0) target = $region184
            $region183: #{wkv7.1} parent=179 // pred_region
              // Predicated region
              $region203: #{wkv7.1} parent=183 // pred_check
                _
              $region204: #{wkv7.1} parent=183 // pred_check_branch
                %1257 = sbr.rel (0) target = $region206
              $region205: #{wkv7.1} parent=183 // pred_region
                %s1258 = sshrl.u32 %s1121, 2
                // While loop
                $region207: #{wkv7.1} parent=205 // loop_pre_header
                  _
                $region208: #{wkv7.1} parent=205 // loop_header
                  %s1260 = sphi 0, %s1262
                  %p1261 = scmp.ge.s32.totalorder %s1260, %s1258
                  %s1265 = sphi 0, %s1334
                  %s1266 = sphi %s1127, %s1337
                  %s1267 = sphi %s1116, %s1338
                $region209: #{wkv7.1} parent=205 // loop_header_branch
                  %1264 = sbr.rel (%p1261) target = $region213
                $region210: #{wkv7.1} parent=205 // loop_body
                  %v1268 = vld [vmem:[%s1266] sm:$0xff]
                  %1269 = vst [vmem:[%s1267] sm:$0xff] %v1268
                  %v1270 = vld [vmem:[%s1266 + $0x8] sm:$0xff]
                  %1271 = vst [vmem:[%s1267 + $0x8] sm:$0xff] %v1270
                  %v1272 = vld [vmem:[%s1266 + $0x10] sm:$0xff]
                  %1273 = vst [vmem:[%s1267 + $0x10] sm:$0xff] %v1272
                  %v1274 = vld [vmem:[%s1266 + $0x18] sm:$0xff]
                  %1275 = vst [vmem:[%s1267 + $0x18] sm:$0xff] %v1274
                  %v1276 = vld [vmem:[%s1266 + $0x48] sm:$0xff]
                  %1277 = vst [vmem:[%s1267 + $0x20] sm:$0xff] %v1276
                  %v1278 = vld [vmem:[%s1266 + $0x50] sm:$0xff]
                  %1279 = vst [vmem:[%s1267 + $0x28] sm:$0xff] %v1278
                  %v1280 = vld [vmem:[%s1266 + $0x58] sm:$0xff]
                  %1281 = vst [vmem:[%s1267 + $0x30] sm:$0xff] %v1280
                  %v1282 = vld [vmem:[%s1266 + $0x60] sm:$0xff]
                  %1283 = vst [vmem:[%s1267 + $0x38] sm:$0xff] %v1282
                  %v1284 = vld [vmem:[%s1266 + $0x90] sm:$0xff]
                  %1285 = vst [vmem:[%s1267 + $0x40] sm:$0xff] %v1284
                  %v1286 = vld [vmem:[%s1266 + $0x98] sm:$0xff]
                  %1287 = vst [vmem:[%s1267 + $0x48] sm:$0xff] %v1286
                  %v1288 = vld [vmem:[%s1266 + $0xa0] sm:$0xff]
                  %1289 = vst [vmem:[%s1267 + $0x50] sm:$0xff] %v1288
                  %v1290 = vld [vmem:[%s1266 + $0xa8] sm:$0xff]
                  %1291 = vst [vmem:[%s1267 + $0x58] sm:$0xff] %v1290
                  %v1292 = vld [vmem:[%s1266 + $0xd8] sm:$0xff]
                  %1293 = vst [vmem:[%s1267 + $0x60] sm:$0xff] %v1292
                  %v1294 = vld [vmem:[%s1266 + $0xe0] sm:$0xff]
                  %1295 = vst [vmem:[%s1267 + $0x68] sm:$0xff] %v1294
                  %v1296 = vld [vmem:[%s1266 + $0xe8] sm:$0xff]
                  %1297 = vst [vmem:[%s1267 + $0x70] sm:$0xff] %v1296
                  %v1298 = vld [vmem:[%s1266 + $0xf0] sm:$0xff]
                  %1299 = vst [vmem:[%s1267 + $0x78] sm:$0xff] %v1298
                  %v1300 = vld [vmem:[%s1266 + $0x120] sm:$0xff]
                  %1301 = vst [vmem:[%s1267 + $0x80] sm:$0xff] %v1300
                  %v1302 = vld [vmem:[%s1266 + $0x128] sm:$0xff]
                  %1303 = vst [vmem:[%s1267 + $0x88] sm:$0xff] %v1302
                  %v1304 = vld [vmem:[%s1266 + $0x130] sm:$0xff]
                  %1305 = vst [vmem:[%s1267 + $0x90] sm:$0xff] %v1304
                  %v1306 = vld [vmem:[%s1266 + $0x138] sm:$0xff]
                  %1307 = vst [vmem:[%s1267 + $0x98] sm:$0xff] %v1306
                  %v1308 = vld [vmem:[%s1266 + $0x168] sm:$0xff]
                  %1309 = vst [vmem:[%s1267 + $0xa0] sm:$0xff] %v1308
                  %v1310 = vld [vmem:[%s1266 + $0x170] sm:$0xff]
                  %1311 = vst [vmem:[%s1267 + $0xa8] sm:$0xff] %v1310
                  %v1312 = vld [vmem:[%s1266 + $0x178] sm:$0xff]
                  %1313 = vst [vmem:[%s1267 + $0xb0] sm:$0xff] %v1312
                  %v1314 = vld [vmem:[%s1266 + $0x180] sm:$0xff]
                  %1315 = vst [vmem:[%s1267 + $0xb8] sm:$0xff] %v1314
                  %v1316 = vld [vmem:[%s1266 + $0x1b0] sm:$0xff]
                  %1317 = vst [vmem:[%s1267 + $0xc0] sm:$0xff] %v1316
                  %v1318 = vld [vmem:[%s1266 + $0x1b8] sm:$0xff]
                  %1319 = vst [vmem:[%s1267 + $0xc8] sm:$0xff] %v1318
                  %v1320 = vld [vmem:[%s1266 + $0x1c0] sm:$0xff]
                  %1321 = vst [vmem:[%s1267 + $0xd0] sm:$0xff] %v1320
                  %v1322 = vld [vmem:[%s1266 + $0x1c8] sm:$0xff]
                  %1323 = vst [vmem:[%s1267 + $0xd8] sm:$0xff] %v1322
                  %v1324 = vld [vmem:[%s1266 + $0x1f8] sm:$0xff]
                  %1325 = vst [vmem:[%s1267 + $0xe0] sm:$0xff] %v1324
                  %v1326 = vld [vmem:[%s1266 + $0x200] sm:$0xff]
                  %1327 = vst [vmem:[%s1267 + $0xe8] sm:$0xff] %v1326
                  %v1328 = vld [vmem:[%s1266 + $0x208] sm:$0xff]
                  %1329 = vst [vmem:[%s1267 + $0xf0] sm:$0xff] %v1328
                  %v1330 = vld [vmem:[%s1266 + $0x210] sm:$0xff]
                  %1331 = vst [vmem:[%s1267 + $0xf8] sm:$0xff] %v1330
                  %s1332 = sadd.s32 1, %s1265
                  %p1333 = scmp.ge.s32.totalorder %s1332, %s1258
                  %s1334 = scalar_select %p1333, 0, %s1332
                  %s1335 = smul.u32 %s1334, 32
                  %s1336 = smul.u32 %s1334, 32
                  %s1337 = scalar_lea.vmem %s1127, %s1335
                  %s1338 = scalar_lea.vmem %s1116, %s1336 [#allocation5]
                $region211: #{wkv7.1} parent=205 // loop_footer
                  %s1262 = sadd.s32 %s1260, 1
                $region212: #{wkv7.1} parent=205 // loop_footer_branch
                  %1259 = sbr.rel target = $region208
                $region213: #{wkv7.1} parent=205 // loop_exit
                  _
                %s1339 = sshrl.u32 %s1121, 2
                %s1340 = sand.u32 %s1121, 3
                %s1341 = smul.u32 %s1339, 4
                %s1342 = smul.u32 8, %s1341
                %s1343 = scalar_lea.vmem %s1127, %s1342
                %s1344 = smul.u32 8, %s1341
                %s1345 = scalar_lea.vmem %s1116, %s1344 [#allocation5]
                // While loop
                $region214: #{wkv7.1} parent=205 // loop_pre_header
                  _
                $region215: #{wkv7.1} parent=205 // loop_header
                  %s1347 = sphi 0, %s1349
                  %p1348 = scmp.ge.s32.totalorder %s1347, %s1340
                  %s1352 = sphi 0, %s1373
                  %s1353 = sphi %s1343, %s1376
                  %s1354 = sphi %s1345, %s1377
                $region216: #{wkv7.1} parent=205 // loop_header_branch
                  %1351 = sbr.rel (%p1348) target = $region220
                $region217: #{wkv7.1} parent=205 // loop_body
                  %v1355 = vld [vmem:[%s1353] sm:$0xff]
                  %1356 = vst [vmem:[%s1354] sm:$0xff] %v1355
                  %v1357 = vld [vmem:[%s1353 + $0x48] sm:$0xff]
                  %1358 = vst [vmem:[%s1354 + $0x20] sm:$0xff] %v1357
                  %v1359 = vld [vmem:[%s1353 + $0x90] sm:$0xff]
                  %1360 = vst [vmem:[%s1354 + $0x40] sm:$0xff] %v1359
                  %v1361 = vld [vmem:[%s1353 + $0xd8] sm:$0xff]
                  %1362 = vst [vmem:[%s1354 + $0x60] sm:$0xff] %v1361
                  %v1363 = vld [vmem:[%s1353 + $0x120] sm:$0xff]
                  %1364 = vst [vmem:[%s1354 + $0x80] sm:$0xff] %v1363
                  %v1365 = vld [vmem:[%s1353 + $0x168] sm:$0xff]
                  %1366 = vst [vmem:[%s1354 + $0xa0] sm:$0xff] %v1365
                  %v1367 = vld [vmem:[%s1353 + $0x1b0] sm:$0xff]
                  %1368 = vst [vmem:[%s1354 + $0xc0] sm:$0xff] %v1367
                  %v1369 = vld [vmem:[%s1353 + $0x1f8] sm:$0xff]
                  %1370 = vst [vmem:[%s1354 + $0xe0] sm:$0xff] %v1369
                  %s1371 = sadd.s32 1, %s1352
                  %p1372 = scmp.ge.s32.totalorder %s1371, %s1340
                  %s1373 = scalar_select %p1372, 0, %s1371
                  %s1374 = smul.u32 %s1373, 8
                  %s1375 = smul.u32 %s1373, 8
                  %s1376 = scalar_lea.vmem %s1343, %s1374
                  %s1377 = scalar_lea.vmem %s1345, %s1375 [#allocation5]
                $region218: #{wkv7.1} parent=205 // loop_footer
                  %s1349 = sadd.s32 %s1347, 1
                $region219: #{wkv7.1} parent=205 // loop_footer_branch
                  %1346 = sbr.rel target = $region215
                $region220: #{wkv7.1} parent=205 // loop_exit
                  _
              $region206: #{wkv7.1} parent=183 // pred_fallthru
                _
              // Predicated region
              $region221: #{wkv7.1} parent=183 // pred_check
                _
              $region222: #{wkv7.1} parent=183 // pred_check_branch
                %1379 = sbr.rel target = $region224
              $region223: #{wkv7.1} parent=183 // pred_region
                _
              $region224: #{wkv7.1} parent=183 // pred_fallthru
                _
            $region184: #{wkv7.1} parent=179 // pred_fallthru
              _
            // Predicated region
            $region185: #{wkv7.1} parent=179 // pred_check
              _
            $region186: #{wkv7.1} parent=179 // pred_check_branch
              %1134 = sbr.rel target = $region188
            $region187: #{wkv7.1} parent=179 // pred_region
              %s1136 = sshrl.u32 %s1121, 2
              // While loop
              $region189: #{wkv7.1} parent=187 // loop_pre_header
                _
              $region190: #{wkv7.1} parent=187 // loop_header
                %s1138 = sphi 0, %s1140
                %p1139 = scmp.ge.s32.totalorder %s1138, %s1136
                %s1143 = sphi 0, %s1212
                %s1144 = sphi %s1127, %s1215
                %s1145 = sphi %s1116, %s1216
              $region191: #{wkv7.1} parent=187 // loop_header_branch
                %1142 = sbr.rel (%p1139) target = $region195
              $region192: #{wkv7.1} parent=187 // loop_body
                %v1146 = vld [vmem:[%s1144] sm:$0xff]
                %1147 = vst [vmem:[%s1145] sm:$0xff] %v1146
                %v1148 = vld [vmem:[%s1144 + $0x8] sm:$0xff]
                %1149 = vst [vmem:[%s1145 + $0x8] sm:$0xff] %v1148
                %v1150 = vld [vmem:[%s1144 + $0x10] sm:$0xff]
                %1151 = vst [vmem:[%s1145 + $0x10] sm:$0xff] %v1150
                %v1152 = vld [vmem:[%s1144 + $0x18] sm:$0xff]
                %1153 = vst [vmem:[%s1145 + $0x18] sm:$0xff] %v1152
                %v1154 = vld [vmem:[%s1144 + $0x48] sm:$0xff]
                %1155 = vst [vmem:[%s1145 + $0x20] sm:$0xff] %v1154
                %v1156 = vld [vmem:[%s1144 + $0x50] sm:$0xff]
                %1157 = vst [vmem:[%s1145 + $0x28] sm:$0xff] %v1156
                %v1158 = vld [vmem:[%s1144 + $0x58] sm:$0xff]
                %1159 = vst [vmem:[%s1145 + $0x30] sm:$0xff] %v1158
                %v1160 = vld [vmem:[%s1144 + $0x60] sm:$0xff]
                %1161 = vst [vmem:[%s1145 + $0x38] sm:$0xff] %v1160
                %v1162 = vld [vmem:[%s1144 + $0x90] sm:$0xff]
                %1163 = vst [vmem:[%s1145 + $0x40] sm:$0xff] %v1162
                %v1164 = vld [vmem:[%s1144 + $0x98] sm:$0xff]
                %1165 = vst [vmem:[%s1145 + $0x48] sm:$0xff] %v1164
                %v1166 = vld [vmem:[%s1144 + $0xa0] sm:$0xff]
                %1167 = vst [vmem:[%s1145 + $0x50] sm:$0xff] %v1166
                %v1168 = vld [vmem:[%s1144 + $0xa8] sm:$0xff]
                %1169 = vst [vmem:[%s1145 + $0x58] sm:$0xff] %v1168
                %v1170 = vld [vmem:[%s1144 + $0xd8] sm:$0xff]
                %1171 = vst [vmem:[%s1145 + $0x60] sm:$0xff] %v1170
                %v1172 = vld [vmem:[%s1144 + $0xe0] sm:$0xff]
                %1173 = vst [vmem:[%s1145 + $0x68] sm:$0xff] %v1172
                %v1174 = vld [vmem:[%s1144 + $0xe8] sm:$0xff]
                %1175 = vst [vmem:[%s1145 + $0x70] sm:$0xff] %v1174
                %v1176 = vld [vmem:[%s1144 + $0xf0] sm:$0xff]
                %1177 = vst [vmem:[%s1145 + $0x78] sm:$0xff] %v1176
                %v1178 = vld [vmem:[%s1144 + $0x120] sm:$0xff]
                %1179 = vst [vmem:[%s1145 + $0x80] sm:$0xff] %v1178
                %v1180 = vld [vmem:[%s1144 + $0x128] sm:$0xff]
                %1181 = vst [vmem:[%s1145 + $0x88] sm:$0xff] %v1180
                %v1182 = vld [vmem:[%s1144 + $0x130] sm:$0xff]
                %1183 = vst [vmem:[%s1145 + $0x90] sm:$0xff] %v1182
                %v1184 = vld [vmem:[%s1144 + $0x138] sm:$0xff]
                %1185 = vst [vmem:[%s1145 + $0x98] sm:$0xff] %v1184
                %v1186 = vld [vmem:[%s1144 + $0x168] sm:$0xff]
                %1187 = vst [vmem:[%s1145 + $0xa0] sm:$0xff] %v1186
                %v1188 = vld [vmem:[%s1144 + $0x170] sm:$0xff]
                %1189 = vst [vmem:[%s1145 + $0xa8] sm:$0xff] %v1188
                %v1190 = vld [vmem:[%s1144 + $0x178] sm:$0xff]
                %1191 = vst [vmem:[%s1145 + $0xb0] sm:$0xff] %v1190
                %v1192 = vld [vmem:[%s1144 + $0x180] sm:$0xff]
                %1193 = vst [vmem:[%s1145 + $0xb8] sm:$0xff] %v1192
                %v1194 = vld [vmem:[%s1144 + $0x1b0] sm:$0xff]
                %1195 = vst [vmem:[%s1145 + $0xc0] sm:$0xff] %v1194
                %v1196 = vld [vmem:[%s1144 + $0x1b8] sm:$0xff]
                %1197 = vst [vmem:[%s1145 + $0xc8] sm:$0xff] %v1196
                %v1198 = vld [vmem:[%s1144 + $0x1c0] sm:$0xff]
                %1199 = vst [vmem:[%s1145 + $0xd0] sm:$0xff] %v1198
                %v1200 = vld [vmem:[%s1144 + $0x1c8] sm:$0xff]
                %1201 = vst [vmem:[%s1145 + $0xd8] sm:$0xff] %v1200
                %v1202 = vld [vmem:[%s1144 + $0x1f8] sm:$0xff]
                %1203 = vst [vmem:[%s1145 + $0xe0] sm:$0xff] %v1202
                %v1204 = vld [vmem:[%s1144 + $0x200] sm:$0xff]
                %1205 = vst [vmem:[%s1145 + $0xe8] sm:$0xff] %v1204
                %v1206 = vld [vmem:[%s1144 + $0x208] sm:$0xff]
                %1207 = vst [vmem:[%s1145 + $0xf0] sm:$0xff] %v1206
                %v1208 = vld [vmem:[%s1144 + $0x210] sm:$0xff]
                %1209 = vst [vmem:[%s1145 + $0xf8] sm:$0xff] %v1208
                %s1210 = sadd.s32 1, %s1143
                %p1211 = scmp.ge.s32.totalorder %s1210, %s1136
                %s1212 = scalar_select %p1211, 0, %s1210
                %s1213 = smul.u32 %s1212, 32
                %s1214 = smul.u32 %s1212, 32
                %s1215 = scalar_lea.vmem %s1127, %s1213
                %s1216 = scalar_lea.vmem %s1116, %s1214 [#allocation5]
              $region193: #{wkv7.1} parent=187 // loop_footer
                %s1140 = sadd.s32 %s1138, 1
              $region194: #{wkv7.1} parent=187 // loop_footer_branch
                %1137 = sbr.rel target = $region190
              $region195: #{wkv7.1} parent=187 // loop_exit
                _
              %s1217 = sshrl.u32 %s1121, 2
              %s1218 = sand.u32 %s1121, 3
              %s1219 = smul.u32 %s1217, 4
              %s1220 = smul.u32 8, %s1219
              %s1221 = scalar_lea.vmem %s1127, %s1220
              %s1222 = smul.u32 8, %s1219
              %s1223 = scalar_lea.vmem %s1116, %s1222 [#allocation5]
              // While loop
              $region196: #{wkv7.1} parent=187 // loop_pre_header
                _
              $region197: #{wkv7.1} parent=187 // loop_header
                %s1225 = sphi 0, %s1227
                %p1226 = scmp.ge.s32.totalorder %s1225, %s1218
                %s1230 = sphi 0, %s1251
                %s1231 = sphi %s1221, %s1254
                %s1232 = sphi %s1223, %s1255
              $region198: #{wkv7.1} parent=187 // loop_header_branch
                %1229 = sbr.rel (%p1226) target = $region202
              $region199: #{wkv7.1} parent=187 // loop_body
                %v1233 = vld [vmem:[%s1231] sm:$0xff]
                %1234 = vst [vmem:[%s1232] sm:$0xff] %v1233
                %v1235 = vld [vmem:[%s1231 + $0x48] sm:$0xff]
                %1236 = vst [vmem:[%s1232 + $0x20] sm:$0xff] %v1235
                %v1237 = vld [vmem:[%s1231 + $0x90] sm:$0xff]
                %1238 = vst [vmem:[%s1232 + $0x40] sm:$0xff] %v1237
                %v1239 = vld [vmem:[%s1231 + $0xd8] sm:$0xff]
                %1240 = vst [vmem:[%s1232 + $0x60] sm:$0xff] %v1239
                %v1241 = vld [vmem:[%s1231 + $0x120] sm:$0xff]
                %1242 = vst [vmem:[%s1232 + $0x80] sm:$0xff] %v1241
                %v1243 = vld [vmem:[%s1231 + $0x168] sm:$0xff]
                %1244 = vst [vmem:[%s1232 + $0xa0] sm:$0xff] %v1243
                %v1245 = vld [vmem:[%s1231 + $0x1b0] sm:$0xff]
                %1246 = vst [vmem:[%s1232 + $0xc0] sm:$0xff] %v1245
                %v1247 = vld [vmem:[%s1231 + $0x1f8] sm:$0xff]
                %1248 = vst [vmem:[%s1232 + $0xe0] sm:$0xff] %v1247
                %s1249 = sadd.s32 1, %s1230
                %p1250 = scmp.ge.s32.totalorder %s1249, %s1218
                %s1251 = scalar_select %p1250, 0, %s1249
                %s1252 = smul.u32 %s1251, 8
                %s1253 = smul.u32 %s1251, 8
                %s1254 = scalar_lea.vmem %s1221, %s1252
                %s1255 = scalar_lea.vmem %s1223, %s1253 [#allocation5]
              $region200: #{wkv7.1} parent=187 // loop_footer
                %s1227 = sadd.s32 %s1225, 1
              $region201: #{wkv7.1} parent=187 // loop_footer_branch
                %1224 = sbr.rel target = $region197
              $region202: #{wkv7.1} parent=187 // loop_exit
                _
            $region188: #{wkv7.1} parent=179 // pred_fallthru
              _
          $region180: #{wkv7.1} parent=175 // pred_fallthru
            _
          %1380 = vnop
        $region176: #{wkv7.1} parent=15 // pred_fallthru
          _
        // Predicated region
        $region225: #{wkv7.1} parent=15 // pred_check
          %p1381 = pneg %p164
        $region226: #{wkv7.1} parent=15 // pred_check_branch
          %1383 = sbr.rel (%p1381) target = $region228
        $region227: #{wkv7.1} parent=15 // pred_region
          %s1384 = sand.u32 %s154, 1
          %s1385 = sand.u32 %s154, 1
          %s1386 = smul.addr %s1385, 256
          %s1387 = scalar_lea.vmem [#allocation6], %s1386
          %s1388 = smul.u32 8, %s25
          %s1389 = smul.u32 4, %s26
          %s1390 = ssub.s32 9, %s1389
          %p1391 = scmp.lt.s32.totalorder %s1390, 4
          %s1392 = scalar_select %p1391, %s1390, 4
          %s1393 = smul.u32 1024, %s1392
          %p1394 = scmp.ne.s32.totalorder 0, %s1393
          %s1395 = smul.addr %s1388, 9
          %s1396 = sadd.s32 %s1389, %s1395
          %s1397 = smul.addr %s1396, 8
          %s1398 = scalar_lea.vmem %s4, %s1397
          // Predicated region
          $region229: #{wkv7.1} parent=227 // pred_check
            %p1399 = pneg %p1394
          $region230: #{wkv7.1} parent=227 // pred_check_branch
            %1401 = sbr.rel (%p1399) target = $region232
          $region231: #{wkv7.1} parent=227 // pred_region
            // Predicated region
            $region233: #{wkv7.1} parent=231 // pred_check
              _
            $region234: #{wkv7.1} parent=231 // pred_check_branch
              %1403 = sbr.rel (0) target = $region236
            $region235: #{wkv7.1} parent=231 // pred_region
              // Predicated region
              $region255: #{wkv7.1} parent=235 // pred_check
                _
              $region256: #{wkv7.1} parent=235 // pred_check_branch
                %1528 = sbr.rel (0) target = $region258
              $region257: #{wkv7.1} parent=235 // pred_region
                %s1529 = sshrl.u32 %s1392, 2
                // While loop
                $region259: #{wkv7.1} parent=257 // loop_pre_header
                  _
                $region260: #{wkv7.1} parent=257 // loop_header
                  %s1531 = sphi 0, %s1533
                  %p1532 = scmp.ge.s32.totalorder %s1531, %s1529
                  %s1536 = sphi 0, %s1605
                  %s1537 = sphi %s1398, %s1608
                  %s1538 = sphi %s1387, %s1609
                $region261: #{wkv7.1} parent=257 // loop_header_branch
                  %1535 = sbr.rel (%p1532) target = $region265
                $region262: #{wkv7.1} parent=257 // loop_body
                  %v1539 = vld [vmem:[%s1537] sm:$0xff]
                  %1540 = vst [vmem:[%s1538] sm:$0xff] %v1539
                  %v1541 = vld [vmem:[%s1537 + $0x8] sm:$0xff]
                  %1542 = vst [vmem:[%s1538 + $0x8] sm:$0xff] %v1541
                  %v1543 = vld [vmem:[%s1537 + $0x10] sm:$0xff]
                  %1544 = vst [vmem:[%s1538 + $0x10] sm:$0xff] %v1543
                  %v1545 = vld [vmem:[%s1537 + $0x18] sm:$0xff]
                  %1546 = vst [vmem:[%s1538 + $0x18] sm:$0xff] %v1545
                  %v1547 = vld [vmem:[%s1537 + $0x48] sm:$0xff]
                  %1548 = vst [vmem:[%s1538 + $0x20] sm:$0xff] %v1547
                  %v1549 = vld [vmem:[%s1537 + $0x50] sm:$0xff]
                  %1550 = vst [vmem:[%s1538 + $0x28] sm:$0xff] %v1549
                  %v1551 = vld [vmem:[%s1537 + $0x58] sm:$0xff]
                  %1552 = vst [vmem:[%s1538 + $0x30] sm:$0xff] %v1551
                  %v1553 = vld [vmem:[%s1537 + $0x60] sm:$0xff]
                  %1554 = vst [vmem:[%s1538 + $0x38] sm:$0xff] %v1553
                  %v1555 = vld [vmem:[%s1537 + $0x90] sm:$0xff]
                  %1556 = vst [vmem:[%s1538 + $0x40] sm:$0xff] %v1555
                  %v1557 = vld [vmem:[%s1537 + $0x98] sm:$0xff]
                  %1558 = vst [vmem:[%s1538 + $0x48] sm:$0xff] %v1557
                  %v1559 = vld [vmem:[%s1537 + $0xa0] sm:$0xff]
                  %1560 = vst [vmem:[%s1538 + $0x50] sm:$0xff] %v1559
                  %v1561 = vld [vmem:[%s1537 + $0xa8] sm:$0xff]
                  %1562 = vst [vmem:[%s1538 + $0x58] sm:$0xff] %v1561
                  %v1563 = vld [vmem:[%s1537 + $0xd8] sm:$0xff]
                  %1564 = vst [vmem:[%s1538 + $0x60] sm:$0xff] %v1563
                  %v1565 = vld [vmem:[%s1537 + $0xe0] sm:$0xff]
                  %1566 = vst [vmem:[%s1538 + $0x68] sm:$0xff] %v1565
                  %v1567 = vld [vmem:[%s1537 + $0xe8] sm:$0xff]
                  %1568 = vst [vmem:[%s1538 + $0x70] sm:$0xff] %v1567
                  %v1569 = vld [vmem:[%s1537 + $0xf0] sm:$0xff]
                  %1570 = vst [vmem:[%s1538 + $0x78] sm:$0xff] %v1569
                  %v1571 = vld [vmem:[%s1537 + $0x120] sm:$0xff]
                  %1572 = vst [vmem:[%s1538 + $0x80] sm:$0xff] %v1571
                  %v1573 = vld [vmem:[%s1537 + $0x128] sm:$0xff]
                  %1574 = vst [vmem:[%s1538 + $0x88] sm:$0xff] %v1573
                  %v1575 = vld [vmem:[%s1537 + $0x130] sm:$0xff]
                  %1576 = vst [vmem:[%s1538 + $0x90] sm:$0xff] %v1575
                  %v1577 = vld [vmem:[%s1537 + $0x138] sm:$0xff]
                  %1578 = vst [vmem:[%s1538 + $0x98] sm:$0xff] %v1577
                  %v1579 = vld [vmem:[%s1537 + $0x168] sm:$0xff]
                  %1580 = vst [vmem:[%s1538 + $0xa0] sm:$0xff] %v1579
                  %v1581 = vld [vmem:[%s1537 + $0x170] sm:$0xff]
                  %1582 = vst [vmem:[%s1538 + $0xa8] sm:$0xff] %v1581
                  %v1583 = vld [vmem:[%s1537 + $0x178] sm:$0xff]
                  %1584 = vst [vmem:[%s1538 + $0xb0] sm:$0xff] %v1583
                  %v1585 = vld [vmem:[%s1537 + $0x180] sm:$0xff]
                  %1586 = vst [vmem:[%s1538 + $0xb8] sm:$0xff] %v1585
                  %v1587 = vld [vmem:[%s1537 + $0x1b0] sm:$0xff]
                  %1588 = vst [vmem:[%s1538 + $0xc0] sm:$0xff] %v1587
                  %v1589 = vld [vmem:[%s1537 + $0x1b8] sm:$0xff]
                  %1590 = vst [vmem:[%s1538 + $0xc8] sm:$0xff] %v1589
                  %v1591 = vld [vmem:[%s1537 + $0x1c0] sm:$0xff]
                  %1592 = vst [vmem:[%s1538 + $0xd0] sm:$0xff] %v1591
                  %v1593 = vld [vmem:[%s1537 + $0x1c8] sm:$0xff]
                  %1594 = vst [vmem:[%s1538 + $0xd8] sm:$0xff] %v1593
                  %v1595 = vld [vmem:[%s1537 + $0x1f8] sm:$0xff]
                  %1596 = vst [vmem:[%s1538 + $0xe0] sm:$0xff] %v1595
                  %v1597 = vld [vmem:[%s1537 + $0x200] sm:$0xff]
                  %1598 = vst [vmem:[%s1538 + $0xe8] sm:$0xff] %v1597
                  %v1599 = vld [vmem:[%s1537 + $0x208] sm:$0xff]
                  %1600 = vst [vmem:[%s1538 + $0xf0] sm:$0xff] %v1599
                  %v1601 = vld [vmem:[%s1537 + $0x210] sm:$0xff]
                  %1602 = vst [vmem:[%s1538 + $0xf8] sm:$0xff] %v1601
                  %s1603 = sadd.s32 1, %s1536
                  %p1604 = scmp.ge.s32.totalorder %s1603, %s1529
                  %s1605 = scalar_select %p1604, 0, %s1603
                  %s1606 = smul.u32 %s1605, 32
                  %s1607 = smul.u32 %s1605, 32
                  %s1608 = scalar_lea.vmem %s1398, %s1606
                  %s1609 = scalar_lea.vmem %s1387, %s1607 [#allocation6]
                $region263: #{wkv7.1} parent=257 // loop_footer
                  %s1533 = sadd.s32 %s1531, 1
                $region264: #{wkv7.1} parent=257 // loop_footer_branch
                  %1530 = sbr.rel target = $region260
                $region265: #{wkv7.1} parent=257 // loop_exit
                  _
                %s1610 = sshrl.u32 %s1392, 2
                %s1611 = sand.u32 %s1392, 3
                %s1612 = smul.u32 %s1610, 4
                %s1613 = smul.u32 8, %s1612
                %s1614 = scalar_lea.vmem %s1398, %s1613
                %s1615 = smul.u32 8, %s1612
                %s1616 = scalar_lea.vmem %s1387, %s1615 [#allocation6]
                // While loop
                $region266: #{wkv7.1} parent=257 // loop_pre_header
                  _
                $region267: #{wkv7.1} parent=257 // loop_header
                  %s1618 = sphi 0, %s1620
                  %p1619 = scmp.ge.s32.totalorder %s1618, %s1611
                  %s1623 = sphi 0, %s1644
                  %s1624 = sphi %s1614, %s1647
                  %s1625 = sphi %s1616, %s1648
                $region268: #{wkv7.1} parent=257 // loop_header_branch
                  %1622 = sbr.rel (%p1619) target = $region272
                $region269: #{wkv7.1} parent=257 // loop_body
                  %v1626 = vld [vmem:[%s1624] sm:$0xff]
                  %1627 = vst [vmem:[%s1625] sm:$0xff] %v1626
                  %v1628 = vld [vmem:[%s1624 + $0x48] sm:$0xff]
                  %1629 = vst [vmem:[%s1625 + $0x20] sm:$0xff] %v1628
                  %v1630 = vld [vmem:[%s1624 + $0x90] sm:$0xff]
                  %1631 = vst [vmem:[%s1625 + $0x40] sm:$0xff] %v1630
                  %v1632 = vld [vmem:[%s1624 + $0xd8] sm:$0xff]
                  %1633 = vst [vmem:[%s1625 + $0x60] sm:$0xff] %v1632
                  %v1634 = vld [vmem:[%s1624 + $0x120] sm:$0xff]
                  %1635 = vst [vmem:[%s1625 + $0x80] sm:$0xff] %v1634
                  %v1636 = vld [vmem:[%s1624 + $0x168] sm:$0xff]
                  %1637 = vst [vmem:[%s1625 + $0xa0] sm:$0xff] %v1636
                  %v1638 = vld [vmem:[%s1624 + $0x1b0] sm:$0xff]
                  %1639 = vst [vmem:[%s1625 + $0xc0] sm:$0xff] %v1638
                  %v1640 = vld [vmem:[%s1624 + $0x1f8] sm:$0xff]
                  %1641 = vst [vmem:[%s1625 + $0xe0] sm:$0xff] %v1640
                  %s1642 = sadd.s32 1, %s1623
                  %p1643 = scmp.ge.s32.totalorder %s1642, %s1611
                  %s1644 = scalar_select %p1643, 0, %s1642
                  %s1645 = smul.u32 %s1644, 8
                  %s1646 = smul.u32 %s1644, 8
                  %s1647 = scalar_lea.vmem %s1614, %s1645
                  %s1648 = scalar_lea.vmem %s1616, %s1646 [#allocation6]
                $region270: #{wkv7.1} parent=257 // loop_footer
                  %s1620 = sadd.s32 %s1618, 1
                $region271: #{wkv7.1} parent=257 // loop_footer_branch
                  %1617 = sbr.rel target = $region267
                $region272: #{wkv7.1} parent=257 // loop_exit
                  _
              $region258: #{wkv7.1} parent=235 // pred_fallthru
                _
              // Predicated region
              $region273: #{wkv7.1} parent=235 // pred_check
                _
              $region274: #{wkv7.1} parent=235 // pred_check_branch
                %1650 = sbr.rel target = $region276
              $region275: #{wkv7.1} parent=235 // pred_region
                _
              $region276: #{wkv7.1} parent=235 // pred_fallthru
                _
            $region236: #{wkv7.1} parent=231 // pred_fallthru
              _
            // Predicated region
            $region237: #{wkv7.1} parent=231 // pred_check
              _
            $region238: #{wkv7.1} parent=231 // pred_check_branch
              %1405 = sbr.rel target = $region240
            $region239: #{wkv7.1} parent=231 // pred_region
              %s1407 = sshrl.u32 %s1392, 2
              // While loop
              $region241: #{wkv7.1} parent=239 // loop_pre_header
                _
              $region242: #{wkv7.1} parent=239 // loop_header
                %s1409 = sphi 0, %s1411
                %p1410 = scmp.ge.s32.totalorder %s1409, %s1407
                %s1414 = sphi 0, %s1483
                %s1415 = sphi %s1398, %s1486
                %s1416 = sphi %s1387, %s1487
              $region243: #{wkv7.1} parent=239 // loop_header_branch
                %1413 = sbr.rel (%p1410) target = $region247
              $region244: #{wkv7.1} parent=239 // loop_body
                %v1417 = vld [vmem:[%s1415] sm:$0xff]
                %1418 = vst [vmem:[%s1416] sm:$0xff] %v1417
                %v1419 = vld [vmem:[%s1415 + $0x8] sm:$0xff]
                %1420 = vst [vmem:[%s1416 + $0x8] sm:$0xff] %v1419
                %v1421 = vld [vmem:[%s1415 + $0x10] sm:$0xff]
                %1422 = vst [vmem:[%s1416 + $0x10] sm:$0xff] %v1421
                %v1423 = vld [vmem:[%s1415 + $0x18] sm:$0xff]
                %1424 = vst [vmem:[%s1416 + $0x18] sm:$0xff] %v1423
                %v1425 = vld [vmem:[%s1415 + $0x48] sm:$0xff]
                %1426 = vst [vmem:[%s1416 + $0x20] sm:$0xff] %v1425
                %v1427 = vld [vmem:[%s1415 + $0x50] sm:$0xff]
                %1428 = vst [vmem:[%s1416 + $0x28] sm:$0xff] %v1427
                %v1429 = vld [vmem:[%s1415 + $0x58] sm:$0xff]
                %1430 = vst [vmem:[%s1416 + $0x30] sm:$0xff] %v1429
                %v1431 = vld [vmem:[%s1415 + $0x60] sm:$0xff]
                %1432 = vst [vmem:[%s1416 + $0x38] sm:$0xff] %v1431
                %v1433 = vld [vmem:[%s1415 + $0x90] sm:$0xff]
                %1434 = vst [vmem:[%s1416 + $0x40] sm:$0xff] %v1433
                %v1435 = vld [vmem:[%s1415 + $0x98] sm:$0xff]
                %1436 = vst [vmem:[%s1416 + $0x48] sm:$0xff] %v1435
                %v1437 = vld [vmem:[%s1415 + $0xa0] sm:$0xff]
                %1438 = vst [vmem:[%s1416 + $0x50] sm:$0xff] %v1437
                %v1439 = vld [vmem:[%s1415 + $0xa8] sm:$0xff]
                %1440 = vst [vmem:[%s1416 + $0x58] sm:$0xff] %v1439
                %v1441 = vld [vmem:[%s1415 + $0xd8] sm:$0xff]
                %1442 = vst [vmem:[%s1416 + $0x60] sm:$0xff] %v1441
                %v1443 = vld [vmem:[%s1415 + $0xe0] sm:$0xff]
                %1444 = vst [vmem:[%s1416 + $0x68] sm:$0xff] %v1443
                %v1445 = vld [vmem:[%s1415 + $0xe8] sm:$0xff]
                %1446 = vst [vmem:[%s1416 + $0x70] sm:$0xff] %v1445
                %v1447 = vld [vmem:[%s1415 + $0xf0] sm:$0xff]
                %1448 = vst [vmem:[%s1416 + $0x78] sm:$0xff] %v1447
                %v1449 = vld [vmem:[%s1415 + $0x120] sm:$0xff]
                %1450 = vst [vmem:[%s1416 + $0x80] sm:$0xff] %v1449
                %v1451 = vld [vmem:[%s1415 + $0x128] sm:$0xff]
                %1452 = vst [vmem:[%s1416 + $0x88] sm:$0xff] %v1451
                %v1453 = vld [vmem:[%s1415 + $0x130] sm:$0xff]
                %1454 = vst [vmem:[%s1416 + $0x90] sm:$0xff] %v1453
                %v1455 = vld [vmem:[%s1415 + $0x138] sm:$0xff]
                %1456 = vst [vmem:[%s1416 + $0x98] sm:$0xff] %v1455
                %v1457 = vld [vmem:[%s1415 + $0x168] sm:$0xff]
                %1458 = vst [vmem:[%s1416 + $0xa0] sm:$0xff] %v1457
                %v1459 = vld [vmem:[%s1415 + $0x170] sm:$0xff]
                %1460 = vst [vmem:[%s1416 + $0xa8] sm:$0xff] %v1459
                %v1461 = vld [vmem:[%s1415 + $0x178] sm:$0xff]
                %1462 = vst [vmem:[%s1416 + $0xb0] sm:$0xff] %v1461
                %v1463 = vld [vmem:[%s1415 + $0x180] sm:$0xff]
                %1464 = vst [vmem:[%s1416 + $0xb8] sm:$0xff] %v1463
                %v1465 = vld [vmem:[%s1415 + $0x1b0] sm:$0xff]
                %1466 = vst [vmem:[%s1416 + $0xc0] sm:$0xff] %v1465
                %v1467 = vld [vmem:[%s1415 + $0x1b8] sm:$0xff]
                %1468 = vst [vmem:[%s1416 + $0xc8] sm:$0xff] %v1467
                %v1469 = vld [vmem:[%s1415 + $0x1c0] sm:$0xff]
                %1470 = vst [vmem:[%s1416 + $0xd0] sm:$0xff] %v1469
                %v1471 = vld [vmem:[%s1415 + $0x1c8] sm:$0xff]
                %1472 = vst [vmem:[%s1416 + $0xd8] sm:$0xff] %v1471
                %v1473 = vld [vmem:[%s1415 + $0x1f8] sm:$0xff]
                %1474 = vst [vmem:[%s1416 + $0xe0] sm:$0xff] %v1473
                %v1475 = vld [vmem:[%s1415 + $0x200] sm:$0xff]
                %1476 = vst [vmem:[%s1416 + $0xe8] sm:$0xff] %v1475
                %v1477 = vld [vmem:[%s1415 + $0x208] sm:$0xff]
                %1478 = vst [vmem:[%s1416 + $0xf0] sm:$0xff] %v1477
                %v1479 = vld [vmem:[%s1415 + $0x210] sm:$0xff]
                %1480 = vst [vmem:[%s1416 + $0xf8] sm:$0xff] %v1479
                %s1481 = sadd.s32 1, %s1414
                %p1482 = scmp.ge.s32.totalorder %s1481, %s1407
                %s1483 = scalar_select %p1482, 0, %s1481
                %s1484 = smul.u32 %s1483, 32
                %s1485 = smul.u32 %s1483, 32
                %s1486 = scalar_lea.vmem %s1398, %s1484
                %s1487 = scalar_lea.vmem %s1387, %s1485 [#allocation6]
              $region245: #{wkv7.1} parent=239 // loop_footer
                %s1411 = sadd.s32 %s1409, 1
              $region246: #{wkv7.1} parent=239 // loop_footer_branch
                %1408 = sbr.rel target = $region242
              $region247: #{wkv7.1} parent=239 // loop_exit
                _
              %s1488 = sshrl.u32 %s1392, 2
              %s1489 = sand.u32 %s1392, 3
              %s1490 = smul.u32 %s1488, 4
              %s1491 = smul.u32 8, %s1490
              %s1492 = scalar_lea.vmem %s1398, %s1491
              %s1493 = smul.u32 8, %s1490
              %s1494 = scalar_lea.vmem %s1387, %s1493 [#allocation6]
              // While loop
              $region248: #{wkv7.1} parent=239 // loop_pre_header
                _
              $region249: #{wkv7.1} parent=239 // loop_header
                %s1496 = sphi 0, %s1498
                %p1497 = scmp.ge.s32.totalorder %s1496, %s1489
                %s1501 = sphi 0, %s1522
                %s1502 = sphi %s1492, %s1525
                %s1503 = sphi %s1494, %s1526
              $region250: #{wkv7.1} parent=239 // loop_header_branch
                %1500 = sbr.rel (%p1497) target = $region254
              $region251: #{wkv7.1} parent=239 // loop_body
                %v1504 = vld [vmem:[%s1502] sm:$0xff]
                %1505 = vst [vmem:[%s1503] sm:$0xff] %v1504
                %v1506 = vld [vmem:[%s1502 + $0x48] sm:$0xff]
                %1507 = vst [vmem:[%s1503 + $0x20] sm:$0xff] %v1506
                %v1508 = vld [vmem:[%s1502 + $0x90] sm:$0xff]
                %1509 = vst [vmem:[%s1503 + $0x40] sm:$0xff] %v1508
                %v1510 = vld [vmem:[%s1502 + $0xd8] sm:$0xff]
                %1511 = vst [vmem:[%s1503 + $0x60] sm:$0xff] %v1510
                %v1512 = vld [vmem:[%s1502 + $0x120] sm:$0xff]
                %1513 = vst [vmem:[%s1503 + $0x80] sm:$0xff] %v1512
                %v1514 = vld [vmem:[%s1502 + $0x168] sm:$0xff]
                %1515 = vst [vmem:[%s1503 + $0xa0] sm:$0xff] %v1514
                %v1516 = vld [vmem:[%s1502 + $0x1b0] sm:$0xff]
                %1517 = vst [vmem:[%s1503 + $0xc0] sm:$0xff] %v1516
                %v1518 = vld [vmem:[%s1502 + $0x1f8] sm:$0xff]
                %1519 = vst [vmem:[%s1503 + $0xe0] sm:$0xff] %v1518
                %s1520 = sadd.s32 1, %s1501
                %p1521 = scmp.ge.s32.totalorder %s1520, %s1489
                %s1522 = scalar_select %p1521, 0, %s1520
                %s1523 = smul.u32 %s1522, 8
                %s1524 = smul.u32 %s1522, 8
                %s1525 = scalar_lea.vmem %s1492, %s1523
                %s1526 = scalar_lea.vmem %s1494, %s1524 [#allocation6]
              $region252: #{wkv7.1} parent=239 // loop_footer
                %s1498 = sadd.s32 %s1496, 1
              $region253: #{wkv7.1} parent=239 // loop_footer_branch
                %1495 = sbr.rel target = $region249
              $region254: #{wkv7.1} parent=239 // loop_exit
                _
            $region240: #{wkv7.1} parent=231 // pred_fallthru
              _
          $region232: #{wkv7.1} parent=227 // pred_fallthru
            _
          %1651 = vnop
        $region228: #{wkv7.1} parent=15 // pred_fallthru
          _
        // Predicated region
        $region277: #{wkv7.1} parent=15 // pred_check
          %p1652 = pneg %p192
        $region278: #{wkv7.1} parent=15 // pred_check_branch
          %1654 = sbr.rel (%p1652) target = $region280
        $region279: #{wkv7.1} parent=15 // pred_region
          %s1655 = sand.u32 %s182, 1
          %s1656 = sand.u32 %s182, 1
          %s1657 = smul.addr %s1656, 256
          %s1658 = scalar_lea.vmem [#allocation7], %s1657
          %s1659 = smul.u32 8, %s25
          %s1660 = smul.u32 4, %s26
          %s1661 = ssub.s32 9, %s1660
          %p1662 = scmp.lt.s32.totalorder %s1661, 4
          %s1663 = scalar_select %p1662, %s1661, 4
          %s1664 = smul.u32 1024, %s1663
          %p1665 = scmp.ne.s32.totalorder 0, %s1664
          %s1666 = smul.addr %s1659, 9
          %s1667 = sadd.s32 %s1660, %s1666
          %s1668 = smul.addr %s1667, 8
          %s1669 = scalar_lea.vmem %s5, %s1668
          // Predicated region
          $region281: #{wkv7.1} parent=279 // pred_check
            %p1670 = pneg %p1665
          $region282: #{wkv7.1} parent=279 // pred_check_branch
            %1672 = sbr.rel (%p1670) target = $region284
          $region283: #{wkv7.1} parent=279 // pred_region
            // Predicated region
            $region285: #{wkv7.1} parent=283 // pred_check
              _
            $region286: #{wkv7.1} parent=283 // pred_check_branch
              %1674 = sbr.rel (0) target = $region288
            $region287: #{wkv7.1} parent=283 // pred_region
              // Predicated region
              $region307: #{wkv7.1} parent=287 // pred_check
                _
              $region308: #{wkv7.1} parent=287 // pred_check_branch
                %1799 = sbr.rel (0) target = $region310
              $region309: #{wkv7.1} parent=287 // pred_region
                %s1800 = sshrl.u32 %s1663, 2
                // While loop
                $region311: #{wkv7.1} parent=309 // loop_pre_header
                  _
                $region312: #{wkv7.1} parent=309 // loop_header
                  %s1802 = sphi 0, %s1804
                  %p1803 = scmp.ge.s32.totalorder %s1802, %s1800
                  %s1807 = sphi 0, %s1876
                  %s1808 = sphi %s1669, %s1879
                  %s1809 = sphi %s1658, %s1880
                $region313: #{wkv7.1} parent=309 // loop_header_branch
                  %1806 = sbr.rel (%p1803) target = $region317
                $region314: #{wkv7.1} parent=309 // loop_body
                  %v1810 = vld [vmem:[%s1808] sm:$0xff]
                  %1811 = vst [vmem:[%s1809] sm:$0xff] %v1810
                  %v1812 = vld [vmem:[%s1808 + $0x8] sm:$0xff]
                  %1813 = vst [vmem:[%s1809 + $0x8] sm:$0xff] %v1812
                  %v1814 = vld [vmem:[%s1808 + $0x10] sm:$0xff]
                  %1815 = vst [vmem:[%s1809 + $0x10] sm:$0xff] %v1814
                  %v1816 = vld [vmem:[%s1808 + $0x18] sm:$0xff]
                  %1817 = vst [vmem:[%s1809 + $0x18] sm:$0xff] %v1816
                  %v1818 = vld [vmem:[%s1808 + $0x48] sm:$0xff]
                  %1819 = vst [vmem:[%s1809 + $0x20] sm:$0xff] %v1818
                  %v1820 = vld [vmem:[%s1808 + $0x50] sm:$0xff]
                  %1821 = vst [vmem:[%s1809 + $0x28] sm:$0xff] %v1820
                  %v1822 = vld [vmem:[%s1808 + $0x58] sm:$0xff]
                  %1823 = vst [vmem:[%s1809 + $0x30] sm:$0xff] %v1822
                  %v1824 = vld [vmem:[%s1808 + $0x60] sm:$0xff]
                  %1825 = vst [vmem:[%s1809 + $0x38] sm:$0xff] %v1824
                  %v1826 = vld [vmem:[%s1808 + $0x90] sm:$0xff]
                  %1827 = vst [vmem:[%s1809 + $0x40] sm:$0xff] %v1826
                  %v1828 = vld [vmem:[%s1808 + $0x98] sm:$0xff]
                  %1829 = vst [vmem:[%s1809 + $0x48] sm:$0xff] %v1828
                  %v1830 = vld [vmem:[%s1808 + $0xa0] sm:$0xff]
                  %1831 = vst [vmem:[%s1809 + $0x50] sm:$0xff] %v1830
                  %v1832 = vld [vmem:[%s1808 + $0xa8] sm:$0xff]
                  %1833 = vst [vmem:[%s1809 + $0x58] sm:$0xff] %v1832
                  %v1834 = vld [vmem:[%s1808 + $0xd8] sm:$0xff]
                  %1835 = vst [vmem:[%s1809 + $0x60] sm:$0xff] %v1834
                  %v1836 = vld [vmem:[%s1808 + $0xe0] sm:$0xff]
                  %1837 = vst [vmem:[%s1809 + $0x68] sm:$0xff] %v1836
                  %v1838 = vld [vmem:[%s1808 + $0xe8] sm:$0xff]
                  %1839 = vst [vmem:[%s1809 + $0x70] sm:$0xff] %v1838
                  %v1840 = vld [vmem:[%s1808 + $0xf0] sm:$0xff]
                  %1841 = vst [vmem:[%s1809 + $0x78] sm:$0xff] %v1840
                  %v1842 = vld [vmem:[%s1808 + $0x120] sm:$0xff]
                  %1843 = vst [vmem:[%s1809 + $0x80] sm:$0xff] %v1842
                  %v1844 = vld [vmem:[%s1808 + $0x128] sm:$0xff]
                  %1845 = vst [vmem:[%s1809 + $0x88] sm:$0xff] %v1844
                  %v1846 = vld [vmem:[%s1808 + $0x130] sm:$0xff]
                  %1847 = vst [vmem:[%s1809 + $0x90] sm:$0xff] %v1846
                  %v1848 = vld [vmem:[%s1808 + $0x138] sm:$0xff]
                  %1849 = vst [vmem:[%s1809 + $0x98] sm:$0xff] %v1848
                  %v1850 = vld [vmem:[%s1808 + $0x168] sm:$0xff]
                  %1851 = vst [vmem:[%s1809 + $0xa0] sm:$0xff] %v1850
                  %v1852 = vld [vmem:[%s1808 + $0x170] sm:$0xff]
                  %1853 = vst [vmem:[%s1809 + $0xa8] sm:$0xff] %v1852
                  %v1854 = vld [vmem:[%s1808 + $0x178] sm:$0xff]
                  %1855 = vst [vmem:[%s1809 + $0xb0] sm:$0xff] %v1854
                  %v1856 = vld [vmem:[%s1808 + $0x180] sm:$0xff]
                  %1857 = vst [vmem:[%s1809 + $0xb8] sm:$0xff] %v1856
                  %v1858 = vld [vmem:[%s1808 + $0x1b0] sm:$0xff]
                  %1859 = vst [vmem:[%s1809 + $0xc0] sm:$0xff] %v1858
                  %v1860 = vld [vmem:[%s1808 + $0x1b8] sm:$0xff]
                  %1861 = vst [vmem:[%s1809 + $0xc8] sm:$0xff] %v1860
                  %v1862 = vld [vmem:[%s1808 + $0x1c0] sm:$0xff]
                  %1863 = vst [vmem:[%s1809 + $0xd0] sm:$0xff] %v1862
                  %v1864 = vld [vmem:[%s1808 + $0x1c8] sm:$0xff]
                  %1865 = vst [vmem:[%s1809 + $0xd8] sm:$0xff] %v1864
                  %v1866 = vld [vmem:[%s1808 + $0x1f8] sm:$0xff]
                  %1867 = vst [vmem:[%s1809 + $0xe0] sm:$0xff] %v1866
                  %v1868 = vld [vmem:[%s1808 + $0x200] sm:$0xff]
                  %1869 = vst [vmem:[%s1809 + $0xe8] sm:$0xff] %v1868
                  %v1870 = vld [vmem:[%s1808 + $0x208] sm:$0xff]
                  %1871 = vst [vmem:[%s1809 + $0xf0] sm:$0xff] %v1870
                  %v1872 = vld [vmem:[%s1808 + $0x210] sm:$0xff]
                  %1873 = vst [vmem:[%s1809 + $0xf8] sm:$0xff] %v1872
                  %s1874 = sadd.s32 1, %s1807
                  %p1875 = scmp.ge.s32.totalorder %s1874, %s1800
                  %s1876 = scalar_select %p1875, 0, %s1874
                  %s1877 = smul.u32 %s1876, 32
                  %s1878 = smul.u32 %s1876, 32
                  %s1879 = scalar_lea.vmem %s1669, %s1877
                  %s1880 = scalar_lea.vmem %s1658, %s1878 [#allocation7]
                $region315: #{wkv7.1} parent=309 // loop_footer
                  %s1804 = sadd.s32 %s1802, 1
                $region316: #{wkv7.1} parent=309 // loop_footer_branch
                  %1801 = sbr.rel target = $region312
                $region317: #{wkv7.1} parent=309 // loop_exit
                  _
                %s1881 = sshrl.u32 %s1663, 2
                %s1882 = sand.u32 %s1663, 3
                %s1883 = smul.u32 %s1881, 4
                %s1884 = smul.u32 8, %s1883
                %s1885 = scalar_lea.vmem %s1669, %s1884
                %s1886 = smul.u32 8, %s1883
                %s1887 = scalar_lea.vmem %s1658, %s1886 [#allocation7]
                // While loop
                $region318: #{wkv7.1} parent=309 // loop_pre_header
                  _
                $region319: #{wkv7.1} parent=309 // loop_header
                  %s1889 = sphi 0, %s1891
                  %p1890 = scmp.ge.s32.totalorder %s1889, %s1882
                  %s1894 = sphi 0, %s1915
                  %s1895 = sphi %s1885, %s1918
                  %s1896 = sphi %s1887, %s1919
                $region320: #{wkv7.1} parent=309 // loop_header_branch
                  %1893 = sbr.rel (%p1890) target = $region324
                $region321: #{wkv7.1} parent=309 // loop_body
                  %v1897 = vld [vmem:[%s1895] sm:$0xff]
                  %1898 = vst [vmem:[%s1896] sm:$0xff] %v1897
                  %v1899 = vld [vmem:[%s1895 + $0x48] sm:$0xff]
                  %1900 = vst [vmem:[%s1896 + $0x20] sm:$0xff] %v1899
                  %v1901 = vld [vmem:[%s1895 + $0x90] sm:$0xff]
                  %1902 = vst [vmem:[%s1896 + $0x40] sm:$0xff] %v1901
                  %v1903 = vld [vmem:[%s1895 + $0xd8] sm:$0xff]
                  %1904 = vst [vmem:[%s1896 + $0x60] sm:$0xff] %v1903
                  %v1905 = vld [vmem:[%s1895 + $0x120] sm:$0xff]
                  %1906 = vst [vmem:[%s1896 + $0x80] sm:$0xff] %v1905
                  %v1907 = vld [vmem:[%s1895 + $0x168] sm:$0xff]
                  %1908 = vst [vmem:[%s1896 + $0xa0] sm:$0xff] %v1907
                  %v1909 = vld [vmem:[%s1895 + $0x1b0] sm:$0xff]
                  %1910 = vst [vmem:[%s1896 + $0xc0] sm:$0xff] %v1909
                  %v1911 = vld [vmem:[%s1895 + $0x1f8] sm:$0xff]
                  %1912 = vst [vmem:[%s1896 + $0xe0] sm:$0xff] %v1911
                  %s1913 = sadd.s32 1, %s1894
                  %p1914 = scmp.ge.s32.totalorder %s1913, %s1882
                  %s1915 = scalar_select %p1914, 0, %s1913
                  %s1916 = smul.u32 %s1915, 8
                  %s1917 = smul.u32 %s1915, 8
                  %s1918 = scalar_lea.vmem %s1885, %s1916
                  %s1919 = scalar_lea.vmem %s1887, %s1917 [#allocation7]
                $region322: #{wkv7.1} parent=309 // loop_footer
                  %s1891 = sadd.s32 %s1889, 1
                $region323: #{wkv7.1} parent=309 // loop_footer_branch
                  %1888 = sbr.rel target = $region319
                $region324: #{wkv7.1} parent=309 // loop_exit
                  _
              $region310: #{wkv7.1} parent=287 // pred_fallthru
                _
              // Predicated region
              $region325: #{wkv7.1} parent=287 // pred_check
                _
              $region326: #{wkv7.1} parent=287 // pred_check_branch
                %1921 = sbr.rel target = $region328
              $region327: #{wkv7.1} parent=287 // pred_region
                _
              $region328: #{wkv7.1} parent=287 // pred_fallthru
                _
            $region288: #{wkv7.1} parent=283 // pred_fallthru
              _
            // Predicated region
            $region289: #{wkv7.1} parent=283 // pred_check
              _
            $region290: #{wkv7.1} parent=283 // pred_check_branch
              %1676 = sbr.rel target = $region292
            $region291: #{wkv7.1} parent=283 // pred_region
              %s1678 = sshrl.u32 %s1663, 2
              // While loop
              $region293: #{wkv7.1} parent=291 // loop_pre_header
                _
              $region294: #{wkv7.1} parent=291 // loop_header
                %s1680 = sphi 0, %s1682
                %p1681 = scmp.ge.s32.totalorder %s1680, %s1678
                %s1685 = sphi 0, %s1754
                %s1686 = sphi %s1669, %s1757
                %s1687 = sphi %s1658, %s1758
              $region295: #{wkv7.1} parent=291 // loop_header_branch
                %1684 = sbr.rel (%p1681) target = $region299
              $region296: #{wkv7.1} parent=291 // loop_body
                %v1688 = vld [vmem:[%s1686] sm:$0xff]
                %1689 = vst [vmem:[%s1687] sm:$0xff] %v1688
                %v1690 = vld [vmem:[%s1686 + $0x8] sm:$0xff]
                %1691 = vst [vmem:[%s1687 + $0x8] sm:$0xff] %v1690
                %v1692 = vld [vmem:[%s1686 + $0x10] sm:$0xff]
                %1693 = vst [vmem:[%s1687 + $0x10] sm:$0xff] %v1692
                %v1694 = vld [vmem:[%s1686 + $0x18] sm:$0xff]
                %1695 = vst [vmem:[%s1687 + $0x18] sm:$0xff] %v1694
                %v1696 = vld [vmem:[%s1686 + $0x48] sm:$0xff]
                %1697 = vst [vmem:[%s1687 + $0x20] sm:$0xff] %v1696
                %v1698 = vld [vmem:[%s1686 + $0x50] sm:$0xff]
                %1699 = vst [vmem:[%s1687 + $0x28] sm:$0xff] %v1698
                %v1700 = vld [vmem:[%s1686 + $0x58] sm:$0xff]
                %1701 = vst [vmem:[%s1687 + $0x30] sm:$0xff] %v1700
                %v1702 = vld [vmem:[%s1686 + $0x60] sm:$0xff]
                %1703 = vst [vmem:[%s1687 + $0x38] sm:$0xff] %v1702
                %v1704 = vld [vmem:[%s1686 + $0x90] sm:$0xff]
                %1705 = vst [vmem:[%s1687 + $0x40] sm:$0xff] %v1704
                %v1706 = vld [vmem:[%s1686 + $0x98] sm:$0xff]
                %1707 = vst [vmem:[%s1687 + $0x48] sm:$0xff] %v1706
                %v1708 = vld [vmem:[%s1686 + $0xa0] sm:$0xff]
                %1709 = vst [vmem:[%s1687 + $0x50] sm:$0xff] %v1708
                %v1710 = vld [vmem:[%s1686 + $0xa8] sm:$0xff]
                %1711 = vst [vmem:[%s1687 + $0x58] sm:$0xff] %v1710
                %v1712 = vld [vmem:[%s1686 + $0xd8] sm:$0xff]
                %1713 = vst [vmem:[%s1687 + $0x60] sm:$0xff] %v1712
                %v1714 = vld [vmem:[%s1686 + $0xe0] sm:$0xff]
                %1715 = vst [vmem:[%s1687 + $0x68] sm:$0xff] %v1714
                %v1716 = vld [vmem:[%s1686 + $0xe8] sm:$0xff]
                %1717 = vst [vmem:[%s1687 + $0x70] sm:$0xff] %v1716
                %v1718 = vld [vmem:[%s1686 + $0xf0] sm:$0xff]
                %1719 = vst [vmem:[%s1687 + $0x78] sm:$0xff] %v1718
                %v1720 = vld [vmem:[%s1686 + $0x120] sm:$0xff]
                %1721 = vst [vmem:[%s1687 + $0x80] sm:$0xff] %v1720
                %v1722 = vld [vmem:[%s1686 + $0x128] sm:$0xff]
                %1723 = vst [vmem:[%s1687 + $0x88] sm:$0xff] %v1722
                %v1724 = vld [vmem:[%s1686 + $0x130] sm:$0xff]
                %1725 = vst [vmem:[%s1687 + $0x90] sm:$0xff] %v1724
                %v1726 = vld [vmem:[%s1686 + $0x138] sm:$0xff]
                %1727 = vst [vmem:[%s1687 + $0x98] sm:$0xff] %v1726
                %v1728 = vld [vmem:[%s1686 + $0x168] sm:$0xff]
                %1729 = vst [vmem:[%s1687 + $0xa0] sm:$0xff] %v1728
                %v1730 = vld [vmem:[%s1686 + $0x170] sm:$0xff]
                %1731 = vst [vmem:[%s1687 + $0xa8] sm:$0xff] %v1730
                %v1732 = vld [vmem:[%s1686 + $0x178] sm:$0xff]
                %1733 = vst [vmem:[%s1687 + $0xb0] sm:$0xff] %v1732
                %v1734 = vld [vmem:[%s1686 + $0x180] sm:$0xff]
                %1735 = vst [vmem:[%s1687 + $0xb8] sm:$0xff] %v1734
                %v1736 = vld [vmem:[%s1686 + $0x1b0] sm:$0xff]
                %1737 = vst [vmem:[%s1687 + $0xc0] sm:$0xff] %v1736
                %v1738 = vld [vmem:[%s1686 + $0x1b8] sm:$0xff]
                %1739 = vst [vmem:[%s1687 + $0xc8] sm:$0xff] %v1738
                %v1740 = vld [vmem:[%s1686 + $0x1c0] sm:$0xff]
                %1741 = vst [vmem:[%s1687 + $0xd0] sm:$0xff] %v1740
                %v1742 = vld [vmem:[%s1686 + $0x1c8] sm:$0xff]
                %1743 = vst [vmem:[%s1687 + $0xd8] sm:$0xff] %v1742
                %v1744 = vld [vmem:[%s1686 + $0x1f8] sm:$0xff]
                %1745 = vst [vmem:[%s1687 + $0xe0] sm:$0xff] %v1744
                %v1746 = vld [vmem:[%s1686 + $0x200] sm:$0xff]
                %1747 = vst [vmem:[%s1687 + $0xe8] sm:$0xff] %v1746
                %v1748 = vld [vmem:[%s1686 + $0x208] sm:$0xff]
                %1749 = vst [vmem:[%s1687 + $0xf0] sm:$0xff] %v1748
                %v1750 = vld [vmem:[%s1686 + $0x210] sm:$0xff]
                %1751 = vst [vmem:[%s1687 + $0xf8] sm:$0xff] %v1750
                %s1752 = sadd.s32 1, %s1685
                %p1753 = scmp.ge.s32.totalorder %s1752, %s1678
                %s1754 = scalar_select %p1753, 0, %s1752
                %s1755 = smul.u32 %s1754, 32
                %s1756 = smul.u32 %s1754, 32
                %s1757 = scalar_lea.vmem %s1669, %s1755
                %s1758 = scalar_lea.vmem %s1658, %s1756 [#allocation7]
              $region297: #{wkv7.1} parent=291 // loop_footer
                %s1682 = sadd.s32 %s1680, 1
              $region298: #{wkv7.1} parent=291 // loop_footer_branch
                %1679 = sbr.rel target = $region294
              $region299: #{wkv7.1} parent=291 // loop_exit
                _
              %s1759 = sshrl.u32 %s1663, 2
              %s1760 = sand.u32 %s1663, 3
              %s1761 = smul.u32 %s1759, 4
              %s1762 = smul.u32 8, %s1761
              %s1763 = scalar_lea.vmem %s1669, %s1762
              %s1764 = smul.u32 8, %s1761
              %s1765 = scalar_lea.vmem %s1658, %s1764 [#allocation7]
              // While loop
              $region300: #{wkv7.1} parent=291 // loop_pre_header
                _
              $region301: #{wkv7.1} parent=291 // loop_header
                %s1767 = sphi 0, %s1769
                %p1768 = scmp.ge.s32.totalorder %s1767, %s1760
                %s1772 = sphi 0, %s1793
                %s1773 = sphi %s1763, %s1796
                %s1774 = sphi %s1765, %s1797
              $region302: #{wkv7.1} parent=291 // loop_header_branch
                %1771 = sbr.rel (%p1768) target = $region306
              $region303: #{wkv7.1} parent=291 // loop_body
                %v1775 = vld [vmem:[%s1773] sm:$0xff]
                %1776 = vst [vmem:[%s1774] sm:$0xff] %v1775
                %v1777 = vld [vmem:[%s1773 + $0x48] sm:$0xff]
                %1778 = vst [vmem:[%s1774 + $0x20] sm:$0xff] %v1777
                %v1779 = vld [vmem:[%s1773 + $0x90] sm:$0xff]
                %1780 = vst [vmem:[%s1774 + $0x40] sm:$0xff] %v1779
                %v1781 = vld [vmem:[%s1773 + $0xd8] sm:$0xff]
                %1782 = vst [vmem:[%s1774 + $0x60] sm:$0xff] %v1781
                %v1783 = vld [vmem:[%s1773 + $0x120] sm:$0xff]
                %1784 = vst [vmem:[%s1774 + $0x80] sm:$0xff] %v1783
                %v1785 = vld [vmem:[%s1773 + $0x168] sm:$0xff]
                %1786 = vst [vmem:[%s1774 + $0xa0] sm:$0xff] %v1785
                %v1787 = vld [vmem:[%s1773 + $0x1b0] sm:$0xff]
                %1788 = vst [vmem:[%s1774 + $0xc0] sm:$0xff] %v1787
                %v1789 = vld [vmem:[%s1773 + $0x1f8] sm:$0xff]
                %1790 = vst [vmem:[%s1774 + $0xe0] sm:$0xff] %v1789
                %s1791 = sadd.s32 1, %s1772
                %p1792 = scmp.ge.s32.totalorder %s1791, %s1760
                %s1793 = scalar_select %p1792, 0, %s1791
                %s1794 = smul.u32 %s1793, 8
                %s1795 = smul.u32 %s1793, 8
                %s1796 = scalar_lea.vmem %s1763, %s1794
                %s1797 = scalar_lea.vmem %s1765, %s1795 [#allocation7]
              $region304: #{wkv7.1} parent=291 // loop_footer
                %s1769 = sadd.s32 %s1767, 1
              $region305: #{wkv7.1} parent=291 // loop_footer_branch
                %1766 = sbr.rel target = $region301
              $region306: #{wkv7.1} parent=291 // loop_exit
                _
            $region292: #{wkv7.1} parent=283 // pred_fallthru
              _
          $region284: #{wkv7.1} parent=279 // pred_fallthru
            _
          %1922 = vnop
        $region280: #{wkv7.1} parent=15 // pred_fallthru
          _
        // Predicated region
        $region329: #{wkv7.1} parent=15 // pred_check
          %p1923 = pneg %p218
        $region330: #{wkv7.1} parent=15 // pred_check_branch
          %1925 = sbr.rel (%p1923) target = $region332
        $region331: #{wkv7.1} parent=15 // pred_region
          %s1926 = smul.u32 8, %s25
          %p1927 = scmp.lt.s32.totalorder %s1926, 15
          %s1928 = scalar_select %p1927, %s1926, 15
          %s1929 = smul.addr %s1928, 8
          %s1930 = smul.addr %s1929, 8
          %s1931 = scalar_lea.vmem %s6, %s1930
          %s1932 = smul.u32 8, %s25
        $region332: #{wkv7.1} parent=15 // pred_fallthru
          _
      $region16: #{wkv7.1} parent=5 // pred_fallthru
        _
      %p1933 = scmp.le.s32.totalorder 1, %s18
      %p1934 = scmp.lt.s32.totalorder %s18, 7
      %p1935 = pnand %p1933, %p1934
      %p1936 = pneg %p1935
      // Predicated region
      $region333: #{wkv7.1} parent=5 // pred_check
        _
      $region334: #{wkv7.1} parent=5 // pred_check_branch
        %1938 = sbr.rel (%p1935) target = $region336
      $region335: #{wkv7.1} parent=5 // pred_region
        %s1939 = ssub.s32 %s18, 1
        %s1940 = sand.u32 %s45, 1
        %s1941 = sand.u32 %s45, 1
        %s1942 = smul.addr %s1941, 256
        %s1943 = scalar_lea.vmem [#allocation2], %s1942
        // Predicated region
        $region337: #{wkv7.1} parent=335 // pred_check
          %p1944 = pneg %p58
        $region338: #{wkv7.1} parent=335 // pred_check_branch
          %1946 = sbr.rel (%p1944) target = $region340
        $region339: #{wkv7.1} parent=335 // pred_region
          _
        $region340: #{wkv7.1} parent=335 // pred_fallthru
          _
        %s1947 = sand.u32 %s73, 1
        %s1948 = sand.u32 %s73, 1
        %s1949 = smul.addr %s1948, 256
        %s1950 = scalar_lea.vmem [#allocation3], %s1949
        // Predicated region
        $region341: #{wkv7.1} parent=335 // pred_check
          %p1951 = pneg %p86
        $region342: #{wkv7.1} parent=335 // pred_check_branch
          %1953 = sbr.rel (%p1951) target = $region344
        $region343: #{wkv7.1} parent=335 // pred_region
          _
        $region344: #{wkv7.1} parent=335 // pred_fallthru
          _
        %s1954 = sand.u32 %s101, 1
        %s1955 = sand.u32 %s101, 1
        %s1956 = smul.addr %s1955, 256
        %s1957 = scalar_lea.vmem [#allocation4], %s1956
        // Predicated region
        $region345: #{wkv7.1} parent=335 // pred_check
          %p1958 = pneg %p114
        $region346: #{wkv7.1} parent=335 // pred_check_branch
          %1960 = sbr.rel (%p1958) target = $region348
        $region347: #{wkv7.1} parent=335 // pred_region
          _
        $region348: #{wkv7.1} parent=335 // pred_fallthru
          _
        %s1961 = sand.u32 %s129, 1
        %s1962 = sand.u32 %s129, 1
        %s1963 = smul.addr %s1962, 256
        %s1964 = scalar_lea.vmem [#allocation5], %s1963
        // Predicated region
        $region349: #{wkv7.1} parent=335 // pred_check
          %p1965 = pneg %p142
        $region350: #{wkv7.1} parent=335 // pred_check_branch
          %1967 = sbr.rel (%p1965) target = $region352
        $region351: #{wkv7.1} parent=335 // pred_region
          _
        $region352: #{wkv7.1} parent=335 // pred_fallthru
          _
        %s1968 = sand.u32 %s157, 1
        %s1969 = sand.u32 %s157, 1
        %s1970 = smul.addr %s1969, 256
        %s1971 = scalar_lea.vmem [#allocation6], %s1970
        // Predicated region
        $region353: #{wkv7.1} parent=335 // pred_check
          %p1972 = pneg %p170
        $region354: #{wkv7.1} parent=335 // pred_check_branch
          %1974 = sbr.rel (%p1972) target = $region356
        $region355: #{wkv7.1} parent=335 // pred_region
          _
        $region356: #{wkv7.1} parent=335 // pred_fallthru
          _
        %s1975 = sand.u32 %s185, 1
        %s1976 = sand.u32 %s185, 1
        %s1977 = smul.addr %s1976, 256
        %s1978 = scalar_lea.vmem [#allocation7], %s1977
        // Predicated region
        $region357: #{wkv7.1} parent=335 // pred_check
          %p1979 = pneg %p198
        $region358: #{wkv7.1} parent=335 // pred_check_branch
          %1981 = sbr.rel (%p1979) target = $region360
        $region359: #{wkv7.1} parent=335 // pred_region
          _
        $region360: #{wkv7.1} parent=335 // pred_fallthru
          _
        %s1982 = sand.u32 %s45, 1
        %s1983 = sand.u32 %s45, 1
        %s1984 = smul.addr %s1983, 256
        %s1985 = scalar_lea.vmem [#allocation2], %s1984
        %p1986 = pneg %p58
        %p1987 = pneg %p55
        %s1988 = sand.u32 %s73, 1
        %s1989 = sand.u32 %s73, 1
        %s1990 = smul.addr %s1989, 256
        %s1991 = scalar_lea.vmem [#allocation3], %s1990
        %p1992 = pneg %p86
        %p1993 = pneg %p83
        %s1994 = sand.u32 %s101, 1
        %s1995 = sand.u32 %s101, 1
        %s1996 = smul.addr %s1995, 256
        %s1997 = scalar_lea.vmem [#allocation4], %s1996
        %p1998 = pneg %p114
        %p1999 = pneg %p111
        %s2000 = sand.u32 %s129, 1
        %s2001 = sand.u32 %s129, 1
        %s2002 = smul.addr %s2001, 256
        %s2003 = scalar_lea.vmem [#allocation5], %s2002
        %p2004 = pneg %p142
        %p2005 = pneg %p139
        %s2006 = sand.u32 %s157, 1
        %s2007 = sand.u32 %s157, 1
        %s2008 = smul.addr %s2007, 256
        %s2009 = scalar_lea.vmem [#allocation6], %s2008
        %p2010 = pneg %p170
        %p2011 = pneg %p167
        %s2012 = sand.u32 %s185, 1
        %s2013 = sand.u32 %s185, 1
        %s2014 = smul.addr %s2013, 256
        %s2015 = scalar_lea.vmem [#allocation7], %s2014
        %p2016 = pneg %p198
        %p2017 = pneg %p195
        %s2018 = smul.u32 8, %s27
        %p2019 = scmp.lt.s32.totalorder %s2018, 15
        %s2020 = scalar_select %p2019, %s2018, 15
        %s2021 = smul.addr %s2020, 8
        %s2022 = smul.addr %s2021, 8
        %s2023 = scalar_lea.vmem %s6, %s2022
        %p2024 = pneg %p224
        %p2025 = pneg %p221
        %p2026 = pneg %p252
        %p2027 = pneg %p249
        %s2028 = sand.u32 %s239, 1
        %s2029 = sand.u32 %s239, 1
        %s2030 = smul.addr %s2029, 256
        %s2031 = scalar_lea.vmem [#allocation8], %s2030
        %p2032 = pneg %p278
        %p2033 = pneg %p275
        %s2034 = sand.u32 %s265, 1
        %s2035 = scalar_lea.sflag [#allocation10], %s2034
        %s2036 = sand.u32 %s265, 1
        %s2037 = smul.addr %s2036, 512
        %s2038 = scalar_lea.vmem [#allocation9], %s2037
        %s2039 = smul.u32 8, %s27
        %s2040 = smul.u32 4, %s28
        %s2041 = ssub.s32 9, %s2040
        %p2042 = scmp.lt.s32.totalorder %s2041, 4
        %s2043 = scalar_select %p2042, %s2041, 4
        %s2044 = smul.u32 1024, %s2043
        %s2045 = smul.u32 8, %s27
        %s2046 = smul.u32 4, %s28
        %s2047 = ssub.s32 9, %s2046
        %p2048 = scmp.lt.s32.totalorder %s2047, 4
        %s2049 = scalar_select %p2048, %s2047, 4
        %s2050 = smul.u32 1024, %s2049
        %s2051 = smul.u32 8, %s27
        %s2052 = smul.u32 4, %s28
        %s2053 = ssub.s32 9, %s2052
        %p2054 = scmp.lt.s32.totalorder %s2053, 4
        %s2055 = scalar_select %p2054, %s2053, 4
        %s2056 = smul.u32 1024, %s2055
        %s2057 = smul.u32 8, %s27
        %s2058 = smul.u32 4, %s28
        %s2059 = ssub.s32 9, %s2058
        %p2060 = scmp.lt.s32.totalorder %s2059, 4
        %s2061 = scalar_select %p2060, %s2059, 4
        %s2062 = smul.u32 1024, %s2061
        %s2063 = smul.u32 8, %s27
        %s2064 = smul.u32 4, %s28
        %s2065 = ssub.s32 9, %s2064
        %p2066 = scmp.lt.s32.totalorder %s2065, 4
        %s2067 = scalar_select %p2066, %s2065, 4
        %s2068 = smul.u32 1024, %s2067
        %s2069 = smul.u32 8, %s27
        %s2070 = smul.u32 4, %s28
        %s2071 = ssub.s32 9, %s2070
        %p2072 = scmp.lt.s32.totalorder %s2071, 4
        %s2073 = scalar_select %p2072, %s2071, 4
        %s2074 = smul.u32 1024, %s2073
        %s2075 = smul.u32 8, %s27
        %p2076 = scmp.lt.s32.totalorder %s2075, 15
        %s2077 = scalar_select %p2076, %s2075, 15
        %s2078 = smul.addr %s2077, 8
        %s2079 = smul.addr %s2078, 8
        %s2080 = scalar_lea.vmem %s6, %s2079
        %s2081 = smul.u32 8, %s27
        %s2082 = smul.u32 8, %s27
        %s2083 = smul.u32 4, %s28
        %s2084 = ssub.s32 9, %s2083
        %p2085 = scmp.lt.s32.totalorder %s2084, 4
        %s2086 = scalar_select %p2085, %s2084, 4
        %s2087 = smul.u32 1024, %s2086
        %s2088 = smul.u32 8, %s27
        %p2090 = scmp.eq.s32.totalorder %s28, 0
        // Predicated region
        $region361: #{wkv7.1} parent=335 // pred_check
          %p2091 = pneg %p2090
        $region362: #{wkv7.1} parent=335 // pred_check_branch
          %2093 = sbr.rel (%p2091) target = $region364
        $region363: #{wkv7.1} parent=335 // pred_region
          %v2094 = vld [vmem:[%s2080] sm:$0xff]
          %v2095 = vld [vmem:[%s2080 + $0x8] sm:$0xff]
          %v2096 = vld [vmem:[%s2080 + $0x10] sm:$0xff]
          %v2097 = vld [vmem:[%s2080 + $0x18] sm:$0xff]
          %v2098 = vld [vmem:[%s2080 + $0x20] sm:$0xff]
          %v2099 = vld [vmem:[%s2080 + $0x28] sm:$0xff]
          %v2100 = vld [vmem:[%s2080 + $0x30] sm:$0xff]
          %v2101 = vld [vmem:[%s2080 + $0x38] sm:$0xff]
          %v2102 = vld [vmem:[%s2080 + $0x40] sm:$0xff]
          %v2103 = vld [vmem:[%s2080 + $0x48] sm:$0xff]
          %v2104 = vld [vmem:[%s2080 + $0x50] sm:$0xff]
          %v2105 = vld [vmem:[%s2080 + $0x58] sm:$0xff]
          %v2106 = vld [vmem:[%s2080 + $0x60] sm:$0xff]
          %v2107 = vld [vmem:[%s2080 + $0x68] sm:$0xff]
          %v2108 = vld [vmem:[%s2080 + $0x70] sm:$0xff]
          %v2109 = vld [vmem:[%s2080 + $0x78] sm:$0xff]
          %v2110 = vld [vmem:[%s2080 + $0x80] sm:$0xff]
          %v2111 = vld [vmem:[%s2080 + $0x88] sm:$0xff]
          %v2112 = vld [vmem:[%s2080 + $0x90] sm:$0xff]
          %v2113 = vld [vmem:[%s2080 + $0x98] sm:$0xff]
          %v2114 = vld [vmem:[%s2080 + $0xa0] sm:$0xff]
          %v2115 = vld [vmem:[%s2080 + $0xa8] sm:$0xff]
          %v2116 = vld [vmem:[%s2080 + $0xb0] sm:$0xff]
          %v2117 = vld [vmem:[%s2080 + $0xb8] sm:$0xff]
          %v2118 = vld [vmem:[%s2080 + $0xc0] sm:$0xff]
          %v2119 = vld [vmem:[%s2080 + $0xc8] sm:$0xff]
          %v2120 = vld [vmem:[%s2080 + $0xd0] sm:$0xff]
          %v2121 = vld [vmem:[%s2080 + $0xd8] sm:$0xff]
          %v2122 = vld [vmem:[%s2080 + $0xe0] sm:$0xff]
          %v2123 = vld [vmem:[%s2080 + $0xe8] sm:$0xff]
          %v2124 = vld [vmem:[%s2080 + $0xf0] sm:$0xff]
          %v2125 = vld [vmem:[%s2080 + $0xf8] sm:$0xff]
          %v2126 = vld [vmem:[%s2080 + $0x100] sm:$0xff]
          %v2127 = vld [vmem:[%s2080 + $0x108] sm:$0xff]
          %v2128 = vld [vmem:[%s2080 + $0x110] sm:$0xff]
          %v2129 = vld [vmem:[%s2080 + $0x118] sm:$0xff]
          %v2130 = vld [vmem:[%s2080 + $0x120] sm:$0xff]
          %v2131 = vld [vmem:[%s2080 + $0x128] sm:$0xff]
          %v2132 = vld [vmem:[%s2080 + $0x130] sm:$0xff]
          %v2133 = vld [vmem:[%s2080 + $0x138] sm:$0xff]
          %v2134 = vld [vmem:[%s2080 + $0x140] sm:$0xff]
          %v2135 = vld [vmem:[%s2080 + $0x148] sm:$0xff]
          %v2136 = vld [vmem:[%s2080 + $0x150] sm:$0xff]
          %v2137 = vld [vmem:[%s2080 + $0x158] sm:$0xff]
          %v2138 = vld [vmem:[%s2080 + $0x160] sm:$0xff]
          %v2139 = vld [vmem:[%s2080 + $0x168] sm:$0xff]
          %v2140 = vld [vmem:[%s2080 + $0x170] sm:$0xff]
          %v2141 = vld [vmem:[%s2080 + $0x178] sm:$0xff]
          %v2142 = vld [vmem:[%s2080 + $0x180] sm:$0xff]
          %v2143 = vld [vmem:[%s2080 + $0x188] sm:$0xff]
          %v2144 = vld [vmem:[%s2080 + $0x190] sm:$0xff]
          %v2145 = vld [vmem:[%s2080 + $0x198] sm:$0xff]
          %v2146 = vld [vmem:[%s2080 + $0x1a0] sm:$0xff]
          %v2147 = vld [vmem:[%s2080 + $0x1a8] sm:$0xff]
          %v2148 = vld [vmem:[%s2080 + $0x1b0] sm:$0xff]
          %v2149 = vld [vmem:[%s2080 + $0x1b8] sm:$0xff]
          %v2150 = vld [vmem:[%s2080 + $0x1c0] sm:$0xff]
          %v2151 = vld [vmem:[%s2080 + $0x1c8] sm:$0xff]
          %v2152 = vld [vmem:[%s2080 + $0x1d0] sm:$0xff]
          %v2153 = vld [vmem:[%s2080 + $0x1d8] sm:$0xff]
          %v2154 = vld [vmem:[%s2080 + $0x1e0] sm:$0xff]
          %v2155 = vld [vmem:[%s2080 + $0x1e8] sm:$0xff]
          %v2156 = vld [vmem:[%s2080 + $0x1f0] sm:$0xff]
          %v2157 = vld [vmem:[%s2080 + $0x1f8] sm:$0xff]
          %vm2158 = vcmask 523264
          %2159 = vst.msk [vmem:[%s2038] sm:$0xff] %vm2158, %v2094
          %2160 = vst.msk [vmem:[%s2038 + $0x8] sm:$0xff] %vm2158, %v2095
          %2161 = vst.msk [vmem:[%s2038 + $0x10] sm:$0xff] %vm2158, %v2096
          %2162 = vst.msk [vmem:[%s2038 + $0x18] sm:$0xff] %vm2158, %v2097
          %2163 = vst.msk [vmem:[%s2038 + $0x20] sm:$0xff] %vm2158, %v2098
          %2164 = vst.msk [vmem:[%s2038 + $0x28] sm:$0xff] %vm2158, %v2099
          %2165 = vst.msk [vmem:[%s2038 + $0x30] sm:$0xff] %vm2158, %v2100
          %2166 = vst.msk [vmem:[%s2038 + $0x38] sm:$0xff] %vm2158, %v2101
          %2167 = vst.msk [vmem:[%s2038 + $0x40] sm:$0xff] %vm2158, %v2102
          %2168 = vst.msk [vmem:[%s2038 + $0x48] sm:$0xff] %vm2158, %v2103
          %2169 = vst.msk [vmem:[%s2038 + $0x50] sm:$0xff] %vm2158, %v2104
          %2170 = vst.msk [vmem:[%s2038 + $0x58] sm:$0xff] %vm2158, %v2105
          %2171 = vst.msk [vmem:[%s2038 + $0x60] sm:$0xff] %vm2158, %v2106
          %2172 = vst.msk [vmem:[%s2038 + $0x68] sm:$0xff] %vm2158, %v2107
          %2173 = vst.msk [vmem:[%s2038 + $0x70] sm:$0xff] %vm2158, %v2108
          %2174 = vst.msk [vmem:[%s2038 + $0x78] sm:$0xff] %vm2158, %v2109
          %2175 = vst.msk [vmem:[%s2038 + $0x80] sm:$0xff] %vm2158, %v2110
          %2176 = vst.msk [vmem:[%s2038 + $0x88] sm:$0xff] %vm2158, %v2111
          %2177 = vst.msk [vmem:[%s2038 + $0x90] sm:$0xff] %vm2158, %v2112
          %2178 = vst.msk [vmem:[%s2038 + $0x98] sm:$0xff] %vm2158, %v2113
          %2179 = vst.msk [vmem:[%s2038 + $0xa0] sm:$0xff] %vm2158, %v2114
          %2180 = vst.msk [vmem:[%s2038 + $0xa8] sm:$0xff] %vm2158, %v2115
          %2181 = vst.msk [vmem:[%s2038 + $0xb0] sm:$0xff] %vm2158, %v2116
          %2182 = vst.msk [vmem:[%s2038 + $0xb8] sm:$0xff] %vm2158, %v2117
          %2183 = vst.msk [vmem:[%s2038 + $0xc0] sm:$0xff] %vm2158, %v2118
          %2184 = vst.msk [vmem:[%s2038 + $0xc8] sm:$0xff] %vm2158, %v2119
          %2185 = vst.msk [vmem:[%s2038 + $0xd0] sm:$0xff] %vm2158, %v2120
          %2186 = vst.msk [vmem:[%s2038 + $0xd8] sm:$0xff] %vm2158, %v2121
          %2187 = vst.msk [vmem:[%s2038 + $0xe0] sm:$0xff] %vm2158, %v2122
          %2188 = vst.msk [vmem:[%s2038 + $0xe8] sm:$0xff] %vm2158, %v2123
          %2189 = vst.msk [vmem:[%s2038 + $0xf0] sm:$0xff] %vm2158, %v2124
          %2190 = vst.msk [vmem:[%s2038 + $0xf8] sm:$0xff] %vm2158, %v2125
          %2191 = vst.msk [vmem:[%s2038 + $0x100] sm:$0xff] %vm2158, %v2126
          %2192 = vst.msk [vmem:[%s2038 + $0x108] sm:$0xff] %vm2158, %v2127
          %2193 = vst.msk [vmem:[%s2038 + $0x110] sm:$0xff] %vm2158, %v2128
          %2194 = vst.msk [vmem:[%s2038 + $0x118] sm:$0xff] %vm2158, %v2129
          %2195 = vst.msk [vmem:[%s2038 + $0x120] sm:$0xff] %vm2158, %v2130
          %2196 = vst.msk [vmem:[%s2038 + $0x128] sm:$0xff] %vm2158, %v2131
          %2197 = vst.msk [vmem:[%s2038 + $0x130] sm:$0xff] %vm2158, %v2132
          %2198 = vst.msk [vmem:[%s2038 + $0x138] sm:$0xff] %vm2158, %v2133
          %2199 = vst.msk [vmem:[%s2038 + $0x140] sm:$0xff] %vm2158, %v2134
          %2200 = vst.msk [vmem:[%s2038 + $0x148] sm:$0xff] %vm2158, %v2135
          %2201 = vst.msk [vmem:[%s2038 + $0x150] sm:$0xff] %vm2158, %v2136
          %2202 = vst.msk [vmem:[%s2038 + $0x158] sm:$0xff] %vm2158, %v2137
          %2203 = vst.msk [vmem:[%s2038 + $0x160] sm:$0xff] %vm2158, %v2138
          %2204 = vst.msk [vmem:[%s2038 + $0x168] sm:$0xff] %vm2158, %v2139
          %2205 = vst.msk [vmem:[%s2038 + $0x170] sm:$0xff] %vm2158, %v2140
          %2206 = vst.msk [vmem:[%s2038 + $0x178] sm:$0xff] %vm2158, %v2141
          %2207 = vst.msk [vmem:[%s2038 + $0x180] sm:$0xff] %vm2158, %v2142
          %2208 = vst.msk [vmem:[%s2038 + $0x188] sm:$0xff] %vm2158, %v2143
          %2209 = vst.msk [vmem:[%s2038 + $0x190] sm:$0xff] %vm2158, %v2144
          %2210 = vst.msk [vmem:[%s2038 + $0x198] sm:$0xff] %vm2158, %v2145
          %2211 = vst.msk [vmem:[%s2038 + $0x1a0] sm:$0xff] %vm2158, %v2146
          %2212 = vst.msk [vmem:[%s2038 + $0x1a8] sm:$0xff] %vm2158, %v2147
          %2213 = vst.msk [vmem:[%s2038 + $0x1b0] sm:$0xff] %vm2158, %v2148
          %2214 = vst.msk [vmem:[%s2038 + $0x1b8] sm:$0xff] %vm2158, %v2149
          %2215 = vst.msk [vmem:[%s2038 + $0x1c0] sm:$0xff] %vm2158, %v2150
          %2216 = vst.msk [vmem:[%s2038 + $0x1c8] sm:$0xff] %vm2158, %v2151
          %2217 = vst.msk [vmem:[%s2038 + $0x1d0] sm:$0xff] %vm2158, %v2152
          %2218 = vst.msk [vmem:[%s2038 + $0x1d8] sm:$0xff] %vm2158, %v2153
          %2219 = vst.msk [vmem:[%s2038 + $0x1e0] sm:$0xff] %vm2158, %v2154
          %2220 = vst.msk [vmem:[%s2038 + $0x1e8] sm:$0xff] %vm2158, %v2155
          %2221 = vst.msk [vmem:[%s2038 + $0x1f0] sm:$0xff] %vm2158, %v2156
          %2222 = vst.msk [vmem:[%s2038 + $0x1f8] sm:$0xff] %vm2158, %v2157
        $region364: #{wkv7.1} parent=335 // pred_fallthru
          _
        %v2223 = vlaneseq
        %v2224 = vshrl.u32 %v2223, 7
        %v2225 = vadd.s32 %v2224, 8
        %v2226 = vadd.s32 %v2224, 16
        %v2227 = vadd.s32 %v2224, 24
        %v2228 = vlaneseq
        %v2229 = vand.u32 %v2228, 127
        %vm2230 = vcmp.le.s32.totalorder %v2229, %v2224
        %vm2231 = vcmp.le.s32.totalorder %v2229, %v2225
        %vm2232 = vcmp.le.s32.totalorder %v2229, %v2226
        %vm2233 = vcmp.le.s32.totalorder %v2229, %v2227
        %vm2234 = vcmp.lt.s32.totalorder %v2229, %v2224
        %vm2235 = vcmp.lt.s32.totalorder %v2229, %v2225
        %vm2236 = vcmp.lt.s32.totalorder %v2229, %v2226
        %vm2237 = vcmp.lt.s32.totalorder %v2229, %v2227
        %v2238 = vsel %vm2230, 1, 0
        %v2239 = vsel %vm2231, 1, 0
        %v2240 = vsel %vm2232, 1, 0
        %v2241 = vsel %vm2233, 1, 0
        %v2242 = vcvt.s32.f32 %v2238
        %v2243 = vcvt.s32.f32 %v2239
        %v2244 = vcvt.s32.f32 %v2240
        %v2245 = vcvt.s32.f32 %v2241
        %vm2246 = vcmp.eq.s32.totalorder %v2229, %v2224
        %vm2247 = vcmp.eq.s32.totalorder %v2229, %v2225
        %vm2248 = vcmp.eq.s32.totalorder %v2229, %v2226
        %vm2249 = vcmp.eq.s32.totalorder %v2229, %v2227
        %v2250 = vsel %vm2246, 1, 0
        %v2251 = vsel %vm2247, 1, 0
        %v2252 = vsel %vm2248, 1, 0
        %v2253 = vsel %vm2249, 1, 0
        %v2254 = vcvt.s32.f32 %v2250
        %v2255 = vcvt.s32.f32 %v2251
        %v2256 = vcvt.s32.f32 %v2252
        %v2257 = vcvt.s32.f32 %v2253
        %s2258 = smul.u32 %s28, 32
        %v2259 = vstv %s2258
        %v2260 = vadd.s32 %v2259, %v2224
        %v2261 = vadd.s32 %v2259, %v2225
        %v2262 = vadd.s32 %v2259, %v2226
        %v2263 = vadd.s32 %v2259, %v2227
        %vm2264 = vcmp.lt.s32.totalorder %v2260, 72
        %vm2265 = vcmp.lt.s32.totalorder %v2261, 72
        %vm2266 = vcmp.lt.s32.totalorder %v2262, 72
        %vm2267 = vcmp.lt.s32.totalorder %v2263, 72
        loop: start=0, step=1, limit=8
        $region365: #{wkv7.1} parent=335 // loop_pre_header
          _
        $region366: #{wkv7.1} parent=335 // loop_header
          %s2269 = sphi 0, %s2273
          %p2270 = scmp.ge.s32.totalorder %s2269, 8
        $region367: #{wkv7.1} parent=335 // loop_header_branch
          %2272 = sbr.rel (%p2270) target = $region371
        $region368: #{wkv7.1} parent=335 // loop_body
          %s2274 = smul.u32 %s2269, 32
          %s2275 = scalar_lea.vmem %s1943, %s2274 [#allocation2]
          %v2276 = vld [vmem:[%s2275] sm:$0xff]
          %v2277 = vld [vmem:[%s2275 + $0x8] sm:$0xff]
          %v2278 = vld [vmem:[%s2275 + $0x10] sm:$0xff]
          %v2279 = vld [vmem:[%s2275 + $0x18] sm:$0xff]
          %s2280 = scalar_lea.vmem %s1950, %s2274 [#allocation3]
          %v2281 = vld [vmem:[%s2280] sm:$0xff]
          %v2282 = vld [vmem:[%s2280 + $0x8] sm:$0xff]
          %v2283 = vld [vmem:[%s2280 + $0x10] sm:$0xff]
          %v2284 = vld [vmem:[%s2280 + $0x18] sm:$0xff]
          %s2285 = scalar_lea.vmem %s1957, %s2274 [#allocation4]
          %v2286 = vld [vmem:[%s2285] sm:$0xff]
          %v2287 = vld [vmem:[%s2285 + $0x8] sm:$0xff]
          %v2288 = vld [vmem:[%s2285 + $0x10] sm:$0xff]
          %v2289 = vld [vmem:[%s2285 + $0x18] sm:$0xff]
          %s2290 = scalar_lea.vmem %s1964, %s2274 [#allocation5]
          %v2291 = vld [vmem:[%s2290] sm:$0xff]
          %v2292 = vld [vmem:[%s2290 + $0x8] sm:$0xff]
          %v2293 = vld [vmem:[%s2290 + $0x10] sm:$0xff]
          %v2294 = vld [vmem:[%s2290 + $0x18] sm:$0xff]
          %s2295 = scalar_lea.vmem %s1971, %s2274 [#allocation6]
          %v2296 = vld [vmem:[%s2295] sm:$0xff]
          %v2297 = vld [vmem:[%s2295 + $0x8] sm:$0xff]
          %v2298 = vld [vmem:[%s2295 + $0x10] sm:$0xff]
          %v2299 = vld [vmem:[%s2295 + $0x18] sm:$0xff]
          %s2300 = scalar_lea.vmem %s1978, %s2274 [#allocation7]
          %v2301 = vld [vmem:[%s2300] sm:$0xff]
          %v2302 = vld [vmem:[%s2300 + $0x8] sm:$0xff]
          %v2303 = vld [vmem:[%s2300 + $0x10] sm:$0xff]
          %v2304 = vld [vmem:[%s2300 + $0x18] sm:$0xff]
          %v2305 = vsel %vm2264, 1, 0
          %v2306 = vsel %vm2265, 1, 0
          %v2307 = vsel %vm2266, 1, 0
          %v2308 = vsel %vm2267, 1, 0
          %vm2309 = vcmp.eq.s32.totalorder %v2305, 1
          %vm2310 = vcmp.eq.s32.totalorder %v2306, 1
          %vm2311 = vcmp.eq.s32.totalorder %v2307, 1
          %vm2312 = vcmp.eq.s32.totalorder %v2308, 1
          %v2313 = vsel %vm2309, %v2281, 1.0
          %v2314 = vsel %vm2310, %v2282, 1.0
          %v2315 = vsel %vm2311, %v2283, 1.0
          %v2316 = vsel %vm2312, %v2284, 1.0
          %v2317 = vsel %vm2309, %v2276, 0.0
          %v2318 = vsel %vm2310, %v2277, 0.0
          %v2319 = vsel %vm2311, %v2278, 0.0
          %v2320 = vsel %vm2312, %v2279, 0.0
          %v2321 = vsel %vm2309, %v2286, 0.0
          %v2322 = vsel %vm2310, %v2287, 0.0
          %v2323 = vsel %vm2311, %v2288, 0.0
          %v2324 = vsel %vm2312, %v2289, 0.0
          %v2325 = vsel %vm2309, %v2291, 0.0
          %v2326 = vsel %vm2310, %v2292, 0.0
          %v2327 = vsel %vm2311, %v2293, 0.0
          %v2328 = vsel %vm2312, %v2294, 0.0
          %v2329 = vsel %vm2309, %v2296, 0.0
          %v2330 = vsel %vm2310, %v2297, 0.0
          %v2331 = vsel %vm2311, %v2298, 0.0
          %v2332 = vsel %vm2312, %v2299, 0.0
          %v2333 = vsel %vm2309, %v2301, 0.0
          %v2334 = vsel %vm2310, %v2302, 0.0
          %v2335 = vsel %vm2311, %v2303, 0.0
          %v2336 = vsel %vm2312, %v2304, 0.0
          %s2337 = smul.u32 %s2269, 64
          %s2338 = scalar_lea.vmem %s2038, %s2337 [#allocation9]
          %v2339 = vld [vmem:[%s2338] sm:$0xff]
          %v2340 = vld [vmem:[%s2338 + $0x8] sm:$0xff]
          %v2341 = vld [vmem:[%s2338 + $0x10] sm:$0xff]
          %v2342 = vld [vmem:[%s2338 + $0x18] sm:$0xff]
          %v2343 = vld [vmem:[%s2338 + $0x20] sm:$0xff]
          %v2344 = vld [vmem:[%s2338 + $0x28] sm:$0xff]
          %v2345 = vld [vmem:[%s2338 + $0x30] sm:$0xff]
          %v2346 = vld [vmem:[%s2338 + $0x38] sm:$0xff]
          %v2347 = vlog2.pop %v2313
          %v2348 = vmul.f32 %v2347, 0.6931472
          %v2349 = vlog2.pop %v2314
          %v2350 = vmul.f32 %v2349, 0.6931472
          %v2351 = vlog2.pop %v2315
          %v2352 = vmul.f32 %v2351, 0.6931472
          %v2353 = vlog2.pop %v2316
          %v2354 = vmul.f32 %v2353, 0.6931472
          %vm2355 = vcmask 261120
          %v2357 = vsel %vm2355, %v2242, 0
          %v2360 = vsel %vm2355, %v2243, 0
          %v2363 = vsel %vm2355, %v2244, 0
          %v2366 = vsel %vm2355, %v2245, 0
          %2368 = vmatprep.subr.mxu0 0.0
          %v2369 = vand.u32 %v2348, 4294901760
          %2370 = vmatpush1.msra.mxu0 %v2369
          %2371 = vmatprep.subr.mxu0 0.0
          %v2372 = vand.u32 %v2350, 4294901760
          %2373 = vmatpush1.msra.mxu0 %v2372
          %2374 = vmatprep.subr.mxu0 0.0
          %v2375 = vand.u32 %v2352, 4294901760
          %2376 = vmatpush1.msra.mxu0 %v2375
          %2377 = vmatprep.subr.mxu0 0.0
          %v2378 = vand.u32 %v2354, 4294901760
          %2379 = vmatpush1.msra.mxu0 %v2378
          %2380 = vmatprep.subr.mxu0 0.0
          %2381 = vmatpush1.msra.mxu0 0.0
          %2382 = vmatprep.subr.mxu0 0.0
          %2383 = vmatpush1.msra.mxu0 0.0
          %2384 = vmatprep.subr.mxu0 0.0
          %2385 = vmatpush1.msra.mxu0 0.0
          %2386 = vmatprep.subr.mxu0 0.0
          %2387 = vmatpush1.msra.mxu0 0.0
          %2388 = vmatprep.subr.mxu0 0.0
          %2389 = vmatpush1.msra.mxu0 0.0
          %2390 = vmatprep.subr.mxu0 0.0
          %2391 = vmatpush1.msra.mxu0 0.0
          %2392 = vmatprep.subr.mxu0 0.0
          %2393 = vmatpush1.msra.mxu0 0.0
          %2394 = vmatprep.subr.mxu0 0.0
          %2395 = vmatpush1.msra.mxu0 0.0
          %2396 = vmatprep.subr.mxu0 0.0
          %2397 = vmatpush1.msra.mxu0 0.0
          %2398 = vmatprep.subr.mxu0 0.0
          %2399 = vmatpush1.msra.mxu0 0.0
          %2400 = vmatprep.subr.mxu0 0.0
          %2401 = vmatpush1.msra.mxu0 0.0
          %2402 = vmatprep.subr.mxu0 0.0
          %2403 = vmatpush1.msra.mxu0 0.0
          %2404 = vmatprep.subr.mxu0 0.0
          %2405 = vmatpush1.msra.mxu0 0.0
          %2406 = vmatprep.subr.mxu0 0.0
          %2407 = vmatpush1.msra.mxu0 0.0
          %2408 = vmatprep.subr.mxu0 0.0
          %2409 = vmatpush1.msra.mxu0 0.0
          %2410 = vmatprep.subr.mxu0 0.0
          %2411 = vmatpush1.msra.mxu0 0.0
          %2412 = vmatprep.subr.mxu0 0.0
          %2413 = vmatpush1.msra.mxu0 0.0
          %2414 = vmatprep.subr.mxu0 0.0
          %2415 = vmatpush1.msra.mxu0 0.0
          %2416 = vmatprep.subr.mxu0 0.0
          %2417 = vmatpush1.msra.mxu0 0.0
          %2418 = vmatprep.subr.mxu0 0.0
          %2419 = vmatpush1.msra.mxu0 0.0
          %2420 = vmatprep.subr.mxu0 0.0
          %2421 = vmatpush1.msra.mxu0 0.0
          %2422 = vmatprep.subr.mxu0 0.0
          %2423 = vmatpush1.msra.mxu0 0.0
          %2424 = vmatprep.subr.mxu0 0.0
          %2425 = vmatpush1.msra.mxu0 0.0
          %2426 = vmatprep.subr.mxu0 0.0
          %2427 = vmatpush1.msra.mxu0 0.0
          %2428 = vmatprep.subr.mxu0 0.0
          %2429 = vmatpush1.msra.mxu0 0.0
          %2430 = vmatprep.subr.mxu0 0.0
          %2431 = vmatpush1.msra.mxu0 0.0
          %2432 = vmatprep.subr.mxu0 0.0
          %2433 = vmatpush1.msra.mxu0 0.0
          %2434 = vmatprep.subr.mxu0 0.0
          %2435 = vmatpush1.msra.mxu0 0.0
          %2436 = vmatprep.mubr.f32.mxu0 0.0
          %v2437 = vand.u32 %v2357, 4294901760
          %v2438 = vsub.f32 %v2357, %v2437
          %v2439 = vand.u32 %v2438, 4294901760
          %v2440 = vsub.f32 %v2438, %v2439
          %v2441 = vand.u32 %v2440, 4294901760
          %2442 = vmatmul.mubr.f32.gmra.mrb[0].mxu0 %v2441
          %v2443 = vpop.f32.mrb[0].mxu0
          %v2444 = vadd.f32 0.0, %v2443
          %v2445 = vpop.f32.mrb[0].mxu0
          %2446 = vmatprep.mubr.f32.mxu0 0.0
          %v2447 = vand.u32 %v2360, 4294901760
          %v2448 = vsub.f32 %v2360, %v2447
          %v2449 = vand.u32 %v2448, 4294901760
          %v2450 = vsub.f32 %v2448, %v2449
          %v2451 = vand.u32 %v2450, 4294901760
          %2452 = vmatmul.mubr.f32.gmra.mrb[0].mxu0 %v2451
          %v2453 = vpop.f32.mrb[0].mxu0
          %v2454 = vadd.f32 0.0, %v2453
          %v2455 = vpop.f32.mrb[0].mxu0
          %2456 = vmatprep.mubr.f32.mxu0 0.0
          %v2457 = vand.u32 %v2363, 4294901760
          %v2458 = vsub.f32 %v2363, %v2457
          %v2459 = vand.u32 %v2458, 4294901760
          %v2460 = vsub.f32 %v2458, %v2459
          %v2461 = vand.u32 %v2460, 4294901760
          %2462 = vmatmul.mubr.f32.gmra.mrb[0].mxu0 %v2461
          %v2463 = vpop.f32.mrb[0].mxu0
          %v2464 = vadd.f32 0.0, %v2463
          %v2465 = vpop.f32.mrb[0].mxu0
          %2466 = vmatprep.mubr.f32.mxu0 0.0
          %v2467 = vand.u32 %v2366, 4294901760
          %v2468 = vsub.f32 %v2366, %v2467
          %v2469 = vand.u32 %v2468, 4294901760
          %v2470 = vsub.f32 %v2468, %v2469
          %v2471 = vand.u32 %v2470, 4294901760
          %2472 = vmatmul.mubr.f32.gmra.mrb[0].mxu0 %v2471
          %v2473 = vpop.f32.mrb[0].mxu0
          %v2474 = vadd.f32 0.0, %v2473
          %v2475 = vpop.f32.mrb[0].mxu0
          %2476 = vdwg.mxu0
          %2477 = vmatprep.subr.mxu0 0.0
          %v2478 = vand.u32 %v2348, 4294901760
          %v2479 = vsub.f32 %v2348, %v2478
          %v2480 = vand.u32 %v2479, 4294901760
          %v2481 = vsub.f32 %v2479, %v2480
          %v2482 = vand.u32 %v2481, 4294901760
          %2483 = vmatpush1.msra.mxu0 %v2482
          %2484 = vmatprep.subr.mxu0 0.0
          %v2485 = vand.u32 %v2350, 4294901760
          %v2486 = vsub.f32 %v2350, %v2485
          %v2487 = vand.u32 %v2486, 4294901760
          %v2488 = vsub.f32 %v2486, %v2487
          %v2489 = vand.u32 %v2488, 4294901760
          %2490 = vmatpush1.msra.mxu0 %v2489
          %2491 = vmatprep.subr.mxu0 0.0
          %v2492 = vand.u32 %v2352, 4294901760
          %v2493 = vsub.f32 %v2352, %v2492
          %v2494 = vand.u32 %v2493, 4294901760
          %v2495 = vsub.f32 %v2493, %v2494
          %v2496 = vand.u32 %v2495, 4294901760
          %2497 = vmatpush1.msra.mxu0 %v2496
          %2498 = vmatprep.subr.mxu0 0.0
          %v2499 = vand.u32 %v2354, 4294901760
          %v2500 = vsub.f32 %v2354, %v2499
          %v2501 = vand.u32 %v2500, 4294901760
          %v2502 = vsub.f32 %v2500, %v2501
          %v2503 = vand.u32 %v2502, 4294901760
          %2504 = vmatpush1.msra.mxu0 %v2503
          %2505 = vmatprep.subr.mxu0 0.0
          %2506 = vmatpush1.msra.mxu0 0.0
          %2507 = vmatprep.subr.mxu0 0.0
          %2508 = vmatpush1.msra.mxu0 0.0
          %2509 = vmatprep.subr.mxu0 0.0
          %2510 = vmatpush1.msra.mxu0 0.0
          %2511 = vmatprep.subr.mxu0 0.0
          %2512 = vmatpush1.msra.mxu0 0.0
          %2513 = vmatprep.subr.mxu0 0.0
          %2514 = vmatpush1.msra.mxu0 0.0
          %2515 = vmatprep.subr.mxu0 0.0
          %2516 = vmatpush1.msra.mxu0 0.0
          %2517 = vmatprep.subr.mxu0 0.0
          %2518 = vmatpush1.msra.mxu0 0.0
          %2519 = vmatprep.subr.mxu0 0.0
          %2520 = vmatpush1.msra.mxu0 0.0
          %2521 = vmatprep.subr.mxu0 0.0
          %2522 = vmatpush1.msra.mxu0 0.0
          %2523 = vmatprep.subr.mxu0 0.0
          %2524 = vmatpush1.msra.mxu0 0.0
          %2525 = vmatprep.subr.mxu0 0.0
          %2526 = vmatpush1.msra.mxu0 0.0
          %2527 = vmatprep.subr.mxu0 0.0
          %2528 = vmatpush1.msra.mxu0 0.0
          %2529 = vmatprep.subr.mxu0 0.0
          %2530 = vmatpush1.msra.mxu0 0.0
          %2531 = vmatprep.subr.mxu0 0.0
          %2532 = vmatpush1.msra.mxu0 0.0
          %2533 = vmatprep.subr.mxu0 0.0
          %2534 = vmatpush1.msra.mxu0 0.0
          %2535 = vmatprep.subr.mxu0 0.0
          %2536 = vmatpush1.msra.mxu0 0.0
          %2537 = vmatprep.subr.mxu0 0.0
          %2538 = vmatpush1.msra.mxu0 0.0
          %2539 = vmatprep.subr.mxu0 0.0
          %2540 = vmatpush1.msra.mxu0 0.0
          %2541 = vmatprep.subr.mxu0 0.0
          %2542 = vmatpush1.msra.mxu0 0.0
          %2543 = vmatprep.subr.mxu0 0.0
          %2544 = vmatpush1.msra.mxu0 0.0
          %2545 = vmatprep.subr.mxu0 0.0
          %2546 = vmatpush1.msra.mxu0 0.0
          %2547 = vmatprep.subr.mxu0 0.0
          %2548 = vmatpush1.msra.mxu0 0.0
          %2549 = vmatprep.subr.mxu0 0.0
          %2550 = vmatpush1.msra.mxu0 0.0
          %2551 = vmatprep.subr.mxu0 0.0
          %2552 = vmatpush1.msra.mxu0 0.0
          %2553 = vmatprep.subr.mxu0 0.0
          %2554 = vmatpush1.msra.mxu0 0.0
          %2555 = vmatprep.subr.mxu0 0.0
          %2556 = vmatpush1.msra.mxu0 0.0
          %2557 = vmatprep.subr.mxu0 0.0
          %2558 = vmatpush1.msra.mxu0 0.0
          %2559 = vmatprep.subr.mxu0 0.0
          %2560 = vmatpush1.msra.mxu0 0.0
          %2561 = vmatprep.mubr.f32.mxu0 0.0
          %v2562 = vand.u32 %v2357, 4294901760
          %2563 = vmatmul.mubr.f32.gmra.mrb[0].mxu0 %v2562
          %v2564 = vpop.f32.mrb[0].mxu0
          %v2565 = vadd.f32 %v2444, %v2564
          %v2566 = vpop.f32.mrb[0].mxu0
          %2567 = vmatprep.mubr.f32.mxu0 0.0
          %v2568 = vand.u32 %v2360, 4294901760
          %2569 = vmatmul.mubr.f32.gmra.mrb[0].mxu0 %v2568
          %v2570 = vpop.f32.mrb[0].mxu0
          %v2571 = vadd.f32 %v2454, %v2570
          %v2572 = vpop.f32.mrb[0].mxu0
          %2573 = vmatprep.mubr.f32.mxu0 0.0
          %v2574 = vand.u32 %v2363, 4294901760
          %2575 = vmatmul.mubr.f32.gmra.mrb[0].mxu0 %v2574
          %v2576 = vpop.f32.mrb[0].mxu0
          %v2577 = vadd.f32 %v2464, %v2576
          %v2578 = vpop.f32.mrb[0].mxu0
          %2579 = vmatprep.mubr.f32.mxu0 0.0
          %v2580 = vand.u32 %v2366, 4294901760
          %2581 = vmatmul.mubr.f32.gmra.mrb[0].mxu0 %v2580
          %v2582 = vpop.f32.mrb[0].mxu0
          %v2583 = vadd.f32 %v2474, %v2582
          %v2584 = vpop.f32.mrb[0].mxu0
          %2585 = vdwg.mxu0
          %2586 = vmatprep.subr.mxu0 0.0
          %v2587 = vand.u32 %v2348, 4294901760
          %v2588 = vsub.f32 %v2348, %v2587
          %2589 = vmatpush1.msra.mxu0 %v2588
          %2590 = vmatprep.subr.mxu0 0.0
          %v2591 = vand.u32 %v2350, 4294901760
          %v2592 = vsub.f32 %v2350, %v2591
          %2593 = vmatpush1.msra.mxu0 %v2592
          %2594 = vmatprep.subr.mxu0 0.0
          %v2595 = vand.u32 %v2352, 4294901760
          %v2596 = vsub.f32 %v2352, %v2595
          %2597 = vmatpush1.msra.mxu0 %v2596
          %2598 = vmatprep.subr.mxu0 0.0
          %v2599 = vand.u32 %v2354, 4294901760
          %v2600 = vsub.f32 %v2354, %v2599
          %2601 = vmatpush1.msra.mxu0 %v2600
          %2602 = vmatprep.subr.mxu0 0.0
          %2603 = vmatpush1.msra.mxu0 0.0
          %2604 = vmatprep.subr.mxu0 0.0
          %2605 = vmatpush1.msra.mxu0 0.0
          %2606 = vmatprep.subr.mxu0 0.0
          %2607 = vmatpush1.msra.mxu0 0.0
          %2608 = vmatprep.subr.mxu0 0.0
          %2609 = vmatpush1.msra.mxu0 0.0
          %2610 = vmatprep.subr.mxu0 0.0
          %2611 = vmatpush1.msra.mxu0 0.0
          %2612 = vmatprep.subr.mxu0 0.0
          %2613 = vmatpush1.msra.mxu0 0.0
          %2614 = vmatprep.subr.mxu0 0.0
          %2615 = vmatpush1.msra.mxu0 0.0
          %2616 = vmatprep.subr.mxu0 0.0
          %2617 = vmatpush1.msra.mxu0 0.0
          %2618 = vmatprep.subr.mxu0 0.0
          %2619 = vmatpush1.msra.mxu0 0.0
          %2620 = vmatprep.subr.mxu0 0.0
          %2621 = vmatpush1.msra.mxu0 0.0
          %2622 = vmatprep.subr.mxu0 0.0
          %2623 = vmatpush1.msra.mxu0 0.0
          %2624 = vmatprep.subr.mxu0 0.0
          %2625 = vmatpush1.msra.mxu0 0.0
          %2626 = vmatprep.subr.mxu0 0.0
          %2627 = vmatpush1.msra.mxu0 0.0
          %2628 = vmatprep.subr.mxu0 0.0
          %2629 = vmatpush1.msra.mxu0 0.0
          %2630 = vmatprep.subr.mxu0 0.0
          %2631 = vmatpush1.msra.mxu0 0.0
          %2632 = vmatprep.subr.mxu0 0.0
          %2633 = vmatpush1.msra.mxu0 0.0
          %2634 = vmatprep.subr.mxu0 0.0
          %2635 = vmatpush1.msra.mxu0 0.0
          %2636 = vmatprep.subr.mxu0 0.0
          %2637 = vmatpush1.msra.mxu0 0.0
          %2638 = vmatprep.subr.mxu0 0.0
          %2639 = vmatpush1.msra.mxu0 0.0
          %2640 = vmatprep.subr.mxu0 0.0
          %2641 = vmatpush1.msra.mxu0 0.0
          %2642 = vmatprep.subr.mxu0 0.0
          %2643 = vmatpush1.msra.mxu0 0.0
          %2644 = vmatprep.subr.mxu0 0.0
          %2645 = vmatpush1.msra.mxu0 0.0
          %2646 = vmatprep.subr.mxu0 0.0
          %2647 = vmatpush1.msra.mxu0 0.0
          %2648 = vmatprep.subr.mxu0 0.0
          %2649 = vmatpush1.msra.mxu0 0.0
          %2650 = vmatprep.subr.mxu0 0.0
          %2651 = vmatpush1.msra.mxu0 0.0
          %2652 = vmatprep.subr.mxu0 0.0
          %2653 = vmatpush1.msra.mxu0 0.0
          %2654 = vmatprep.subr.mxu0 0.0
          %2655 = vmatpush1.msra.mxu0 0.0
          %2656 = vmatprep.subr.mxu0 0.0
          %2657 = vmatpush1.msra.mxu0 0.0
          %2658 = vmatprep.mubr.f32.mxu0 0.0
          %v2659 = vand.u32 %v2357, 4294901760
          %v2660 = vsub.f32 %v2357, %v2659
          %2661 = vmatmul.mubr.f32.gmra.mrb[0].mxu0 %v2660
          %v2662 = vpop.f32.mrb[0].mxu0
          %v2663 = vadd.f32 %v2565, %v2662
          %v2664 = vpop.f32.mrb[0].mxu0
          %2665 = vmatprep.mubr.f32.mxu0 0.0
          %v2666 = vand.u32 %v2360, 4294901760
          %v2667 = vsub.f32 %v2360, %v2666
          %2668 = vmatmul.mubr.f32.gmra.mrb[0].mxu0 %v2667
          %v2669 = vpop.f32.mrb[0].mxu0
          %v2670 = vadd.f32 %v2571, %v2669
          %v2671 = vpop.f32.mrb[0].mxu0
          %2672 = vmatprep.mubr.f32.mxu0 0.0
          %v2673 = vand.u32 %v2363, 4294901760
          %v2674 = vsub.f32 %v2363, %v2673
          %2675 = vmatmul.mubr.f32.gmra.mrb[0].mxu0 %v2674
          %v2676 = vpop.f32.mrb[0].mxu0
          %v2677 = vadd.f32 %v2577, %v2676
          %v2678 = vpop.f32.mrb[0].mxu0
          %2679 = vmatprep.mubr.f32.mxu0 0.0
          %v2680 = vand.u32 %v2366, 4294901760
          %v2681 = vsub.f32 %v2366, %v2680
          %2682 = vmatmul.mubr.f32.gmra.mrb[0].mxu0 %v2681
          %v2683 = vpop.f32.mrb[0].mxu0
          %v2684 = vadd.f32 %v2583, %v2683
          %v2685 = vpop.f32.mrb[0].mxu0
          %2686 = vdwg.mxu0
          %2687 = vmatprep.subr.mxu0 0.0
          %v2688 = vand.u32 %v2348, 4294901760
          %2689 = vmatpush1.msra.mxu0 %v2688
          %2690 = vmatprep.subr.mxu0 0.0
          %v2691 = vand.u32 %v2350, 4294901760
          %2692 = vmatpush1.msra.mxu0 %v2691
          %2693 = vmatprep.subr.mxu0 0.0
          %v2694 = vand.u32 %v2352, 4294901760
          %2695 = vmatpush1.msra.mxu0 %v2694
          %2696 = vmatprep.subr.mxu0 0.0
          %v2697 = vand.u32 %v2354, 4294901760
          %2698 = vmatpush1.msra.mxu0 %v2697
          %2699 = vmatprep.subr.mxu0 0.0
          %2700 = vmatpush1.msra.mxu0 0.0
          %2701 = vmatprep.subr.mxu0 0.0
          %2702 = vmatpush1.msra.mxu0 0.0
          %2703 = vmatprep.subr.mxu0 0.0
          %2704 = vmatpush1.msra.mxu0 0.0
          %2705 = vmatprep.subr.mxu0 0.0
          %2706 = vmatpush1.msra.mxu0 0.0
          %2707 = vmatprep.subr.mxu0 0.0
          %2708 = vmatpush1.msra.mxu0 0.0
          %2709 = vmatprep.subr.mxu0 0.0
          %2710 = vmatpush1.msra.mxu0 0.0
          %2711 = vmatprep.subr.mxu0 0.0
          %2712 = vmatpush1.msra.mxu0 0.0
          %2713 = vmatprep.subr.mxu0 0.0
          %2714 = vmatpush1.msra.mxu0 0.0
          %2715 = vmatprep.subr.mxu0 0.0
          %2716 = vmatpush1.msra.mxu0 0.0
          %2717 = vmatprep.subr.mxu0 0.0
          %2718 = vmatpush1.msra.mxu0 0.0
          %2719 = vmatprep.subr.mxu0 0.0
          %2720 = vmatpush1.msra.mxu0 0.0
          %2721 = vmatprep.subr.mxu0 0.0
          %2722 = vmatpush1.msra.mxu0 0.0
          %2723 = vmatprep.subr.mxu0 0.0
          %2724 = vmatpush1.msra.mxu0 0.0
          %2725 = vmatprep.subr.mxu0 0.0
          %2726 = vmatpush1.msra.mxu0 0.0
          %2727 = vmatprep.subr.mxu0 0.0
          %2728 = vmatpush1.msra.mxu0 0.0
          %2729 = vmatprep.subr.mxu0 0.0
          %2730 = vmatpush1.msra.mxu0 0.0
          %2731 = vmatprep.subr.mxu0 0.0
          %2732 = vmatpush1.msra.mxu0 0.0
          %2733 = vmatprep.subr.mxu0 0.0
          %2734 = vmatpush1.msra.mxu0 0.0
          %2735 = vmatprep.subr.mxu0 0.0
          %2736 = vmatpush1.msra.mxu0 0.0
          %2737 = vmatprep.subr.mxu0 0.0
          %2738 = vmatpush1.msra.mxu0 0.0
          %2739 = vmatprep.subr.mxu0 0.0
          %2740 = vmatpush1.msra.mxu0 0.0
          %2741 = vmatprep.subr.mxu0 0.0
          %2742 = vmatpush1.msra.mxu0 0.0
          %2743 = vmatprep.subr.mxu0 0.0
          %2744 = vmatpush1.msra.mxu0 0.0
          %2745 = vmatprep.subr.mxu0 0.0
          %2746 = vmatpush1.msra.mxu0 0.0
          %2747 = vmatprep.subr.mxu0 0.0
          %2748 = vmatpush1.msra.mxu0 0.0
          %2749 = vmatprep.subr.mxu0 0.0
          %2750 = vmatpush1.msra.mxu0 0.0
          %2751 = vmatprep.subr.mxu0 0.0
          %2752 = vmatpush1.msra.mxu0 0.0
          %2753 = vmatprep.subr.mxu0 0.0
          %2754 = vmatpush1.msra.mxu0 0.0
          %2755 = vmatprep.mubr.f32.mxu0 0.0
          %v2756 = vand.u32 %v2357, 4294901760
          %v2757 = vsub.f32 %v2357, %v2756
          %v2758 = vand.u32 %v2757, 4294901760
          %2759 = vmatmul.mubr.f32.gmra.mrb[0].mxu0 %v2758
          %v2760 = vpop.f32.mrb[0].mxu0
          %v2761 = vadd.f32 %v2663, %v2760
          %v2762 = vpop.f32.mrb[0].mxu0
          %2763 = vmatprep.mubr.f32.mxu0 0.0
          %v2764 = vand.u32 %v2360, 4294901760
          %v2765 = vsub.f32 %v2360, %v2764
          %v2766 = vand.u32 %v2765, 4294901760
          %2767 = vmatmul.mubr.f32.gmra.mrb[0].mxu0 %v2766
          %v2768 = vpop.f32.mrb[0].mxu0
          %v2769 = vadd.f32 %v2670, %v2768
          %v2770 = vpop.f32.mrb[0].mxu0
          %2771 = vmatprep.mubr.f32.mxu0 0.0
          %v2772 = vand.u32 %v2363, 4294901760
          %v2773 = vsub.f32 %v2363, %v2772
          %v2774 = vand.u32 %v2773, 4294901760
          %2775 = vmatmul.mubr.f32.gmra.mrb[0].mxu0 %v2774
          %v2776 = vpop.f32.mrb[0].mxu0
          %v2777 = vadd.f32 %v2677, %v2776
          %v2778 = vpop.f32.mrb[0].mxu0
          %2779 = vmatprep.mubr.f32.mxu0 0.0
          %v2780 = vand.u32 %v2366, 4294901760
          %v2781 = vsub.f32 %v2366, %v2780
          %v2782 = vand.u32 %v2781, 4294901760
          %2783 = vmatmul.mubr.f32.gmra.mrb[0].mxu0 %v2782
          %v2784 = vpop.f32.mrb[0].mxu0
          %v2785 = vadd.f32 %v2684, %v2784
          %v2786 = vpop.f32.mrb[0].mxu0
          %2787 = vdwg.mxu0
          %2788 = vmatprep.subr.mxu0 0.0
          %v2789 = vand.u32 %v2348, 4294901760
          %v2790 = vsub.f32 %v2348, %v2789
          %v2791 = vand.u32 %v2790, 4294901760
          %2792 = vmatpush1.msra.mxu0 %v2791
          %2793 = vmatprep.subr.mxu0 0.0
          %v2794 = vand.u32 %v2350, 4294901760
          %v2795 = vsub.f32 %v2350, %v2794
          %v2796 = vand.u32 %v2795, 4294901760
          %2797 = vmatpush1.msra.mxu0 %v2796
          %2798 = vmatprep.subr.mxu0 0.0
          %v2799 = vand.u32 %v2352, 4294901760
          %v2800 = vsub.f32 %v2352, %v2799
          %v2801 = vand.u32 %v2800, 4294901760
          %2802 = vmatpush1.msra.mxu0 %v2801
          %2803 = vmatprep.subr.mxu0 0.0
          %v2804 = vand.u32 %v2354, 4294901760
          %v2805 = vsub.f32 %v2354, %v2804
          %v2806 = vand.u32 %v2805, 4294901760
          %2807 = vmatpush1.msra.mxu0 %v2806
          %2808 = vmatprep.subr.mxu0 0.0
          %2809 = vmatpush1.msra.mxu0 0.0
          %2810 = vmatprep.subr.mxu0 0.0
          %2811 = vmatpush1.msra.mxu0 0.0
          %2812 = vmatprep.subr.mxu0 0.0
          %2813 = vmatpush1.msra.mxu0 0.0
          %2814 = vmatprep.subr.mxu0 0.0
          %2815 = vmatpush1.msra.mxu0 0.0
          %2816 = vmatprep.subr.mxu0 0.0
          %2817 = vmatpush1.msra.mxu0 0.0
          %2818 = vmatprep.subr.mxu0 0.0
          %2819 = vmatpush1.msra.mxu0 0.0
          %2820 = vmatprep.subr.mxu0 0.0
          %2821 = vmatpush1.msra.mxu0 0.0
          %2822 = vmatprep.subr.mxu0 0.0
          %2823 = vmatpush1.msra.mxu0 0.0
          %2824 = vmatprep.subr.mxu0 0.0
          %2825 = vmatpush1.msra.mxu0 0.0
          %2826 = vmatprep.subr.mxu0 0.0
          %2827 = vmatpush1.msra.mxu0 0.0
          %2828 = vmatprep.subr.mxu0 0.0
          %2829 = vmatpush1.msra.mxu0 0.0
          %2830 = vmatprep.subr.mxu0 0.0
          %2831 = vmatpush1.msra.mxu0 0.0
          %2832 = vmatprep.subr.mxu0 0.0
          %2833 = vmatpush1.msra.mxu0 0.0
          %2834 = vmatprep.subr.mxu0 0.0
          %2835 = vmatpush1.msra.mxu0 0.0
          %2836 = vmatprep.subr.mxu0 0.0
          %2837 = vmatpush1.msra.mxu0 0.0
          %2838 = vmatprep.subr.mxu0 0.0
          %2839 = vmatpush1.msra.mxu0 0.0
          %2840 = vmatprep.subr.mxu0 0.0
          %2841 = vmatpush1.msra.mxu0 0.0
          %2842 = vmatprep.subr.mxu0 0.0
          %2843 = vmatpush1.msra.mxu0 0.0
          %2844 = vmatprep.subr.mxu0 0.0
          %2845 = vmatpush1.msra.mxu0 0.0
          %2846 = vmatprep.subr.mxu0 0.0
          %2847 = vmatpush1.msra.mxu0 0.0
          %2848 = vmatprep.subr.mxu0 0.0
          %2849 = vmatpush1.msra.mxu0 0.0
          %2850 = vmatprep.subr.mxu0 0.0
          %2851 = vmatpush1.msra.mxu0 0.0
          %2852 = vmatprep.subr.mxu0 0.0
          %2853 = vmatpush1.msra.mxu0 0.0
          %2854 = vmatprep.subr.mxu0 0.0
          %2855 = vmatpush1.msra.mxu0 0.0
          %2856 = vmatprep.subr.mxu0 0.0
          %2857 = vmatpush1.msra.mxu0 0.0
          %2858 = vmatprep.subr.mxu0 0.0
          %2859 = vmatpush1.msra.mxu0 0.0
          %2860 = vmatprep.subr.mxu0 0.0
          %2861 = vmatpush1.msra.mxu0 0.0
          %2862 = vmatprep.subr.mxu0 0.0
          %2863 = vmatpush1.msra.mxu0 0.0
          %2864 = vmatprep.mubr.f32.mxu0 0.0
          %v2865 = vand.u32 %v2357, 4294901760
          %2866 = vmatmul.mubr.f32.gmra.mrb[0].mxu0 %v2865
          %v2867 = vpop.f32.mrb[0].mxu0
          %v2868 = vadd.f32 %v2761, %v2867
          %v2869 = vpop.f32.mrb[0].mxu0
          %2870 = vmatprep.mubr.f32.mxu0 0.0
          %v2871 = vand.u32 %v2360, 4294901760
          %2872 = vmatmul.mubr.f32.gmra.mrb[0].mxu0 %v2871
          %v2873 = vpop.f32.mrb[0].mxu0
          %v2874 = vadd.f32 %v2769, %v2873
          %v2875 = vpop.f32.mrb[0].mxu0
          %2876 = vmatprep.mubr.f32.mxu0 0.0
          %v2877 = vand.u32 %v2363, 4294901760
          %2878 = vmatmul.mubr.f32.gmra.mrb[0].mxu0 %v2877
          %v2879 = vpop.f32.mrb[0].mxu0
          %v2880 = vadd.f32 %v2777, %v2879
          %v2881 = vpop.f32.mrb[0].mxu0
          %2882 = vmatprep.mubr.f32.mxu0 0.0
          %v2883 = vand.u32 %v2366, 4294901760
          %2884 = vmatmul.mubr.f32.gmra.mrb[0].mxu0 %v2883
          %v2885 = vpop.f32.mrb[0].mxu0
          %v2886 = vadd.f32 %v2785, %v2885
          %v2887 = vpop.f32.mrb[0].mxu0
          %2888 = vdwg.mxu0
          %2889 = vmatprep.subr.mxu0 0.0
          %v2890 = vand.u32 %v2348, 4294901760
          %2891 = vmatpush1.msra.mxu0 %v2890
          %2892 = vmatprep.subr.mxu0 0.0
          %v2893 = vand.u32 %v2350, 4294901760
          %2894 = vmatpush1.msra.mxu0 %v2893
          %2895 = vmatprep.subr.mxu0 0.0
          %v2896 = vand.u32 %v2352, 4294901760
          %2897 = vmatpush1.msra.mxu0 %v2896
          %2898 = vmatprep.subr.mxu0 0.0
          %v2899 = vand.u32 %v2354, 4294901760
          %2900 = vmatpush1.msra.mxu0 %v2899
          %2901 = vmatprep.subr.mxu0 0.0
          %2902 = vmatpush1.msra.mxu0 0.0
          %2903 = vmatprep.subr.mxu0 0.0
          %2904 = vmatpush1.msra.mxu0 0.0
          %2905 = vmatprep.subr.mxu0 0.0
          %2906 = vmatpush1.msra.mxu0 0.0
          %2907 = vmatprep.subr.mxu0 0.0
          %2908 = vmatpush1.msra.mxu0 0.0
          %2909 = vmatprep.subr.mxu0 0.0
          %2910 = vmatpush1.msra.mxu0 0.0
          %2911 = vmatprep.subr.mxu0 0.0
          %2912 = vmatpush1.msra.mxu0 0.0
          %2913 = vmatprep.subr.mxu0 0.0
          %2914 = vmatpush1.msra.mxu0 0.0
          %2915 = vmatprep.subr.mxu0 0.0
          %2916 = vmatpush1.msra.mxu0 0.0
          %2917 = vmatprep.subr.mxu0 0.0
          %2918 = vmatpush1.msra.mxu0 0.0
          %2919 = vmatprep.subr.mxu0 0.0
          %2920 = vmatpush1.msra.mxu0 0.0
          %2921 = vmatprep.subr.mxu0 0.0
          %2922 = vmatpush1.msra.mxu0 0.0
          %2923 = vmatprep.subr.mxu0 0.0
          %2924 = vmatpush1.msra.mxu0 0.0
          %2925 = vmatprep.subr.mxu0 0.0
          %2926 = vmatpush1.msra.mxu0 0.0
          %2927 = vmatprep.subr.mxu0 0.0
          %2928 = vmatpush1.msra.mxu0 0.0
          %2929 = vmatprep.subr.mxu0 0.0
          %2930 = vmatpush1.msra.mxu0 0.0
          %2931 = vmatprep.subr.mxu0 0.0
          %2932 = vmatpush1.msra.mxu0 0.0
          %2933 = vmatprep.subr.mxu0 0.0
          %2934 = vmatpush1.msra.mxu0 0.0
          %2935 = vmatprep.subr.mxu0 0.0
          %2936 = vmatpush1.msra.mxu0 0.0
          %2937 = vmatprep.subr.mxu0 0.0
          %2938 = vmatpush1.msra.mxu0 0.0
          %2939 = vmatprep.subr.mxu0 0.0
          %2940 = vmatpush1.msra.mxu0 0.0
          %2941 = vmatprep.subr.mxu0 0.0
          %2942 = vmatpush1.msra.mxu0 0.0
          %2943 = vmatprep.subr.mxu0 0.0
          %2944 = vmatpush1.msra.mxu0 0.0
          %2945 = vmatprep.subr.mxu0 0.0
          %2946 = vmatpush1.msra.mxu0 0.0
          %2947 = vmatprep.subr.mxu0 0.0
          %2948 = vmatpush1.msra.mxu0 0.0
          %2949 = vmatprep.subr.mxu0 0.0
          %2950 = vmatpush1.msra.mxu0 0.0
          %2951 = vmatprep.subr.mxu0 0.0
          %2952 = vmatpush1.msra.mxu0 0.0
          %2953 = vmatprep.subr.mxu0 0.0
          %2954 = vmatpush1.msra.mxu0 0.0
          %2955 = vmatprep.subr.mxu0 0.0
          %2956 = vmatpush1.msra.mxu0 0.0
          %2957 = vmatprep.mubr.f32.mxu0 0.0
          %v2958 = vand.u32 %v2357, 4294901760
          %2959 = vmatmul.mubr.f32.gmra.mrb[0].mxu0 %v2958
          %v2960 = vpop.f32.mrb[0].mxu0
          %v2961 = vadd.f32 %v2868, %v2960
          %v2962 = vpop.f32.mrb[0].mxu0
          %2963 = vmatprep.mubr.f32.mxu0 0.0
          %v2964 = vand.u32 %v2360, 4294901760
          %2965 = vmatmul.mubr.f32.gmra.mrb[0].mxu0 %v2964
          %v2966 = vpop.f32.mrb[0].mxu0
          %v2967 = vadd.f32 %v2874, %v2966
          %v2968 = vpop.f32.mrb[0].mxu0
          %2969 = vmatprep.mubr.f32.mxu0 0.0
          %v2970 = vand.u32 %v2363, 4294901760
          %2971 = vmatmul.mubr.f32.gmra.mrb[0].mxu0 %v2970
          %v2972 = vpop.f32.mrb[0].mxu0
          %v2973 = vadd.f32 %v2880, %v2972
          %v2974 = vpop.f32.mrb[0].mxu0
          %2975 = vmatprep.mubr.f32.mxu0 0.0
          %v2976 = vand.u32 %v2366, 4294901760
          %2977 = vmatmul.mubr.f32.gmra.mrb[0].mxu0 %v2976
          %v2978 = vpop.f32.mrb[0].mxu0
          %v2979 = vadd.f32 %v2886, %v2978
          %v2980 = vpop.f32.mrb[0].mxu0
          %2981 = vdwg.mxu0
          %v2982 = vmax.f32 %v2961, -70.0
          %v2983 = vmax.f32 %v2967, -70.0
          %v2984 = vmax.f32 %v2973, -70.0
          %v2985 = vmax.f32 %v2979, -70.0
          %v2986 = vmul.f32 %v2982, 1.442695
          %v2987 = vpow.pop %v2986
          %v2988 = vmul.f32 %v2983, 1.442695
          %v2989 = vpow.pop %v2988
          %v2990 = vmul.f32 %v2984, 1.442695
          %v2991 = vpow.pop %v2990
          %v2992 = vmul.f32 %v2985, 1.442695
          %v2993 = vpow.pop %v2992
          %v2994 = vsub.f32 0.0, %v2982
          %v2995 = vsub.f32 0.0, %v2983
          %v2996 = vsub.f32 0.0, %v2984
          %v2997 = vsub.f32 0.0, %v2985
          %v2998 = vmul.f32 %v2994, 1.442695
          %v2999 = vpow.pop %v2998
          %v3000 = vmul.f32 %v2995, 1.442695
          %v3001 = vpow.pop %v3000
          %v3002 = vmul.f32 %v2996, 1.442695
          %v3003 = vpow.pop %v3002
          %v3004 = vmul.f32 %v2997, 1.442695
          %v3005 = vpow.pop %v3004
          %v3006 = vmul.f32 %v2329, %v2987
          %v3007 = vmul.f32 %v2330, %v2989
          %v3008 = vmul.f32 %v2331, %v2991
          %v3009 = vmul.f32 %v2332, %v2993
          %v3010 = vmul.f32 %v2333, %v2999
          %v3011 = vmul.f32 %v2334, %v3001
          %v3012 = vmul.f32 %v2335, %v3003
          %v3013 = vmul.f32 %v2336, %v3005
          %v3014 = vmul.f32 %v2321, %v2999
          %v3015 = vmul.f32 %v2322, %v3001
          %v3016 = vmul.f32 %v2323, %v3003
          %v3017 = vmul.f32 %v2324, %v3005
          %v3018 = vmul.f32 %v2317, %v2987
          %v3019 = vmul.f32 %v2318, %v2989
          %v3020 = vmul.f32 %v2319, %v2991
          %v3021 = vmul.f32 %v2320, %v2993
          %v3022 = vpack.c.bf16 %v3007, %v3006
          %v3023 = vpack.c.bf16 %v3009, %v3008
          %v3024 = vpack.c.bf16 %v3011, %v3010
          %v3025 = vpack.c.bf16 %v3013, %v3012
          %vm3026 = vcmask 523264
          %v3028 = vsel %vm3026, %v3022, 0
          %v3031 = vsel %vm3026, %v3023, 0
          %v3034 = vsel %vm3026, %v3024, 0
          %v3037 = vsel %vm3026, %v3025, 0
          %3039 = vmatprep.subr.bf16.mxu0 0
          %3040 = vmatpush1.bf16.xpose.msra.mxu0 %v3034
          %3041 = vmatprep.subr.bf16.mxu0 0
          %3042 = vmatpush1.bf16.xpose.msra.mxu0 %v3037
          %3043 = vmatprep.subr.bf16.mxu0 0
          %3044 = vmatpush1.bf16.xpose.msra.mxu0 0
          %3045 = vmatprep.subr.bf16.mxu0 0
          %3046 = vmatpush1.bf16.xpose.msra.mxu0 0
          %3047 = vmatprep.subr.bf16.mxu0 0
          %3048 = vmatpush1.bf16.xpose.msra.mxu0 0
          %3049 = vmatprep.subr.bf16.mxu0 0
          %3050 = vmatpush1.bf16.xpose.msra.mxu0 0
          %3051 = vmatprep.subr.bf16.mxu0 0
          %3052 = vmatpush1.bf16.xpose.msra.mxu0 0
          %3053 = vmatprep.subr.bf16.mxu0 0
          %3054 = vmatpush1.bf16.xpose.msra.mxu0 0
          %3055 = vmatprep.subr.bf16.mxu0 0
          %3056 = vmatpush1.bf16.xpose.msra.mxu0 0
          %3057 = vmatprep.subr.bf16.mxu0 0
          %3058 = vmatpush1.bf16.xpose.msra.mxu0 0
          %3059 = vmatprep.subr.bf16.mxu0 0
          %3060 = vmatpush1.bf16.xpose.msra.mxu0 0
          %3061 = vmatprep.subr.bf16.mxu0 0
          %3062 = vmatpush1.bf16.xpose.msra.mxu0 0
          %3063 = vmatprep.subr.bf16.mxu0 0
          %3064 = vmatpush1.bf16.xpose.msra.mxu0 0
          %3065 = vmatprep.subr.bf16.mxu0 0
          %3066 = vmatpush1.bf16.xpose.msra.mxu0 0
          %3067 = vmatprep.subr.bf16.mxu0 0
          %3068 = vmatpush1.bf16.xpose.msra.mxu0 0
          %3069 = vmatprep.subr.bf16.mxu0 0
          %3070 = vmatpush1.bf16.xpose.msra.mxu0 0
          %3071 = vmatprep.mubr.bf16.mxu0 0
          %3072 = vmatmul.mubr.bf16.gmra.mrb[0].mxu0 %v3028
          %v3073 = vpop.f32.mrb[0].mxu0
          %v3074 = vadd.f32 0.0, %v3073
          %v3075 = vpop.f32.mrb[0].mxu0
          %v3076 = vpop.f32.mrb[0].mxu0
          %v3077 = vadd.f32 0.0, %v3076
          %v3078 = vpop.f32.mrb[0].mxu0
          %3079 = vmatprep.mubr.bf16.mxu0 0
          %3080 = vmatmul.mubr.bf16.gmra.mrb[0].mxu0 %v3031
          %v3081 = vpop.f32.mrb[0].mxu0
          %v3082 = vadd.f32 0.0, %v3081
          %v3083 = vpop.f32.mrb[0].mxu0
          %v3084 = vpop.f32.mrb[0].mxu0
          %v3085 = vadd.f32 0.0, %v3084
          %v3086 = vpop.f32.mrb[0].mxu0
          %3087 = vdwg.mxu0
          %v3088 = vsel %vm2234, %v3074, 0.0
          %v3089 = vsel %vm2235, %v3077, 0.0
          %v3090 = vsel %vm2236, %v3082, 0.0
          %v3091 = vsel %vm2237, %v3085, 0.0
          %v3092 = vpack.c.bf16 %v3015, %v3014
          %v3093 = vpack.c.bf16 %v3017, %v3016
          %v3095 = vsel %vm3026, %v3092, 0
          %v3098 = vsel %vm3026, %v3093, 0
          %3100 = vmatprep.subr.bf16.mxu0 0
          %3101 = vmatpush1.bf16.xpose.msra.mxu0 %v3095
          %3102 = vmatprep.subr.bf16.mxu0 0
          %3103 = vmatpush1.bf16.xpose.msra.mxu0 %v3098
          %3104 = vmatprep.subr.bf16.mxu0 0
          %3105 = vmatpush1.bf16.xpose.msra.mxu0 0
          %3106 = vmatprep.subr.bf16.mxu0 0
          %3107 = vmatpush1.bf16.xpose.msra.mxu0 0
          %3108 = vmatprep.subr.bf16.mxu0 0
          %3109 = vmatpush1.bf16.xpose.msra.mxu0 0
          %3110 = vmatprep.subr.bf16.mxu0 0
          %3111 = vmatpush1.bf16.xpose.msra.mxu0 0
          %3112 = vmatprep.subr.bf16.mxu0 0
          %3113 = vmatpush1.bf16.xpose.msra.mxu0 0
          %3114 = vmatprep.subr.bf16.mxu0 0
          %3115 = vmatpush1.bf16.xpose.msra.mxu0 0
          %3116 = vmatprep.subr.bf16.mxu0 0
          %3117 = vmatpush1.bf16.xpose.msra.mxu0 0
          %3118 = vmatprep.subr.bf16.mxu0 0
          %3119 = vmatpush1.bf16.xpose.msra.mxu0 0
          %3120 = vmatprep.subr.bf16.mxu0 0
          %3121 = vmatpush1.bf16.xpose.msra.mxu0 0
          %3122 = vmatprep.subr.bf16.mxu0 0
          %3123 = vmatpush1.bf16.xpose.msra.mxu0 0
          %3124 = vmatprep.subr.bf16.mxu0 0
          %3125 = vmatpush1.bf16.xpose.msra.mxu0 0
          %3126 = vmatprep.subr.bf16.mxu0 0
          %3127 = vmatpush1.bf16.xpose.msra.mxu0 0
          %3128 = vmatprep.subr.bf16.mxu0 0
          %3129 = vmatpush1.bf16.xpose.msra.mxu0 0
          %3130 = vmatprep.subr.bf16.mxu0 0
          %3131 = vmatpush1.bf16.xpose.msra.mxu0 0
          %3132 = vmatprep.mubr.bf16.mxu0 0
          %3133 = vmatmul.mubr.bf16.gmra.mrb[0].mxu0 %v3028
          %v3134 = vpop.f32.mrb[0].mxu0
          %v3135 = vadd.f32 0.0, %v3134
          %v3136 = vpop.f32.mrb[0].mxu0
          %v3137 = vpop.f32.mrb[0].mxu0
          %v3138 = vadd.f32 0.0, %v3137
          %v3139 = vpop.f32.mrb[0].mxu0
          %3140 = vmatprep.mubr.bf16.mxu0 0
          %3141 = vmatmul.mubr.bf16.gmra.mrb[0].mxu0 %v3031
          %v3142 = vpop.f32.mrb[0].mxu0
          %v3143 = vadd.f32 0.0, %v3142
          %v3144 = vpop.f32.mrb[0].mxu0
          %v3145 = vpop.f32.mrb[0].mxu0
          %v3146 = vadd.f32 0.0, %v3145
          %v3147 = vpop.f32.mrb[0].mxu0
          %3148 = vdwg.mxu0
          %v3149 = vsel %vm2234, %v3135, 0.0
          %v3150 = vsel %vm2235, %v3138, 0.0
          %v3151 = vsel %vm2236, %v3143, 0.0
          %v3152 = vsel %vm2237, %v3146, 0.0
          %v3153 = vpack.c.bf16 %v3019, %v3018
          %v3154 = vpack.c.bf16 %v3021, %v3020
          %v3156 = vsel %vm3026, %v3153, 0
          %v3159 = vsel %vm3026, %v3154, 0
          %3161 = vmatprep.subr.bf16.mxu0 0
          %3162 = vmatpush1.bf16.xpose.msra.mxu0 %v3034
          %3163 = vmatprep.subr.bf16.mxu0 0
          %3164 = vmatpush1.bf16.xpose.msra.mxu0 %v3037
          %3165 = vmatprep.subr.bf16.mxu0 0
          %3166 = vmatpush1.bf16.xpose.msra.mxu0 0
          %3167 = vmatprep.subr.bf16.mxu0 0
          %3168 = vmatpush1.bf16.xpose.msra.mxu0 0
          %3169 = vmatprep.subr.bf16.mxu0 0
          %3170 = vmatpush1.bf16.xpose.msra.mxu0 0
          %3171 = vmatprep.subr.bf16.mxu0 0
          %3172 = vmatpush1.bf16.xpose.msra.mxu0 0
          %3173 = vmatprep.subr.bf16.mxu0 0
          %3174 = vmatpush1.bf16.xpose.msra.mxu0 0
          %3175 = vmatprep.subr.bf16.mxu0 0
          %3176 = vmatpush1.bf16.xpose.msra.mxu0 0
          %3177 = vmatprep.subr.bf16.mxu0 0
          %3178 = vmatpush1.bf16.xpose.msra.mxu0 0
          %3179 = vmatprep.subr.bf16.mxu0 0
          %3180 = vmatpush1.bf16.xpose.msra.mxu0 0
          %3181 = vmatprep.subr.bf16.mxu0 0
          %3182 = vmatpush1.bf16.xpose.msra.mxu0 0
          %3183 = vmatprep.subr.bf16.mxu0 0
          %3184 = vmatpush1.bf16.xpose.msra.mxu0 0
          %3185 = vmatprep.subr.bf16.mxu0 0
          %3186 = vmatpush1.bf16.xpose.msra.mxu0 0
          %3187 = vmatprep.subr.bf16.mxu0 0
          %3188 = vmatpush1.bf16.xpose.msra.mxu0 0
          %3189 = vmatprep.subr.bf16.mxu0 0
          %3190 = vmatpush1.bf16.xpose.msra.mxu0 0
          %3191 = vmatprep.subr.bf16.mxu0 0
          %3192 = vmatpush1.bf16.xpose.msra.mxu0 0
          %3193 = vmatprep.mubr.bf16.mxu0 0
          %3194 = vmatmul.mubr.bf16.gmra.mrb[0].mxu0 %v3156
          %v3195 = vpop.f32.mrb[0].mxu0
          %v3196 = vadd.f32 0.0, %v3195
          %v3197 = vpop.f32.mrb[0].mxu0
          %v3198 = vpop.f32.mrb[0].mxu0
          %v3199 = vadd.f32 0.0, %v3198
          %v3200 = vpop.f32.mrb[0].mxu0
          %3201 = vmatprep.mubr.bf16.mxu0 0
          %3202 = vmatmul.mubr.bf16.gmra.mrb[0].mxu0 %v3159
          %v3203 = vpop.f32.mrb[0].mxu0
          %v3204 = vadd.f32 0.0, %v3203
          %v3205 = vpop.f32.mrb[0].mxu0
          %v3206 = vpop.f32.mrb[0].mxu0
          %v3207 = vadd.f32 0.0, %v3206
          %v3208 = vpop.f32.mrb[0].mxu0
          %3209 = vdwg.mxu0
          %v3210 = vsel %vm2230, %v3196, 0.0
          %v3211 = vsel %vm2231, %v3199, 0.0
          %v3212 = vsel %vm2232, %v3204, 0.0
          %v3213 = vsel %vm2233, %v3207, 0.0
          %3214 = vmatprep.subr.bf16.mxu0 0
          %3215 = vmatpush1.bf16.xpose.msra.mxu0 %v3095
          %3216 = vmatprep.subr.bf16.mxu0 0
          %3217 = vmatpush1.bf16.xpose.msra.mxu0 %v3098
          %3218 = vmatprep.subr.bf16.mxu0 0
          %3219 = vmatpush1.bf16.xpose.msra.mxu0 0
          %3220 = vmatprep.subr.bf16.mxu0 0
          %3221 = vmatpush1.bf16.xpose.msra.mxu0 0
          %3222 = vmatprep.subr.bf16.mxu0 0
          %3223 = vmatpush1.bf16.xpose.msra.mxu0 0
          %3224 = vmatprep.subr.bf16.mxu0 0
          %3225 = vmatpush1.bf16.xpose.msra.mxu0 0
          %3226 = vmatprep.subr.bf16.mxu0 0
          %3227 = vmatpush1.bf16.xpose.msra.mxu0 0
          %3228 = vmatprep.subr.bf16.mxu0 0
          %3229 = vmatpush1.bf16.xpose.msra.mxu0 0
          %3230 = vmatprep.subr.bf16.mxu0 0
          %3231 = vmatpush1.bf16.xpose.msra.mxu0 0
          %3232 = vmatprep.subr.bf16.mxu0 0
          %3233 = vmatpush1.bf16.xpose.msra.mxu0 0
          %3234 = vmatprep.subr.bf16.mxu0 0
          %3235 = vmatpush1.bf16.xpose.msra.mxu0 0
          %3236 = vmatprep.subr.bf16.mxu0 0
          %3237 = vmatpush1.bf16.xpose.msra.mxu0 0
          %3238 = vmatprep.subr.bf16.mxu0 0
          %3239 = vmatpush1.bf16.xpose.msra.mxu0 0
          %3240 = vmatprep.subr.bf16.mxu0 0
          %3241 = vmatpush1.bf16.xpose.msra.mxu0 0
          %3242 = vmatprep.subr.bf16.mxu0 0
          %3243 = vmatpush1.bf16.xpose.msra.mxu0 0
          %3244 = vmatprep.subr.bf16.mxu0 0
          %3245 = vmatpush1.bf16.xpose.msra.mxu0 0
          %3246 = vmatprep.mubr.bf16.mxu0 0
          %3247 = vmatmul.mubr.bf16.gmra.mrb[0].mxu0 %v3156
          %v3248 = vpop.f32.mrb[0].mxu0
          %v3249 = vadd.f32 0.0, %v3248
          %v3250 = vpop.f32.mrb[0].mxu0
          %v3251 = vpop.f32.mrb[0].mxu0
          %v3252 = vadd.f32 0.0, %v3251
          %v3253 = vpop.f32.mrb[0].mxu0
          %3254 = vmatprep.mubr.bf16.mxu0 0
          %3255 = vmatmul.mubr.bf16.gmra.mrb[0].mxu0 %v3159
          %v3256 = vpop.f32.mrb[0].mxu0
          %v3257 = vadd.f32 0.0, %v3256
          %v3258 = vpop.f32.mrb[0].mxu0
          %v3259 = vpop.f32.mrb[0].mxu0
          %v3260 = vadd.f32 0.0, %v3259
          %v3261 = vpop.f32.mrb[0].mxu0
          %3262 = vdwg.mxu0
          %v3263 = vsel %vm2230, %v3249, 0.0
          %v3264 = vsel %vm2231, %v3252, 0.0
          %v3265 = vsel %vm2232, %v3257, 0.0
          %v3266 = vsel %vm2233, %v3260, 0.0
          %v3267 = vadd.f32 %v2254, %v3088
          %v3268 = vadd.f32 %v2255, %v3089
          %v3269 = vadd.f32 %v2256, %v3090
          %v3270 = vadd.f32 %v2257, %v3091
          %v3272 = vsel %vm2355, %v3088, 0
          %v3275 = vsel %vm2355, %v3089, 0
          %v3278 = vsel %vm2355, %v3090, 0
          %v3281 = vsel %vm2355, %v3091, 0
          %3283 = vmatprep.subr.mxu0 0.0
          %v3284 = vand.u32 %v3088, 4294901760
          %3285 = vmatpush1.msra.mxu0 %v3284
          %3286 = vmatprep.subr.mxu0 0.0
          %v3287 = vand.u32 %v3089, 4294901760
          %3288 = vmatpush1.msra.mxu0 %v3287
          %3289 = vmatprep.subr.mxu0 0.0
          %v3290 = vand.u32 %v3090, 4294901760
          %3291 = vmatpush1.msra.mxu0 %v3290
          %3292 = vmatprep.subr.mxu0 0.0
          %v3293 = vand.u32 %v3091, 4294901760
          %3294 = vmatpush1.msra.mxu0 %v3293
          %3295 = vmatprep.subr.mxu0 0.0
          %3296 = vmatpush1.msra.mxu0 0.0
          %3297 = vmatprep.subr.mxu0 0.0
          %3298 = vmatpush1.msra.mxu0 0.0
          %3299 = vmatprep.subr.mxu0 0.0
          %3300 = vmatpush1.msra.mxu0 0.0
          %3301 = vmatprep.subr.mxu0 0.0
          %3302 = vmatpush1.msra.mxu0 0.0
          %3303 = vmatprep.subr.mxu0 0.0
          %3304 = vmatpush1.msra.mxu0 0.0
          %3305 = vmatprep.subr.mxu0 0.0
          %3306 = vmatpush1.msra.mxu0 0.0
          %3307 = vmatprep.subr.mxu0 0.0
          %3308 = vmatpush1.msra.mxu0 0.0
          %3309 = vmatprep.subr.mxu0 0.0
          %3310 = vmatpush1.msra.mxu0 0.0
          %3311 = vmatprep.subr.mxu0 0.0
          %3312 = vmatpush1.msra.mxu0 0.0
          %3313 = vmatprep.subr.mxu0 0.0
          %3314 = vmatpush1.msra.mxu0 0.0
          %3315 = vmatprep.subr.mxu0 0.0
          %3316 = vmatpush1.msra.mxu0 0.0
          %3317 = vmatprep.subr.mxu0 0.0
          %3318 = vmatpush1.msra.mxu0 0.0
          %3319 = vmatprep.subr.mxu0 0.0
          %3320 = vmatpush1.msra.mxu0 0.0
          %3321 = vmatprep.subr.mxu0 0.0
          %3322 = vmatpush1.msra.mxu0 0.0
          %3323 = vmatprep.subr.mxu0 0.0
          %3324 = vmatpush1.msra.mxu0 0.0
          %3325 = vmatprep.subr.mxu0 0.0
          %3326 = vmatpush1.msra.mxu0 0.0
          %3327 = vmatprep.subr.mxu0 0.0
          %3328 = vmatpush1.msra.mxu0 0.0
          %3329 = vmatprep.subr.mxu0 0.0
          %3330 = vmatpush1.msra.mxu0 0.0
          %3331 = vmatprep.subr.mxu0 0.0
          %3332 = vmatpush1.msra.mxu0 0.0
          %3333 = vmatprep.subr.mxu0 0.0
          %3334 = vmatpush1.msra.mxu0 0.0
          %3335 = vmatprep.subr.mxu0 0.0
          %3336 = vmatpush1.msra.mxu0 0.0
          %3337 = vmatprep.subr.mxu0 0.0
          %3338 = vmatpush1.msra.mxu0 0.0
          %3339 = vmatprep.subr.mxu0 0.0
          %3340 = vmatpush1.msra.mxu0 0.0
          %3341 = vmatprep.subr.mxu0 0.0
          %3342 = vmatpush1.msra.mxu0 0.0
          %3343 = vmatprep.subr.mxu0 0.0
          %3344 = vmatpush1.msra.mxu0 0.0
          %3345 = vmatprep.subr.mxu0 0.0
          %3346 = vmatpush1.msra.mxu0 0.0
          %3347 = vmatprep.subr.mxu0 0.0
          %3348 = vmatpush1.msra.mxu0 0.0
          %3349 = vmatprep.subr.mxu0 0.0
          %3350 = vmatpush1.msra.mxu0 0.0
          %3351 = vmatprep.mubr.f32.mxu0 0.0
          %v3352 = vand.u32 %v3272, 4294901760
          %v3353 = vsub.f32 %v3272, %v3352
          %v3354 = vand.u32 %v3353, 4294901760
          %v3355 = vsub.f32 %v3353, %v3354
          %v3356 = vand.u32 %v3355, 4294901760
          %3357 = vmatmul.mubr.f32.gmra.mrb[0].mxu0 %v3356
          %v3358 = vpop.f32.mrb[0].mxu0
          %v3359 = vadd.f32 0.0, %v3358
          %v3360 = vpop.f32.mrb[0].mxu0
          %3361 = vmatprep.mubr.f32.mxu0 0.0
          %v3362 = vand.u32 %v3275, 4294901760
          %v3363 = vsub.f32 %v3275, %v3362
          %v3364 = vand.u32 %v3363, 4294901760
          %v3365 = vsub.f32 %v3363, %v3364
          %v3366 = vand.u32 %v3365, 4294901760
          %3367 = vmatmul.mubr.f32.gmra.mrb[0].mxu0 %v3366
          %v3368 = vpop.f32.mrb[0].mxu0
          %v3369 = vadd.f32 0.0, %v3368
          %v3370 = vpop.f32.mrb[0].mxu0
          %3371 = vmatprep.mubr.f32.mxu0 0.0
          %v3372 = vand.u32 %v3278, 4294901760
          %v3373 = vsub.f32 %v3278, %v3372
          %v3374 = vand.u32 %v3373, 4294901760
          %v3375 = vsub.f32 %v3373, %v3374
          %v3376 = vand.u32 %v3375, 4294901760
          %3377 = vmatmul.mubr.f32.gmra.mrb[0].mxu0 %v3376
          %v3378 = vpop.f32.mrb[0].mxu0
          %v3379 = vadd.f32 0.0, %v3378
          %v3380 = vpop.f32.mrb[0].mxu0
          %3381 = vmatprep.mubr.f32.mxu0 0.0
          %v3382 = vand.u32 %v3281, 4294901760
          %v3383 = vsub.f32 %v3281, %v3382
          %v3384 = vand.u32 %v3383, 4294901760
          %v3385 = vsub.f32 %v3383, %v3384
          %v3386 = vand.u32 %v3385, 4294901760
          %3387 = vmatmul.mubr.f32.gmra.mrb[0].mxu0 %v3386
          %v3388 = vpop.f32.mrb[0].mxu0
          %v3389 = vadd.f32 0.0, %v3388
          %v3390 = vpop.f32.mrb[0].mxu0
          %3391 = vdwg.mxu0
          %3392 = vmatprep.subr.mxu0 0.0
          %v3393 = vand.u32 %v3088, 4294901760
          %v3394 = vsub.f32 %v3088, %v3393
          %v3395 = vand.u32 %v3394, 4294901760
          %v3396 = vsub.f32 %v3394, %v3395
          %v3397 = vand.u32 %v3396, 4294901760
          %3398 = vmatpush1.msra.mxu0 %v3397
          %3399 = vmatprep.subr.mxu0 0.0
          %v3400 = vand.u32 %v3089, 4294901760
          %v3401 = vsub.f32 %v3089, %v3400
          %v3402 = vand.u32 %v3401, 4294901760
          %v3403 = vsub.f32 %v3401, %v3402
          %v3404 = vand.u32 %v3403, 4294901760
          %3405 = vmatpush1.msra.mxu0 %v3404
          %3406 = vmatprep.subr.mxu0 0.0
          %v3407 = vand.u32 %v3090, 4294901760
          %v3408 = vsub.f32 %v3090, %v3407
          %v3409 = vand.u32 %v3408, 4294901760
          %v3410 = vsub.f32 %v3408, %v3409
          %v3411 = vand.u32 %v3410, 4294901760
          %3412 = vmatpush1.msra.mxu0 %v3411
          %3413 = vmatprep.subr.mxu0 0.0
          %v3414 = vand.u32 %v3091, 4294901760
          %v3415 = vsub.f32 %v3091, %v3414
          %v3416 = vand.u32 %v3415, 4294901760
          %v3417 = vsub.f32 %v3415, %v3416
          %v3418 = vand.u32 %v3417, 4294901760
          %3419 = vmatpush1.msra.mxu0 %v3418
          %3420 = vmatprep.subr.mxu0 0.0
          %3421 = vmatpush1.msra.mxu0 0.0
          %3422 = vmatprep.subr.mxu0 0.0
          %3423 = vmatpush1.msra.mxu0 0.0
          %3424 = vmatprep.subr.mxu0 0.0
          %3425 = vmatpush1.msra.mxu0 0.0
          %3426 = vmatprep.subr.mxu0 0.0
          %3427 = vmatpush1.msra.mxu0 0.0
          %3428 = vmatprep.subr.mxu0 0.0
          %3429 = vmatpush1.msra.mxu0 0.0
          %3430 = vmatprep.subr.mxu0 0.0
          %3431 = vmatpush1.msra.mxu0 0.0
          %3432 = vmatprep.subr.mxu0 0.0
          %3433 = vmatpush1.msra.mxu0 0.0
          %3434 = vmatprep.subr.mxu0 0.0
          %3435 = vmatpush1.msra.mxu0 0.0
          %3436 = vmatprep.subr.mxu0 0.0
          %3437 = vmatpush1.msra.mxu0 0.0
          %3438 = vmatprep.subr.mxu0 0.0
          %3439 = vmatpush1.msra.mxu0 0.0
          %3440 = vmatprep.subr.mxu0 0.0
          %3441 = vmatpush1.msra.mxu0 0.0
          %3442 = vmatprep.subr.mxu0 0.0
          %3443 = vmatpush1.msra.mxu0 0.0
          %3444 = vmatprep.subr.mxu0 0.0
          %3445 = vmatpush1.msra.mxu0 0.0
          %3446 = vmatprep.subr.mxu0 0.0
          %3447 = vmatpush1.msra.mxu0 0.0
          %3448 = vmatprep.subr.mxu0 0.0
          %3449 = vmatpush1.msra.mxu0 0.0
          %3450 = vmatprep.subr.mxu0 0.0
          %3451 = vmatpush1.msra.mxu0 0.0
          %3452 = vmatprep.subr.mxu0 0.0
          %3453 = vmatpush1.msra.mxu0 0.0
          %3454 = vmatprep.subr.mxu0 0.0
          %3455 = vmatpush1.msra.mxu0 0.0
          %3456 = vmatprep.subr.mxu0 0.0
          %3457 = vmatpush1.msra.mxu0 0.0
          %3458 = vmatprep.subr.mxu0 0.0
          %3459 = vmatpush1.msra.mxu0 0.0
          %3460 = vmatprep.subr.mxu0 0.0
          %3461 = vmatpush1.msra.mxu0 0.0
          %3462 = vmatprep.subr.mxu0 0.0
          %3463 = vmatpush1.msra.mxu0 0.0
          %3464 = vmatprep.subr.mxu0 0.0
          %3465 = vmatpush1.msra.mxu0 0.0
          %3466 = vmatprep.subr.mxu0 0.0
          %3467 = vmatpush1.msra.mxu0 0.0
          %3468 = vmatprep.subr.mxu0 0.0
          %3469 = vmatpush1.msra.mxu0 0.0
          %3470 = vmatprep.subr.mxu0 0.0
          %3471 = vmatpush1.msra.mxu0 0.0
          %3472 = vmatprep.subr.mxu0 0.0
          %3473 = vmatpush1.msra.mxu0 0.0
          %3474 = vmatprep.subr.mxu0 0.0
          %3475 = vmatpush1.msra.mxu0 0.0
          %3476 = vmatprep.mubr.f32.mxu0 0.0
          %v3477 = vand.u32 %v3272, 4294901760
          %3478 = vmatmul.mubr.f32.gmra.mrb[0].mxu0 %v3477
          %v3479 = vpop.f32.mrb[0].mxu0
          %v3480 = vadd.f32 %v3359, %v3479
          %v3481 = vpop.f32.mrb[0].mxu0
          %3482 = vmatprep.mubr.f32.mxu0 0.0
          %v3483 = vand.u32 %v3275, 4294901760
          %3484 = vmatmul.mubr.f32.gmra.mrb[0].mxu0 %v3483
          %v3485 = vpop.f32.mrb[0].mxu0
          %v3486 = vadd.f32 %v3369, %v3485
          %v3487 = vpop.f32.mrb[0].mxu0
          %3488 = vmatprep.mubr.f32.mxu0 0.0
          %v3489 = vand.u32 %v3278, 4294901760
          %3490 = vmatmul.mubr.f32.gmra.mrb[0].mxu0 %v3489
          %v3491 = vpop.f32.mrb[0].mxu0
          %v3492 = vadd.f32 %v3379, %v3491
          %v3493 = vpop.f32.mrb[0].mxu0
          %3494 = vmatprep.mubr.f32.mxu0 0.0
          %v3495 = vand.u32 %v3281, 4294901760
          %3496 = vmatmul.mubr.f32.gmra.mrb[0].mxu0 %v3495
          %v3497 = vpop.f32.mrb[0].mxu0
          %v3498 = vadd.f32 %v3389, %v3497
          %v3499 = vpop.f32.mrb[0].mxu0
          %3500 = vdwg.mxu0
          %3501 = vmatprep.subr.mxu0 0.0
          %v3502 = vand.u32 %v3088, 4294901760
          %v3503 = vsub.f32 %v3088, %v3502
          %3504 = vmatpush1.msra.mxu0 %v3503
          %3505 = vmatprep.subr.mxu0 0.0
          %v3506 = vand.u32 %v3089, 4294901760
          %v3507 = vsub.f32 %v3089, %v3506
          %3508 = vmatpush1.msra.mxu0 %v3507
          %3509 = vmatprep.subr.mxu0 0.0
          %v3510 = vand.u32 %v3090, 4294901760
          %v3511 = vsub.f32 %v3090, %v3510
          %3512 = vmatpush1.msra.mxu0 %v3511
          %3513 = vmatprep.subr.mxu0 0.0
          %v3514 = vand.u32 %v3091, 4294901760
          %v3515 = vsub.f32 %v3091, %v3514
          %3516 = vmatpush1.msra.mxu0 %v3515
          %3517 = vmatprep.subr.mxu0 0.0
          %3518 = vmatpush1.msra.mxu0 0.0
          %3519 = vmatprep.subr.mxu0 0.0
          %3520 = vmatpush1.msra.mxu0 0.0
          %3521 = vmatprep.subr.mxu0 0.0
          %3522 = vmatpush1.msra.mxu0 0.0
          %3523 = vmatprep.subr.mxu0 0.0
          %3524 = vmatpush1.msra.mxu0 0.0
          %3525 = vmatprep.subr.mxu0 0.0
          %3526 = vmatpush1.msra.mxu0 0.0
          %3527 = vmatprep.subr.mxu0 0.0
          %3528 = vmatpush1.msra.mxu0 0.0
          %3529 = vmatprep.subr.mxu0 0.0
          %3530 = vmatpush1.msra.mxu0 0.0
          %3531 = vmatprep.subr.mxu0 0.0
          %3532 = vmatpush1.msra.mxu0 0.0
          %3533 = vmatprep.subr.mxu0 0.0
          %3534 = vmatpush1.msra.mxu0 0.0
          %3535 = vmatprep.subr.mxu0 0.0
          %3536 = vmatpush1.msra.mxu0 0.0
          %3537 = vmatprep.subr.mxu0 0.0
          %3538 = vmatpush1.msra.mxu0 0.0
          %3539 = vmatprep.subr.mxu0 0.0
          %3540 = vmatpush1.msra.mxu0 0.0
          %3541 = vmatprep.subr.mxu0 0.0
          %3542 = vmatpush1.msra.mxu0 0.0
          %3543 = vmatprep.subr.mxu0 0.0
          %3544 = vmatpush1.msra.mxu0 0.0
          %3545 = vmatprep.subr.mxu0 0.0
          %3546 = vmatpush1.msra.mxu0 0.0
          %3547 = vmatprep.subr.mxu0 0.0
          %3548 = vmatpush1.msra.mxu0 0.0
          %3549 = vmatprep.subr.mxu0 0.0
          %3550 = vmatpush1.msra.mxu0 0.0
          %3551 = vmatprep.subr.mxu0 0.0
          %3552 = vmatpush1.msra.mxu0 0.0
          %3553 = vmatprep.subr.mxu0 0.0
          %3554 = vmatpush1.msra.mxu0 0.0
          %3555 = vmatprep.subr.mxu0 0.0
          %3556 = vmatpush1.msra.mxu0 0.0
          %3557 = vmatprep.subr.mxu0 0.0
          %3558 = vmatpush1.msra.mxu0 0.0
          %3559 = vmatprep.subr.mxu0 0.0
          %3560 = vmatpush1.msra.mxu0 0.0
          %3561 = vmatprep.subr.mxu0 0.0
          %3562 = vmatpush1.msra.mxu0 0.0
          %3563 = vmatprep.subr.mxu0 0.0
          %3564 = vmatpush1.msra.mxu0 0.0
          %3565 = vmatprep.subr.mxu0 0.0
          %3566 = vmatpush1.msra.mxu0 0.0
          %3567 = vmatprep.subr.mxu0 0.0
          %3568 = vmatpush1.msra.mxu0 0.0
          %3569 = vmatprep.subr.mxu0 0.0
          %3570 = vmatpush1.msra.mxu0 0.0
          %3571 = vmatprep.subr.mxu0 0.0
          %3572 = vmatpush1.msra.mxu0 0.0
          %3573 = vmatprep.mubr.f32.mxu0 0.0
          %v3574 = vand.u32 %v3272, 4294901760
          %v3575 = vsub.f32 %v3272, %v3574
          %3576 = vmatmul.mubr.f32.gmra.mrb[0].mxu0 %v3575
          %v3577 = vpop.f32.mrb[0].mxu0
          %v3578 = vadd.f32 %v3480, %v3577
          %v3579 = vpop.f32.mrb[0].mxu0
          %3580 = vmatprep.mubr.f32.mxu0 0.0
          %v3581 = vand.u32 %v3275, 4294901760
          %v3582 = vsub.f32 %v3275, %v3581
          %3583 = vmatmul.mubr.f32.gmra.mrb[0].mxu0 %v3582
          %v3584 = vpop.f32.mrb[0].mxu0
          %v3585 = vadd.f32 %v3486, %v3584
          %v3586 = vpop.f32.mrb[0].mxu0
          %3587 = vmatprep.mubr.f32.mxu0 0.0
          %v3588 = vand.u32 %v3278, 4294901760
          %v3589 = vsub.f32 %v3278, %v3588
          %3590 = vmatmul.mubr.f32.gmra.mrb[0].mxu0 %v3589
          %v3591 = vpop.f32.mrb[0].mxu0
          %v3592 = vadd.f32 %v3492, %v3591
          %v3593 = vpop.f32.mrb[0].mxu0
          %3594 = vmatprep.mubr.f32.mxu0 0.0
          %v3595 = vand.u32 %v3281, 4294901760
          %v3596 = vsub.f32 %v3281, %v3595
          %3597 = vmatmul.mubr.f32.gmra.mrb[0].mxu0 %v3596
          %v3598 = vpop.f32.mrb[0].mxu0
          %v3599 = vadd.f32 %v3498, %v3598
          %v3600 = vpop.f32.mrb[0].mxu0
          %3601 = vdwg.mxu0
          %3602 = vmatprep.subr.mxu0 0.0
          %v3603 = vand.u32 %v3088, 4294901760
          %3604 = vmatpush1.msra.mxu0 %v3603
          %3605 = vmatprep.subr.mxu0 0.0
          %v3606 = vand.u32 %v3089, 4294901760
          %3607 = vmatpush1.msra.mxu0 %v3606
          %3608 = vmatprep.subr.mxu0 0.0
          %v3609 = vand.u32 %v3090, 4294901760
          %3610 = vmatpush1.msra.mxu0 %v3609
          %3611 = vmatprep.subr.mxu0 0.0
          %v3612 = vand.u32 %v3091, 4294901760
          %3613 = vmatpush1.msra.mxu0 %v3612
          %3614 = vmatprep.subr.mxu0 0.0
          %3615 = vmatpush1.msra.mxu0 0.0
          %3616 = vmatprep.subr.mxu0 0.0
          %3617 = vmatpush1.msra.mxu0 0.0
          %3618 = vmatprep.subr.mxu0 0.0
          %3619 = vmatpush1.msra.mxu0 0.0
          %3620 = vmatprep.subr.mxu0 0.0
          %3621 = vmatpush1.msra.mxu0 0.0
          %3622 = vmatprep.subr.mxu0 0.0
          %3623 = vmatpush1.msra.mxu0 0.0
          %3624 = vmatprep.subr.mxu0 0.0
          %3625 = vmatpush1.msra.mxu0 0.0
          %3626 = vmatprep.subr.mxu0 0.0
          %3627 = vmatpush1.msra.mxu0 0.0
          %3628 = vmatprep.subr.mxu0 0.0
          %3629 = vmatpush1.msra.mxu0 0.0
          %3630 = vmatprep.subr.mxu0 0.0
          %3631 = vmatpush1.msra.mxu0 0.0
          %3632 = vmatprep.subr.mxu0 0.0
          %3633 = vmatpush1.msra.mxu0 0.0
          %3634 = vmatprep.subr.mxu0 0.0
          %3635 = vmatpush1.msra.mxu0 0.0
          %3636 = vmatprep.subr.mxu0 0.0
          %3637 = vmatpush1.msra.mxu0 0.0
          %3638 = vmatprep.subr.mxu0 0.0
          %3639 = vmatpush1.msra.mxu0 0.0
          %3640 = vmatprep.subr.mxu0 0.0
          %3641 = vmatpush1.msra.mxu0 0.0
          %3642 = vmatprep.subr.mxu0 0.0
          %3643 = vmatpush1.msra.mxu0 0.0
          %3644 = vmatprep.subr.mxu0 0.0
          %3645 = vmatpush1.msra.mxu0 0.0
          %3646 = vmatprep.subr.mxu0 0.0
          %3647 = vmatpush1.msra.mxu0 0.0
          %3648 = vmatprep.subr.mxu0 0.0
          %3649 = vmatpush1.msra.mxu0 0.0
          %3650 = vmatprep.subr.mxu0 0.0
          %3651 = vmatpush1.msra.mxu0 0.0
          %3652 = vmatprep.subr.mxu0 0.0
          %3653 = vmatpush1.msra.mxu0 0.0
          %3654 = vmatprep.subr.mxu0 0.0
          %3655 = vmatpush1.msra.mxu0 0.0
          %3656 = vmatprep.subr.mxu0 0.0
          %3657 = vmatpush1.msra.mxu0 0.0
          %3658 = vmatprep.subr.mxu0 0.0
          %3659 = vmatpush1.msra.mxu0 0.0
          %3660 = vmatprep.subr.mxu0 0.0
          %3661 = vmatpush1.msra.mxu0 0.0
          %3662 = vmatprep.subr.mxu0 0.0
          %3663 = vmatpush1.msra.mxu0 0.0
          %3664 = vmatprep.subr.mxu0 0.0
          %3665 = vmatpush1.msra.mxu0 0.0
          %3666 = vmatprep.subr.mxu0 0.0
          %3667 = vmatpush1.msra.mxu0 0.0
          %3668 = vmatprep.subr.mxu0 0.0
          %3669 = vmatpush1.msra.mxu0 0.0
          %3670 = vmatprep.mubr.f32.mxu0 0.0
          %v3671 = vand.u32 %v3272, 4294901760
          %v3672 = vsub.f32 %v3272, %v3671
          %v3673 = vand.u32 %v3672, 4294901760
          %3674 = vmatmul.mubr.f32.gmra.mrb[0].mxu0 %v3673
          %v3675 = vpop.f32.mrb[0].mxu0
          %v3676 = vadd.f32 %v3578, %v3675
          %v3677 = vpop.f32.mrb[0].mxu0
          %3678 = vmatprep.mubr.f32.mxu0 0.0
          %v3679 = vand.u32 %v3275, 4294901760
          %v3680 = vsub.f32 %v3275, %v3679
          %v3681 = vand.u32 %v3680, 4294901760
          %3682 = vmatmul.mubr.f32.gmra.mrb[0].mxu0 %v3681
          %v3683 = vpop.f32.mrb[0].mxu0
          %v3684 = vadd.f32 %v3585, %v3683
          %v3685 = vpop.f32.mrb[0].mxu0
          %3686 = vmatprep.mubr.f32.mxu0 0.0
          %v3687 = vand.u32 %v3278, 4294901760
          %v3688 = vsub.f32 %v3278, %v3687
          %v3689 = vand.u32 %v3688, 4294901760
          %3690 = vmatmul.mubr.f32.gmra.mrb[0].mxu0 %v3689
          %v3691 = vpop.f32.mrb[0].mxu0
          %v3692 = vadd.f32 %v3592, %v3691
          %v3693 = vpop.f32.mrb[0].mxu0
          %3694 = vmatprep.mubr.f32.mxu0 0.0
          %v3695 = vand.u32 %v3281, 4294901760
          %v3696 = vsub.f32 %v3281, %v3695
          %v3697 = vand.u32 %v3696, 4294901760
          %3698 = vmatmul.mubr.f32.gmra.mrb[0].mxu0 %v3697
          %v3699 = vpop.f32.mrb[0].mxu0
          %v3700 = vadd.f32 %v3599, %v3699
          %v3701 = vpop.f32.mrb[0].mxu0
          %3702 = vdwg.mxu0
          %3703 = vmatprep.subr.mxu0 0.0
          %v3704 = vand.u32 %v3088, 4294901760
          %v3705 = vsub.f32 %v3088, %v3704
          %v3706 = vand.u32 %v3705, 4294901760
          %3707 = vmatpush1.msra.mxu0 %v3706
          %3708 = vmatprep.subr.mxu0 0.0
          %v3709 = vand.u32 %v3089, 4294901760
          %v3710 = vsub.f32 %v3089, %v3709
          %v3711 = vand.u32 %v3710, 4294901760
          %3712 = vmatpush1.msra.mxu0 %v3711
          %3713 = vmatprep.subr.mxu0 0.0
          %v3714 = vand.u32 %v3090, 4294901760
          %v3715 = vsub.f32 %v3090, %v3714
          %v3716 = vand.u32 %v3715, 4294901760
          %3717 = vmatpush1.msra.mxu0 %v3716
          %3718 = vmatprep.subr.mxu0 0.0
          %v3719 = vand.u32 %v3091, 4294901760
          %v3720 = vsub.f32 %v3091, %v3719
          %v3721 = vand.u32 %v3720, 4294901760
          %3722 = vmatpush1.msra.mxu0 %v3721
          %3723 = vmatprep.subr.mxu0 0.0
          %3724 = vmatpush1.msra.mxu0 0.0
          %3725 = vmatprep.subr.mxu0 0.0
          %3726 = vmatpush1.msra.mxu0 0.0
          %3727 = vmatprep.subr.mxu0 0.0
          %3728 = vmatpush1.msra.mxu0 0.0
          %3729 = vmatprep.subr.mxu0 0.0
          %3730 = vmatpush1.msra.mxu0 0.0
          %3731 = vmatprep.subr.mxu0 0.0
          %3732 = vmatpush1.msra.mxu0 0.0
          %3733 = vmatprep.subr.mxu0 0.0
          %3734 = vmatpush1.msra.mxu0 0.0
          %3735 = vmatprep.subr.mxu0 0.0
          %3736 = vmatpush1.msra.mxu0 0.0
          %3737 = vmatprep.subr.mxu0 0.0
          %3738 = vmatpush1.msra.mxu0 0.0
          %3739 = vmatprep.subr.mxu0 0.0
          %3740 = vmatpush1.msra.mxu0 0.0
          %3741 = vmatprep.subr.mxu0 0.0
          %3742 = vmatpush1.msra.mxu0 0.0
          %3743 = vmatprep.subr.mxu0 0.0
          %3744 = vmatpush1.msra.mxu0 0.0
          %3745 = vmatprep.subr.mxu0 0.0
          %3746 = vmatpush1.msra.mxu0 0.0
          %3747 = vmatprep.subr.mxu0 0.0
          %3748 = vmatpush1.msra.mxu0 0.0
          %3749 = vmatprep.subr.mxu0 0.0
          %3750 = vmatpush1.msra.mxu0 0.0
          %3751 = vmatprep.subr.mxu0 0.0
          %3752 = vmatpush1.msra.mxu0 0.0
          %3753 = vmatprep.subr.mxu0 0.0
          %3754 = vmatpush1.msra.mxu0 0.0
          %3755 = vmatprep.subr.mxu0 0.0
          %3756 = vmatpush1.msra.mxu0 0.0
          %3757 = vmatprep.subr.mxu0 0.0
          %3758 = vmatpush1.msra.mxu0 0.0
          %3759 = vmatprep.subr.mxu0 0.0
          %3760 = vmatpush1.msra.mxu0 0.0
          %3761 = vmatprep.subr.mxu0 0.0
          %3762 = vmatpush1.msra.mxu0 0.0
          %3763 = vmatprep.subr.mxu0 0.0
          %3764 = vmatpush1.msra.mxu0 0.0
          %3765 = vmatprep.subr.mxu0 0.0
          %3766 = vmatpush1.msra.mxu0 0.0
          %3767 = vmatprep.subr.mxu0 0.0
          %3768 = vmatpush1.msra.mxu0 0.0
          %3769 = vmatprep.subr.mxu0 0.0
          %3770 = vmatpush1.msra.mxu0 0.0
          %3771 = vmatprep.subr.mxu0 0.0
          %3772 = vmatpush1.msra.mxu0 0.0
          %3773 = vmatprep.subr.mxu0 0.0
          %3774 = vmatpush1.msra.mxu0 0.0
          %3775 = vmatprep.subr.mxu0 0.0
          %3776 = vmatpush1.msra.mxu0 0.0
          %3777 = vmatprep.subr.mxu0 0.0
          %3778 = vmatpush1.msra.mxu0 0.0
          %3779 = vmatprep.mubr.f32.mxu0 0.0
          %v3780 = vand.u32 %v3272, 4294901760
          %3781 = vmatmul.mubr.f32.gmra.mrb[0].mxu0 %v3780
          %v3782 = vpop.f32.mrb[0].mxu0
          %v3783 = vadd.f32 %v3676, %v3782
          %v3784 = vpop.f32.mrb[0].mxu0
          %3785 = vmatprep.mubr.f32.mxu0 0.0
          %v3786 = vand.u32 %v3275, 4294901760
          %3787 = vmatmul.mubr.f32.gmra.mrb[0].mxu0 %v3786
          %v3788 = vpop.f32.mrb[0].mxu0
          %v3789 = vadd.f32 %v3684, %v3788
          %v3790 = vpop.f32.mrb[0].mxu0
          %3791 = vmatprep.mubr.f32.mxu0 0.0
          %v3792 = vand.u32 %v3278, 4294901760
          %3793 = vmatmul.mubr.f32.gmra.mrb[0].mxu0 %v3792
          %v3794 = vpop.f32.mrb[0].mxu0
          %v3795 = vadd.f32 %v3692, %v3794
          %v3796 = vpop.f32.mrb[0].mxu0
          %3797 = vmatprep.mubr.f32.mxu0 0.0
          %v3798 = vand.u32 %v3281, 4294901760
          %3799 = vmatmul.mubr.f32.gmra.mrb[0].mxu0 %v3798
          %v3800 = vpop.f32.mrb[0].mxu0
          %v3801 = vadd.f32 %v3700, %v3800
          %v3802 = vpop.f32.mrb[0].mxu0
          %3803 = vdwg.mxu0
          %3804 = vmatprep.subr.mxu0 0.0
          %v3805 = vand.u32 %v3088, 4294901760
          %3806 = vmatpush1.msra.mxu0 %v3805
          %3807 = vmatprep.subr.mxu0 0.0
          %v3808 = vand.u32 %v3089, 4294901760
          %3809 = vmatpush1.msra.mxu0 %v3808
          %3810 = vmatprep.subr.mxu0 0.0
          %v3811 = vand.u32 %v3090, 4294901760
          %3812 = vmatpush1.msra.mxu0 %v3811
          %3813 = vmatprep.subr.mxu0 0.0
          %v3814 = vand.u32 %v3091, 4294901760
          %3815 = vmatpush1.msra.mxu0 %v3814
          %3816 = vmatprep.subr.mxu0 0.0
          %3817 = vmatpush1.msra.mxu0 0.0
          %3818 = vmatprep.subr.mxu0 0.0
          %3819 = vmatpush1.msra.mxu0 0.0
          %3820 = vmatprep.subr.mxu0 0.0
          %3821 = vmatpush1.msra.mxu0 0.0
          %3822 = vmatprep.subr.mxu0 0.0
          %3823 = vmatpush1.msra.mxu0 0.0
          %3824 = vmatprep.subr.mxu0 0.0
          %3825 = vmatpush1.msra.mxu0 0.0
          %3826 = vmatprep.subr.mxu0 0.0
          %3827 = vmatpush1.msra.mxu0 0.0
          %3828 = vmatprep.subr.mxu0 0.0
          %3829 = vmatpush1.msra.mxu0 0.0
          %3830 = vmatprep.subr.mxu0 0.0
          %3831 = vmatpush1.msra.mxu0 0.0
          %3832 = vmatprep.subr.mxu0 0.0
          %3833 = vmatpush1.msra.mxu0 0.0
          %3834 = vmatprep.subr.mxu0 0.0
          %3835 = vmatpush1.msra.mxu0 0.0
          %3836 = vmatprep.subr.mxu0 0.0
          %3837 = vmatpush1.msra.mxu0 0.0
          %3838 = vmatprep.subr.mxu0 0.0
          %3839 = vmatpush1.msra.mxu0 0.0
          %3840 = vmatprep.subr.mxu0 0.0
          %3841 = vmatpush1.msra.mxu0 0.0
          %3842 = vmatprep.subr.mxu0 0.0
          %3843 = vmatpush1.msra.mxu0 0.0
          %3844 = vmatprep.subr.mxu0 0.0
          %3845 = vmatpush1.msra.mxu0 0.0
          %3846 = vmatprep.subr.mxu0 0.0
          %3847 = vmatpush1.msra.mxu0 0.0
          %3848 = vmatprep.subr.mxu0 0.0
          %3849 = vmatpush1.msra.mxu0 0.0
          %3850 = vmatprep.subr.mxu0 0.0
          %3851 = vmatpush1.msra.mxu0 0.0
          %3852 = vmatprep.subr.mxu0 0.0
          %3853 = vmatpush1.msra.mxu0 0.0
          %3854 = vmatprep.subr.mxu0 0.0
          %3855 = vmatpush1.msra.mxu0 0.0
          %3856 = vmatprep.subr.mxu0 0.0
          %3857 = vmatpush1.msra.mxu0 0.0
          %3858 = vmatprep.subr.mxu0 0.0
          %3859 = vmatpush1.msra.mxu0 0.0
          %3860 = vmatprep.subr.mxu0 0.0
          %3861 = vmatpush1.msra.mxu0 0.0
          %3862 = vmatprep.subr.mxu0 0.0
          %3863 = vmatpush1.msra.mxu0 0.0
          %3864 = vmatprep.subr.mxu0 0.0
          %3865 = vmatpush1.msra.mxu0 0.0
          %3866 = vmatprep.subr.mxu0 0.0
          %3867 = vmatpush1.msra.mxu0 0.0
          %3868 = vmatprep.subr.mxu0 0.0
          %3869 = vmatpush1.msra.mxu0 0.0
          %3870 = vmatprep.subr.mxu0 0.0
          %3871 = vmatpush1.msra.mxu0 0.0
          %3872 = vmatprep.mubr.f32.mxu0 0.0
          %v3873 = vand.u32 %v3272, 4294901760
          %3874 = vmatmul.mubr.f32.gmra.mrb[0].mxu0 %v3873
          %v3875 = vpop.f32.mrb[0].mxu0
          %v3876 = vadd.f32 %v3783, %v3875
          %v3877 = vpop.f32.mrb[0].mxu0
          %3878 = vmatprep.mubr.f32.mxu0 0.0
          %v3879 = vand.u32 %v3275, 4294901760
          %3880 = vmatmul.mubr.f32.gmra.mrb[0].mxu0 %v3879
          %v3881 = vpop.f32.mrb[0].mxu0
          %v3882 = vadd.f32 %v3789, %v3881
          %v3883 = vpop.f32.mrb[0].mxu0
          %3884 = vmatprep.mubr.f32.mxu0 0.0
          %v3885 = vand.u32 %v3278, 4294901760
          %3886 = vmatmul.mubr.f32.gmra.mrb[0].mxu0 %v3885
          %v3887 = vpop.f32.mrb[0].mxu0
          %v3888 = vadd.f32 %v3795, %v3887
          %v3889 = vpop.f32.mrb[0].mxu0
          %3890 = vmatprep.mubr.f32.mxu0 0.0
          %v3891 = vand.u32 %v3281, 4294901760
          %3892 = vmatmul.mubr.f32.gmra.mrb[0].mxu0 %v3891
          %v3893 = vpop.f32.mrb[0].mxu0
          %v3894 = vadd.f32 %v3801, %v3893
          %v3895 = vpop.f32.mrb[0].mxu0
          %3896 = vdwg.mxu0
          %v3897 = vadd.f32 %v2254, %v3876
          %v3898 = vadd.f32 %v2255, %v3882
          %v3899 = vadd.f32 %v2256, %v3888
          %v3900 = vadd.f32 %v2257, %v3894
          %v3902 = vsel %vm2355, %v3267, 0
          %v3905 = vsel %vm2355, %v3268, 0
          %v3908 = vsel %vm2355, %v3269, 0
          %v3911 = vsel %vm2355, %v3270, 0
          %3913 = vmatprep.subr.mxu0 0.0
          %v3914 = vand.u32 %v3897, 4294901760
          %3915 = vmatpush1.msra.mxu0 %v3914
          %3916 = vmatprep.subr.mxu0 0.0
          %v3917 = vand.u32 %v3898, 4294901760
          %3918 = vmatpush1.msra.mxu0 %v3917
          %3919 = vmatprep.subr.mxu0 0.0
          %v3920 = vand.u32 %v3899, 4294901760
          %3921 = vmatpush1.msra.mxu0 %v3920
          %3922 = vmatprep.subr.mxu0 0.0
          %v3923 = vand.u32 %v3900, 4294901760
          %3924 = vmatpush1.msra.mxu0 %v3923
          %3925 = vmatprep.subr.mxu0 0.0
          %3926 = vmatpush1.msra.mxu0 0.0
          %3927 = vmatprep.subr.mxu0 0.0
          %3928 = vmatpush1.msra.mxu0 0.0
          %3929 = vmatprep.subr.mxu0 0.0
          %3930 = vmatpush1.msra.mxu0 0.0
          %3931 = vmatprep.subr.mxu0 0.0
          %3932 = vmatpush1.msra.mxu0 0.0
          %3933 = vmatprep.subr.mxu0 0.0
          %3934 = vmatpush1.msra.mxu0 0.0
          %3935 = vmatprep.subr.mxu0 0.0
          %3936 = vmatpush1.msra.mxu0 0.0
          %3937 = vmatprep.subr.mxu0 0.0
          %3938 = vmatpush1.msra.mxu0 0.0
          %3939 = vmatprep.subr.mxu0 0.0
          %3940 = vmatpush1.msra.mxu0 0.0
          %3941 = vmatprep.subr.mxu0 0.0
          %3942 = vmatpush1.msra.mxu0 0.0
          %3943 = vmatprep.subr.mxu0 0.0
          %3944 = vmatpush1.msra.mxu0 0.0
          %3945 = vmatprep.subr.mxu0 0.0
          %3946 = vmatpush1.msra.mxu0 0.0
          %3947 = vmatprep.subr.mxu0 0.0
          %3948 = vmatpush1.msra.mxu0 0.0
          %3949 = vmatprep.subr.mxu0 0.0
          %3950 = vmatpush1.msra.mxu0 0.0
          %3951 = vmatprep.subr.mxu0 0.0
          %3952 = vmatpush1.msra.mxu0 0.0
          %3953 = vmatprep.subr.mxu0 0.0
          %3954 = vmatpush1.msra.mxu0 0.0
          %3955 = vmatprep.subr.mxu0 0.0
          %3956 = vmatpush1.msra.mxu0 0.0
          %3957 = vmatprep.subr.mxu0 0.0
          %3958 = vmatpush1.msra.mxu0 0.0
          %3959 = vmatprep.subr.mxu0 0.0
          %3960 = vmatpush1.msra.mxu0 0.0
          %3961 = vmatprep.subr.mxu0 0.0
          %3962 = vmatpush1.msra.mxu0 0.0
          %3963 = vmatprep.subr.mxu0 0.0
          %3964 = vmatpush1.msra.mxu0 0.0
          %3965 = vmatprep.subr.mxu0 0.0
          %3966 = vmatpush1.msra.mxu0 0.0
          %3967 = vmatprep.subr.mxu0 0.0
          %3968 = vmatpush1.msra.mxu0 0.0
          %3969 = vmatprep.subr.mxu0 0.0
          %3970 = vmatpush1.msra.mxu0 0.0
          %3971 = vmatprep.subr.mxu0 0.0
          %3972 = vmatpush1.msra.mxu0 0.0
          %3973 = vmatprep.subr.mxu0 0.0
          %3974 = vmatpush1.msra.mxu0 0.0
          %3975 = vmatprep.subr.mxu0 0.0
          %3976 = vmatpush1.msra.mxu0 0.0
          %3977 = vmatprep.subr.mxu0 0.0
          %3978 = vmatpush1.msra.mxu0 0.0
          %3979 = vmatprep.subr.mxu0 0.0
          %3980 = vmatpush1.msra.mxu0 0.0
          %3981 = vmatprep.mubr.f32.mxu0 0.0
          %v3982 = vand.u32 %v3902, 4294901760
          %v3983 = vsub.f32 %v3902, %v3982
          %v3984 = vand.u32 %v3983, 4294901760
          %v3985 = vsub.f32 %v3983, %v3984
          %v3986 = vand.u32 %v3985, 4294901760
          %3987 = vmatmul.mubr.f32.gmra.mrb[0].mxu0 %v3986
          %v3988 = vpop.f32.mrb[0].mxu0
          %v3989 = vadd.f32 0.0, %v3988
          %v3990 = vpop.f32.mrb[0].mxu0
          %3991 = vmatprep.mubr.f32.mxu0 0.0
          %v3992 = vand.u32 %v3905, 4294901760
          %v3993 = vsub.f32 %v3905, %v3992
          %v3994 = vand.u32 %v3993, 4294901760
          %v3995 = vsub.f32 %v3993, %v3994
          %v3996 = vand.u32 %v3995, 4294901760
          %3997 = vmatmul.mubr.f32.gmra.mrb[0].mxu0 %v3996
          %v3998 = vpop.f32.mrb[0].mxu0
          %v3999 = vadd.f32 0.0, %v3998
          %v4000 = vpop.f32.mrb[0].mxu0
          %4001 = vmatprep.mubr.f32.mxu0 0.0
          %v4002 = vand.u32 %v3908, 4294901760
          %v4003 = vsub.f32 %v3908, %v4002
          %v4004 = vand.u32 %v4003, 4294901760
          %v4005 = vsub.f32 %v4003, %v4004
          %v4006 = vand.u32 %v4005, 4294901760
          %4007 = vmatmul.mubr.f32.gmra.mrb[0].mxu0 %v4006
          %v4008 = vpop.f32.mrb[0].mxu0
          %v4009 = vadd.f32 0.0, %v4008
          %v4010 = vpop.f32.mrb[0].mxu0
          %4011 = vmatprep.mubr.f32.mxu0 0.0
          %v4012 = vand.u32 %v3911, 4294901760
          %v4013 = vsub.f32 %v3911, %v4012
          %v4014 = vand.u32 %v4013, 4294901760
          %v4015 = vsub.f32 %v4013, %v4014
          %v4016 = vand.u32 %v4015, 4294901760
          %4017 = vmatmul.mubr.f32.gmra.mrb[0].mxu0 %v4016
          %v4018 = vpop.f32.mrb[0].mxu0
          %v4019 = vadd.f32 0.0, %v4018
          %v4020 = vpop.f32.mrb[0].mxu0
          %4021 = vdwg.mxu0
          %4022 = vmatprep.subr.mxu0 0.0
          %v4023 = vand.u32 %v3897, 4294901760
          %v4024 = vsub.f32 %v3897, %v4023
          %v4025 = vand.u32 %v4024, 4294901760
          %v4026 = vsub.f32 %v4024, %v4025
          %v4027 = vand.u32 %v4026, 4294901760
          %4028 = vmatpush1.msra.mxu0 %v4027
          %4029 = vmatprep.subr.mxu0 0.0
          %v4030 = vand.u32 %v3898, 4294901760
          %v4031 = vsub.f32 %v3898, %v4030
          %v4032 = vand.u32 %v4031, 4294901760
          %v4033 = vsub.f32 %v4031, %v4032
          %v4034 = vand.u32 %v4033, 4294901760
          %4035 = vmatpush1.msra.mxu0 %v4034
          %4036 = vmatprep.subr.mxu0 0.0
          %v4037 = vand.u32 %v3899, 4294901760
          %v4038 = vsub.f32 %v3899, %v4037
          %v4039 = vand.u32 %v4038, 4294901760
          %v4040 = vsub.f32 %v4038, %v4039
          %v4041 = vand.u32 %v4040, 4294901760
          %4042 = vmatpush1.msra.mxu0 %v4041
          %4043 = vmatprep.subr.mxu0 0.0
          %v4044 = vand.u32 %v3900, 4294901760
          %v4045 = vsub.f32 %v3900, %v4044
          %v4046 = vand.u32 %v4045, 4294901760
          %v4047 = vsub.f32 %v4045, %v4046
          %v4048 = vand.u32 %v4047, 4294901760
          %4049 = vmatpush1.msra.mxu0 %v4048
          %4050 = vmatprep.subr.mxu0 0.0
          %4051 = vmatpush1.msra.mxu0 0.0
          %4052 = vmatprep.subr.mxu0 0.0
          %4053 = vmatpush1.msra.mxu0 0.0
          %4054 = vmatprep.subr.mxu0 0.0
          %4055 = vmatpush1.msra.mxu0 0.0
          %4056 = vmatprep.subr.mxu0 0.0
          %4057 = vmatpush1.msra.mxu0 0.0
          %4058 = vmatprep.subr.mxu0 0.0
          %4059 = vmatpush1.msra.mxu0 0.0
          %4060 = vmatprep.subr.mxu0 0.0
          %4061 = vmatpush1.msra.mxu0 0.0
          %4062 = vmatprep.subr.mxu0 0.0
          %4063 = vmatpush1.msra.mxu0 0.0
          %4064 = vmatprep.subr.mxu0 0.0
          %4065 = vmatpush1.msra.mxu0 0.0
          %4066 = vmatprep.subr.mxu0 0.0
          %4067 = vmatpush1.msra.mxu0 0.0
          %4068 = vmatprep.subr.mxu0 0.0
          %4069 = vmatpush1.msra.mxu0 0.0
          %4070 = vmatprep.subr.mxu0 0.0
          %4071 = vmatpush1.msra.mxu0 0.0
          %4072 = vmatprep.subr.mxu0 0.0
          %4073 = vmatpush1.msra.mxu0 0.0
          %4074 = vmatprep.subr.mxu0 0.0
          %4075 = vmatpush1.msra.mxu0 0.0
          %4076 = vmatprep.subr.mxu0 0.0
          %4077 = vmatpush1.msra.mxu0 0.0
          %4078 = vmatprep.subr.mxu0 0.0
          %4079 = vmatpush1.msra.mxu0 0.0
          %4080 = vmatprep.subr.mxu0 0.0
          %4081 = vmatpush1.msra.mxu0 0.0
          %4082 = vmatprep.subr.mxu0 0.0
          %4083 = vmatpush1.msra.mxu0 0.0
          %4084 = vmatprep.subr.mxu0 0.0
          %4085 = vmatpush1.msra.mxu0 0.0
          %4086 = vmatprep.subr.mxu0 0.0
          %4087 = vmatpush1.msra.mxu0 0.0
          %4088 = vmatprep.subr.mxu0 0.0
          %4089 = vmatpush1.msra.mxu0 0.0
          %4090 = vmatprep.subr.mxu0 0.0
          %4091 = vmatpush1.msra.mxu0 0.0
          %4092 = vmatprep.subr.mxu0 0.0
          %4093 = vmatpush1.msra.mxu0 0.0
          %4094 = vmatprep.subr.mxu0 0.0
          %4095 = vmatpush1.msra.mxu0 0.0
          %4096 = vmatprep.subr.mxu0 0.0
          %4097 = vmatpush1.msra.mxu0 0.0
          %4098 = vmatprep.subr.mxu0 0.0
          %4099 = vmatpush1.msra.mxu0 0.0
          %4100 = vmatprep.subr.mxu0 0.0
          %4101 = vmatpush1.msra.mxu0 0.0
          %4102 = vmatprep.subr.mxu0 0.0
          %4103 = vmatpush1.msra.mxu0 0.0
          %4104 = vmatprep.subr.mxu0 0.0
          %4105 = vmatpush1.msra.mxu0 0.0
          %4106 = vmatprep.mubr.f32.mxu0 0.0
          %v4107 = vand.u32 %v3902, 4294901760
          %4108 = vmatmul.mubr.f32.gmra.mrb[0].mxu0 %v4107
          %v4109 = vpop.f32.mrb[0].mxu0
          %v4110 = vadd.f32 %v3989, %v4109
          %v4111 = vpop.f32.mrb[0].mxu0
          %4112 = vmatprep.mubr.f32.mxu0 0.0
          %v4113 = vand.u32 %v3905, 4294901760
          %4114 = vmatmul.mubr.f32.gmra.mrb[0].mxu0 %v4113
          %v4115 = vpop.f32.mrb[0].mxu0
          %v4116 = vadd.f32 %v3999, %v4115
          %v4117 = vpop.f32.mrb[0].mxu0
          %4118 = vmatprep.mubr.f32.mxu0 0.0
          %v4119 = vand.u32 %v3908, 4294901760
          %4120 = vmatmul.mubr.f32.gmra.mrb[0].mxu0 %v4119
          %v4121 = vpop.f32.mrb[0].mxu0
          %v4122 = vadd.f32 %v4009, %v4121
          %v4123 = vpop.f32.mrb[0].mxu0
          %4124 = vmatprep.mubr.f32.mxu0 0.0
          %v4125 = vand.u32 %v3911, 4294901760
          %4126 = vmatmul.mubr.f32.gmra.mrb[0].mxu0 %v4125
          %v4127 = vpop.f32.mrb[0].mxu0
          %v4128 = vadd.f32 %v4019, %v4127
          %v4129 = vpop.f32.mrb[0].mxu0
          %4130 = vdwg.mxu0
          %4131 = vmatprep.subr.mxu0 0.0
          %v4132 = vand.u32 %v3897, 4294901760
          %v4133 = vsub.f32 %v3897, %v4132
          %4134 = vmatpush1.msra.mxu0 %v4133
          %4135 = vmatprep.subr.mxu0 0.0
          %v4136 = vand.u32 %v3898, 4294901760
          %v4137 = vsub.f32 %v3898, %v4136
          %4138 = vmatpush1.msra.mxu0 %v4137
          %4139 = vmatprep.subr.mxu0 0.0
          %v4140 = vand.u32 %v3899, 4294901760
          %v4141 = vsub.f32 %v3899, %v4140
          %4142 = vmatpush1.msra.mxu0 %v4141
          %4143 = vmatprep.subr.mxu0 0.0
          %v4144 = vand.u32 %v3900, 4294901760
          %v4145 = vsub.f32 %v3900, %v4144
          %4146 = vmatpush1.msra.mxu0 %v4145
          %4147 = vmatprep.subr.mxu0 0.0
          %4148 = vmatpush1.msra.mxu0 0.0
          %4149 = vmatprep.subr.mxu0 0.0
          %4150 = vmatpush1.msra.mxu0 0.0
          %4151 = vmatprep.subr.mxu0 0.0
          %4152 = vmatpush1.msra.mxu0 0.0
          %4153 = vmatprep.subr.mxu0 0.0
          %4154 = vmatpush1.msra.mxu0 0.0
          %4155 = vmatprep.subr.mxu0 0.0
          %4156 = vmatpush1.msra.mxu0 0.0
          %4157 = vmatprep.subr.mxu0 0.0
          %4158 = vmatpush1.msra.mxu0 0.0
          %4159 = vmatprep.subr.mxu0 0.0
          %4160 = vmatpush1.msra.mxu0 0.0
          %4161 = vmatprep.subr.mxu0 0.0
          %4162 = vmatpush1.msra.mxu0 0.0
          %4163 = vmatprep.subr.mxu0 0.0
          %4164 = vmatpush1.msra.mxu0 0.0
          %4165 = vmatprep.subr.mxu0 0.0
          %4166 = vmatpush1.msra.mxu0 0.0
          %4167 = vmatprep.subr.mxu0 0.0
          %4168 = vmatpush1.msra.mxu0 0.0
          %4169 = vmatprep.subr.mxu0 0.0
          %4170 = vmatpush1.msra.mxu0 0.0
          %4171 = vmatprep.subr.mxu0 0.0
          %4172 = vmatpush1.msra.mxu0 0.0
          %4173 = vmatprep.subr.mxu0 0.0
          %4174 = vmatpush1.msra.mxu0 0.0
          %4175 = vmatprep.subr.mxu0 0.0
          %4176 = vmatpush1.msra.mxu0 0.0
          %4177 = vmatprep.subr.mxu0 0.0
          %4178 = vmatpush1.msra.mxu0 0.0
          %4179 = vmatprep.subr.mxu0 0.0
          %4180 = vmatpush1.msra.mxu0 0.0
          %4181 = vmatprep.subr.mxu0 0.0
          %4182 = vmatpush1.msra.mxu0 0.0
          %4183 = vmatprep.subr.mxu0 0.0
          %4184 = vmatpush1.msra.mxu0 0.0
          %4185 = vmatprep.subr.mxu0 0.0
          %4186 = vmatpush1.msra.mxu0 0.0
          %4187 = vmatprep.subr.mxu0 0.0
          %4188 = vmatpush1.msra.mxu0 0.0
          %4189 = vmatprep.subr.mxu0 0.0
          %4190 = vmatpush1.msra.mxu0 0.0
          %4191 = vmatprep.subr.mxu0 0.0
          %4192 = vmatpush1.msra.mxu0 0.0
          %4193 = vmatprep.subr.mxu0 0.0
          %4194 = vmatpush1.msra.mxu0 0.0
          %4195 = vmatprep.subr.mxu0 0.0
          %4196 = vmatpush1.msra.mxu0 0.0
          %4197 = vmatprep.subr.mxu0 0.0
          %4198 = vmatpush1.msra.mxu0 0.0
          %4199 = vmatprep.subr.mxu0 0.0
          %4200 = vmatpush1.msra.mxu0 0.0
          %4201 = vmatprep.subr.mxu0 0.0
          %4202 = vmatpush1.msra.mxu0 0.0
          %4203 = vmatprep.mubr.f32.mxu0 0.0
          %v4204 = vand.u32 %v3902, 4294901760
          %v4205 = vsub.f32 %v3902, %v4204
          %4206 = vmatmul.mubr.f32.gmra.mrb[0].mxu0 %v4205
          %v4207 = vpop.f32.mrb[0].mxu0
          %v4208 = vadd.f32 %v4110, %v4207
          %v4209 = vpop.f32.mrb[0].mxu0
          %4210 = vmatprep.mubr.f32.mxu0 0.0
          %v4211 = vand.u32 %v3905, 4294901760
          %v4212 = vsub.f32 %v3905, %v4211
          %4213 = vmatmul.mubr.f32.gmra.mrb[0].mxu0 %v4212
          %v4214 = vpop.f32.mrb[0].mxu0
          %v4215 = vadd.f32 %v4116, %v4214
          %v4216 = vpop.f32.mrb[0].mxu0
          %4217 = vmatprep.mubr.f32.mxu0 0.0
          %v4218 = vand.u32 %v3908, 4294901760
          %v4219 = vsub.f32 %v3908, %v4218
          %4220 = vmatmul.mubr.f32.gmra.mrb[0].mxu0 %v4219
          %v4221 = vpop.f32.mrb[0].mxu0
          %v4222 = vadd.f32 %v4122, %v4221
          %v4223 = vpop.f32.mrb[0].mxu0
          %4224 = vmatprep.mubr.f32.mxu0 0.0
          %v4225 = vand.u32 %v3911, 4294901760
          %v4226 = vsub.f32 %v3911, %v4225
          %4227 = vmatmul.mubr.f32.gmra.mrb[0].mxu0 %v4226
          %v4228 = vpop.f32.mrb[0].mxu0
          %v4229 = vadd.f32 %v4128, %v4228
          %v4230 = vpop.f32.mrb[0].mxu0
          %4231 = vdwg.mxu0
          %4232 = vmatprep.subr.mxu0 0.0
          %v4233 = vand.u32 %v3897, 4294901760
          %4234 = vmatpush1.msra.mxu0 %v4233
          %4235 = vmatprep.subr.mxu0 0.0
          %v4236 = vand.u32 %v3898, 4294901760
          %4237 = vmatpush1.msra.mxu0 %v4236
          %4238 = vmatprep.subr.mxu0 0.0
          %v4239 = vand.u32 %v3899, 4294901760
          %4240 = vmatpush1.msra.mxu0 %v4239
          %4241 = vmatprep.subr.mxu0 0.0
          %v4242 = vand.u32 %v3900, 4294901760
          %4243 = vmatpush1.msra.mxu0 %v4242
          %4244 = vmatprep.subr.mxu0 0.0
          %4245 = vmatpush1.msra.mxu0 0.0
          %4246 = vmatprep.subr.mxu0 0.0
          %4247 = vmatpush1.msra.mxu0 0.0
          %4248 = vmatprep.subr.mxu0 0.0
          %4249 = vmatpush1.msra.mxu0 0.0
          %4250 = vmatprep.subr.mxu0 0.0
          %4251 = vmatpush1.msra.mxu0 0.0
          %4252 = vmatprep.subr.mxu0 0.0
          %4253 = vmatpush1.msra.mxu0 0.0
          %4254 = vmatprep.subr.mxu0 0.0
          %4255 = vmatpush1.msra.mxu0 0.0
          %4256 = vmatprep.subr.mxu0 0.0
          %4257 = vmatpush1.msra.mxu0 0.0
          %4258 = vmatprep.subr.mxu0 0.0
          %4259 = vmatpush1.msra.mxu0 0.0
          %4260 = vmatprep.subr.mxu0 0.0
          %4261 = vmatpush1.msra.mxu0 0.0
          %4262 = vmatprep.subr.mxu0 0.0
          %4263 = vmatpush1.msra.mxu0 0.0
          %4264 = vmatprep.subr.mxu0 0.0
          %4265 = vmatpush1.msra.mxu0 0.0
          %4266 = vmatprep.subr.mxu0 0.0
          %4267 = vmatpush1.msra.mxu0 0.0
          %4268 = vmatprep.subr.mxu0 0.0
          %4269 = vmatpush1.msra.mxu0 0.0
          %4270 = vmatprep.subr.mxu0 0.0
          %4271 = vmatpush1.msra.mxu0 0.0
          %4272 = vmatprep.subr.mxu0 0.0
          %4273 = vmatpush1.msra.mxu0 0.0
          %4274 = vmatprep.subr.mxu0 0.0
          %4275 = vmatpush1.msra.mxu0 0.0
          %4276 = vmatprep.subr.mxu0 0.0
          %4277 = vmatpush1.msra.mxu0 0.0
          %4278 = vmatprep.subr.mxu0 0.0
          %4279 = vmatpush1.msra.mxu0 0.0
          %4280 = vmatprep.subr.mxu0 0.0
          %4281 = vmatpush1.msra.mxu0 0.0
          %4282 = vmatprep.subr.mxu0 0.0
          %4283 = vmatpush1.msra.mxu0 0.0
          %4284 = vmatprep.subr.mxu0 0.0
          %4285 = vmatpush1.msra.mxu0 0.0
          %4286 = vmatprep.subr.mxu0 0.0
          %4287 = vmatpush1.msra.mxu0 0.0
          %4288 = vmatprep.subr.mxu0 0.0
          %4289 = vmatpush1.msra.mxu0 0.0
          %4290 = vmatprep.subr.mxu0 0.0
          %4291 = vmatpush1.msra.mxu0 0.0
          %4292 = vmatprep.subr.mxu0 0.0
          %4293 = vmatpush1.msra.mxu0 0.0
          %4294 = vmatprep.subr.mxu0 0.0
          %4295 = vmatpush1.msra.mxu0 0.0
          %4296 = vmatprep.subr.mxu0 0.0
          %4297 = vmatpush1.msra.mxu0 0.0
          %4298 = vmatprep.subr.mxu0 0.0
          %4299 = vmatpush1.msra.mxu0 0.0
          %4300 = vmatprep.mubr.f32.mxu0 0.0
          %v4301 = vand.u32 %v3902, 4294901760
          %v4302 = vsub.f32 %v3902, %v4301
          %v4303 = vand.u32 %v4302, 4294901760
          %4304 = vmatmul.mubr.f32.gmra.mrb[0].mxu0 %v4303
          %v4305 = vpop.f32.mrb[0].mxu0
          %v4306 = vadd.f32 %v4208, %v4305
          %v4307 = vpop.f32.mrb[0].mxu0
          %4308 = vmatprep.mubr.f32.mxu0 0.0
          %v4309 = vand.u32 %v3905, 4294901760
          %v4310 = vsub.f32 %v3905, %v4309
          %v4311 = vand.u32 %v4310, 4294901760
          %4312 = vmatmul.mubr.f32.gmra.mrb[0].mxu0 %v4311
          %v4313 = vpop.f32.mrb[0].mxu0
          %v4314 = vadd.f32 %v4215, %v4313
          %v4315 = vpop.f32.mrb[0].mxu0
          %4316 = vmatprep.mubr.f32.mxu0 0.0
          %v4317 = vand.u32 %v3908, 4294901760
          %v4318 = vsub.f32 %v3908, %v4317
          %v4319 = vand.u32 %v4318, 4294901760
          %4320 = vmatmul.mubr.f32.gmra.mrb[0].mxu0 %v4319
          %v4321 = vpop.f32.mrb[0].mxu0
          %v4322 = vadd.f32 %v4222, %v4321
          %v4323 = vpop.f32.mrb[0].mxu0
          %4324 = vmatprep.mubr.f32.mxu0 0.0
          %v4325 = vand.u32 %v3911, 4294901760
          %v4326 = vsub.f32 %v3911, %v4325
          %v4327 = vand.u32 %v4326, 4294901760
          %4328 = vmatmul.mubr.f32.gmra.mrb[0].mxu0 %v4327
          %v4329 = vpop.f32.mrb[0].mxu0
          %v4330 = vadd.f32 %v4229, %v4329
          %v4331 = vpop.f32.mrb[0].mxu0
          %4332 = vdwg.mxu0
          %4333 = vmatprep.subr.mxu0 0.0
          %v4334 = vand.u32 %v3897, 4294901760
          %v4335 = vsub.f32 %v3897, %v4334
          %v4336 = vand.u32 %v4335, 4294901760
          %4337 = vmatpush1.msra.mxu0 %v4336
          %4338 = vmatprep.subr.mxu0 0.0
          %v4339 = vand.u32 %v3898, 4294901760
          %v4340 = vsub.f32 %v3898, %v4339
          %v4341 = vand.u32 %v4340, 4294901760
          %4342 = vmatpush1.msra.mxu0 %v4341
          %4343 = vmatprep.subr.mxu0 0.0
          %v4344 = vand.u32 %v3899, 4294901760
          %v4345 = vsub.f32 %v3899, %v4344
          %v4346 = vand.u32 %v4345, 4294901760
          %4347 = vmatpush1.msra.mxu0 %v4346
          %4348 = vmatprep.subr.mxu0 0.0
          %v4349 = vand.u32 %v3900, 4294901760
          %v4350 = vsub.f32 %v3900, %v4349
          %v4351 = vand.u32 %v4350, 4294901760
          %4352 = vmatpush1.msra.mxu0 %v4351
          %4353 = vmatprep.subr.mxu0 0.0
          %4354 = vmatpush1.msra.mxu0 0.0
          %4355 = vmatprep.subr.mxu0 0.0
          %4356 = vmatpush1.msra.mxu0 0.0
          %4357 = vmatprep.subr.mxu0 0.0
          %4358 = vmatpush1.msra.mxu0 0.0
          %4359 = vmatprep.subr.mxu0 0.0
          %4360 = vmatpush1.msra.mxu0 0.0
          %4361 = vmatprep.subr.mxu0 0.0
          %4362 = vmatpush1.msra.mxu0 0.0
          %4363 = vmatprep.subr.mxu0 0.0
          %4364 = vmatpush1.msra.mxu0 0.0
          %4365 = vmatprep.subr.mxu0 0.0
          %4366 = vmatpush1.msra.mxu0 0.0
          %4367 = vmatprep.subr.mxu0 0.0
          %4368 = vmatpush1.msra.mxu0 0.0
          %4369 = vmatprep.subr.mxu0 0.0
          %4370 = vmatpush1.msra.mxu0 0.0
          %4371 = vmatprep.subr.mxu0 0.0
          %4372 = vmatpush1.msra.mxu0 0.0
          %4373 = vmatprep.subr.mxu0 0.0
          %4374 = vmatpush1.msra.mxu0 0.0
          %4375 = vmatprep.subr.mxu0 0.0
          %4376 = vmatpush1.msra.mxu0 0.0
          %4377 = vmatprep.subr.mxu0 0.0
          %4378 = vmatpush1.msra.mxu0 0.0
          %4379 = vmatprep.subr.mxu0 0.0
          %4380 = vmatpush1.msra.mxu0 0.0
          %4381 = vmatprep.subr.mxu0 0.0
          %4382 = vmatpush1.msra.mxu0 0.0
          %4383 = vmatprep.subr.mxu0 0.0
          %4384 = vmatpush1.msra.mxu0 0.0
          %4385 = vmatprep.subr.mxu0 0.0
          %4386 = vmatpush1.msra.mxu0 0.0
          %4387 = vmatprep.subr.mxu0 0.0
          %4388 = vmatpush1.msra.mxu0 0.0
          %4389 = vmatprep.subr.mxu0 0.0
          %4390 = vmatpush1.msra.mxu0 0.0
          %4391 = vmatprep.subr.mxu0 0.0
          %4392 = vmatpush1.msra.mxu0 0.0
          %4393 = vmatprep.subr.mxu0 0.0
          %4394 = vmatpush1.msra.mxu0 0.0
          %4395 = vmatprep.subr.mxu0 0.0
          %4396 = vmatpush1.msra.mxu0 0.0
          %4397 = vmatprep.subr.mxu0 0.0
          %4398 = vmatpush1.msra.mxu0 0.0
          %4399 = vmatprep.subr.mxu0 0.0
          %4400 = vmatpush1.msra.mxu0 0.0
          %4401 = vmatprep.subr.mxu0 0.0
          %4402 = vmatpush1.msra.mxu0 0.0
          %4403 = vmatprep.subr.mxu0 0.0
          %4404 = vmatpush1.msra.mxu0 0.0
          %4405 = vmatprep.subr.mxu0 0.0
          %4406 = vmatpush1.msra.mxu0 0.0
          %4407 = vmatprep.subr.mxu0 0.0
          %4408 = vmatpush1.msra.mxu0 0.0
          %4409 = vmatprep.mubr.f32.mxu0 0.0
          %v4410 = vand.u32 %v3902, 4294901760
          %4411 = vmatmul.mubr.f32.gmra.mrb[0].mxu0 %v4410
          %v4412 = vpop.f32.mrb[0].mxu0
          %v4413 = vadd.f32 %v4306, %v4412
          %v4414 = vpop.f32.mrb[0].mxu0
          %4415 = vmatprep.mubr.f32.mxu0 0.0
          %v4416 = vand.u32 %v3905, 4294901760
          %4417 = vmatmul.mubr.f32.gmra.mrb[0].mxu0 %v4416
          %v4418 = vpop.f32.mrb[0].mxu0
          %v4419 = vadd.f32 %v4314, %v4418
          %v4420 = vpop.f32.mrb[0].mxu0
          %4421 = vmatprep.mubr.f32.mxu0 0.0
          %v4422 = vand.u32 %v3908, 4294901760
          %4423 = vmatmul.mubr.f32.gmra.mrb[0].mxu0 %v4422
          %v4424 = vpop.f32.mrb[0].mxu0
          %v4425 = vadd.f32 %v4322, %v4424
          %v4426 = vpop.f32.mrb[0].mxu0
          %4427 = vmatprep.mubr.f32.mxu0 0.0
          %v4428 = vand.u32 %v3911, 4294901760
          %4429 = vmatmul.mubr.f32.gmra.mrb[0].mxu0 %v4428
          %v4430 = vpop.f32.mrb[0].mxu0
          %v4431 = vadd.f32 %v4330, %v4430
          %v4432 = vpop.f32.mrb[0].mxu0
          %4433 = vdwg.mxu0
          %4434 = vmatprep.subr.mxu0 0.0
          %v4435 = vand.u32 %v3897, 4294901760
          %4436 = vmatpush1.msra.mxu0 %v4435
          %4437 = vmatprep.subr.mxu0 0.0
          %v4438 = vand.u32 %v3898, 4294901760
          %4439 = vmatpush1.msra.mxu0 %v4438
          %4440 = vmatprep.subr.mxu0 0.0
          %v4441 = vand.u32 %v3899, 4294901760
          %4442 = vmatpush1.msra.mxu0 %v4441
          %4443 = vmatprep.subr.mxu0 0.0
          %v4444 = vand.u32 %v3900, 4294901760
          %4445 = vmatpush1.msra.mxu0 %v4444
          %4446 = vmatprep.subr.mxu0 0.0
          %4447 = vmatpush1.msra.mxu0 0.0
          %4448 = vmatprep.subr.mxu0 0.0
          %4449 = vmatpush1.msra.mxu0 0.0
          %4450 = vmatprep.subr.mxu0 0.0
          %4451 = vmatpush1.msra.mxu0 0.0
          %4452 = vmatprep.subr.mxu0 0.0
          %4453 = vmatpush1.msra.mxu0 0.0
          %4454 = vmatprep.subr.mxu0 0.0
          %4455 = vmatpush1.msra.mxu0 0.0
          %4456 = vmatprep.subr.mxu0 0.0
          %4457 = vmatpush1.msra.mxu0 0.0
          %4458 = vmatprep.subr.mxu0 0.0
          %4459 = vmatpush1.msra.mxu0 0.0
          %4460 = vmatprep.subr.mxu0 0.0
          %4461 = vmatpush1.msra.mxu0 0.0
          %4462 = vmatprep.subr.mxu0 0.0
          %4463 = vmatpush1.msra.mxu0 0.0
          %4464 = vmatprep.subr.mxu0 0.0
          %4465 = vmatpush1.msra.mxu0 0.0
          %4466 = vmatprep.subr.mxu0 0.0
          %4467 = vmatpush1.msra.mxu0 0.0
          %4468 = vmatprep.subr.mxu0 0.0
          %4469 = vmatpush1.msra.mxu0 0.0
          %4470 = vmatprep.subr.mxu0 0.0
          %4471 = vmatpush1.msra.mxu0 0.0
          %4472 = vmatprep.subr.mxu0 0.0
          %4473 = vmatpush1.msra.mxu0 0.0
          %4474 = vmatprep.subr.mxu0 0.0
          %4475 = vmatpush1.msra.mxu0 0.0
          %4476 = vmatprep.subr.mxu0 0.0
          %4477 = vmatpush1.msra.mxu0 0.0
          %4478 = vmatprep.subr.mxu0 0.0
          %4479 = vmatpush1.msra.mxu0 0.0
          %4480 = vmatprep.subr.mxu0 0.0
          %4481 = vmatpush1.msra.mxu0 0.0
          %4482 = vmatprep.subr.mxu0 0.0
          %4483 = vmatpush1.msra.mxu0 0.0
          %4484 = vmatprep.subr.mxu0 0.0
          %4485 = vmatpush1.msra.mxu0 0.0
          %4486 = vmatprep.subr.mxu0 0.0
          %4487 = vmatpush1.msra.mxu0 0.0
          %4488 = vmatprep.subr.mxu0 0.0
          %4489 = vmatpush1.msra.mxu0 0.0
          %4490 = vmatprep.subr.mxu0 0.0
          %4491 = vmatpush1.msra.mxu0 0.0
          %4492 = vmatprep.subr.mxu0 0.0
          %4493 = vmatpush1.msra.mxu0 0.0
          %4494 = vmatprep.subr.mxu0 0.0
          %4495 = vmatpush1.msra.mxu0 0.0
          %4496 = vmatprep.subr.mxu0 0.0
          %4497 = vmatpush1.msra.mxu0 0.0
          %4498 = vmatprep.subr.mxu0 0.0
          %4499 = vmatpush1.msra.mxu0 0.0
          %4500 = vmatprep.subr.mxu0 0.0
          %4501 = vmatpush1.msra.mxu0 0.0
          %4502 = vmatprep.mubr.f32.mxu0 0.0
          %v4503 = vand.u32 %v3902, 4294901760
          %4504 = vmatmul.mubr.f32.gmra.mrb[0].mxu0 %v4503
          %v4505 = vpop.f32.mrb[0].mxu0
          %v4506 = vadd.f32 %v4413, %v4505
          %v4507 = vpop.f32.mrb[0].mxu0
          %4508 = vmatprep.mubr.f32.mxu0 0.0
          %v4509 = vand.u32 %v3905, 4294901760
          %4510 = vmatmul.mubr.f32.gmra.mrb[0].mxu0 %v4509
          %v4511 = vpop.f32.mrb[0].mxu0
          %v4512 = vadd.f32 %v4419, %v4511
          %v4513 = vpop.f32.mrb[0].mxu0
          %4514 = vmatprep.mubr.f32.mxu0 0.0
          %v4515 = vand.u32 %v3908, 4294901760
          %4516 = vmatmul.mubr.f32.gmra.mrb[0].mxu0 %v4515
          %v4517 = vpop.f32.mrb[0].mxu0
          %v4518 = vadd.f32 %v4425, %v4517
          %v4519 = vpop.f32.mrb[0].mxu0
          %4520 = vmatprep.mubr.f32.mxu0 0.0
          %v4521 = vand.u32 %v3911, 4294901760
          %4522 = vmatmul.mubr.f32.gmra.mrb[0].mxu0 %v4521
          %v4523 = vpop.f32.mrb[0].mxu0
          %v4524 = vadd.f32 %v4431, %v4523
          %v4525 = vpop.f32.mrb[0].mxu0
          %4526 = vdwg.mxu0
          %v4528 = vsel %vm2355, %v3876, 0
          %v4531 = vsel %vm2355, %v3882, 0
          %v4534 = vsel %vm2355, %v3888, 0
          %v4537 = vsel %vm2355, %v3894, 0
          %4539 = vmatprep.subr.mxu0 0.0
          %v4540 = vand.u32 %v3876, 4294901760
          %4541 = vmatpush1.msra.mxu0 %v4540
          %4542 = vmatprep.subr.mxu0 0.0
          %v4543 = vand.u32 %v3882, 4294901760
          %4544 = vmatpush1.msra.mxu0 %v4543
          %4545 = vmatprep.subr.mxu0 0.0
          %v4546 = vand.u32 %v3888, 4294901760
          %4547 = vmatpush1.msra.mxu0 %v4546
          %4548 = vmatprep.subr.mxu0 0.0
          %v4549 = vand.u32 %v3894, 4294901760
          %4550 = vmatpush1.msra.mxu0 %v4549
          %4551 = vmatprep.subr.mxu0 0.0
          %4552 = vmatpush1.msra.mxu0 0.0
          %4553 = vmatprep.subr.mxu0 0.0
          %4554 = vmatpush1.msra.mxu0 0.0
          %4555 = vmatprep.subr.mxu0 0.0
          %4556 = vmatpush1.msra.mxu0 0.0
          %4557 = vmatprep.subr.mxu0 0.0
          %4558 = vmatpush1.msra.mxu0 0.0
          %4559 = vmatprep.subr.mxu0 0.0
          %4560 = vmatpush1.msra.mxu0 0.0
          %4561 = vmatprep.subr.mxu0 0.0
          %4562 = vmatpush1.msra.mxu0 0.0
          %4563 = vmatprep.subr.mxu0 0.0
          %4564 = vmatpush1.msra.mxu0 0.0
          %4565 = vmatprep.subr.mxu0 0.0
          %4566 = vmatpush1.msra.mxu0 0.0
          %4567 = vmatprep.subr.mxu0 0.0
          %4568 = vmatpush1.msra.mxu0 0.0
          %4569 = vmatprep.subr.mxu0 0.0
          %4570 = vmatpush1.msra.mxu0 0.0
          %4571 = vmatprep.subr.mxu0 0.0
          %4572 = vmatpush1.msra.mxu0 0.0
          %4573 = vmatprep.subr.mxu0 0.0
          %4574 = vmatpush1.msra.mxu0 0.0
          %4575 = vmatprep.subr.mxu0 0.0
          %4576 = vmatpush1.msra.mxu0 0.0
          %4577 = vmatprep.subr.mxu0 0.0
          %4578 = vmatpush1.msra.mxu0 0.0
          %4579 = vmatprep.subr.mxu0 0.0
          %4580 = vmatpush1.msra.mxu0 0.0
          %4581 = vmatprep.subr.mxu0 0.0
          %4582 = vmatpush1.msra.mxu0 0.0
          %4583 = vmatprep.subr.mxu0 0.0
          %4584 = vmatpush1.msra.mxu0 0.0
          %4585 = vmatprep.subr.mxu0 0.0
          %4586 = vmatpush1.msra.mxu0 0.0
          %4587 = vmatprep.subr.mxu0 0.0
          %4588 = vmatpush1.msra.mxu0 0.0
          %4589 = vmatprep.subr.mxu0 0.0
          %4590 = vmatpush1.msra.mxu0 0.0
          %4591 = vmatprep.subr.mxu0 0.0
          %4592 = vmatpush1.msra.mxu0 0.0
          %4593 = vmatprep.subr.mxu0 0.0
          %4594 = vmatpush1.msra.mxu0 0.0
          %4595 = vmatprep.subr.mxu0 0.0
          %4596 = vmatpush1.msra.mxu0 0.0
          %4597 = vmatprep.subr.mxu0 0.0
          %4598 = vmatpush1.msra.mxu0 0.0
          %4599 = vmatprep.subr.mxu0 0.0
          %4600 = vmatpush1.msra.mxu0 0.0
          %4601 = vmatprep.subr.mxu0 0.0
          %4602 = vmatpush1.msra.mxu0 0.0
          %4603 = vmatprep.subr.mxu0 0.0
          %4604 = vmatpush1.msra.mxu0 0.0
          %4605 = vmatprep.subr.mxu0 0.0
          %4606 = vmatpush1.msra.mxu0 0.0
          %4607 = vmatprep.mubr.f32.mxu0 0.0
          %v4608 = vand.u32 %v4528, 4294901760
          %v4609 = vsub.f32 %v4528, %v4608
          %v4610 = vand.u32 %v4609, 4294901760
          %v4611 = vsub.f32 %v4609, %v4610
          %v4612 = vand.u32 %v4611, 4294901760
          %4613 = vmatmul.mubr.f32.gmra.mrb[0].mxu0 %v4612
          %v4614 = vpop.f32.mrb[0].mxu0
          %v4615 = vadd.f32 0.0, %v4614
          %v4616 = vpop.f32.mrb[0].mxu0
          %4617 = vmatprep.mubr.f32.mxu0 0.0
          %v4618 = vand.u32 %v4531, 4294901760
          %v4619 = vsub.f32 %v4531, %v4618
          %v4620 = vand.u32 %v4619, 4294901760
          %v4621 = vsub.f32 %v4619, %v4620
          %v4622 = vand.u32 %v4621, 4294901760
          %4623 = vmatmul.mubr.f32.gmra.mrb[0].mxu0 %v4622
          %v4624 = vpop.f32.mrb[0].mxu0
          %v4625 = vadd.f32 0.0, %v4624
          %v4626 = vpop.f32.mrb[0].mxu0
          %4627 = vmatprep.mubr.f32.mxu0 0.0
          %v4628 = vand.u32 %v4534, 4294901760
          %v4629 = vsub.f32 %v4534, %v4628
          %v4630 = vand.u32 %v4629, 4294901760
          %v4631 = vsub.f32 %v4629, %v4630
          %v4632 = vand.u32 %v4631, 4294901760
          %4633 = vmatmul.mubr.f32.gmra.mrb[0].mxu0 %v4632
          %v4634 = vpop.f32.mrb[0].mxu0
          %v4635 = vadd.f32 0.0, %v4634
          %v4636 = vpop.f32.mrb[0].mxu0
          %4637 = vmatprep.mubr.f32.mxu0 0.0
          %v4638 = vand.u32 %v4537, 4294901760
          %v4639 = vsub.f32 %v4537, %v4638
          %v4640 = vand.u32 %v4639, 4294901760
          %v4641 = vsub.f32 %v4639, %v4640
          %v4642 = vand.u32 %v4641, 4294901760
          %4643 = vmatmul.mubr.f32.gmra.mrb[0].mxu0 %v4642
          %v4644 = vpop.f32.mrb[0].mxu0
          %v4645 = vadd.f32 0.0, %v4644
          %v4646 = vpop.f32.mrb[0].mxu0
          %4647 = vdwg.mxu0
          %4648 = vmatprep.subr.mxu0 0.0
          %v4649 = vand.u32 %v3876, 4294901760
          %v4650 = vsub.f32 %v3876, %v4649
          %v4651 = vand.u32 %v4650, 4294901760
          %v4652 = vsub.f32 %v4650, %v4651
          %v4653 = vand.u32 %v4652, 4294901760
          %4654 = vmatpush1.msra.mxu0 %v4653
          %4655 = vmatprep.subr.mxu0 0.0
          %v4656 = vand.u32 %v3882, 4294901760
          %v4657 = vsub.f32 %v3882, %v4656
          %v4658 = vand.u32 %v4657, 4294901760
          %v4659 = vsub.f32 %v4657, %v4658
          %v4660 = vand.u32 %v4659, 4294901760
          %4661 = vmatpush1.msra.mxu0 %v4660
          %4662 = vmatprep.subr.mxu0 0.0
          %v4663 = vand.u32 %v3888, 4294901760
          %v4664 = vsub.f32 %v3888, %v4663
          %v4665 = vand.u32 %v4664, 4294901760
          %v4666 = vsub.f32 %v4664, %v4665
          %v4667 = vand.u32 %v4666, 4294901760
          %4668 = vmatpush1.msra.mxu0 %v4667
          %4669 = vmatprep.subr.mxu0 0.0
          %v4670 = vand.u32 %v3894, 4294901760
          %v4671 = vsub.f32 %v3894, %v4670
          %v4672 = vand.u32 %v4671, 4294901760
          %v4673 = vsub.f32 %v4671, %v4672
          %v4674 = vand.u32 %v4673, 4294901760
          %4675 = vmatpush1.msra.mxu0 %v4674
          %4676 = vmatprep.subr.mxu0 0.0
          %4677 = vmatpush1.msra.mxu0 0.0
          %4678 = vmatprep.subr.mxu0 0.0
          %4679 = vmatpush1.msra.mxu0 0.0
          %4680 = vmatprep.subr.mxu0 0.0
          %4681 = vmatpush1.msra.mxu0 0.0
          %4682 = vmatprep.subr.mxu0 0.0
          %4683 = vmatpush1.msra.mxu0 0.0
          %4684 = vmatprep.subr.mxu0 0.0
          %4685 = vmatpush1.msra.mxu0 0.0
          %4686 = vmatprep.subr.mxu0 0.0
          %4687 = vmatpush1.msra.mxu0 0.0
          %4688 = vmatprep.subr.mxu0 0.0
          %4689 = vmatpush1.msra.mxu0 0.0
          %4690 = vmatprep.subr.mxu0 0.0
          %4691 = vmatpush1.msra.mxu0 0.0
          %4692 = vmatprep.subr.mxu0 0.0
          %4693 = vmatpush1.msra.mxu0 0.0
          %4694 = vmatprep.subr.mxu0 0.0
          %4695 = vmatpush1.msra.mxu0 0.0
          %4696 = vmatprep.subr.mxu0 0.0
          %4697 = vmatpush1.msra.mxu0 0.0
          %4698 = vmatprep.subr.mxu0 0.0
          %4699 = vmatpush1.msra.mxu0 0.0
          %4700 = vmatprep.subr.mxu0 0.0
          %4701 = vmatpush1.msra.mxu0 0.0
          %4702 = vmatprep.subr.mxu0 0.0
          %4703 = vmatpush1.msra.mxu0 0.0
          %4704 = vmatprep.subr.mxu0 0.0
          %4705 = vmatpush1.msra.mxu0 0.0
          %4706 = vmatprep.subr.mxu0 0.0
          %4707 = vmatpush1.msra.mxu0 0.0
          %4708 = vmatprep.subr.mxu0 0.0
          %4709 = vmatpush1.msra.mxu0 0.0
          %4710 = vmatprep.subr.mxu0 0.0
          %4711 = vmatpush1.msra.mxu0 0.0
          %4712 = vmatprep.subr.mxu0 0.0
          %4713 = vmatpush1.msra.mxu0 0.0
          %4714 = vmatprep.subr.mxu0 0.0
          %4715 = vmatpush1.msra.mxu0 0.0
          %4716 = vmatprep.subr.mxu0 0.0
          %4717 = vmatpush1.msra.mxu0 0.0
          %4718 = vmatprep.subr.mxu0 0.0
          %4719 = vmatpush1.msra.mxu0 0.0
          %4720 = vmatprep.subr.mxu0 0.0
          %4721 = vmatpush1.msra.mxu0 0.0
          %4722 = vmatprep.subr.mxu0 0.0
          %4723 = vmatpush1.msra.mxu0 0.0
          %4724 = vmatprep.subr.mxu0 0.0
          %4725 = vmatpush1.msra.mxu0 0.0
          %4726 = vmatprep.subr.mxu0 0.0
          %4727 = vmatpush1.msra.mxu0 0.0
          %4728 = vmatprep.subr.mxu0 0.0
          %4729 = vmatpush1.msra.mxu0 0.0
          %4730 = vmatprep.subr.mxu0 0.0
          %4731 = vmatpush1.msra.mxu0 0.0
          %4732 = vmatprep.mubr.f32.mxu0 0.0
          %v4733 = vand.u32 %v4528, 4294901760
          %4734 = vmatmul.mubr.f32.gmra.mrb[0].mxu0 %v4733
          %v4735 = vpop.f32.mrb[0].mxu0
          %v4736 = vadd.f32 %v4615, %v4735
          %v4737 = vpop.f32.mrb[0].mxu0
          %4738 = vmatprep.mubr.f32.mxu0 0.0
          %v4739 = vand.u32 %v4531, 4294901760
          %4740 = vmatmul.mubr.f32.gmra.mrb[0].mxu0 %v4739
          %v4741 = vpop.f32.mrb[0].mxu0
          %v4742 = vadd.f32 %v4625, %v4741
          %v4743 = vpop.f32.mrb[0].mxu0
          %4744 = vmatprep.mubr.f32.mxu0 0.0
          %v4745 = vand.u32 %v4534, 4294901760
          %4746 = vmatmul.mubr.f32.gmra.mrb[0].mxu0 %v4745
          %v4747 = vpop.f32.mrb[0].mxu0
          %v4748 = vadd.f32 %v4635, %v4747
          %v4749 = vpop.f32.mrb[0].mxu0
          %4750 = vmatprep.mubr.f32.mxu0 0.0
          %v4751 = vand.u32 %v4537, 4294901760
          %4752 = vmatmul.mubr.f32.gmra.mrb[0].mxu0 %v4751
          %v4753 = vpop.f32.mrb[0].mxu0
          %v4754 = vadd.f32 %v4645, %v4753
          %v4755 = vpop.f32.mrb[0].mxu0
          %4756 = vdwg.mxu0
          %4757 = vmatprep.subr.mxu0 0.0
          %v4758 = vand.u32 %v3876, 4294901760
          %v4759 = vsub.f32 %v3876, %v4758
          %4760 = vmatpush1.msra.mxu0 %v4759
          %4761 = vmatprep.subr.mxu0 0.0
          %v4762 = vand.u32 %v3882, 4294901760
          %v4763 = vsub.f32 %v3882, %v4762
          %4764 = vmatpush1.msra.mxu0 %v4763
          %4765 = vmatprep.subr.mxu0 0.0
          %v4766 = vand.u32 %v3888, 4294901760
          %v4767 = vsub.f32 %v3888, %v4766
          %4768 = vmatpush1.msra.mxu0 %v4767
          %4769 = vmatprep.subr.mxu0 0.0
          %v4770 = vand.u32 %v3894, 4294901760
          %v4771 = vsub.f32 %v3894, %v4770
          %4772 = vmatpush1.msra.mxu0 %v4771
          %4773 = vmatprep.subr.mxu0 0.0
          %4774 = vmatpush1.msra.mxu0 0.0
          %4775 = vmatprep.subr.mxu0 0.0
          %4776 = vmatpush1.msra.mxu0 0.0
          %4777 = vmatprep.subr.mxu0 0.0
          %4778 = vmatpush1.msra.mxu0 0.0
          %4779 = vmatprep.subr.mxu0 0.0
          %4780 = vmatpush1.msra.mxu0 0.0
          %4781 = vmatprep.subr.mxu0 0.0
          %4782 = vmatpush1.msra.mxu0 0.0
          %4783 = vmatprep.subr.mxu0 0.0
          %4784 = vmatpush1.msra.mxu0 0.0
          %4785 = vmatprep.subr.mxu0 0.0
          %4786 = vmatpush1.msra.mxu0 0.0
          %4787 = vmatprep.subr.mxu0 0.0
          %4788 = vmatpush1.msra.mxu0 0.0
          %4789 = vmatprep.subr.mxu0 0.0
          %4790 = vmatpush1.msra.mxu0 0.0
          %4791 = vmatprep.subr.mxu0 0.0
          %4792 = vmatpush1.msra.mxu0 0.0
          %4793 = vmatprep.subr.mxu0 0.0
          %4794 = vmatpush1.msra.mxu0 0.0
          %4795 = vmatprep.subr.mxu0 0.0
          %4796 = vmatpush1.msra.mxu0 0.0
          %4797 = vmatprep.subr.mxu0 0.0
          %4798 = vmatpush1.msra.mxu0 0.0
          %4799 = vmatprep.subr.mxu0 0.0
          %4800 = vmatpush1.msra.mxu0 0.0
          %4801 = vmatprep.subr.mxu0 0.0
          %4802 = vmatpush1.msra.mxu0 0.0
          %4803 = vmatprep.subr.mxu0 0.0
          %4804 = vmatpush1.msra.mxu0 0.0
          %4805 = vmatprep.subr.mxu0 0.0
          %4806 = vmatpush1.msra.mxu0 0.0
          %4807 = vmatprep.subr.mxu0 0.0
          %4808 = vmatpush1.msra.mxu0 0.0
          %4809 = vmatprep.subr.mxu0 0.0
          %4810 = vmatpush1.msra.mxu0 0.0
          %4811 = vmatprep.subr.mxu0 0.0
          %4812 = vmatpush1.msra.mxu0 0.0
          %4813 = vmatprep.subr.mxu0 0.0
          %4814 = vmatpush1.msra.mxu0 0.0
          %4815 = vmatprep.subr.mxu0 0.0
          %4816 = vmatpush1.msra.mxu0 0.0
          %4817 = vmatprep.subr.mxu0 0.0
          %4818 = vmatpush1.msra.mxu0 0.0
          %4819 = vmatprep.subr.mxu0 0.0
          %4820 = vmatpush1.msra.mxu0 0.0
          %4821 = vmatprep.subr.mxu0 0.0
          %4822 = vmatpush1.msra.mxu0 0.0
          %4823 = vmatprep.subr.mxu0 0.0
          %4824 = vmatpush1.msra.mxu0 0.0
          %4825 = vmatprep.subr.mxu0 0.0
          %4826 = vmatpush1.msra.mxu0 0.0
          %4827 = vmatprep.subr.mxu0 0.0
          %4828 = vmatpush1.msra.mxu0 0.0
          %4829 = vmatprep.mubr.f32.mxu0 0.0
          %v4830 = vand.u32 %v4528, 4294901760
          %v4831 = vsub.f32 %v4528, %v4830
          %4832 = vmatmul.mubr.f32.gmra.mrb[0].mxu0 %v4831
          %v4833 = vpop.f32.mrb[0].mxu0
          %v4834 = vadd.f32 %v4736, %v4833
          %v4835 = vpop.f32.mrb[0].mxu0
          %4836 = vmatprep.mubr.f32.mxu0 0.0
          %v4837 = vand.u32 %v4531, 4294901760
          %v4838 = vsub.f32 %v4531, %v4837
          %4839 = vmatmul.mubr.f32.gmra.mrb[0].mxu0 %v4838
          %v4840 = vpop.f32.mrb[0].mxu0
          %v4841 = vadd.f32 %v4742, %v4840
          %v4842 = vpop.f32.mrb[0].mxu0
          %4843 = vmatprep.mubr.f32.mxu0 0.0
          %v4844 = vand.u32 %v4534, 4294901760
          %v4845 = vsub.f32 %v4534, %v4844
          %4846 = vmatmul.mubr.f32.gmra.mrb[0].mxu0 %v4845
          %v4847 = vpop.f32.mrb[0].mxu0
          %v4848 = vadd.f32 %v4748, %v4847
          %v4849 = vpop.f32.mrb[0].mxu0
          %4850 = vmatprep.mubr.f32.mxu0 0.0
          %v4851 = vand.u32 %v4537, 4294901760
          %v4852 = vsub.f32 %v4537, %v4851
          %4853 = vmatmul.mubr.f32.gmra.mrb[0].mxu0 %v4852
          %v4854 = vpop.f32.mrb[0].mxu0
          %v4855 = vadd.f32 %v4754, %v4854
          %v4856 = vpop.f32.mrb[0].mxu0
          %4857 = vdwg.mxu0
          %4858 = vmatprep.subr.mxu0 0.0
          %v4859 = vand.u32 %v3876, 4294901760
          %4860 = vmatpush1.msra.mxu0 %v4859
          %4861 = vmatprep.subr.mxu0 0.0
          %v4862 = vand.u32 %v3882, 4294901760
          %4863 = vmatpush1.msra.mxu0 %v4862
          %4864 = vmatprep.subr.mxu0 0.0
          %v4865 = vand.u32 %v3888, 4294901760
          %4866 = vmatpush1.msra.mxu0 %v4865
          %4867 = vmatprep.subr.mxu0 0.0
          %v4868 = vand.u32 %v3894, 4294901760
          %4869 = vmatpush1.msra.mxu0 %v4868
          %4870 = vmatprep.subr.mxu0 0.0
          %4871 = vmatpush1.msra.mxu0 0.0
          %4872 = vmatprep.subr.mxu0 0.0
          %4873 = vmatpush1.msra.mxu0 0.0
          %4874 = vmatprep.subr.mxu0 0.0
          %4875 = vmatpush1.msra.mxu0 0.0
          %4876 = vmatprep.subr.mxu0 0.0
          %4877 = vmatpush1.msra.mxu0 0.0
          %4878 = vmatprep.subr.mxu0 0.0
          %4879 = vmatpush1.msra.mxu0 0.0
          %4880 = vmatprep.subr.mxu0 0.0
          %4881 = vmatpush1.msra.mxu0 0.0
          %4882 = vmatprep.subr.mxu0 0.0
          %4883 = vmatpush1.msra.mxu0 0.0
          %4884 = vmatprep.subr.mxu0 0.0
          %4885 = vmatpush1.msra.mxu0 0.0
          %4886 = vmatprep.subr.mxu0 0.0
          %4887 = vmatpush1.msra.mxu0 0.0
          %4888 = vmatprep.subr.mxu0 0.0
          %4889 = vmatpush1.msra.mxu0 0.0
          %4890 = vmatprep.subr.mxu0 0.0
          %4891 = vmatpush1.msra.mxu0 0.0
          %4892 = vmatprep.subr.mxu0 0.0
          %4893 = vmatpush1.msra.mxu0 0.0
          %4894 = vmatprep.subr.mxu0 0.0
          %4895 = vmatpush1.msra.mxu0 0.0
          %4896 = vmatprep.subr.mxu0 0.0
          %4897 = vmatpush1.msra.mxu0 0.0
          %4898 = vmatprep.subr.mxu0 0.0
          %4899 = vmatpush1.msra.mxu0 0.0
          %4900 = vmatprep.subr.mxu0 0.0
          %4901 = vmatpush1.msra.mxu0 0.0
          %4902 = vmatprep.subr.mxu0 0.0
          %4903 = vmatpush1.msra.mxu0 0.0
          %4904 = vmatprep.subr.mxu0 0.0
          %4905 = vmatpush1.msra.mxu0 0.0
          %4906 = vmatprep.subr.mxu0 0.0
          %4907 = vmatpush1.msra.mxu0 0.0
          %4908 = vmatprep.subr.mxu0 0.0
          %4909 = vmatpush1.msra.mxu0 0.0
          %4910 = vmatprep.subr.mxu0 0.0
          %4911 = vmatpush1.msra.mxu0 0.0
          %4912 = vmatprep.subr.mxu0 0.0
          %4913 = vmatpush1.msra.mxu0 0.0
          %4914 = vmatprep.subr.mxu0 0.0
          %4915 = vmatpush1.msra.mxu0 0.0
          %4916 = vmatprep.subr.mxu0 0.0
          %4917 = vmatpush1.msra.mxu0 0.0
          %4918 = vmatprep.subr.mxu0 0.0
          %4919 = vmatpush1.msra.mxu0 0.0
          %4920 = vmatprep.subr.mxu0 0.0
          %4921 = vmatpush1.msra.mxu0 0.0
          %4922 = vmatprep.subr.mxu0 0.0
          %4923 = vmatpush1.msra.mxu0 0.0
          %4924 = vmatprep.subr.mxu0 0.0
          %4925 = vmatpush1.msra.mxu0 0.0
          %4926 = vmatprep.mubr.f32.mxu0 0.0
          %v4927 = vand.u32 %v4528, 4294901760
          %v4928 = vsub.f32 %v4528, %v4927
          %v4929 = vand.u32 %v4928, 4294901760
          %4930 = vmatmul.mubr.f32.gmra.mrb[0].mxu0 %v4929
          %v4931 = vpop.f32.mrb[0].mxu0
          %v4932 = vadd.f32 %v4834, %v4931
          %v4933 = vpop.f32.mrb[0].mxu0
          %4934 = vmatprep.mubr.f32.mxu0 0.0
          %v4935 = vand.u32 %v4531, 4294901760
          %v4936 = vsub.f32 %v4531, %v4935
          %v4937 = vand.u32 %v4936, 4294901760
          %4938 = vmatmul.mubr.f32.gmra.mrb[0].mxu0 %v4937
          %v4939 = vpop.f32.mrb[0].mxu0
          %v4940 = vadd.f32 %v4841, %v4939
          %v4941 = vpop.f32.mrb[0].mxu0
          %4942 = vmatprep.mubr.f32.mxu0 0.0
          %v4943 = vand.u32 %v4534, 4294901760
          %v4944 = vsub.f32 %v4534, %v4943
          %v4945 = vand.u32 %v4944, 4294901760
          %4946 = vmatmul.mubr.f32.gmra.mrb[0].mxu0 %v4945
          %v4947 = vpop.f32.mrb[0].mxu0
          %v4948 = vadd.f32 %v4848, %v4947
          %v4949 = vpop.f32.mrb[0].mxu0
          %4950 = vmatprep.mubr.f32.mxu0 0.0
          %v4951 = vand.u32 %v4537, 4294901760
          %v4952 = vsub.f32 %v4537, %v4951
          %v4953 = vand.u32 %v4952, 4294901760
          %4954 = vmatmul.mubr.f32.gmra.mrb[0].mxu0 %v4953
          %v4955 = vpop.f32.mrb[0].mxu0
          %v4956 = vadd.f32 %v4855, %v4955
          %v4957 = vpop.f32.mrb[0].mxu0
          %4958 = vdwg.mxu0
          %4959 = vmatprep.subr.mxu0 0.0
          %v4960 = vand.u32 %v3876, 4294901760
          %v4961 = vsub.f32 %v3876, %v4960
          %v4962 = vand.u32 %v4961, 4294901760
          %4963 = vmatpush1.msra.mxu0 %v4962
          %4964 = vmatprep.subr.mxu0 0.0
          %v4965 = vand.u32 %v3882, 4294901760
          %v4966 = vsub.f32 %v3882, %v4965
          %v4967 = vand.u32 %v4966, 4294901760
          %4968 = vmatpush1.msra.mxu0 %v4967
          %4969 = vmatprep.subr.mxu0 0.0
          %v4970 = vand.u32 %v3888, 4294901760
          %v4971 = vsub.f32 %v3888, %v4970
          %v4972 = vand.u32 %v4971, 4294901760
          %4973 = vmatpush1.msra.mxu0 %v4972
          %4974 = vmatprep.subr.mxu0 0.0
          %v4975 = vand.u32 %v3894, 4294901760
          %v4976 = vsub.f32 %v3894, %v4975
          %v4977 = vand.u32 %v4976, 4294901760
          %4978 = vmatpush1.msra.mxu0 %v4977
          %4979 = vmatprep.subr.mxu0 0.0
          %4980 = vmatpush1.msra.mxu0 0.0
          %4981 = vmatprep.subr.mxu0 0.0
          %4982 = vmatpush1.msra.mxu0 0.0
          %4983 = vmatprep.subr.mxu0 0.0
          %4984 = vmatpush1.msra.mxu0 0.0
          %4985 = vmatprep.subr.mxu0 0.0
          %4986 = vmatpush1.msra.mxu0 0.0
          %4987 = vmatprep.subr.mxu0 0.0
          %4988 = vmatpush1.msra.mxu0 0.0
          %4989 = vmatprep.subr.mxu0 0.0
          %4990 = vmatpush1.msra.mxu0 0.0
          %4991 = vmatprep.subr.mxu0 0.0
          %4992 = vmatpush1.msra.mxu0 0.0
          %4993 = vmatprep.subr.mxu0 0.0
          %4994 = vmatpush1.msra.mxu0 0.0
          %4995 = vmatprep.subr.mxu0 0.0
          %4996 = vmatpush1.msra.mxu0 0.0
          %4997 = vmatprep.subr.mxu0 0.0
          %4998 = vmatpush1.msra.mxu0 0.0
          %4999 = vmatprep.subr.mxu0 0.0
          %5000 = vmatpush1.msra.mxu0 0.0
          %5001 = vmatprep.subr.mxu0 0.0
          %5002 = vmatpush1.msra.mxu0 0.0
          %5003 = vmatprep.subr.mxu0 0.0
          %5004 = vmatpush1.msra.mxu0 0.0
          %5005 = vmatprep.subr.mxu0 0.0
          %5006 = vmatpush1.msra.mxu0 0.0
          %5007 = vmatprep.subr.mxu0 0.0
          %5008 = vmatpush1.msra.mxu0 0.0
          %5009 = vmatprep.subr.mxu0 0.0
          %5010 = vmatpush1.msra.mxu0 0.0
          %5011 = vmatprep.subr.mxu0 0.0
          %5012 = vmatpush1.msra.mxu0 0.0
          %5013 = vmatprep.subr.mxu0 0.0
          %5014 = vmatpush1.msra.mxu0 0.0
          %5015 = vmatprep.subr.mxu0 0.0
          %5016 = vmatpush1.msra.mxu0 0.0
          %5017 = vmatprep.subr.mxu0 0.0
          %5018 = vmatpush1.msra.mxu0 0.0
          %5019 = vmatprep.subr.mxu0 0.0
          %5020 = vmatpush1.msra.mxu0 0.0
          %5021 = vmatprep.subr.mxu0 0.0
          %5022 = vmatpush1.msra.mxu0 0.0
          %5023 = vmatprep.subr.mxu0 0.0
          %5024 = vmatpush1.msra.mxu0 0.0
          %5025 = vmatprep.subr.mxu0 0.0
          %5026 = vmatpush1.msra.mxu0 0.0
          %5027 = vmatprep.subr.mxu0 0.0
          %5028 = vmatpush1.msra.mxu0 0.0
          %5029 = vmatprep.subr.mxu0 0.0
          %5030 = vmatpush1.msra.mxu0 0.0
          %5031 = vmatprep.subr.mxu0 0.0
          %5032 = vmatpush1.msra.mxu0 0.0
          %5033 = vmatprep.subr.mxu0 0.0
          %5034 = vmatpush1.msra.mxu0 0.0
          %5035 = vmatprep.mubr.f32.mxu0 0.0
          %v5036 = vand.u32 %v4528, 4294901760
          %5037 = vmatmul.mubr.f32.gmra.mrb[0].mxu0 %v5036
          %v5038 = vpop.f32.mrb[0].mxu0
          %v5039 = vadd.f32 %v4932, %v5038
          %v5040 = vpop.f32.mrb[0].mxu0
          %5041 = vmatprep.mubr.f32.mxu0 0.0
          %v5042 = vand.u32 %v4531, 4294901760
          %5043 = vmatmul.mubr.f32.gmra.mrb[0].mxu0 %v5042
          %v5044 = vpop.f32.mrb[0].mxu0
          %v5045 = vadd.f32 %v4940, %v5044
          %v5046 = vpop.f32.mrb[0].mxu0
          %5047 = vmatprep.mubr.f32.mxu0 0.0
          %v5048 = vand.u32 %v4534, 4294901760
          %5049 = vmatmul.mubr.f32.gmra.mrb[0].mxu0 %v5048
          %v5050 = vpop.f32.mrb[0].mxu0
          %v5051 = vadd.f32 %v4948, %v5050
          %v5052 = vpop.f32.mrb[0].mxu0
          %5053 = vmatprep.mubr.f32.mxu0 0.0
          %v5054 = vand.u32 %v4537, 4294901760
          %5055 = vmatmul.mubr.f32.gmra.mrb[0].mxu0 %v5054
          %v5056 = vpop.f32.mrb[0].mxu0
          %v5057 = vadd.f32 %v4956, %v5056
          %v5058 = vpop.f32.mrb[0].mxu0
          %5059 = vdwg.mxu0
          %5060 = vmatprep.subr.mxu0 0.0
          %v5061 = vand.u32 %v3876, 4294901760
          %5062 = vmatpush1.msra.mxu0 %v5061
          %5063 = vmatprep.subr.mxu0 0.0
          %v5064 = vand.u32 %v3882, 4294901760
          %5065 = vmatpush1.msra.mxu0 %v5064
          %5066 = vmatprep.subr.mxu0 0.0
          %v5067 = vand.u32 %v3888, 4294901760
          %5068 = vmatpush1.msra.mxu0 %v5067
          %5069 = vmatprep.subr.mxu0 0.0
          %v5070 = vand.u32 %v3894, 4294901760
          %5071 = vmatpush1.msra.mxu0 %v5070
          %5072 = vmatprep.subr.mxu0 0.0
          %5073 = vmatpush1.msra.mxu0 0.0
          %5074 = vmatprep.subr.mxu0 0.0
          %5075 = vmatpush1.msra.mxu0 0.0
          %5076 = vmatprep.subr.mxu0 0.0
          %5077 = vmatpush1.msra.mxu0 0.0
          %5078 = vmatprep.subr.mxu0 0.0
          %5079 = vmatpush1.msra.mxu0 0.0
          %5080 = vmatprep.subr.mxu0 0.0
          %5081 = vmatpush1.msra.mxu0 0.0
          %5082 = vmatprep.subr.mxu0 0.0
          %5083 = vmatpush1.msra.mxu0 0.0
          %5084 = vmatprep.subr.mxu0 0.0
          %5085 = vmatpush1.msra.mxu0 0.0
          %5086 = vmatprep.subr.mxu0 0.0
          %5087 = vmatpush1.msra.mxu0 0.0
          %5088 = vmatprep.subr.mxu0 0.0
          %5089 = vmatpush1.msra.mxu0 0.0
          %5090 = vmatprep.subr.mxu0 0.0
          %5091 = vmatpush1.msra.mxu0 0.0
          %5092 = vmatprep.subr.mxu0 0.0
          %5093 = vmatpush1.msra.mxu0 0.0
          %5094 = vmatprep.subr.mxu0 0.0
          %5095 = vmatpush1.msra.mxu0 0.0
          %5096 = vmatprep.subr.mxu0 0.0
          %5097 = vmatpush1.msra.mxu0 0.0
          %5098 = vmatprep.subr.mxu0 0.0
          %5099 = vmatpush1.msra.mxu0 0.0
          %5100 = vmatprep.subr.mxu0 0.0
          %5101 = vmatpush1.msra.mxu0 0.0
          %5102 = vmatprep.subr.mxu0 0.0
          %5103 = vmatpush1.msra.mxu0 0.0
          %5104 = vmatprep.subr.mxu0 0.0
          %5105 = vmatpush1.msra.mxu0 0.0
          %5106 = vmatprep.subr.mxu0 0.0
          %5107 = vmatpush1.msra.mxu0 0.0
          %5108 = vmatprep.subr.mxu0 0.0
          %5109 = vmatpush1.msra.mxu0 0.0
          %5110 = vmatprep.subr.mxu0 0.0
          %5111 = vmatpush1.msra.mxu0 0.0
          %5112 = vmatprep.subr.mxu0 0.0
          %5113 = vmatpush1.msra.mxu0 0.0
          %5114 = vmatprep.subr.mxu0 0.0
          %5115 = vmatpush1.msra.mxu0 0.0
          %5116 = vmatprep.subr.mxu0 0.0
          %5117 = vmatpush1.msra.mxu0 0.0
          %5118 = vmatprep.subr.mxu0 0.0
          %5119 = vmatpush1.msra.mxu0 0.0
          %5120 = vmatprep.subr.mxu0 0.0
          %5121 = vmatpush1.msra.mxu0 0.0
          %5122 = vmatprep.subr.mxu0 0.0
          %5123 = vmatpush1.msra.mxu0 0.0
          %5124 = vmatprep.subr.mxu0 0.0
          %5125 = vmatpush1.msra.mxu0 0.0
          %5126 = vmatprep.subr.mxu0 0.0
          %5127 = vmatpush1.msra.mxu0 0.0
          %5128 = vmatprep.mubr.f32.mxu0 0.0
          %v5129 = vand.u32 %v4528, 4294901760
          %5130 = vmatmul.mubr.f32.gmra.mrb[0].mxu0 %v5129
          %v5131 = vpop.f32.mrb[0].mxu0
          %v5132 = vadd.f32 %v5039, %v5131
          %v5133 = vpop.f32.mrb[0].mxu0
          %5134 = vmatprep.mubr.f32.mxu0 0.0
          %v5135 = vand.u32 %v4531, 4294901760
          %5136 = vmatmul.mubr.f32.gmra.mrb[0].mxu0 %v5135
          %v5137 = vpop.f32.mrb[0].mxu0
          %v5138 = vadd.f32 %v5045, %v5137
          %v5139 = vpop.f32.mrb[0].mxu0
          %5140 = vmatprep.mubr.f32.mxu0 0.0
          %v5141 = vand.u32 %v4534, 4294901760
          %5142 = vmatmul.mubr.f32.gmra.mrb[0].mxu0 %v5141
          %v5143 = vpop.f32.mrb[0].mxu0
          %v5144 = vadd.f32 %v5051, %v5143
          %v5145 = vpop.f32.mrb[0].mxu0
          %5146 = vmatprep.mubr.f32.mxu0 0.0
          %v5147 = vand.u32 %v4537, 4294901760
          %5148 = vmatmul.mubr.f32.gmra.mrb[0].mxu0 %v5147
          %v5149 = vpop.f32.mrb[0].mxu0
          %v5150 = vadd.f32 %v5057, %v5149
          %v5151 = vpop.f32.mrb[0].mxu0
          %5152 = vdwg.mxu0
          %v5153 = vadd.f32 %v2254, %v5132
          %v5154 = vadd.f32 %v2255, %v5138
          %v5155 = vadd.f32 %v2256, %v5144
          %v5156 = vadd.f32 %v2257, %v5150
          %v5158 = vsel %vm2355, %v4506, 0
          %v5161 = vsel %vm2355, %v4512, 0
          %v5164 = vsel %vm2355, %v4518, 0
          %v5167 = vsel %vm2355, %v4524, 0
          %5169 = vmatprep.subr.mxu0 0.0
          %v5170 = vand.u32 %v5153, 4294901760
          %5171 = vmatpush1.msra.mxu0 %v5170
          %5172 = vmatprep.subr.mxu0 0.0
          %v5173 = vand.u32 %v5154, 4294901760
          %5174 = vmatpush1.msra.mxu0 %v5173
          %5175 = vmatprep.subr.mxu0 0.0
          %v5176 = vand.u32 %v5155, 4294901760
          %5177 = vmatpush1.msra.mxu0 %v5176
          %5178 = vmatprep.subr.mxu0 0.0
          %v5179 = vand.u32 %v5156, 4294901760
          %5180 = vmatpush1.msra.mxu0 %v5179
          %5181 = vmatprep.subr.mxu0 0.0
          %5182 = vmatpush1.msra.mxu0 0.0
          %5183 = vmatprep.subr.mxu0 0.0
          %5184 = vmatpush1.msra.mxu0 0.0
          %5185 = vmatprep.subr.mxu0 0.0
          %5186 = vmatpush1.msra.mxu0 0.0
          %5187 = vmatprep.subr.mxu0 0.0
          %5188 = vmatpush1.msra.mxu0 0.0
          %5189 = vmatprep.subr.mxu0 0.0
          %5190 = vmatpush1.msra.mxu0 0.0
          %5191 = vmatprep.subr.mxu0 0.0
          %5192 = vmatpush1.msra.mxu0 0.0
          %5193 = vmatprep.subr.mxu0 0.0
          %5194 = vmatpush1.msra.mxu0 0.0
          %5195 = vmatprep.subr.mxu0 0.0
          %5196 = vmatpush1.msra.mxu0 0.0
          %5197 = vmatprep.subr.mxu0 0.0
          %5198 = vmatpush1.msra.mxu0 0.0
          %5199 = vmatprep.subr.mxu0 0.0
          %5200 = vmatpush1.msra.mxu0 0.0
          %5201 = vmatprep.subr.mxu0 0.0
          %5202 = vmatpush1.msra.mxu0 0.0
          %5203 = vmatprep.subr.mxu0 0.0
          %5204 = vmatpush1.msra.mxu0 0.0
          %5205 = vmatprep.subr.mxu0 0.0
          %5206 = vmatpush1.msra.mxu0 0.0
          %5207 = vmatprep.subr.mxu0 0.0
          %5208 = vmatpush1.msra.mxu0 0.0
          %5209 = vmatprep.subr.mxu0 0.0
          %5210 = vmatpush1.msra.mxu0 0.0
          %5211 = vmatprep.subr.mxu0 0.0
          %5212 = vmatpush1.msra.mxu0 0.0
          %5213 = vmatprep.subr.mxu0 0.0
          %5214 = vmatpush1.msra.mxu0 0.0
          %5215 = vmatprep.subr.mxu0 0.0
          %5216 = vmatpush1.msra.mxu0 0.0
          %5217 = vmatprep.subr.mxu0 0.0
          %5218 = vmatpush1.msra.mxu0 0.0
          %5219 = vmatprep.subr.mxu0 0.0
          %5220 = vmatpush1.msra.mxu0 0.0
          %5221 = vmatprep.subr.mxu0 0.0
          %5222 = vmatpush1.msra.mxu0 0.0
          %5223 = vmatprep.subr.mxu0 0.0
          %5224 = vmatpush1.msra.mxu0 0.0
          %5225 = vmatprep.subr.mxu0 0.0
          %5226 = vmatpush1.msra.mxu0 0.0
          %5227 = vmatprep.subr.mxu0 0.0
          %5228 = vmatpush1.msra.mxu0 0.0
          %5229 = vmatprep.subr.mxu0 0.0
          %5230 = vmatpush1.msra.mxu0 0.0
          %5231 = vmatprep.subr.mxu0 0.0
          %5232 = vmatpush1.msra.mxu0 0.0
          %5233 = vmatprep.subr.mxu0 0.0
          %5234 = vmatpush1.msra.mxu0 0.0
          %5235 = vmatprep.subr.mxu0 0.0
          %5236 = vmatpush1.msra.mxu0 0.0
          %5237 = vmatprep.mubr.f32.mxu0 0.0
          %v5238 = vand.u32 %v5158, 4294901760
          %v5239 = vsub.f32 %v5158, %v5238
          %v5240 = vand.u32 %v5239, 4294901760
          %v5241 = vsub.f32 %v5239, %v5240
          %v5242 = vand.u32 %v5241, 4294901760
          %5243 = vmatmul.mubr.f32.gmra.mrb[0].mxu0 %v5242
          %v5244 = vpop.f32.mrb[0].mxu0
          %v5245 = vadd.f32 0.0, %v5244
          %v5246 = vpop.f32.mrb[0].mxu0
          %5247 = vmatprep.mubr.f32.mxu0 0.0
          %v5248 = vand.u32 %v5161, 4294901760
          %v5249 = vsub.f32 %v5161, %v5248
          %v5250 = vand.u32 %v5249, 4294901760
          %v5251 = vsub.f32 %v5249, %v5250
          %v5252 = vand.u32 %v5251, 4294901760
          %5253 = vmatmul.mubr.f32.gmra.mrb[0].mxu0 %v5252
          %v5254 = vpop.f32.mrb[0].mxu0
          %v5255 = vadd.f32 0.0, %v5254
          %v5256 = vpop.f32.mrb[0].mxu0
          %5257 = vmatprep.mubr.f32.mxu0 0.0
          %v5258 = vand.u32 %v5164, 4294901760
          %v5259 = vsub.f32 %v5164, %v5258
          %v5260 = vand.u32 %v5259, 4294901760
          %v5261 = vsub.f32 %v5259, %v5260
          %v5262 = vand.u32 %v5261, 4294901760
          %5263 = vmatmul.mubr.f32.gmra.mrb[0].mxu0 %v5262
          %v5264 = vpop.f32.mrb[0].mxu0
          %v5265 = vadd.f32 0.0, %v5264
          %v5266 = vpop.f32.mrb[0].mxu0
          %5267 = vmatprep.mubr.f32.mxu0 0.0
          %v5268 = vand.u32 %v5167, 4294901760
          %v5269 = vsub.f32 %v5167, %v5268
          %v5270 = vand.u32 %v5269, 4294901760
          %v5271 = vsub.f32 %v5269, %v5270
          %v5272 = vand.u32 %v5271, 4294901760
          %5273 = vmatmul.mubr.f32.gmra.mrb[0].mxu0 %v5272
          %v5274 = vpop.f32.mrb[0].mxu0
          %v5275 = vadd.f32 0.0, %v5274
          %v5276 = vpop.f32.mrb[0].mxu0
          %5277 = vdwg.mxu0
          %5278 = vmatprep.subr.mxu0 0.0
          %v5279 = vand.u32 %v5153, 4294901760
          %v5280 = vsub.f32 %v5153, %v5279
          %v5281 = vand.u32 %v5280, 4294901760
          %v5282 = vsub.f32 %v5280, %v5281
          %v5283 = vand.u32 %v5282, 4294901760
          %5284 = vmatpush1.msra.mxu0 %v5283
          %5285 = vmatprep.subr.mxu0 0.0
          %v5286 = vand.u32 %v5154, 4294901760
          %v5287 = vsub.f32 %v5154, %v5286
          %v5288 = vand.u32 %v5287, 4294901760
          %v5289 = vsub.f32 %v5287, %v5288
          %v5290 = vand.u32 %v5289, 4294901760
          %5291 = vmatpush1.msra.mxu0 %v5290
          %5292 = vmatprep.subr.mxu0 0.0
          %v5293 = vand.u32 %v5155, 4294901760
          %v5294 = vsub.f32 %v5155, %v5293
          %v5295 = vand.u32 %v5294, 4294901760
          %v5296 = vsub.f32 %v5294, %v5295
          %v5297 = vand.u32 %v5296, 4294901760
          %5298 = vmatpush1.msra.mxu0 %v5297
          %5299 = vmatprep.subr.mxu0 0.0
          %v5300 = vand.u32 %v5156, 4294901760
          %v5301 = vsub.f32 %v5156, %v5300
          %v5302 = vand.u32 %v5301, 4294901760
          %v5303 = vsub.f32 %v5301, %v5302
          %v5304 = vand.u32 %v5303, 4294901760
          %5305 = vmatpush1.msra.mxu0 %v5304
          %5306 = vmatprep.subr.mxu0 0.0
          %5307 = vmatpush1.msra.mxu0 0.0
          %5308 = vmatprep.subr.mxu0 0.0
          %5309 = vmatpush1.msra.mxu0 0.0
          %5310 = vmatprep.subr.mxu0 0.0
          %5311 = vmatpush1.msra.mxu0 0.0
          %5312 = vmatprep.subr.mxu0 0.0
          %5313 = vmatpush1.msra.mxu0 0.0
          %5314 = vmatprep.subr.mxu0 0.0
          %5315 = vmatpush1.msra.mxu0 0.0
          %5316 = vmatprep.subr.mxu0 0.0
          %5317 = vmatpush1.msra.mxu0 0.0
          %5318 = vmatprep.subr.mxu0 0.0
          %5319 = vmatpush1.msra.mxu0 0.0
          %5320 = vmatprep.subr.mxu0 0.0
          %5321 = vmatpush1.msra.mxu0 0.0
          %5322 = vmatprep.subr.mxu0 0.0
          %5323 = vmatpush1.msra.mxu0 0.0
          %5324 = vmatprep.subr.mxu0 0.0
          %5325 = vmatpush1.msra.mxu0 0.0
          %5326 = vmatprep.subr.mxu0 0.0
          %5327 = vmatpush1.msra.mxu0 0.0
          %5328 = vmatprep.subr.mxu0 0.0
          %5329 = vmatpush1.msra.mxu0 0.0
          %5330 = vmatprep.subr.mxu0 0.0
          %5331 = vmatpush1.msra.mxu0 0.0
          %5332 = vmatprep.subr.mxu0 0.0
          %5333 = vmatpush1.msra.mxu0 0.0
          %5334 = vmatprep.subr.mxu0 0.0
          %5335 = vmatpush1.msra.mxu0 0.0
          %5336 = vmatprep.subr.mxu0 0.0
          %5337 = vmatpush1.msra.mxu0 0.0
          %5338 = vmatprep.subr.mxu0 0.0
          %5339 = vmatpush1.msra.mxu0 0.0
          %5340 = vmatprep.subr.mxu0 0.0
          %5341 = vmatpush1.msra.mxu0 0.0
          %5342 = vmatprep.subr.mxu0 0.0
          %5343 = vmatpush1.msra.mxu0 0.0
          %5344 = vmatprep.subr.mxu0 0.0
          %5345 = vmatpush1.msra.mxu0 0.0
          %5346 = vmatprep.subr.mxu0 0.0
          %5347 = vmatpush1.msra.mxu0 0.0
          %5348 = vmatprep.subr.mxu0 0.0
          %5349 = vmatpush1.msra.mxu0 0.0
          %5350 = vmatprep.subr.mxu0 0.0
          %5351 = vmatpush1.msra.mxu0 0.0
          %5352 = vmatprep.subr.mxu0 0.0
          %5353 = vmatpush1.msra.mxu0 0.0
          %5354 = vmatprep.subr.mxu0 0.0
          %5355 = vmatpush1.msra.mxu0 0.0
          %5356 = vmatprep.subr.mxu0 0.0
          %5357 = vmatpush1.msra.mxu0 0.0
          %5358 = vmatprep.subr.mxu0 0.0
          %5359 = vmatpush1.msra.mxu0 0.0
          %5360 = vmatprep.subr.mxu0 0.0
          %5361 = vmatpush1.msra.mxu0 0.0
          %5362 = vmatprep.mubr.f32.mxu0 0.0
          %v5363 = vand.u32 %v5158, 4294901760
          %5364 = vmatmul.mubr.f32.gmra.mrb[0].mxu0 %v5363
          %v5365 = vpop.f32.mrb[0].mxu0
          %v5366 = vadd.f32 %v5245, %v5365
          %v5367 = vpop.f32.mrb[0].mxu0
          %5368 = vmatprep.mubr.f32.mxu0 0.0
          %v5369 = vand.u32 %v5161, 4294901760
          %5370 = vmatmul.mubr.f32.gmra.mrb[0].mxu0 %v5369
          %v5371 = vpop.f32.mrb[0].mxu0
          %v5372 = vadd.f32 %v5255, %v5371
          %v5373 = vpop.f32.mrb[0].mxu0
          %5374 = vmatprep.mubr.f32.mxu0 0.0
          %v5375 = vand.u32 %v5164, 4294901760
          %5376 = vmatmul.mubr.f32.gmra.mrb[0].mxu0 %v5375
          %v5377 = vpop.f32.mrb[0].mxu0
          %v5378 = vadd.f32 %v5265, %v5377
          %v5379 = vpop.f32.mrb[0].mxu0
          %5380 = vmatprep.mubr.f32.mxu0 0.0
          %v5381 = vand.u32 %v5167, 4294901760
          %5382 = vmatmul.mubr.f32.gmra.mrb[0].mxu0 %v5381
          %v5383 = vpop.f32.mrb[0].mxu0
          %v5384 = vadd.f32 %v5275, %v5383
          %v5385 = vpop.f32.mrb[0].mxu0
          %5386 = vdwg.mxu0
          %5387 = vmatprep.subr.mxu0 0.0
          %v5388 = vand.u32 %v5153, 4294901760
          %v5389 = vsub.f32 %v5153, %v5388
          %5390 = vmatpush1.msra.mxu0 %v5389
          %5391 = vmatprep.subr.mxu0 0.0
          %v5392 = vand.u32 %v5154, 4294901760
          %v5393 = vsub.f32 %v5154, %v5392
          %5394 = vmatpush1.msra.mxu0 %v5393
          %5395 = vmatprep.subr.mxu0 0.0
          %v5396 = vand.u32 %v5155, 4294901760
          %v5397 = vsub.f32 %v5155, %v5396
          %5398 = vmatpush1.msra.mxu0 %v5397
          %5399 = vmatprep.subr.mxu0 0.0
          %v5400 = vand.u32 %v5156, 4294901760
          %v5401 = vsub.f32 %v5156, %v5400
          %5402 = vmatpush1.msra.mxu0 %v5401
          %5403 = vmatprep.subr.mxu0 0.0
          %5404 = vmatpush1.msra.mxu0 0.0
          %5405 = vmatprep.subr.mxu0 0.0
          %5406 = vmatpush1.msra.mxu0 0.0
          %5407 = vmatprep.subr.mxu0 0.0
          %5408 = vmatpush1.msra.mxu0 0.0
          %5409 = vmatprep.subr.mxu0 0.0
          %5410 = vmatpush1.msra.mxu0 0.0
          %5411 = vmatprep.subr.mxu0 0.0
          %5412 = vmatpush1.msra.mxu0 0.0
          %5413 = vmatprep.subr.mxu0 0.0
          %5414 = vmatpush1.msra.mxu0 0.0
          %5415 = vmatprep.subr.mxu0 0.0
          %5416 = vmatpush1.msra.mxu0 0.0
          %5417 = vmatprep.subr.mxu0 0.0
          %5418 = vmatpush1.msra.mxu0 0.0
          %5419 = vmatprep.subr.mxu0 0.0
          %5420 = vmatpush1.msra.mxu0 0.0
          %5421 = vmatprep.subr.mxu0 0.0
          %5422 = vmatpush1.msra.mxu0 0.0
          %5423 = vmatprep.subr.mxu0 0.0
          %5424 = vmatpush1.msra.mxu0 0.0
          %5425 = vmatprep.subr.mxu0 0.0
          %5426 = vmatpush1.msra.mxu0 0.0
          %5427 = vmatprep.subr.mxu0 0.0
          %5428 = vmatpush1.msra.mxu0 0.0
          %5429 = vmatprep.subr.mxu0 0.0
          %5430 = vmatpush1.msra.mxu0 0.0
          %5431 = vmatprep.subr.mxu0 0.0
          %5432 = vmatpush1.msra.mxu0 0.0
          %5433 = vmatprep.subr.mxu0 0.0
          %5434 = vmatpush1.msra.mxu0 0.0
          %5435 = vmatprep.subr.mxu0 0.0
          %5436 = vmatpush1.msra.mxu0 0.0
          %5437 = vmatprep.subr.mxu0 0.0
          %5438 = vmatpush1.msra.mxu0 0.0
          %5439 = vmatprep.subr.mxu0 0.0
          %5440 = vmatpush1.msra.mxu0 0.0
          %5441 = vmatprep.subr.mxu0 0.0
          %5442 = vmatpush1.msra.mxu0 0.0
          %5443 = vmatprep.subr.mxu0 0.0
          %5444 = vmatpush1.msra.mxu0 0.0
          %5445 = vmatprep.subr.mxu0 0.0
          %5446 = vmatpush1.msra.mxu0 0.0
          %5447 = vmatprep.subr.mxu0 0.0
          %5448 = vmatpush1.msra.mxu0 0.0
          %5449 = vmatprep.subr.mxu0 0.0
          %5450 = vmatpush1.msra.mxu0 0.0
          %5451 = vmatprep.subr.mxu0 0.0
          %5452 = vmatpush1.msra.mxu0 0.0
          %5453 = vmatprep.subr.mxu0 0.0
          %5454 = vmatpush1.msra.mxu0 0.0
          %5455 = vmatprep.subr.mxu0 0.0
          %5456 = vmatpush1.msra.mxu0 0.0
          %5457 = vmatprep.subr.mxu0 0.0
          %5458 = vmatpush1.msra.mxu0 0.0
          %5459 = vmatprep.mubr.f32.mxu0 0.0
          %v5460 = vand.u32 %v5158, 4294901760
          %v5461 = vsub.f32 %v5158, %v5460
          %5462 = vmatmul.mubr.f32.gmra.mrb[0].mxu0 %v5461
          %v5463 = vpop.f32.mrb[0].mxu0
          %v5464 = vadd.f32 %v5366, %v5463
          %v5465 = vpop.f32.mrb[0].mxu0
          %5466 = vmatprep.mubr.f32.mxu0 0.0
          %v5467 = vand.u32 %v5161, 4294901760
          %v5468 = vsub.f32 %v5161, %v5467
          %5469 = vmatmul.mubr.f32.gmra.mrb[0].mxu0 %v5468
          %v5470 = vpop.f32.mrb[0].mxu0
          %v5471 = vadd.f32 %v5372, %v5470
          %v5472 = vpop.f32.mrb[0].mxu0
          %5473 = vmatprep.mubr.f32.mxu0 0.0
          %v5474 = vand.u32 %v5164, 4294901760
          %v5475 = vsub.f32 %v5164, %v5474
          %5476 = vmatmul.mubr.f32.gmra.mrb[0].mxu0 %v5475
          %v5477 = vpop.f32.mrb[0].mxu0
          %v5478 = vadd.f32 %v5378, %v5477
          %v5479 = vpop.f32.mrb[0].mxu0
          %5480 = vmatprep.mubr.f32.mxu0 0.0
          %v5481 = vand.u32 %v5167, 4294901760
          %v5482 = vsub.f32 %v5167, %v5481
          %5483 = vmatmul.mubr.f32.gmra.mrb[0].mxu0 %v5482
          %v5484 = vpop.f32.mrb[0].mxu0
          %v5485 = vadd.f32 %v5384, %v5484
          %v5486 = vpop.f32.mrb[0].mxu0
          %5487 = vdwg.mxu0
          %5488 = vmatprep.subr.mxu0 0.0
          %v5489 = vand.u32 %v5153, 4294901760
          %5490 = vmatpush1.msra.mxu0 %v5489
          %5491 = vmatprep.subr.mxu0 0.0
          %v5492 = vand.u32 %v5154, 4294901760
          %5493 = vmatpush1.msra.mxu0 %v5492
          %5494 = vmatprep.subr.mxu0 0.0
          %v5495 = vand.u32 %v5155, 4294901760
          %5496 = vmatpush1.msra.mxu0 %v5495
          %5497 = vmatprep.subr.mxu0 0.0
          %v5498 = vand.u32 %v5156, 4294901760
          %5499 = vmatpush1.msra.mxu0 %v5498
          %5500 = vmatprep.subr.mxu0 0.0
          %5501 = vmatpush1.msra.mxu0 0.0
          %5502 = vmatprep.subr.mxu0 0.0
          %5503 = vmatpush1.msra.mxu0 0.0
          %5504 = vmatprep.subr.mxu0 0.0
          %5505 = vmatpush1.msra.mxu0 0.0
          %5506 = vmatprep.subr.mxu0 0.0
          %5507 = vmatpush1.msra.mxu0 0.0
          %5508 = vmatprep.subr.mxu0 0.0
          %5509 = vmatpush1.msra.mxu0 0.0
          %5510 = vmatprep.subr.mxu0 0.0
          %5511 = vmatpush1.msra.mxu0 0.0
          %5512 = vmatprep.subr.mxu0 0.0
          %5513 = vmatpush1.msra.mxu0 0.0
          %5514 = vmatprep.subr.mxu0 0.0
          %5515 = vmatpush1.msra.mxu0 0.0
          %5516 = vmatprep.subr.mxu0 0.0
          %5517 = vmatpush1.msra.mxu0 0.0
          %5518 = vmatprep.subr.mxu0 0.0
          %5519 = vmatpush1.msra.mxu0 0.0
          %5520 = vmatprep.subr.mxu0 0.0
          %5521 = vmatpush1.msra.mxu0 0.0
          %5522 = vmatprep.subr.mxu0 0.0
          %5523 = vmatpush1.msra.mxu0 0.0
          %5524 = vmatprep.subr.mxu0 0.0
          %5525 = vmatpush1.msra.mxu0 0.0
          %5526 = vmatprep.subr.mxu0 0.0
          %5527 = vmatpush1.msra.mxu0 0.0
          %5528 = vmatprep.subr.mxu0 0.0
          %5529 = vmatpush1.msra.mxu0 0.0
          %5530 = vmatprep.subr.mxu0 0.0
          %5531 = vmatpush1.msra.mxu0 0.0
          %5532 = vmatprep.subr.mxu0 0.0
          %5533 = vmatpush1.msra.mxu0 0.0
          %5534 = vmatprep.subr.mxu0 0.0
          %5535 = vmatpush1.msra.mxu0 0.0
          %5536 = vmatprep.subr.mxu0 0.0
          %5537 = vmatpush1.msra.mxu0 0.0
          %5538 = vmatprep.subr.mxu0 0.0
          %5539 = vmatpush1.msra.mxu0 0.0
          %5540 = vmatprep.subr.mxu0 0.0
          %5541 = vmatpush1.msra.mxu0 0.0
          %5542 = vmatprep.subr.mxu0 0.0
          %5543 = vmatpush1.msra.mxu0 0.0
          %5544 = vmatprep.subr.mxu0 0.0
          %5545 = vmatpush1.msra.mxu0 0.0
          %5546 = vmatprep.subr.mxu0 0.0
          %5547 = vmatpush1.msra.mxu0 0.0
          %5548 = vmatprep.subr.mxu0 0.0
          %5549 = vmatpush1.msra.mxu0 0.0
          %5550 = vmatprep.subr.mxu0 0.0
          %5551 = vmatpush1.msra.mxu0 0.0
          %5552 = vmatprep.subr.mxu0 0.0
          %5553 = vmatpush1.msra.mxu0 0.0
          %5554 = vmatprep.subr.mxu0 0.0
          %5555 = vmatpush1.msra.mxu0 0.0
          %5556 = vmatprep.mubr.f32.mxu0 0.0
          %v5557 = vand.u32 %v5158, 4294901760
          %v5558 = vsub.f32 %v5158, %v5557
          %v5559 = vand.u32 %v5558, 4294901760
          %5560 = vmatmul.mubr.f32.gmra.mrb[0].mxu0 %v5559
          %v5561 = vpop.f32.mrb[0].mxu0
          %v5562 = vadd.f32 %v5464, %v5561
          %v5563 = vpop.f32.mrb[0].mxu0
          %5564 = vmatprep.mubr.f32.mxu0 0.0
          %v5565 = vand.u32 %v5161, 4294901760
          %v5566 = vsub.f32 %v5161, %v5565
          %v5567 = vand.u32 %v5566, 4294901760
          %5568 = vmatmul.mubr.f32.gmra.mrb[0].mxu0 %v5567
          %v5569 = vpop.f32.mrb[0].mxu0
          %v5570 = vadd.f32 %v5471, %v5569
          %v5571 = vpop.f32.mrb[0].mxu0
          %5572 = vmatprep.mubr.f32.mxu0 0.0
          %v5573 = vand.u32 %v5164, 4294901760
          %v5574 = vsub.f32 %v5164, %v5573
          %v5575 = vand.u32 %v5574, 4294901760
          %5576 = vmatmul.mubr.f32.gmra.mrb[0].mxu0 %v5575
          %v5577 = vpop.f32.mrb[0].mxu0
          %v5578 = vadd.f32 %v5478, %v5577
          %v5579 = vpop.f32.mrb[0].mxu0
          %5580 = vmatprep.mubr.f32.mxu0 0.0
          %v5581 = vand.u32 %v5167, 4294901760
          %v5582 = vsub.f32 %v5167, %v5581
          %v5583 = vand.u32 %v5582, 4294901760
          %5584 = vmatmul.mubr.f32.gmra.mrb[0].mxu0 %v5583
          %v5585 = vpop.f32.mrb[0].mxu0
          %v5586 = vadd.f32 %v5485, %v5585
          %v5587 = vpop.f32.mrb[0].mxu0
          %5588 = vdwg.mxu0
          %5589 = vmatprep.subr.mxu0 0.0
          %v5590 = vand.u32 %v5153, 4294901760
          %v5591 = vsub.f32 %v5153, %v5590
          %v5592 = vand.u32 %v5591, 4294901760
          %5593 = vmatpush1.msra.mxu0 %v5592
          %5594 = vmatprep.subr.mxu0 0.0
          %v5595 = vand.u32 %v5154, 4294901760
          %v5596 = vsub.f32 %v5154, %v5595
          %v5597 = vand.u32 %v5596, 4294901760
          %5598 = vmatpush1.msra.mxu0 %v5597
          %5599 = vmatprep.subr.mxu0 0.0
          %v5600 = vand.u32 %v5155, 4294901760
          %v5601 = vsub.f32 %v5155, %v5600
          %v5602 = vand.u32 %v5601, 4294901760
          %5603 = vmatpush1.msra.mxu0 %v5602
          %5604 = vmatprep.subr.mxu0 0.0
          %v5605 = vand.u32 %v5156, 4294901760
          %v5606 = vsub.f32 %v5156, %v5605
          %v5607 = vand.u32 %v5606, 4294901760
          %5608 = vmatpush1.msra.mxu0 %v5607
          %5609 = vmatprep.subr.mxu0 0.0
          %5610 = vmatpush1.msra.mxu0 0.0
          %5611 = vmatprep.subr.mxu0 0.0
          %5612 = vmatpush1.msra.mxu0 0.0
          %5613 = vmatprep.subr.mxu0 0.0
          %5614 = vmatpush1.msra.mxu0 0.0
          %5615 = vmatprep.subr.mxu0 0.0
          %5616 = vmatpush1.msra.mxu0 0.0
          %5617 = vmatprep.subr.mxu0 0.0
          %5618 = vmatpush1.msra.mxu0 0.0
          %5619 = vmatprep.subr.mxu0 0.0
          %5620 = vmatpush1.msra.mxu0 0.0
          %5621 = vmatprep.subr.mxu0 0.0
          %5622 = vmatpush1.msra.mxu0 0.0
          %5623 = vmatprep.subr.mxu0 0.0
          %5624 = vmatpush1.msra.mxu0 0.0
          %5625 = vmatprep.subr.mxu0 0.0
          %5626 = vmatpush1.msra.mxu0 0.0
          %5627 = vmatprep.subr.mxu0 0.0
          %5628 = vmatpush1.msra.mxu0 0.0
          %5629 = vmatprep.subr.mxu0 0.0
          %5630 = vmatpush1.msra.mxu0 0.0
          %5631 = vmatprep.subr.mxu0 0.0
          %5632 = vmatpush1.msra.mxu0 0.0
          %5633 = vmatprep.subr.mxu0 0.0
          %5634 = vmatpush1.msra.mxu0 0.0
          %5635 = vmatprep.subr.mxu0 0.0
          %5636 = vmatpush1.msra.mxu0 0.0
          %5637 = vmatprep.subr.mxu0 0.0
          %5638 = vmatpush1.msra.mxu0 0.0
          %5639 = vmatprep.subr.mxu0 0.0
          %5640 = vmatpush1.msra.mxu0 0.0
          %5641 = vmatprep.subr.mxu0 0.0
          %5642 = vmatpush1.msra.mxu0 0.0
          %5643 = vmatprep.subr.mxu0 0.0
          %5644 = vmatpush1.msra.mxu0 0.0
          %5645 = vmatprep.subr.mxu0 0.0
          %5646 = vmatpush1.msra.mxu0 0.0
          %5647 = vmatprep.subr.mxu0 0.0
          %5648 = vmatpush1.msra.mxu0 0.0
          %5649 = vmatprep.subr.mxu0 0.0
          %5650 = vmatpush1.msra.mxu0 0.0
          %5651 = vmatprep.subr.mxu0 0.0
          %5652 = vmatpush1.msra.mxu0 0.0
          %5653 = vmatprep.subr.mxu0 0.0
          %5654 = vmatpush1.msra.mxu0 0.0
          %5655 = vmatprep.subr.mxu0 0.0
          %5656 = vmatpush1.msra.mxu0 0.0
          %5657 = vmatprep.subr.mxu0 0.0
          %5658 = vmatpush1.msra.mxu0 0.0
          %5659 = vmatprep.subr.mxu0 0.0
          %5660 = vmatpush1.msra.mxu0 0.0
          %5661 = vmatprep.subr.mxu0 0.0
          %5662 = vmatpush1.msra.mxu0 0.0
          %5663 = vmatprep.subr.mxu0 0.0
          %5664 = vmatpush1.msra.mxu0 0.0
          %5665 = vmatprep.mubr.f32.mxu0 0.0
          %v5666 = vand.u32 %v5158, 4294901760
          %5667 = vmatmul.mubr.f32.gmra.mrb[0].mxu0 %v5666
          %v5668 = vpop.f32.mrb[0].mxu0
          %v5669 = vadd.f32 %v5562, %v5668
          %v5670 = vpop.f32.mrb[0].mxu0
          %5671 = vmatprep.mubr.f32.mxu0 0.0
          %v5672 = vand.u32 %v5161, 4294901760
          %5673 = vmatmul.mubr.f32.gmra.mrb[0].mxu0 %v5672
          %v5674 = vpop.f32.mrb[0].mxu0
          %v5675 = vadd.f32 %v5570, %v5674
          %v5676 = vpop.f32.mrb[0].mxu0
          %5677 = vmatprep.mubr.f32.mxu0 0.0
          %v5678 = vand.u32 %v5164, 4294901760
          %5679 = vmatmul.mubr.f32.gmra.mrb[0].mxu0 %v5678
          %v5680 = vpop.f32.mrb[0].mxu0
          %v5681 = vadd.f32 %v5578, %v5680
          %v5682 = vpop.f32.mrb[0].mxu0
          %5683 = vmatprep.mubr.f32.mxu0 0.0
          %v5684 = vand.u32 %v5167, 4294901760
          %5685 = vmatmul.mubr.f32.gmra.mrb[0].mxu0 %v5684
          %v5686 = vpop.f32.mrb[0].mxu0
          %v5687 = vadd.f32 %v5586, %v5686
          %v5688 = vpop.f32.mrb[0].mxu0
          %5689 = vdwg.mxu0
          %5690 = vmatprep.subr.mxu0 0.0
          %v5691 = vand.u32 %v5153, 4294901760
          %5692 = vmatpush1.msra.mxu0 %v5691
          %5693 = vmatprep.subr.mxu0 0.0
          %v5694 = vand.u32 %v5154, 4294901760
          %5695 = vmatpush1.msra.mxu0 %v5694
          %5696 = vmatprep.subr.mxu0 0.0
          %v5697 = vand.u32 %v5155, 4294901760
          %5698 = vmatpush1.msra.mxu0 %v5697
          %5699 = vmatprep.subr.mxu0 0.0
          %v5700 = vand.u32 %v5156, 4294901760
          %5701 = vmatpush1.msra.mxu0 %v5700
          %5702 = vmatprep.subr.mxu0 0.0
          %5703 = vmatpush1.msra.mxu0 0.0
          %5704 = vmatprep.subr.mxu0 0.0
          %5705 = vmatpush1.msra.mxu0 0.0
          %5706 = vmatprep.subr.mxu0 0.0
          %5707 = vmatpush1.msra.mxu0 0.0
          %5708 = vmatprep.subr.mxu0 0.0
          %5709 = vmatpush1.msra.mxu0 0.0
          %5710 = vmatprep.subr.mxu0 0.0
          %5711 = vmatpush1.msra.mxu0 0.0
          %5712 = vmatprep.subr.mxu0 0.0
          %5713 = vmatpush1.msra.mxu0 0.0
          %5714 = vmatprep.subr.mxu0 0.0
          %5715 = vmatpush1.msra.mxu0 0.0
          %5716 = vmatprep.subr.mxu0 0.0
          %5717 = vmatpush1.msra.mxu0 0.0
          %5718 = vmatprep.subr.mxu0 0.0
          %5719 = vmatpush1.msra.mxu0 0.0
          %5720 = vmatprep.subr.mxu0 0.0
          %5721 = vmatpush1.msra.mxu0 0.0
          %5722 = vmatprep.subr.mxu0 0.0
          %5723 = vmatpush1.msra.mxu0 0.0
          %5724 = vmatprep.subr.mxu0 0.0
          %5725 = vmatpush1.msra.mxu0 0.0
          %5726 = vmatprep.subr.mxu0 0.0
          %5727 = vmatpush1.msra.mxu0 0.0
          %5728 = vmatprep.subr.mxu0 0.0
          %5729 = vmatpush1.msra.mxu0 0.0
          %5730 = vmatprep.subr.mxu0 0.0
          %5731 = vmatpush1.msra.mxu0 0.0
          %5732 = vmatprep.subr.mxu0 0.0
          %5733 = vmatpush1.msra.mxu0 0.0
          %5734 = vmatprep.subr.mxu0 0.0
          %5735 = vmatpush1.msra.mxu0 0.0
          %5736 = vmatprep.subr.mxu0 0.0
          %5737 = vmatpush1.msra.mxu0 0.0
          %5738 = vmatprep.subr.mxu0 0.0
          %5739 = vmatpush1.msra.mxu0 0.0
          %5740 = vmatprep.subr.mxu0 0.0
          %5741 = vmatpush1.msra.mxu0 0.0
          %5742 = vmatprep.subr.mxu0 0.0
          %5743 = vmatpush1.msra.mxu0 0.0
          %5744 = vmatprep.subr.mxu0 0.0
          %5745 = vmatpush1.msra.mxu0 0.0
          %5746 = vmatprep.subr.mxu0 0.0
          %5747 = vmatpush1.msra.mxu0 0.0
          %5748 = vmatprep.subr.mxu0 0.0
          %5749 = vmatpush1.msra.mxu0 0.0
          %5750 = vmatprep.subr.mxu0 0.0
          %5751 = vmatpush1.msra.mxu0 0.0
          %5752 = vmatprep.subr.mxu0 0.0
          %5753 = vmatpush1.msra.mxu0 0.0
          %5754 = vmatprep.subr.mxu0 0.0
          %5755 = vmatpush1.msra.mxu0 0.0
          %5756 = vmatprep.subr.mxu0 0.0
          %5757 = vmatpush1.msra.mxu0 0.0
          %5758 = vmatprep.mubr.f32.mxu0 0.0
          %v5759 = vand.u32 %v5158, 4294901760
          %5760 = vmatmul.mubr.f32.gmra.mrb[0].mxu0 %v5759
          %v5761 = vpop.f32.mrb[0].mxu0
          %v5762 = vadd.f32 %v5669, %v5761
          %v5763 = vpop.f32.mrb[0].mxu0
          %5764 = vmatprep.mubr.f32.mxu0 0.0
          %v5765 = vand.u32 %v5161, 4294901760
          %5766 = vmatmul.mubr.f32.gmra.mrb[0].mxu0 %v5765
          %v5767 = vpop.f32.mrb[0].mxu0
          %v5768 = vadd.f32 %v5675, %v5767
          %v5769 = vpop.f32.mrb[0].mxu0
          %5770 = vmatprep.mubr.f32.mxu0 0.0
          %v5771 = vand.u32 %v5164, 4294901760
          %5772 = vmatmul.mubr.f32.gmra.mrb[0].mxu0 %v5771
          %v5773 = vpop.f32.mrb[0].mxu0
          %v5774 = vadd.f32 %v5681, %v5773
          %v5775 = vpop.f32.mrb[0].mxu0
          %5776 = vmatprep.mubr.f32.mxu0 0.0
          %v5777 = vand.u32 %v5167, 4294901760
          %5778 = vmatmul.mubr.f32.gmra.mrb[0].mxu0 %v5777
          %v5779 = vpop.f32.mrb[0].mxu0
          %v5780 = vadd.f32 %v5687, %v5779
          %v5781 = vpop.f32.mrb[0].mxu0
          %5782 = vdwg.mxu0
          %v5784 = vsel %vm2355, %v5132, 0
          %v5787 = vsel %vm2355, %v5138, 0
          %v5790 = vsel %vm2355, %v5144, 0
          %v5793 = vsel %vm2355, %v5150, 0
          %5795 = vmatprep.subr.mxu0 0.0
          %v5796 = vand.u32 %v5132, 4294901760
          %5797 = vmatpush1.msra.mxu0 %v5796
          %5798 = vmatprep.subr.mxu0 0.0
          %v5799 = vand.u32 %v5138, 4294901760
          %5800 = vmatpush1.msra.mxu0 %v5799
          %5801 = vmatprep.subr.mxu0 0.0
          %v5802 = vand.u32 %v5144, 4294901760
          %5803 = vmatpush1.msra.mxu0 %v5802
          %5804 = vmatprep.subr.mxu0 0.0
          %v5805 = vand.u32 %v5150, 4294901760
          %5806 = vmatpush1.msra.mxu0 %v5805
          %5807 = vmatprep.subr.mxu0 0.0
          %5808 = vmatpush1.msra.mxu0 0.0
          %5809 = vmatprep.subr.mxu0 0.0
          %5810 = vmatpush1.msra.mxu0 0.0
          %5811 = vmatprep.subr.mxu0 0.0
          %5812 = vmatpush1.msra.mxu0 0.0
          %5813 = vmatprep.subr.mxu0 0.0
          %5814 = vmatpush1.msra.mxu0 0.0
          %5815 = vmatprep.subr.mxu0 0.0
          %5816 = vmatpush1.msra.mxu0 0.0
          %5817 = vmatprep.subr.mxu0 0.0
          %5818 = vmatpush1.msra.mxu0 0.0
          %5819 = vmatprep.subr.mxu0 0.0
          %5820 = vmatpush1.msra.mxu0 0.0
          %5821 = vmatprep.subr.mxu0 0.0
          %5822 = vmatpush1.msra.mxu0 0.0
          %5823 = vmatprep.subr.mxu0 0.0
          %5824 = vmatpush1.msra.mxu0 0.0
          %5825 = vmatprep.subr.mxu0 0.0
          %5826 = vmatpush1.msra.mxu0 0.0
          %5827 = vmatprep.subr.mxu0 0.0
          %5828 = vmatpush1.msra.mxu0 0.0
          %5829 = vmatprep.subr.mxu0 0.0
          %5830 = vmatpush1.msra.mxu0 0.0
          %5831 = vmatprep.subr.mxu0 0.0
          %5832 = vmatpush1.msra.mxu0 0.0
          %5833 = vmatprep.subr.mxu0 0.0
          %5834 = vmatpush1.msra.mxu0 0.0
          %5835 = vmatprep.subr.mxu0 0.0
          %5836 = vmatpush1.msra.mxu0 0.0
          %5837 = vmatprep.subr.mxu0 0.0
          %5838 = vmatpush1.msra.mxu0 0.0
          %5839 = vmatprep.subr.mxu0 0.0
          %5840 = vmatpush1.msra.mxu0 0.0
          %5841 = vmatprep.subr.mxu0 0.0
          %5842 = vmatpush1.msra.mxu0 0.0
          %5843 = vmatprep.subr.mxu0 0.0
          %5844 = vmatpush1.msra.mxu0 0.0
          %5845 = vmatprep.subr.mxu0 0.0
          %5846 = vmatpush1.msra.mxu0 0.0
          %5847 = vmatprep.subr.mxu0 0.0
          %5848 = vmatpush1.msra.mxu0 0.0
          %5849 = vmatprep.subr.mxu0 0.0
          %5850 = vmatpush1.msra.mxu0 0.0
          %5851 = vmatprep.subr.mxu0 0.0
          %5852 = vmatpush1.msra.mxu0 0.0
          %5853 = vmatprep.subr.mxu0 0.0
          %5854 = vmatpush1.msra.mxu0 0.0
          %5855 = vmatprep.subr.mxu0 0.0
          %5856 = vmatpush1.msra.mxu0 0.0
          %5857 = vmatprep.subr.mxu0 0.0
          %5858 = vmatpush1.msra.mxu0 0.0
          %5859 = vmatprep.subr.mxu0 0.0
          %5860 = vmatpush1.msra.mxu0 0.0
          %5861 = vmatprep.subr.mxu0 0.0
          %5862 = vmatpush1.msra.mxu0 0.0
          %5863 = vmatprep.mubr.f32.mxu0 0.0
          %v5864 = vand.u32 %v5784, 4294901760
          %v5865 = vsub.f32 %v5784, %v5864
          %v5866 = vand.u32 %v5865, 4294901760
          %v5867 = vsub.f32 %v5865, %v5866
          %v5868 = vand.u32 %v5867, 4294901760
          %5869 = vmatmul.mubr.f32.gmra.mrb[0].mxu0 %v5868
          %v5870 = vpop.f32.mrb[0].mxu0
          %v5871 = vadd.f32 0.0, %v5870
          %v5872 = vpop.f32.mrb[0].mxu0
          %5873 = vmatprep.mubr.f32.mxu0 0.0
          %v5874 = vand.u32 %v5787, 4294901760
          %v5875 = vsub.f32 %v5787, %v5874
          %v5876 = vand.u32 %v5875, 4294901760
          %v5877 = vsub.f32 %v5875, %v5876
          %v5878 = vand.u32 %v5877, 4294901760
          %5879 = vmatmul.mubr.f32.gmra.mrb[0].mxu0 %v5878
          %v5880 = vpop.f32.mrb[0].mxu0
          %v5881 = vadd.f32 0.0, %v5880
          %v5882 = vpop.f32.mrb[0].mxu0
          %5883 = vmatprep.mubr.f32.mxu0 0.0
          %v5884 = vand.u32 %v5790, 4294901760
          %v5885 = vsub.f32 %v5790, %v5884
          %v5886 = vand.u32 %v5885, 4294901760
          %v5887 = vsub.f32 %v5885, %v5886
          %v5888 = vand.u32 %v5887, 4294901760
          %5889 = vmatmul.mubr.f32.gmra.mrb[0].mxu0 %v5888
          %v5890 = vpop.f32.mrb[0].mxu0
          %v5891 = vadd.f32 0.0, %v5890
          %v5892 = vpop.f32.mrb[0].mxu0
          %5893 = vmatprep.mubr.f32.mxu0 0.0
          %v5894 = vand.u32 %v5793, 4294901760
          %v5895 = vsub.f32 %v5793, %v5894
          %v5896 = vand.u32 %v5895, 4294901760
          %v5897 = vsub.f32 %v5895, %v5896
          %v5898 = vand.u32 %v5897, 4294901760
          %5899 = vmatmul.mubr.f32.gmra.mrb[0].mxu0 %v5898
          %v5900 = vpop.f32.mrb[0].mxu0
          %v5901 = vadd.f32 0.0, %v5900
          %v5902 = vpop.f32.mrb[0].mxu0
          %5903 = vdwg.mxu0
          %5904 = vmatprep.subr.mxu0 0.0
          %v5905 = vand.u32 %v5132, 4294901760
          %v5906 = vsub.f32 %v5132, %v5905
          %v5907 = vand.u32 %v5906, 4294901760
          %v5908 = vsub.f32 %v5906, %v5907
          %v5909 = vand.u32 %v5908, 4294901760
          %5910 = vmatpush1.msra.mxu0 %v5909
          %5911 = vmatprep.subr.mxu0 0.0
          %v5912 = vand.u32 %v5138, 4294901760
          %v5913 = vsub.f32 %v5138, %v5912
          %v5914 = vand.u32 %v5913, 4294901760
          %v5915 = vsub.f32 %v5913, %v5914
          %v5916 = vand.u32 %v5915, 4294901760
          %5917 = vmatpush1.msra.mxu0 %v5916
          %5918 = vmatprep.subr.mxu0 0.0
          %v5919 = vand.u32 %v5144, 4294901760
          %v5920 = vsub.f32 %v5144, %v5919
          %v5921 = vand.u32 %v5920, 4294901760
          %v5922 = vsub.f32 %v5920, %v5921
          %v5923 = vand.u32 %v5922, 4294901760
          %5924 = vmatpush1.msra.mxu0 %v5923
          %5925 = vmatprep.subr.mxu0 0.0
          %v5926 = vand.u32 %v5150, 4294901760
          %v5927 = vsub.f32 %v5150, %v5926
          %v5928 = vand.u32 %v5927, 4294901760
          %v5929 = vsub.f32 %v5927, %v5928
          %v5930 = vand.u32 %v5929, 4294901760
          %5931 = vmatpush1.msra.mxu0 %v5930
          %5932 = vmatprep.subr.mxu0 0.0
          %5933 = vmatpush1.msra.mxu0 0.0
          %5934 = vmatprep.subr.mxu0 0.0
          %5935 = vmatpush1.msra.mxu0 0.0
          %5936 = vmatprep.subr.mxu0 0.0
          %5937 = vmatpush1.msra.mxu0 0.0
          %5938 = vmatprep.subr.mxu0 0.0
          %5939 = vmatpush1.msra.mxu0 0.0
          %5940 = vmatprep.subr.mxu0 0.0
          %5941 = vmatpush1.msra.mxu0 0.0
          %5942 = vmatprep.subr.mxu0 0.0
          %5943 = vmatpush1.msra.mxu0 0.0
          %5944 = vmatprep.subr.mxu0 0.0
          %5945 = vmatpush1.msra.mxu0 0.0
          %5946 = vmatprep.subr.mxu0 0.0
          %5947 = vmatpush1.msra.mxu0 0.0
          %5948 = vmatprep.subr.mxu0 0.0
          %5949 = vmatpush1.msra.mxu0 0.0
          %5950 = vmatprep.subr.mxu0 0.0
          %5951 = vmatpush1.msra.mxu0 0.0
          %5952 = vmatprep.subr.mxu0 0.0
          %5953 = vmatpush1.msra.mxu0 0.0
          %5954 = vmatprep.subr.mxu0 0.0
          %5955 = vmatpush1.msra.mxu0 0.0
          %5956 = vmatprep.subr.mxu0 0.0
          %5957 = vmatpush1.msra.mxu0 0.0
          %5958 = vmatprep.subr.mxu0 0.0
          %5959 = vmatpush1.msra.mxu0 0.0
          %5960 = vmatprep.subr.mxu0 0.0
          %5961 = vmatpush1.msra.mxu0 0.0
          %5962 = vmatprep.subr.mxu0 0.0
          %5963 = vmatpush1.msra.mxu0 0.0
          %5964 = vmatprep.subr.mxu0 0.0
          %5965 = vmatpush1.msra.mxu0 0.0
          %5966 = vmatprep.subr.mxu0 0.0
          %5967 = vmatpush1.msra.mxu0 0.0
          %5968 = vmatprep.subr.mxu0 0.0
          %5969 = vmatpush1.msra.mxu0 0.0
          %5970 = vmatprep.subr.mxu0 0.0
          %5971 = vmatpush1.msra.mxu0 0.0
          %5972 = vmatprep.subr.mxu0 0.0
          %5973 = vmatpush1.msra.mxu0 0.0
          %5974 = vmatprep.subr.mxu0 0.0
          %5975 = vmatpush1.msra.mxu0 0.0
          %5976 = vmatprep.subr.mxu0 0.0
          %5977 = vmatpush1.msra.mxu0 0.0
          %5978 = vmatprep.subr.mxu0 0.0
          %5979 = vmatpush1.msra.mxu0 0.0
          %5980 = vmatprep.subr.mxu0 0.0
          %5981 = vmatpush1.msra.mxu0 0.0
          %5982 = vmatprep.subr.mxu0 0.0
          %5983 = vmatpush1.msra.mxu0 0.0
          %5984 = vmatprep.subr.mxu0 0.0
          %5985 = vmatpush1.msra.mxu0 0.0
          %5986 = vmatprep.subr.mxu0 0.0
          %5987 = vmatpush1.msra.mxu0 0.0
          %5988 = vmatprep.mubr.f32.mxu0 0.0
          %v5989 = vand.u32 %v5784, 4294901760
          %5990 = vmatmul.mubr.f32.gmra.mrb[0].mxu0 %v5989
          %v5991 = vpop.f32.mrb[0].mxu0
          %v5992 = vadd.f32 %v5871, %v5991
          %v5993 = vpop.f32.mrb[0].mxu0
          %5994 = vmatprep.mubr.f32.mxu0 0.0
          %v5995 = vand.u32 %v5787, 4294901760
          %5996 = vmatmul.mubr.f32.gmra.mrb[0].mxu0 %v5995
          %v5997 = vpop.f32.mrb[0].mxu0
          %v5998 = vadd.f32 %v5881, %v5997
          %v5999 = vpop.f32.mrb[0].mxu0
          %6000 = vmatprep.mubr.f32.mxu0 0.0
          %v6001 = vand.u32 %v5790, 4294901760
          %6002 = vmatmul.mubr.f32.gmra.mrb[0].mxu0 %v6001
          %v6003 = vpop.f32.mrb[0].mxu0
          %v6004 = vadd.f32 %v5891, %v6003
          %v6005 = vpop.f32.mrb[0].mxu0
          %6006 = vmatprep.mubr.f32.mxu0 0.0
          %v6007 = vand.u32 %v5793, 4294901760
          %6008 = vmatmul.mubr.f32.gmra.mrb[0].mxu0 %v6007
          %v6009 = vpop.f32.mrb[0].mxu0
          %v6010 = vadd.f32 %v5901, %v6009
          %v6011 = vpop.f32.mrb[0].mxu0
          %6012 = vdwg.mxu0
          %6013 = vmatprep.subr.mxu0 0.0
          %v6014 = vand.u32 %v5132, 4294901760
          %v6015 = vsub.f32 %v5132, %v6014
          %6016 = vmatpush1.msra.mxu0 %v6015
          %6017 = vmatprep.subr.mxu0 0.0
          %v6018 = vand.u32 %v5138, 4294901760
          %v6019 = vsub.f32 %v5138, %v6018
          %6020 = vmatpush1.msra.mxu0 %v6019
          %6021 = vmatprep.subr.mxu0 0.0
          %v6022 = vand.u32 %v5144, 4294901760
          %v6023 = vsub.f32 %v5144, %v6022
          %6024 = vmatpush1.msra.mxu0 %v6023
          %6025 = vmatprep.subr.mxu0 0.0
          %v6026 = vand.u32 %v5150, 4294901760
          %v6027 = vsub.f32 %v5150, %v6026
          %6028 = vmatpush1.msra.mxu0 %v6027
          %6029 = vmatprep.subr.mxu0 0.0
          %6030 = vmatpush1.msra.mxu0 0.0
          %6031 = vmatprep.subr.mxu0 0.0
          %6032 = vmatpush1.msra.mxu0 0.0
          %6033 = vmatprep.subr.mxu0 0.0
          %6034 = vmatpush1.msra.mxu0 0.0
          %6035 = vmatprep.subr.mxu0 0.0
          %6036 = vmatpush1.msra.mxu0 0.0
          %6037 = vmatprep.subr.mxu0 0.0
          %6038 = vmatpush1.msra.mxu0 0.0
          %6039 = vmatprep.subr.mxu0 0.0
          %6040 = vmatpush1.msra.mxu0 0.0
          %6041 = vmatprep.subr.mxu0 0.0
          %6042 = vmatpush1.msra.mxu0 0.0
          %6043 = vmatprep.subr.mxu0 0.0
          %6044 = vmatpush1.msra.mxu0 0.0
          %6045 = vmatprep.subr.mxu0 0.0
          %6046 = vmatpush1.msra.mxu0 0.0
          %6047 = vmatprep.subr.mxu0 0.0
          %6048 = vmatpush1.msra.mxu0 0.0
          %6049 = vmatprep.subr.mxu0 0.0
          %6050 = vmatpush1.msra.mxu0 0.0
          %6051 = vmatprep.subr.mxu0 0.0
          %6052 = vmatpush1.msra.mxu0 0.0
          %6053 = vmatprep.subr.mxu0 0.0
          %6054 = vmatpush1.msra.mxu0 0.0
          %6055 = vmatprep.subr.mxu0 0.0
          %6056 = vmatpush1.msra.mxu0 0.0
          %6057 = vmatprep.subr.mxu0 0.0
          %6058 = vmatpush1.msra.mxu0 0.0
          %6059 = vmatprep.subr.mxu0 0.0
          %6060 = vmatpush1.msra.mxu0 0.0
          %6061 = vmatprep.subr.mxu0 0.0
          %6062 = vmatpush1.msra.mxu0 0.0
          %6063 = vmatprep.subr.mxu0 0.0
          %6064 = vmatpush1.msra.mxu0 0.0
          %6065 = vmatprep.subr.mxu0 0.0
          %6066 = vmatpush1.msra.mxu0 0.0
          %6067 = vmatprep.subr.mxu0 0.0
          %6068 = vmatpush1.msra.mxu0 0.0
          %6069 = vmatprep.subr.mxu0 0.0
          %6070 = vmatpush1.msra.mxu0 0.0
          %6071 = vmatprep.subr.mxu0 0.0
          %6072 = vmatpush1.msra.mxu0 0.0
          %6073 = vmatprep.subr.mxu0 0.0
          %6074 = vmatpush1.msra.mxu0 0.0
          %6075 = vmatprep.subr.mxu0 0.0
          %6076 = vmatpush1.msra.mxu0 0.0
          %6077 = vmatprep.subr.mxu0 0.0
          %6078 = vmatpush1.msra.mxu0 0.0
          %6079 = vmatprep.subr.mxu0 0.0
          %6080 = vmatpush1.msra.mxu0 0.0
          %6081 = vmatprep.subr.mxu0 0.0
          %6082 = vmatpush1.msra.mxu0 0.0
          %6083 = vmatprep.subr.mxu0 0.0
          %6084 = vmatpush1.msra.mxu0 0.0
          %6085 = vmatprep.mubr.f32.mxu0 0.0
          %v6086 = vand.u32 %v5784, 4294901760
          %v6087 = vsub.f32 %v5784, %v6086
          %6088 = vmatmul.mubr.f32.gmra.mrb[0].mxu0 %v6087
          %v6089 = vpop.f32.mrb[0].mxu0
          %v6090 = vadd.f32 %v5992, %v6089
          %v6091 = vpop.f32.mrb[0].mxu0
          %6092 = vmatprep.mubr.f32.mxu0 0.0
          %v6093 = vand.u32 %v5787, 4294901760
          %v6094 = vsub.f32 %v5787, %v6093
          %6095 = vmatmul.mubr.f32.gmra.mrb[0].mxu0 %v6094
          %v6096 = vpop.f32.mrb[0].mxu0
          %v6097 = vadd.f32 %v5998, %v6096
          %v6098 = vpop.f32.mrb[0].mxu0
          %6099 = vmatprep.mubr.f32.mxu0 0.0
          %v6100 = vand.u32 %v5790, 4294901760
          %v6101 = vsub.f32 %v5790, %v6100
          %6102 = vmatmul.mubr.f32.gmra.mrb[0].mxu0 %v6101
          %v6103 = vpop.f32.mrb[0].mxu0
          %v6104 = vadd.f32 %v6004, %v6103
          %v6105 = vpop.f32.mrb[0].mxu0
          %6106 = vmatprep.mubr.f32.mxu0 0.0
          %v6107 = vand.u32 %v5793, 4294901760
          %v6108 = vsub.f32 %v5793, %v6107
          %6109 = vmatmul.mubr.f32.gmra.mrb[0].mxu0 %v6108
          %v6110 = vpop.f32.mrb[0].mxu0
          %v6111 = vadd.f32 %v6010, %v6110
          %v6112 = vpop.f32.mrb[0].mxu0
          %6113 = vdwg.mxu0
          %6114 = vmatprep.subr.mxu0 0.0
          %v6115 = vand.u32 %v5132, 4294901760
          %6116 = vmatpush1.msra.mxu0 %v6115
          %6117 = vmatprep.subr.mxu0 0.0
          %v6118 = vand.u32 %v5138, 4294901760
          %6119 = vmatpush1.msra.mxu0 %v6118
          %6120 = vmatprep.subr.mxu0 0.0
          %v6121 = vand.u32 %v5144, 4294901760
          %6122 = vmatpush1.msra.mxu0 %v6121
          %6123 = vmatprep.subr.mxu0 0.0
          %v6124 = vand.u32 %v5150, 4294901760
          %6125 = vmatpush1.msra.mxu0 %v6124
          %6126 = vmatprep.subr.mxu0 0.0
          %6127 = vmatpush1.msra.mxu0 0.0
          %6128 = vmatprep.subr.mxu0 0.0
          %6129 = vmatpush1.msra.mxu0 0.0
          %6130 = vmatprep.subr.mxu0 0.0
          %6131 = vmatpush1.msra.mxu0 0.0
          %6132 = vmatprep.subr.mxu0 0.0
          %6133 = vmatpush1.msra.mxu0 0.0
          %6134 = vmatprep.subr.mxu0 0.0
          %6135 = vmatpush1.msra.mxu0 0.0
          %6136 = vmatprep.subr.mxu0 0.0
          %6137 = vmatpush1.msra.mxu0 0.0
          %6138 = vmatprep.subr.mxu0 0.0
          %6139 = vmatpush1.msra.mxu0 0.0
          %6140 = vmatprep.subr.mxu0 0.0
          %6141 = vmatpush1.msra.mxu0 0.0
          %6142 = vmatprep.subr.mxu0 0.0
          %6143 = vmatpush1.msra.mxu0 0.0
          %6144 = vmatprep.subr.mxu0 0.0
          %6145 = vmatpush1.msra.mxu0 0.0
          %6146 = vmatprep.subr.mxu0 0.0
          %6147 = vmatpush1.msra.mxu0 0.0
          %6148 = vmatprep.subr.mxu0 0.0
          %6149 = vmatpush1.msra.mxu0 0.0
          %6150 = vmatprep.subr.mxu0 0.0
          %6151 = vmatpush1.msra.mxu0 0.0
          %6152 = vmatprep.subr.mxu0 0.0
          %6153 = vmatpush1.msra.mxu0 0.0
          %6154 = vmatprep.subr.mxu0 0.0
          %6155 = vmatpush1.msra.mxu0 0.0
          %6156 = vmatprep.subr.mxu0 0.0
          %6157 = vmatpush1.msra.mxu0 0.0
          %6158 = vmatprep.subr.mxu0 0.0
          %6159 = vmatpush1.msra.mxu0 0.0
          %6160 = vmatprep.subr.mxu0 0.0
          %6161 = vmatpush1.msra.mxu0 0.0
          %6162 = vmatprep.subr.mxu0 0.0
          %6163 = vmatpush1.msra.mxu0 0.0
          %6164 = vmatprep.subr.mxu0 0.0
          %6165 = vmatpush1.msra.mxu0 0.0
          %6166 = vmatprep.subr.mxu0 0.0
          %6167 = vmatpush1.msra.mxu0 0.0
          %6168 = vmatprep.subr.mxu0 0.0
          %6169 = vmatpush1.msra.mxu0 0.0
          %6170 = vmatprep.subr.mxu0 0.0
          %6171 = vmatpush1.msra.mxu0 0.0
          %6172 = vmatprep.subr.mxu0 0.0
          %6173 = vmatpush1.msra.mxu0 0.0
          %6174 = vmatprep.subr.mxu0 0.0
          %6175 = vmatpush1.msra.mxu0 0.0
          %6176 = vmatprep.subr.mxu0 0.0
          %6177 = vmatpush1.msra.mxu0 0.0
          %6178 = vmatprep.subr.mxu0 0.0
          %6179 = vmatpush1.msra.mxu0 0.0
          %6180 = vmatprep.subr.mxu0 0.0
          %6181 = vmatpush1.msra.mxu0 0.0
          %6182 = vmatprep.mubr.f32.mxu0 0.0
          %v6183 = vand.u32 %v5784, 4294901760
          %v6184 = vsub.f32 %v5784, %v6183
          %v6185 = vand.u32 %v6184, 4294901760
          %6186 = vmatmul.mubr.f32.gmra.mrb[0].mxu0 %v6185
          %v6187 = vpop.f32.mrb[0].mxu0
          %v6188 = vadd.f32 %v6090, %v6187
          %v6189 = vpop.f32.mrb[0].mxu0
          %6190 = vmatprep.mubr.f32.mxu0 0.0
          %v6191 = vand.u32 %v5787, 4294901760
          %v6192 = vsub.f32 %v5787, %v6191
          %v6193 = vand.u32 %v6192, 4294901760
          %6194 = vmatmul.mubr.f32.gmra.mrb[0].mxu0 %v6193
          %v6195 = vpop.f32.mrb[0].mxu0
          %v6196 = vadd.f32 %v6097, %v6195
          %v6197 = vpop.f32.mrb[0].mxu0
          %6198 = vmatprep.mubr.f32.mxu0 0.0
          %v6199 = vand.u32 %v5790, 4294901760
          %v6200 = vsub.f32 %v5790, %v6199
          %v6201 = vand.u32 %v6200, 4294901760
          %6202 = vmatmul.mubr.f32.gmra.mrb[0].mxu0 %v6201
          %v6203 = vpop.f32.mrb[0].mxu0
          %v6204 = vadd.f32 %v6104, %v6203
          %v6205 = vpop.f32.mrb[0].mxu0
          %6206 = vmatprep.mubr.f32.mxu0 0.0
          %v6207 = vand.u32 %v5793, 4294901760
          %v6208 = vsub.f32 %v5793, %v6207
          %v6209 = vand.u32 %v6208, 4294901760
          %6210 = vmatmul.mubr.f32.gmra.mrb[0].mxu0 %v6209
          %v6211 = vpop.f32.mrb[0].mxu0
          %v6212 = vadd.f32 %v6111, %v6211
          %v6213 = vpop.f32.mrb[0].mxu0
          %6214 = vdwg.mxu0
          %6215 = vmatprep.subr.mxu0 0.0
          %v6216 = vand.u32 %v5132, 4294901760
          %v6217 = vsub.f32 %v5132, %v6216
          %v6218 = vand.u32 %v6217, 4294901760
          %6219 = vmatpush1.msra.mxu0 %v6218
          %6220 = vmatprep.subr.mxu0 0.0
          %v6221 = vand.u32 %v5138, 4294901760
          %v6222 = vsub.f32 %v5138, %v6221
          %v6223 = vand.u32 %v6222, 4294901760
          %6224 = vmatpush1.msra.mxu0 %v6223
          %6225 = vmatprep.subr.mxu0 0.0
          %v6226 = vand.u32 %v5144, 4294901760
          %v6227 = vsub.f32 %v5144, %v6226
          %v6228 = vand.u32 %v6227, 4294901760
          %6229 = vmatpush1.msra.mxu0 %v6228
          %6230 = vmatprep.subr.mxu0 0.0
          %v6231 = vand.u32 %v5150, 4294901760
          %v6232 = vsub.f32 %v5150, %v6231
          %v6233 = vand.u32 %v6232, 4294901760
          %6234 = vmatpush1.msra.mxu0 %v6233
          %6235 = vmatprep.subr.mxu0 0.0
          %6236 = vmatpush1.msra.mxu0 0.0
          %6237 = vmatprep.subr.mxu0 0.0
          %6238 = vmatpush1.msra.mxu0 0.0
          %6239 = vmatprep.subr.mxu0 0.0
          %6240 = vmatpush1.msra.mxu0 0.0
          %6241 = vmatprep.subr.mxu0 0.0
          %6242 = vmatpush1.msra.mxu0 0.0
          %6243 = vmatprep.subr.mxu0 0.0
          %6244 = vmatpush1.msra.mxu0 0.0
          %6245 = vmatprep.subr.mxu0 0.0
          %6246 = vmatpush1.msra.mxu0 0.0
          %6247 = vmatprep.subr.mxu0 0.0
          %6248 = vmatpush1.msra.mxu0 0.0
          %6249 = vmatprep.subr.mxu0 0.0
          %6250 = vmatpush1.msra.mxu0 0.0
          %6251 = vmatprep.subr.mxu0 0.0
          %6252 = vmatpush1.msra.mxu0 0.0
          %6253 = vmatprep.subr.mxu0 0.0
          %6254 = vmatpush1.msra.mxu0 0.0
          %6255 = vmatprep.subr.mxu0 0.0
          %6256 = vmatpush1.msra.mxu0 0.0
          %6257 = vmatprep.subr.mxu0 0.0
          %6258 = vmatpush1.msra.mxu0 0.0
          %6259 = vmatprep.subr.mxu0 0.0
          %6260 = vmatpush1.msra.mxu0 0.0
          %6261 = vmatprep.subr.mxu0 0.0
          %6262 = vmatpush1.msra.mxu0 0.0
          %6263 = vmatprep.subr.mxu0 0.0
          %6264 = vmatpush1.msra.mxu0 0.0
          %6265 = vmatprep.subr.mxu0 0.0
          %6266 = vmatpush1.msra.mxu0 0.0
          %6267 = vmatprep.subr.mxu0 0.0
          %6268 = vmatpush1.msra.mxu0 0.0
          %6269 = vmatprep.subr.mxu0 0.0
          %6270 = vmatpush1.msra.mxu0 0.0
          %6271 = vmatprep.subr.mxu0 0.0
          %6272 = vmatpush1.msra.mxu0 0.0
          %6273 = vmatprep.subr.mxu0 0.0
          %6274 = vmatpush1.msra.mxu0 0.0
          %6275 = vmatprep.subr.mxu0 0.0
          %6276 = vmatpush1.msra.mxu0 0.0
          %6277 = vmatprep.subr.mxu0 0.0
          %6278 = vmatpush1.msra.mxu0 0.0
          %6279 = vmatprep.subr.mxu0 0.0
          %6280 = vmatpush1.msra.mxu0 0.0
          %6281 = vmatprep.subr.mxu0 0.0
          %6282 = vmatpush1.msra.mxu0 0.0
          %6283 = vmatprep.subr.mxu0 0.0
          %6284 = vmatpush1.msra.mxu0 0.0
          %6285 = vmatprep.subr.mxu0 0.0
          %6286 = vmatpush1.msra.mxu0 0.0
          %6287 = vmatprep.subr.mxu0 0.0
          %6288 = vmatpush1.msra.mxu0 0.0
          %6289 = vmatprep.subr.mxu0 0.0
          %6290 = vmatpush1.msra.mxu0 0.0
          %6291 = vmatprep.mubr.f32.mxu0 0.0
          %v6292 = vand.u32 %v5784, 4294901760
          %6293 = vmatmul.mubr.f32.gmra.mrb[0].mxu0 %v6292
          %v6294 = vpop.f32.mrb[0].mxu0
          %v6295 = vadd.f32 %v6188, %v6294
          %v6296 = vpop.f32.mrb[0].mxu0
          %6297 = vmatprep.mubr.f32.mxu0 0.0
          %v6298 = vand.u32 %v5787, 4294901760
          %6299 = vmatmul.mubr.f32.gmra.mrb[0].mxu0 %v6298
          %v6300 = vpop.f32.mrb[0].mxu0
          %v6301 = vadd.f32 %v6196, %v6300
          %v6302 = vpop.f32.mrb[0].mxu0
          %6303 = vmatprep.mubr.f32.mxu0 0.0
          %v6304 = vand.u32 %v5790, 4294901760
          %6305 = vmatmul.mubr.f32.gmra.mrb[0].mxu0 %v6304
          %v6306 = vpop.f32.mrb[0].mxu0
          %v6307 = vadd.f32 %v6204, %v6306
          %v6308 = vpop.f32.mrb[0].mxu0
          %6309 = vmatprep.mubr.f32.mxu0 0.0
          %v6310 = vand.u32 %v5793, 4294901760
          %6311 = vmatmul.mubr.f32.gmra.mrb[0].mxu0 %v6310
          %v6312 = vpop.f32.mrb[0].mxu0
          %v6313 = vadd.f32 %v6212, %v6312
          %v6314 = vpop.f32.mrb[0].mxu0
          %6315 = vdwg.mxu0
          %6316 = vmatprep.subr.mxu0 0.0
          %v6317 = vand.u32 %v5132, 4294901760
          %6318 = vmatpush1.msra.mxu0 %v6317
          %6319 = vmatprep.subr.mxu0 0.0
          %v6320 = vand.u32 %v5138, 4294901760
          %6321 = vmatpush1.msra.mxu0 %v6320
          %6322 = vmatprep.subr.mxu0 0.0
          %v6323 = vand.u32 %v5144, 4294901760
          %6324 = vmatpush1.msra.mxu0 %v6323
          %6325 = vmatprep.subr.mxu0 0.0
          %v6326 = vand.u32 %v5150, 4294901760
          %6327 = vmatpush1.msra.mxu0 %v6326
          %6328 = vmatprep.subr.mxu0 0.0
          %6329 = vmatpush1.msra.mxu0 0.0
          %6330 = vmatprep.subr.mxu0 0.0
          %6331 = vmatpush1.msra.mxu0 0.0
          %6332 = vmatprep.subr.mxu0 0.0
          %6333 = vmatpush1.msra.mxu0 0.0
          %6334 = vmatprep.subr.mxu0 0.0
          %6335 = vmatpush1.msra.mxu0 0.0
          %6336 = vmatprep.subr.mxu0 0.0
          %6337 = vmatpush1.msra.mxu0 0.0
          %6338 = vmatprep.subr.mxu0 0.0
          %6339 = vmatpush1.msra.mxu0 0.0
          %6340 = vmatprep.subr.mxu0 0.0
          %6341 = vmatpush1.msra.mxu0 0.0
          %6342 = vmatprep.subr.mxu0 0.0
          %6343 = vmatpush1.msra.mxu0 0.0
          %6344 = vmatprep.subr.mxu0 0.0
          %6345 = vmatpush1.msra.mxu0 0.0
          %6346 = vmatprep.subr.mxu0 0.0
          %6347 = vmatpush1.msra.mxu0 0.0
          %6348 = vmatprep.subr.mxu0 0.0
          %6349 = vmatpush1.msra.mxu0 0.0
          %6350 = vmatprep.subr.mxu0 0.0
          %6351 = vmatpush1.msra.mxu0 0.0
          %6352 = vmatprep.subr.mxu0 0.0
          %6353 = vmatpush1.msra.mxu0 0.0
          %6354 = vmatprep.subr.mxu0 0.0
          %6355 = vmatpush1.msra.mxu0 0.0
          %6356 = vmatprep.subr.mxu0 0.0
          %6357 = vmatpush1.msra.mxu0 0.0
          %6358 = vmatprep.subr.mxu0 0.0
          %6359 = vmatpush1.msra.mxu0 0.0
          %6360 = vmatprep.subr.mxu0 0.0
          %6361 = vmatpush1.msra.mxu0 0.0
          %6362 = vmatprep.subr.mxu0 0.0
          %6363 = vmatpush1.msra.mxu0 0.0
          %6364 = vmatprep.subr.mxu0 0.0
          %6365 = vmatpush1.msra.mxu0 0.0
          %6366 = vmatprep.subr.mxu0 0.0
          %6367 = vmatpush1.msra.mxu0 0.0
          %6368 = vmatprep.subr.mxu0 0.0
          %6369 = vmatpush1.msra.mxu0 0.0
          %6370 = vmatprep.subr.mxu0 0.0
          %6371 = vmatpush1.msra.mxu0 0.0
          %6372 = vmatprep.subr.mxu0 0.0
          %6373 = vmatpush1.msra.mxu0 0.0
          %6374 = vmatprep.subr.mxu0 0.0
          %6375 = vmatpush1.msra.mxu0 0.0
          %6376 = vmatprep.subr.mxu0 0.0
          %6377 = vmatpush1.msra.mxu0 0.0
          %6378 = vmatprep.subr.mxu0 0.0
          %6379 = vmatpush1.msra.mxu0 0.0
          %6380 = vmatprep.subr.mxu0 0.0
          %6381 = vmatpush1.msra.mxu0 0.0
          %6382 = vmatprep.subr.mxu0 0.0
          %6383 = vmatpush1.msra.mxu0 0.0
          %6384 = vmatprep.mubr.f32.mxu0 0.0
          %v6385 = vand.u32 %v5784, 4294901760
          %6386 = vmatmul.mubr.f32.gmra.mrb[0].mxu0 %v6385
          %v6387 = vpop.f32.mrb[0].mxu0
          %v6388 = vadd.f32 %v6295, %v6387
          %v6389 = vpop.f32.mrb[0].mxu0
          %6390 = vmatprep.mubr.f32.mxu0 0.0
          %v6391 = vand.u32 %v5787, 4294901760
          %6392 = vmatmul.mubr.f32.gmra.mrb[0].mxu0 %v6391
          %v6393 = vpop.f32.mrb[0].mxu0
          %v6394 = vadd.f32 %v6301, %v6393
          %v6395 = vpop.f32.mrb[0].mxu0
          %6396 = vmatprep.mubr.f32.mxu0 0.0
          %v6397 = vand.u32 %v5790, 4294901760
          %6398 = vmatmul.mubr.f32.gmra.mrb[0].mxu0 %v6397
          %v6399 = vpop.f32.mrb[0].mxu0
          %v6400 = vadd.f32 %v6307, %v6399
          %v6401 = vpop.f32.mrb[0].mxu0
          %6402 = vmatprep.mubr.f32.mxu0 0.0
          %v6403 = vand.u32 %v5793, 4294901760
          %6404 = vmatmul.mubr.f32.gmra.mrb[0].mxu0 %v6403
          %v6405 = vpop.f32.mrb[0].mxu0
          %v6406 = vadd.f32 %v6313, %v6405
          %v6407 = vpop.f32.mrb[0].mxu0
          %6408 = vdwg.mxu0
          %v6409 = vadd.f32 %v2254, %v6388
          %v6410 = vadd.f32 %v2255, %v6394
          %v6411 = vadd.f32 %v2256, %v6400
          %v6412 = vadd.f32 %v2257, %v6406
          %v6414 = vsel %vm2355, %v5762, 0
          %v6417 = vsel %vm2355, %v5768, 0
          %v6420 = vsel %vm2355, %v5774, 0
          %v6423 = vsel %vm2355, %v5780, 0
          %6425 = vmatprep.subr.mxu0 0.0
          %v6426 = vand.u32 %v6409, 4294901760
          %6427 = vmatpush1.msra.mxu0 %v6426
          %6428 = vmatprep.subr.mxu0 0.0
          %v6429 = vand.u32 %v6410, 4294901760
          %6430 = vmatpush1.msra.mxu0 %v6429
          %6431 = vmatprep.subr.mxu0 0.0
          %v6432 = vand.u32 %v6411, 4294901760
          %6433 = vmatpush1.msra.mxu0 %v6432
          %6434 = vmatprep.subr.mxu0 0.0
          %v6435 = vand.u32 %v6412, 4294901760
          %6436 = vmatpush1.msra.mxu0 %v6435
          %6437 = vmatprep.subr.mxu0 0.0
          %6438 = vmatpush1.msra.mxu0 0.0
          %6439 = vmatprep.subr.mxu0 0.0
          %6440 = vmatpush1.msra.mxu0 0.0
          %6441 = vmatprep.subr.mxu0 0.0
          %6442 = vmatpush1.msra.mxu0 0.0
          %6443 = vmatprep.subr.mxu0 0.0
          %6444 = vmatpush1.msra.mxu0 0.0
          %6445 = vmatprep.subr.mxu0 0.0
          %6446 = vmatpush1.msra.mxu0 0.0
          %6447 = vmatprep.subr.mxu0 0.0
          %6448 = vmatpush1.msra.mxu0 0.0
          %6449 = vmatprep.subr.mxu0 0.0
          %6450 = vmatpush1.msra.mxu0 0.0
          %6451 = vmatprep.subr.mxu0 0.0
          %6452 = vmatpush1.msra.mxu0 0.0
          %6453 = vmatprep.subr.mxu0 0.0
          %6454 = vmatpush1.msra.mxu0 0.0
          %6455 = vmatprep.subr.mxu0 0.0
          %6456 = vmatpush1.msra.mxu0 0.0
          %6457 = vmatprep.subr.mxu0 0.0
          %6458 = vmatpush1.msra.mxu0 0.0
          %6459 = vmatprep.subr.mxu0 0.0
          %6460 = vmatpush1.msra.mxu0 0.0
          %6461 = vmatprep.subr.mxu0 0.0
          %6462 = vmatpush1.msra.mxu0 0.0
          %6463 = vmatprep.subr.mxu0 0.0
          %6464 = vmatpush1.msra.mxu0 0.0
          %6465 = vmatprep.subr.mxu0 0.0
          %6466 = vmatpush1.msra.mxu0 0.0
          %6467 = vmatprep.subr.mxu0 0.0
          %6468 = vmatpush1.msra.mxu0 0.0
          %6469 = vmatprep.subr.mxu0 0.0
          %6470 = vmatpush1.msra.mxu0 0.0
          %6471 = vmatprep.subr.mxu0 0.0
          %6472 = vmatpush1.msra.mxu0 0.0
          %6473 = vmatprep.subr.mxu0 0.0
          %6474 = vmatpush1.msra.mxu0 0.0
          %6475 = vmatprep.subr.mxu0 0.0
          %6476 = vmatpush1.msra.mxu0 0.0
          %6477 = vmatprep.subr.mxu0 0.0
          %6478 = vmatpush1.msra.mxu0 0.0
          %6479 = vmatprep.subr.mxu0 0.0
          %6480 = vmatpush1.msra.mxu0 0.0
          %6481 = vmatprep.subr.mxu0 0.0
          %6482 = vmatpush1.msra.mxu0 0.0
          %6483 = vmatprep.subr.mxu0 0.0
          %6484 = vmatpush1.msra.mxu0 0.0
          %6485 = vmatprep.subr.mxu0 0.0
          %6486 = vmatpush1.msra.mxu0 0.0
          %6487 = vmatprep.subr.mxu0 0.0
          %6488 = vmatpush1.msra.mxu0 0.0
          %6489 = vmatprep.subr.mxu0 0.0
          %6490 = vmatpush1.msra.mxu0 0.0
          %6491 = vmatprep.subr.mxu0 0.0
          %6492 = vmatpush1.msra.mxu0 0.0
          %6493 = vmatprep.mubr.f32.mxu0 0.0
          %v6494 = vand.u32 %v6414, 4294901760
          %v6495 = vsub.f32 %v6414, %v6494
          %v6496 = vand.u32 %v6495, 4294901760
          %v6497 = vsub.f32 %v6495, %v6496
          %v6498 = vand.u32 %v6497, 4294901760
          %6499 = vmatmul.mubr.f32.gmra.mrb[0].mxu0 %v6498
          %v6500 = vpop.f32.mrb[0].mxu0
          %v6501 = vadd.f32 0.0, %v6500
          %v6502 = vpop.f32.mrb[0].mxu0
          %6503 = vmatprep.mubr.f32.mxu0 0.0
          %v6504 = vand.u32 %v6417, 4294901760
          %v6505 = vsub.f32 %v6417, %v6504
          %v6506 = vand.u32 %v6505, 4294901760
          %v6507 = vsub.f32 %v6505, %v6506
          %v6508 = vand.u32 %v6507, 4294901760
          %6509 = vmatmul.mubr.f32.gmra.mrb[0].mxu0 %v6508
          %v6510 = vpop.f32.mrb[0].mxu0
          %v6511 = vadd.f32 0.0, %v6510
          %v6512 = vpop.f32.mrb[0].mxu0
          %6513 = vmatprep.mubr.f32.mxu0 0.0
          %v6514 = vand.u32 %v6420, 4294901760
          %v6515 = vsub.f32 %v6420, %v6514
          %v6516 = vand.u32 %v6515, 4294901760
          %v6517 = vsub.f32 %v6515, %v6516
          %v6518 = vand.u32 %v6517, 4294901760
          %6519 = vmatmul.mubr.f32.gmra.mrb[0].mxu0 %v6518
          %v6520 = vpop.f32.mrb[0].mxu0
          %v6521 = vadd.f32 0.0, %v6520
          %v6522 = vpop.f32.mrb[0].mxu0
          %6523 = vmatprep.mubr.f32.mxu0 0.0
          %v6524 = vand.u32 %v6423, 4294901760
          %v6525 = vsub.f32 %v6423, %v6524
          %v6526 = vand.u32 %v6525, 4294901760
          %v6527 = vsub.f32 %v6525, %v6526
          %v6528 = vand.u32 %v6527, 4294901760
          %6529 = vmatmul.mubr.f32.gmra.mrb[0].mxu0 %v6528
          %v6530 = vpop.f32.mrb[0].mxu0
          %v6531 = vadd.f32 0.0, %v6530
          %v6532 = vpop.f32.mrb[0].mxu0
          %6533 = vdwg.mxu0
          %6534 = vmatprep.subr.mxu0 0.0
          %v6535 = vand.u32 %v6409, 4294901760
          %v6536 = vsub.f32 %v6409, %v6535
          %v6537 = vand.u32 %v6536, 4294901760
          %v6538 = vsub.f32 %v6536, %v6537
          %v6539 = vand.u32 %v6538, 4294901760
          %6540 = vmatpush1.msra.mxu0 %v6539
          %6541 = vmatprep.subr.mxu0 0.0
          %v6542 = vand.u32 %v6410, 4294901760
          %v6543 = vsub.f32 %v6410, %v6542
          %v6544 = vand.u32 %v6543, 4294901760
          %v6545 = vsub.f32 %v6543, %v6544
          %v6546 = vand.u32 %v6545, 4294901760
          %6547 = vmatpush1.msra.mxu0 %v6546
          %6548 = vmatprep.subr.mxu0 0.0
          %v6549 = vand.u32 %v6411, 4294901760
          %v6550 = vsub.f32 %v6411, %v6549
          %v6551 = vand.u32 %v6550, 4294901760
          %v6552 = vsub.f32 %v6550, %v6551
          %v6553 = vand.u32 %v6552, 4294901760
          %6554 = vmatpush1.msra.mxu0 %v6553
          %6555 = vmatprep.subr.mxu0 0.0
          %v6556 = vand.u32 %v6412, 4294901760
          %v6557 = vsub.f32 %v6412, %v6556
          %v6558 = vand.u32 %v6557, 4294901760
          %v6559 = vsub.f32 %v6557, %v6558
          %v6560 = vand.u32 %v6559, 4294901760
          %6561 = vmatpush1.msra.mxu0 %v6560
          %6562 = vmatprep.subr.mxu0 0.0
          %6563 = vmatpush1.msra.mxu0 0.0
          %6564 = vmatprep.subr.mxu0 0.0
          %6565 = vmatpush1.msra.mxu0 0.0
          %6566 = vmatprep.subr.mxu0 0.0
          %6567 = vmatpush1.msra.mxu0 0.0
          %6568 = vmatprep.subr.mxu0 0.0
          %6569 = vmatpush1.msra.mxu0 0.0
          %6570 = vmatprep.subr.mxu0 0.0
          %6571 = vmatpush1.msra.mxu0 0.0
          %6572 = vmatprep.subr.mxu0 0.0
          %6573 = vmatpush1.msra.mxu0 0.0
          %6574 = vmatprep.subr.mxu0 0.0
          %6575 = vmatpush1.msra.mxu0 0.0
          %6576 = vmatprep.subr.mxu0 0.0
          %6577 = vmatpush1.msra.mxu0 0.0
          %6578 = vmatprep.subr.mxu0 0.0
          %6579 = vmatpush1.msra.mxu0 0.0
          %6580 = vmatprep.subr.mxu0 0.0
          %6581 = vmatpush1.msra.mxu0 0.0
          %6582 = vmatprep.subr.mxu0 0.0
          %6583 = vmatpush1.msra.mxu0 0.0
          %6584 = vmatprep.subr.mxu0 0.0
          %6585 = vmatpush1.msra.mxu0 0.0
          %6586 = vmatprep.subr.mxu0 0.0
          %6587 = vmatpush1.msra.mxu0 0.0
          %6588 = vmatprep.subr.mxu0 0.0
          %6589 = vmatpush1.msra.mxu0 0.0
          %6590 = vmatprep.subr.mxu0 0.0
          %6591 = vmatpush1.msra.mxu0 0.0
          %6592 = vmatprep.subr.mxu0 0.0
          %6593 = vmatpush1.msra.mxu0 0.0
          %6594 = vmatprep.subr.mxu0 0.0
          %6595 = vmatpush1.msra.mxu0 0.0
          %6596 = vmatprep.subr.mxu0 0.0
          %6597 = vmatpush1.msra.mxu0 0.0
          %6598 = vmatprep.subr.mxu0 0.0
          %6599 = vmatpush1.msra.mxu0 0.0
          %6600 = vmatprep.subr.mxu0 0.0
          %6601 = vmatpush1.msra.mxu0 0.0
          %6602 = vmatprep.subr.mxu0 0.0
          %6603 = vmatpush1.msra.mxu0 0.0
          %6604 = vmatprep.subr.mxu0 0.0
          %6605 = vmatpush1.msra.mxu0 0.0
          %6606 = vmatprep.subr.mxu0 0.0
          %6607 = vmatpush1.msra.mxu0 0.0
          %6608 = vmatprep.subr.mxu0 0.0
          %6609 = vmatpush1.msra.mxu0 0.0
          %6610 = vmatprep.subr.mxu0 0.0
          %6611 = vmatpush1.msra.mxu0 0.0
          %6612 = vmatprep.subr.mxu0 0.0
          %6613 = vmatpush1.msra.mxu0 0.0
          %6614 = vmatprep.subr.mxu0 0.0
          %6615 = vmatpush1.msra.mxu0 0.0
          %6616 = vmatprep.subr.mxu0 0.0
          %6617 = vmatpush1.msra.mxu0 0.0
          %6618 = vmatprep.mubr.f32.mxu0 0.0
          %v6619 = vand.u32 %v6414, 4294901760
          %6620 = vmatmul.mubr.f32.gmra.mrb[0].mxu0 %v6619
          %v6621 = vpop.f32.mrb[0].mxu0
          %v6622 = vadd.f32 %v6501, %v6621
          %v6623 = vpop.f32.mrb[0].mxu0
          %6624 = vmatprep.mubr.f32.mxu0 0.0
          %v6625 = vand.u32 %v6417, 4294901760
          %6626 = vmatmul.mubr.f32.gmra.mrb[0].mxu0 %v6625
          %v6627 = vpop.f32.mrb[0].mxu0
          %v6628 = vadd.f32 %v6511, %v6627
          %v6629 = vpop.f32.mrb[0].mxu0
          %6630 = vmatprep.mubr.f32.mxu0 0.0
          %v6631 = vand.u32 %v6420, 4294901760
          %6632 = vmatmul.mubr.f32.gmra.mrb[0].mxu0 %v6631
          %v6633 = vpop.f32.mrb[0].mxu0
          %v6634 = vadd.f32 %v6521, %v6633
          %v6635 = vpop.f32.mrb[0].mxu0
          %6636 = vmatprep.mubr.f32.mxu0 0.0
          %v6637 = vand.u32 %v6423, 4294901760
          %6638 = vmatmul.mubr.f32.gmra.mrb[0].mxu0 %v6637
          %v6639 = vpop.f32.mrb[0].mxu0
          %v6640 = vadd.f32 %v6531, %v6639
          %v6641 = vpop.f32.mrb[0].mxu0
          %6642 = vdwg.mxu0
          %6643 = vmatprep.subr.mxu0 0.0
          %v6644 = vand.u32 %v6409, 4294901760
          %v6645 = vsub.f32 %v6409, %v6644
          %6646 = vmatpush1.msra.mxu0 %v6645
          %6647 = vmatprep.subr.mxu0 0.0
          %v6648 = vand.u32 %v6410, 4294901760
          %v6649 = vsub.f32 %v6410, %v6648
          %6650 = vmatpush1.msra.mxu0 %v6649
          %6651 = vmatprep.subr.mxu0 0.0
          %v6652 = vand.u32 %v6411, 4294901760
          %v6653 = vsub.f32 %v6411, %v6652
          %6654 = vmatpush1.msra.mxu0 %v6653
          %6655 = vmatprep.subr.mxu0 0.0
          %v6656 = vand.u32 %v6412, 4294901760
          %v6657 = vsub.f32 %v6412, %v6656
          %6658 = vmatpush1.msra.mxu0 %v6657
          %6659 = vmatprep.subr.mxu0 0.0
          %6660 = vmatpush1.msra.mxu0 0.0
          %6661 = vmatprep.subr.mxu0 0.0
          %6662 = vmatpush1.msra.mxu0 0.0
          %6663 = vmatprep.subr.mxu0 0.0
          %6664 = vmatpush1.msra.mxu0 0.0
          %6665 = vmatprep.subr.mxu0 0.0
          %6666 = vmatpush1.msra.mxu0 0.0
          %6667 = vmatprep.subr.mxu0 0.0
          %6668 = vmatpush1.msra.mxu0 0.0
          %6669 = vmatprep.subr.mxu0 0.0
          %6670 = vmatpush1.msra.mxu0 0.0
          %6671 = vmatprep.subr.mxu0 0.0
          %6672 = vmatpush1.msra.mxu0 0.0
          %6673 = vmatprep.subr.mxu0 0.0
          %6674 = vmatpush1.msra.mxu0 0.0
          %6675 = vmatprep.subr.mxu0 0.0
          %6676 = vmatpush1.msra.mxu0 0.0
          %6677 = vmatprep.subr.mxu0 0.0
          %6678 = vmatpush1.msra.mxu0 0.0
          %6679 = vmatprep.subr.mxu0 0.0
          %6680 = vmatpush1.msra.mxu0 0.0
          %6681 = vmatprep.subr.mxu0 0.0
          %6682 = vmatpush1.msra.mxu0 0.0
          %6683 = vmatprep.subr.mxu0 0.0
          %6684 = vmatpush1.msra.mxu0 0.0
          %6685 = vmatprep.subr.mxu0 0.0
          %6686 = vmatpush1.msra.mxu0 0.0
          %6687 = vmatprep.subr.mxu0 0.0
          %6688 = vmatpush1.msra.mxu0 0.0
          %6689 = vmatprep.subr.mxu0 0.0
          %6690 = vmatpush1.msra.mxu0 0.0
          %6691 = vmatprep.subr.mxu0 0.0
          %6692 = vmatpush1.msra.mxu0 0.0
          %6693 = vmatprep.subr.mxu0 0.0
          %6694 = vmatpush1.msra.mxu0 0.0
          %6695 = vmatprep.subr.mxu0 0.0
          %6696 = vmatpush1.msra.mxu0 0.0
          %6697 = vmatprep.subr.mxu0 0.0
          %6698 = vmatpush1.msra.mxu0 0.0
          %6699 = vmatprep.subr.mxu0 0.0
          %6700 = vmatpush1.msra.mxu0 0.0
          %6701 = vmatprep.subr.mxu0 0.0
          %6702 = vmatpush1.msra.mxu0 0.0
          %6703 = vmatprep.subr.mxu0 0.0
          %6704 = vmatpush1.msra.mxu0 0.0
          %6705 = vmatprep.subr.mxu0 0.0
          %6706 = vmatpush1.msra.mxu0 0.0
          %6707 = vmatprep.subr.mxu0 0.0
          %6708 = vmatpush1.msra.mxu0 0.0
          %6709 = vmatprep.subr.mxu0 0.0
          %6710 = vmatpush1.msra.mxu0 0.0
          %6711 = vmatprep.subr.mxu0 0.0
          %6712 = vmatpush1.msra.mxu0 0.0
          %6713 = vmatprep.subr.mxu0 0.0
          %6714 = vmatpush1.msra.mxu0 0.0
          %6715 = vmatprep.mubr.f32.mxu0 0.0
          %v6716 = vand.u32 %v6414, 4294901760
          %v6717 = vsub.f32 %v6414, %v6716
          %6718 = vmatmul.mubr.f32.gmra.mrb[0].mxu0 %v6717
          %v6719 = vpop.f32.mrb[0].mxu0
          %v6720 = vadd.f32 %v6622, %v6719
          %v6721 = vpop.f32.mrb[0].mxu0
          %6722 = vmatprep.mubr.f32.mxu0 0.0
          %v6723 = vand.u32 %v6417, 4294901760
          %v6724 = vsub.f32 %v6417, %v6723
          %6725 = vmatmul.mubr.f32.gmra.mrb[0].mxu0 %v6724
          %v6726 = vpop.f32.mrb[0].mxu0
          %v6727 = vadd.f32 %v6628, %v6726
          %v6728 = vpop.f32.mrb[0].mxu0
          %6729 = vmatprep.mubr.f32.mxu0 0.0
          %v6730 = vand.u32 %v6420, 4294901760
          %v6731 = vsub.f32 %v6420, %v6730
          %6732 = vmatmul.mubr.f32.gmra.mrb[0].mxu0 %v6731
          %v6733 = vpop.f32.mrb[0].mxu0
          %v6734 = vadd.f32 %v6634, %v6733
          %v6735 = vpop.f32.mrb[0].mxu0
          %6736 = vmatprep.mubr.f32.mxu0 0.0
          %v6737 = vand.u32 %v6423, 4294901760
          %v6738 = vsub.f32 %v6423, %v6737
          %6739 = vmatmul.mubr.f32.gmra.mrb[0].mxu0 %v6738
          %v6740 = vpop.f32.mrb[0].mxu0
          %v6741 = vadd.f32 %v6640, %v6740
          %v6742 = vpop.f32.mrb[0].mxu0
          %6743 = vdwg.mxu0
          %6744 = vmatprep.subr.mxu0 0.0
          %v6745 = vand.u32 %v6409, 4294901760
          %6746 = vmatpush1.msra.mxu0 %v6745
          %6747 = vmatprep.subr.mxu0 0.0
          %v6748 = vand.u32 %v6410, 4294901760
          %6749 = vmatpush1.msra.mxu0 %v6748
          %6750 = vmatprep.subr.mxu0 0.0
          %v6751 = vand.u32 %v6411, 4294901760
          %6752 = vmatpush1.msra.mxu0 %v6751
          %6753 = vmatprep.subr.mxu0 0.0
          %v6754 = vand.u32 %v6412, 4294901760
          %6755 = vmatpush1.msra.mxu0 %v6754
          %6756 = vmatprep.subr.mxu0 0.0
          %6757 = vmatpush1.msra.mxu0 0.0
          %6758 = vmatprep.subr.mxu0 0.0
          %6759 = vmatpush1.msra.mxu0 0.0
          %6760 = vmatprep.subr.mxu0 0.0
          %6761 = vmatpush1.msra.mxu0 0.0
          %6762 = vmatprep.subr.mxu0 0.0
          %6763 = vmatpush1.msra.mxu0 0.0
          %6764 = vmatprep.subr.mxu0 0.0
          %6765 = vmatpush1.msra.mxu0 0.0
          %6766 = vmatprep.subr.mxu0 0.0
          %6767 = vmatpush1.msra.mxu0 0.0
          %6768 = vmatprep.subr.mxu0 0.0
          %6769 = vmatpush1.msra.mxu0 0.0
          %6770 = vmatprep.subr.mxu0 0.0
          %6771 = vmatpush1.msra.mxu0 0.0
          %6772 = vmatprep.subr.mxu0 0.0
          %6773 = vmatpush1.msra.mxu0 0.0
          %6774 = vmatprep.subr.mxu0 0.0
          %6775 = vmatpush1.msra.mxu0 0.0
          %6776 = vmatprep.subr.mxu0 0.0
          %6777 = vmatpush1.msra.mxu0 0.0
          %6778 = vmatprep.subr.mxu0 0.0
          %6779 = vmatpush1.msra.mxu0 0.0
          %6780 = vmatprep.subr.mxu0 0.0
          %6781 = vmatpush1.msra.mxu0 0.0
          %6782 = vmatprep.subr.mxu0 0.0
          %6783 = vmatpush1.msra.mxu0 0.0
          %6784 = vmatprep.subr.mxu0 0.0
          %6785 = vmatpush1.msra.mxu0 0.0
          %6786 = vmatprep.subr.mxu0 0.0
          %6787 = vmatpush1.msra.mxu0 0.0
          %6788 = vmatprep.subr.mxu0 0.0
          %6789 = vmatpush1.msra.mxu0 0.0
          %6790 = vmatprep.subr.mxu0 0.0
          %6791 = vmatpush1.msra.mxu0 0.0
          %6792 = vmatprep.subr.mxu0 0.0
          %6793 = vmatpush1.msra.mxu0 0.0
          %6794 = vmatprep.subr.mxu0 0.0
          %6795 = vmatpush1.msra.mxu0 0.0
          %6796 = vmatprep.subr.mxu0 0.0
          %6797 = vmatpush1.msra.mxu0 0.0
          %6798 = vmatprep.subr.mxu0 0.0
          %6799 = vmatpush1.msra.mxu0 0.0
          %6800 = vmatprep.subr.mxu0 0.0
          %6801 = vmatpush1.msra.mxu0 0.0
          %6802 = vmatprep.subr.mxu0 0.0
          %6803 = vmatpush1.msra.mxu0 0.0
          %6804 = vmatprep.subr.mxu0 0.0
          %6805 = vmatpush1.msra.mxu0 0.0
          %6806 = vmatprep.subr.mxu0 0.0
          %6807 = vmatpush1.msra.mxu0 0.0
          %6808 = vmatprep.subr.mxu0 0.0
          %6809 = vmatpush1.msra.mxu0 0.0
          %6810 = vmatprep.subr.mxu0 0.0
          %6811 = vmatpush1.msra.mxu0 0.0
          %6812 = vmatprep.mubr.f32.mxu0 0.0
          %v6813 = vand.u32 %v6414, 4294901760
          %v6814 = vsub.f32 %v6414, %v6813
          %v6815 = vand.u32 %v6814, 4294901760
          %6816 = vmatmul.mubr.f32.gmra.mrb[0].mxu0 %v6815
          %v6817 = vpop.f32.mrb[0].mxu0
          %v6818 = vadd.f32 %v6720, %v6817
          %v6819 = vpop.f32.mrb[0].mxu0
          %6820 = vmatprep.mubr.f32.mxu0 0.0
          %v6821 = vand.u32 %v6417, 4294901760
          %v6822 = vsub.f32 %v6417, %v6821
          %v6823 = vand.u32 %v6822, 4294901760
          %6824 = vmatmul.mubr.f32.gmra.mrb[0].mxu0 %v6823
          %v6825 = vpop.f32.mrb[0].mxu0
          %v6826 = vadd.f32 %v6727, %v6825
          %v6827 = vpop.f32.mrb[0].mxu0
          %6828 = vmatprep.mubr.f32.mxu0 0.0
          %v6829 = vand.u32 %v6420, 4294901760
          %v6830 = vsub.f32 %v6420, %v6829
          %v6831 = vand.u32 %v6830, 4294901760
          %6832 = vmatmul.mubr.f32.gmra.mrb[0].mxu0 %v6831
          %v6833 = vpop.f32.mrb[0].mxu0
          %v6834 = vadd.f32 %v6734, %v6833
          %v6835 = vpop.f32.mrb[0].mxu0
          %6836 = vmatprep.mubr.f32.mxu0 0.0
          %v6837 = vand.u32 %v6423, 4294901760
          %v6838 = vsub.f32 %v6423, %v6837
          %v6839 = vand.u32 %v6838, 4294901760
          %6840 = vmatmul.mubr.f32.gmra.mrb[0].mxu0 %v6839
          %v6841 = vpop.f32.mrb[0].mxu0
          %v6842 = vadd.f32 %v6741, %v6841
          %v6843 = vpop.f32.mrb[0].mxu0
          %6844 = vdwg.mxu0
          %6845 = vmatprep.subr.mxu0 0.0
          %v6846 = vand.u32 %v6409, 4294901760
          %v6847 = vsub.f32 %v6409, %v6846
          %v6848 = vand.u32 %v6847, 4294901760
          %6849 = vmatpush1.msra.mxu0 %v6848
          %6850 = vmatprep.subr.mxu0 0.0
          %v6851 = vand.u32 %v6410, 4294901760
          %v6852 = vsub.f32 %v6410, %v6851
          %v6853 = vand.u32 %v6852, 4294901760
          %6854 = vmatpush1.msra.mxu0 %v6853
          %6855 = vmatprep.subr.mxu0 0.0
          %v6856 = vand.u32 %v6411, 4294901760
          %v6857 = vsub.f32 %v6411, %v6856
          %v6858 = vand.u32 %v6857, 4294901760
          %6859 = vmatpush1.msra.mxu0 %v6858
          %6860 = vmatprep.subr.mxu0 0.0
          %v6861 = vand.u32 %v6412, 4294901760
          %v6862 = vsub.f32 %v6412, %v6861
          %v6863 = vand.u32 %v6862, 4294901760
          %6864 = vmatpush1.msra.mxu0 %v6863
          %6865 = vmatprep.subr.mxu0 0.0
          %6866 = vmatpush1.msra.mxu0 0.0
          %6867 = vmatprep.subr.mxu0 0.0
          %6868 = vmatpush1.msra.mxu0 0.0
          %6869 = vmatprep.subr.mxu0 0.0
          %6870 = vmatpush1.msra.mxu0 0.0
          %6871 = vmatprep.subr.mxu0 0.0
          %6872 = vmatpush1.msra.mxu0 0.0
          %6873 = vmatprep.subr.mxu0 0.0
          %6874 = vmatpush1.msra.mxu0 0.0
          %6875 = vmatprep.subr.mxu0 0.0
          %6876 = vmatpush1.msra.mxu0 0.0
          %6877 = vmatprep.subr.mxu0 0.0
          %6878 = vmatpush1.msra.mxu0 0.0
          %6879 = vmatprep.subr.mxu0 0.0
          %6880 = vmatpush1.msra.mxu0 0.0
          %6881 = vmatprep.subr.mxu0 0.0
          %6882 = vmatpush1.msra.mxu0 0.0
          %6883 = vmatprep.subr.mxu0 0.0
          %6884 = vmatpush1.msra.mxu0 0.0
          %6885 = vmatprep.subr.mxu0 0.0
          %6886 = vmatpush1.msra.mxu0 0.0
          %6887 = vmatprep.subr.mxu0 0.0
          %6888 = vmatpush1.msra.mxu0 0.0
          %6889 = vmatprep.subr.mxu0 0.0
          %6890 = vmatpush1.msra.mxu0 0.0
          %6891 = vmatprep.subr.mxu0 0.0
          %6892 = vmatpush1.msra.mxu0 0.0
          %6893 = vmatprep.subr.mxu0 0.0
          %6894 = vmatpush1.msra.mxu0 0.0
          %6895 = vmatprep.subr.mxu0 0.0
          %6896 = vmatpush1.msra.mxu0 0.0
          %6897 = vmatprep.subr.mxu0 0.0
          %6898 = vmatpush1.msra.mxu0 0.0
          %6899 = vmatprep.subr.mxu0 0.0
          %6900 = vmatpush1.msra.mxu0 0.0
          %6901 = vmatprep.subr.mxu0 0.0
          %6902 = vmatpush1.msra.mxu0 0.0
          %6903 = vmatprep.subr.mxu0 0.0
          %6904 = vmatpush1.msra.mxu0 0.0
          %6905 = vmatprep.subr.mxu0 0.0
          %6906 = vmatpush1.msra.mxu0 0.0
          %6907 = vmatprep.subr.mxu0 0.0
          %6908 = vmatpush1.msra.mxu0 0.0
          %6909 = vmatprep.subr.mxu0 0.0
          %6910 = vmatpush1.msra.mxu0 0.0
          %6911 = vmatprep.subr.mxu0 0.0
          %6912 = vmatpush1.msra.mxu0 0.0
          %6913 = vmatprep.subr.mxu0 0.0
          %6914 = vmatpush1.msra.mxu0 0.0
          %6915 = vmatprep.subr.mxu0 0.0
          %6916 = vmatpush1.msra.mxu0 0.0
          %6917 = vmatprep.subr.mxu0 0.0
          %6918 = vmatpush1.msra.mxu0 0.0
          %6919 = vmatprep.subr.mxu0 0.0
          %6920 = vmatpush1.msra.mxu0 0.0
          %6921 = vmatprep.mubr.f32.mxu0 0.0
          %v6922 = vand.u32 %v6414, 4294901760
          %6923 = vmatmul.mubr.f32.gmra.mrb[0].mxu0 %v6922
          %v6924 = vpop.f32.mrb[0].mxu0
          %v6925 = vadd.f32 %v6818, %v6924
          %v6926 = vpop.f32.mrb[0].mxu0
          %6927 = vmatprep.mubr.f32.mxu0 0.0
          %v6928 = vand.u32 %v6417, 4294901760
          %6929 = vmatmul.mubr.f32.gmra.mrb[0].mxu0 %v6928
          %v6930 = vpop.f32.mrb[0].mxu0
          %v6931 = vadd.f32 %v6826, %v6930
          %v6932 = vpop.f32.mrb[0].mxu0
          %6933 = vmatprep.mubr.f32.mxu0 0.0
          %v6934 = vand.u32 %v6420, 4294901760
          %6935 = vmatmul.mubr.f32.gmra.mrb[0].mxu0 %v6934
          %v6936 = vpop.f32.mrb[0].mxu0
          %v6937 = vadd.f32 %v6834, %v6936
          %v6938 = vpop.f32.mrb[0].mxu0
          %6939 = vmatprep.mubr.f32.mxu0 0.0
          %v6940 = vand.u32 %v6423, 4294901760
          %6941 = vmatmul.mubr.f32.gmra.mrb[0].mxu0 %v6940
          %v6942 = vpop.f32.mrb[0].mxu0
          %v6943 = vadd.f32 %v6842, %v6942
          %v6944 = vpop.f32.mrb[0].mxu0
          %6945 = vdwg.mxu0
          %6946 = vmatprep.subr.mxu0 0.0
          %v6947 = vand.u32 %v6409, 4294901760
          %6948 = vmatpush1.msra.mxu0 %v6947
          %6949 = vmatprep.subr.mxu0 0.0
          %v6950 = vand.u32 %v6410, 4294901760
          %6951 = vmatpush1.msra.mxu0 %v6950
          %6952 = vmatprep.subr.mxu0 0.0
          %v6953 = vand.u32 %v6411, 4294901760
          %6954 = vmatpush1.msra.mxu0 %v6953
          %6955 = vmatprep.subr.mxu0 0.0
          %v6956 = vand.u32 %v6412, 4294901760
          %6957 = vmatpush1.msra.mxu0 %v6956
          %6958 = vmatprep.subr.mxu0 0.0
          %6959 = vmatpush1.msra.mxu0 0.0
          %6960 = vmatprep.subr.mxu0 0.0
          %6961 = vmatpush1.msra.mxu0 0.0
          %6962 = vmatprep.subr.mxu0 0.0
          %6963 = vmatpush1.msra.mxu0 0.0
          %6964 = vmatprep.subr.mxu0 0.0
          %6965 = vmatpush1.msra.mxu0 0.0
          %6966 = vmatprep.subr.mxu0 0.0
          %6967 = vmatpush1.msra.mxu0 0.0
          %6968 = vmatprep.subr.mxu0 0.0
          %6969 = vmatpush1.msra.mxu0 0.0
          %6970 = vmatprep.subr.mxu0 0.0
          %6971 = vmatpush1.msra.mxu0 0.0
          %6972 = vmatprep.subr.mxu0 0.0
          %6973 = vmatpush1.msra.mxu0 0.0
          %6974 = vmatprep.subr.mxu0 0.0
          %6975 = vmatpush1.msra.mxu0 0.0
          %6976 = vmatprep.subr.mxu0 0.0
          %6977 = vmatpush1.msra.mxu0 0.0
          %6978 = vmatprep.subr.mxu0 0.0
          %6979 = vmatpush1.msra.mxu0 0.0
          %6980 = vmatprep.subr.mxu0 0.0
          %6981 = vmatpush1.msra.mxu0 0.0
          %6982 = vmatprep.subr.mxu0 0.0
          %6983 = vmatpush1.msra.mxu0 0.0
          %6984 = vmatprep.subr.mxu0 0.0
          %6985 = vmatpush1.msra.mxu0 0.0
          %6986 = vmatprep.subr.mxu0 0.0
          %6987 = vmatpush1.msra.mxu0 0.0
          %6988 = vmatprep.subr.mxu0 0.0
          %6989 = vmatpush1.msra.mxu0 0.0
          %6990 = vmatprep.subr.mxu0 0.0
          %6991 = vmatpush1.msra.mxu0 0.0
          %6992 = vmatprep.subr.mxu0 0.0
          %6993 = vmatpush1.msra.mxu0 0.0
          %6994 = vmatprep.subr.mxu0 0.0
          %6995 = vmatpush1.msra.mxu0 0.0
          %6996 = vmatprep.subr.mxu0 0.0
          %6997 = vmatpush1.msra.mxu0 0.0
          %6998 = vmatprep.subr.mxu0 0.0
          %6999 = vmatpush1.msra.mxu0 0.0
          %7000 = vmatprep.subr.mxu0 0.0
          %7001 = vmatpush1.msra.mxu0 0.0
          %7002 = vmatprep.subr.mxu0 0.0
          %7003 = vmatpush1.msra.mxu0 0.0
          %7004 = vmatprep.subr.mxu0 0.0
          %7005 = vmatpush1.msra.mxu0 0.0
          %7006 = vmatprep.subr.mxu0 0.0
          %7007 = vmatpush1.msra.mxu0 0.0
          %7008 = vmatprep.subr.mxu0 0.0
          %7009 = vmatpush1.msra.mxu0 0.0
          %7010 = vmatprep.subr.mxu0 0.0
          %7011 = vmatpush1.msra.mxu0 0.0
          %7012 = vmatprep.subr.mxu0 0.0
          %7013 = vmatpush1.msra.mxu0 0.0
          %7014 = vmatprep.mubr.f32.mxu0 0.0
          %v7015 = vand.u32 %v6414, 4294901760
          %7016 = vmatmul.mubr.f32.gmra.mrb[0].mxu0 %v7015
          %v7017 = vpop.f32.mrb[0].mxu0
          %v7018 = vadd.f32 %v6925, %v7017
          %v7019 = vpop.f32.mrb[0].mxu0
          %7020 = vmatprep.mubr.f32.mxu0 0.0
          %v7021 = vand.u32 %v6417, 4294901760
          %7022 = vmatmul.mubr.f32.gmra.mrb[0].mxu0 %v7021
          %v7023 = vpop.f32.mrb[0].mxu0
          %v7024 = vadd.f32 %v6931, %v7023
          %v7025 = vpop.f32.mrb[0].mxu0
          %7026 = vmatprep.mubr.f32.mxu0 0.0
          %v7027 = vand.u32 %v6420, 4294901760
          %7028 = vmatmul.mubr.f32.gmra.mrb[0].mxu0 %v7027
          %v7029 = vpop.f32.mrb[0].mxu0
          %v7030 = vadd.f32 %v6937, %v7029
          %v7031 = vpop.f32.mrb[0].mxu0
          %7032 = vmatprep.mubr.f32.mxu0 0.0
          %v7033 = vand.u32 %v6423, 4294901760
          %7034 = vmatmul.mubr.f32.gmra.mrb[0].mxu0 %v7033
          %v7035 = vpop.f32.mrb[0].mxu0
          %v7036 = vadd.f32 %v6943, %v7035
          %v7037 = vpop.f32.mrb[0].mxu0
          %7038 = vdwg.mxu0
          %v7040 = vsel %vm2355, %v6388, 0
          %v7043 = vsel %vm2355, %v6394, 0
          %v7046 = vsel %vm2355, %v6400, 0
          %v7049 = vsel %vm2355, %v6406, 0
          %7051 = vmatprep.subr.mxu0 0.0
          %v7052 = vand.u32 %v6388, 4294901760
          %7053 = vmatpush1.msra.mxu0 %v7052
          %7054 = vmatprep.subr.mxu0 0.0
          %v7055 = vand.u32 %v6394, 4294901760
          %7056 = vmatpush1.msra.mxu0 %v7055
          %7057 = vmatprep.subr.mxu0 0.0
          %v7058 = vand.u32 %v6400, 4294901760
          %7059 = vmatpush1.msra.mxu0 %v7058
          %7060 = vmatprep.subr.mxu0 0.0
          %v7061 = vand.u32 %v6406, 4294901760
          %7062 = vmatpush1.msra.mxu0 %v7061
          %7063 = vmatprep.subr.mxu0 0.0
          %7064 = vmatpush1.msra.mxu0 0.0
          %7065 = vmatprep.subr.mxu0 0.0
          %7066 = vmatpush1.msra.mxu0 0.0
          %7067 = vmatprep.subr.mxu0 0.0
          %7068 = vmatpush1.msra.mxu0 0.0
          %7069 = vmatprep.subr.mxu0 0.0
          %7070 = vmatpush1.msra.mxu0 0.0
          %7071 = vmatprep.subr.mxu0 0.0
          %7072 = vmatpush1.msra.mxu0 0.0
          %7073 = vmatprep.subr.mxu0 0.0
          %7074 = vmatpush1.msra.mxu0 0.0
          %7075 = vmatprep.subr.mxu0 0.0
          %7076 = vmatpush1.msra.mxu0 0.0
          %7077 = vmatprep.subr.mxu0 0.0
          %7078 = vmatpush1.msra.mxu0 0.0
          %7079 = vmatprep.subr.mxu0 0.0
          %7080 = vmatpush1.msra.mxu0 0.0
          %7081 = vmatprep.subr.mxu0 0.0
          %7082 = vmatpush1.msra.mxu0 0.0
          %7083 = vmatprep.subr.mxu0 0.0
          %7084 = vmatpush1.msra.mxu0 0.0
          %7085 = vmatprep.subr.mxu0 0.0
          %7086 = vmatpush1.msra.mxu0 0.0
          %7087 = vmatprep.subr.mxu0 0.0
          %7088 = vmatpush1.msra.mxu0 0.0
          %7089 = vmatprep.subr.mxu0 0.0
          %7090 = vmatpush1.msra.mxu0 0.0
          %7091 = vmatprep.subr.mxu0 0.0
          %7092 = vmatpush1.msra.mxu0 0.0
          %7093 = vmatprep.subr.mxu0 0.0
          %7094 = vmatpush1.msra.mxu0 0.0
          %7095 = vmatprep.subr.mxu0 0.0
          %7096 = vmatpush1.msra.mxu0 0.0
          %7097 = vmatprep.subr.mxu0 0.0
          %7098 = vmatpush1.msra.mxu0 0.0
          %7099 = vmatprep.subr.mxu0 0.0
          %7100 = vmatpush1.msra.mxu0 0.0
          %7101 = vmatprep.subr.mxu0 0.0
          %7102 = vmatpush1.msra.mxu0 0.0
          %7103 = vmatprep.subr.mxu0 0.0
          %7104 = vmatpush1.msra.mxu0 0.0
          %7105 = vmatprep.subr.mxu0 0.0
          %7106 = vmatpush1.msra.mxu0 0.0
          %7107 = vmatprep.subr.mxu0 0.0
          %7108 = vmatpush1.msra.mxu0 0.0
          %7109 = vmatprep.subr.mxu0 0.0
          %7110 = vmatpush1.msra.mxu0 0.0
          %7111 = vmatprep.subr.mxu0 0.0
          %7112 = vmatpush1.msra.mxu0 0.0
          %7113 = vmatprep.subr.mxu0 0.0
          %7114 = vmatpush1.msra.mxu0 0.0
          %7115 = vmatprep.subr.mxu0 0.0
          %7116 = vmatpush1.msra.mxu0 0.0
          %7117 = vmatprep.subr.mxu0 0.0
          %7118 = vmatpush1.msra.mxu0 0.0
          %7119 = vmatprep.mubr.f32.mxu0 0.0
          %v7120 = vand.u32 %v7040, 4294901760
          %v7121 = vsub.f32 %v7040, %v7120
          %v7122 = vand.u32 %v7121, 4294901760
          %v7123 = vsub.f32 %v7121, %v7122
          %v7124 = vand.u32 %v7123, 4294901760
          %7125 = vmatmul.mubr.f32.gmra.mrb[0].mxu0 %v7124
          %v7126 = vpop.f32.mrb[0].mxu0
          %v7127 = vadd.f32 0.0, %v7126
          %v7128 = vpop.f32.mrb[0].mxu0
          %7129 = vmatprep.mubr.f32.mxu0 0.0
          %v7130 = vand.u32 %v7043, 4294901760
          %v7131 = vsub.f32 %v7043, %v7130
          %v7132 = vand.u32 %v7131, 4294901760
          %v7133 = vsub.f32 %v7131, %v7132
          %v7134 = vand.u32 %v7133, 4294901760
          %7135 = vmatmul.mubr.f32.gmra.mrb[0].mxu0 %v7134
          %v7136 = vpop.f32.mrb[0].mxu0
          %v7137 = vadd.f32 0.0, %v7136
          %v7138 = vpop.f32.mrb[0].mxu0
          %7139 = vmatprep.mubr.f32.mxu0 0.0
          %v7140 = vand.u32 %v7046, 4294901760
          %v7141 = vsub.f32 %v7046, %v7140
          %v7142 = vand.u32 %v7141, 4294901760
          %v7143 = vsub.f32 %v7141, %v7142
          %v7144 = vand.u32 %v7143, 4294901760
          %7145 = vmatmul.mubr.f32.gmra.mrb[0].mxu0 %v7144
          %v7146 = vpop.f32.mrb[0].mxu0
          %v7147 = vadd.f32 0.0, %v7146
          %v7148 = vpop.f32.mrb[0].mxu0
          %7149 = vmatprep.mubr.f32.mxu0 0.0
          %v7150 = vand.u32 %v7049, 4294901760
          %v7151 = vsub.f32 %v7049, %v7150
          %v7152 = vand.u32 %v7151, 4294901760
          %v7153 = vsub.f32 %v7151, %v7152
          %v7154 = vand.u32 %v7153, 4294901760
          %7155 = vmatmul.mubr.f32.gmra.mrb[0].mxu0 %v7154
          %v7156 = vpop.f32.mrb[0].mxu0
          %v7157 = vadd.f32 0.0, %v7156
          %v7158 = vpop.f32.mrb[0].mxu0
          %7159 = vdwg.mxu0
          %7160 = vmatprep.subr.mxu0 0.0
          %v7161 = vand.u32 %v6388, 4294901760
          %v7162 = vsub.f32 %v6388, %v7161
          %v7163 = vand.u32 %v7162, 4294901760
          %v7164 = vsub.f32 %v7162, %v7163
          %v7165 = vand.u32 %v7164, 4294901760
          %7166 = vmatpush1.msra.mxu0 %v7165
          %7167 = vmatprep.subr.mxu0 0.0
          %v7168 = vand.u32 %v6394, 4294901760
          %v7169 = vsub.f32 %v6394, %v7168
          %v7170 = vand.u32 %v7169, 4294901760
          %v7171 = vsub.f32 %v7169, %v7170
          %v7172 = vand.u32 %v7171, 4294901760
          %7173 = vmatpush1.msra.mxu0 %v7172
          %7174 = vmatprep.subr.mxu0 0.0
          %v7175 = vand.u32 %v6400, 4294901760
          %v7176 = vsub.f32 %v6400, %v7175
          %v7177 = vand.u32 %v7176, 4294901760
          %v7178 = vsub.f32 %v7176, %v7177
          %v7179 = vand.u32 %v7178, 4294901760
          %7180 = vmatpush1.msra.mxu0 %v7179
          %7181 = vmatprep.subr.mxu0 0.0
          %v7182 = vand.u32 %v6406, 4294901760
          %v7183 = vsub.f32 %v6406, %v7182
          %v7184 = vand.u32 %v7183, 4294901760
          %v7185 = vsub.f32 %v7183, %v7184
          %v7186 = vand.u32 %v7185, 4294901760
          %7187 = vmatpush1.msra.mxu0 %v7186
          %7188 = vmatprep.subr.mxu0 0.0
          %7189 = vmatpush1.msra.mxu0 0.0
          %7190 = vmatprep.subr.mxu0 0.0
          %7191 = vmatpush1.msra.mxu0 0.0
          %7192 = vmatprep.subr.mxu0 0.0
          %7193 = vmatpush1.msra.mxu0 0.0
          %7194 = vmatprep.subr.mxu0 0.0
          %7195 = vmatpush1.msra.mxu0 0.0
          %7196 = vmatprep.subr.mxu0 0.0
          %7197 = vmatpush1.msra.mxu0 0.0
          %7198 = vmatprep.subr.mxu0 0.0
          %7199 = vmatpush1.msra.mxu0 0.0
          %7200 = vmatprep.subr.mxu0 0.0
          %7201 = vmatpush1.msra.mxu0 0.0
          %7202 = vmatprep.subr.mxu0 0.0
          %7203 = vmatpush1.msra.mxu0 0.0
          %7204 = vmatprep.subr.mxu0 0.0
          %7205 = vmatpush1.msra.mxu0 0.0
          %7206 = vmatprep.subr.mxu0 0.0
          %7207 = vmatpush1.msra.mxu0 0.0
          %7208 = vmatprep.subr.mxu0 0.0
          %7209 = vmatpush1.msra.mxu0 0.0
          %7210 = vmatprep.subr.mxu0 0.0
          %7211 = vmatpush1.msra.mxu0 0.0
          %7212 = vmatprep.subr.mxu0 0.0
          %7213 = vmatpush1.msra.mxu0 0.0
          %7214 = vmatprep.subr.mxu0 0.0
          %7215 = vmatpush1.msra.mxu0 0.0
          %7216 = vmatprep.subr.mxu0 0.0
          %7217 = vmatpush1.msra.mxu0 0.0
          %7218 = vmatprep.subr.mxu0 0.0
          %7219 = vmatpush1.msra.mxu0 0.0
          %7220 = vmatprep.subr.mxu0 0.0
          %7221 = vmatpush1.msra.mxu0 0.0
          %7222 = vmatprep.subr.mxu0 0.0
          %7223 = vmatpush1.msra.mxu0 0.0
          %7224 = vmatprep.subr.mxu0 0.0
          %7225 = vmatpush1.msra.mxu0 0.0
          %7226 = vmatprep.subr.mxu0 0.0
          %7227 = vmatpush1.msra.mxu0 0.0
          %7228 = vmatprep.subr.mxu0 0.0
          %7229 = vmatpush1.msra.mxu0 0.0
          %7230 = vmatprep.subr.mxu0 0.0
          %7231 = vmatpush1.msra.mxu0 0.0
          %7232 = vmatprep.subr.mxu0 0.0
          %7233 = vmatpush1.msra.mxu0 0.0
          %7234 = vmatprep.subr.mxu0 0.0
          %7235 = vmatpush1.msra.mxu0 0.0
          %7236 = vmatprep.subr.mxu0 0.0
          %7237 = vmatpush1.msra.mxu0 0.0
          %7238 = vmatprep.subr.mxu0 0.0
          %7239 = vmatpush1.msra.mxu0 0.0
          %7240 = vmatprep.subr.mxu0 0.0
          %7241 = vmatpush1.msra.mxu0 0.0
          %7242 = vmatprep.subr.mxu0 0.0
          %7243 = vmatpush1.msra.mxu0 0.0
          %7244 = vmatprep.mubr.f32.mxu0 0.0
          %v7245 = vand.u32 %v7040, 4294901760
          %7246 = vmatmul.mubr.f32.gmra.mrb[0].mxu0 %v7245
          %v7247 = vpop.f32.mrb[0].mxu0
          %v7248 = vadd.f32 %v7127, %v7247
          %v7249 = vpop.f32.mrb[0].mxu0
          %7250 = vmatprep.mubr.f32.mxu0 0.0
          %v7251 = vand.u32 %v7043, 4294901760
          %7252 = vmatmul.mubr.f32.gmra.mrb[0].mxu0 %v7251
          %v7253 = vpop.f32.mrb[0].mxu0
          %v7254 = vadd.f32 %v7137, %v7253
          %v7255 = vpop.f32.mrb[0].mxu0
          %7256 = vmatprep.mubr.f32.mxu0 0.0
          %v7257 = vand.u32 %v7046, 4294901760
          %7258 = vmatmul.mubr.f32.gmra.mrb[0].mxu0 %v7257
          %v7259 = vpop.f32.mrb[0].mxu0
          %v7260 = vadd.f32 %v7147, %v7259
          %v7261 = vpop.f32.mrb[0].mxu0
          %7262 = vmatprep.mubr.f32.mxu0 0.0
          %v7263 = vand.u32 %v7049, 4294901760
          %7264 = vmatmul.mubr.f32.gmra.mrb[0].mxu0 %v7263
          %v7265 = vpop.f32.mrb[0].mxu0
          %v7266 = vadd.f32 %v7157, %v7265
          %v7267 = vpop.f32.mrb[0].mxu0
          %7268 = vdwg.mxu0
          %7269 = vmatprep.subr.mxu0 0.0
          %v7270 = vand.u32 %v6388, 4294901760
          %v7271 = vsub.f32 %v6388, %v7270
          %7272 = vmatpush1.msra.mxu0 %v7271
          %7273 = vmatprep.subr.mxu0 0.0
          %v7274 = vand.u32 %v6394, 4294901760
          %v7275 = vsub.f32 %v6394, %v7274
          %7276 = vmatpush1.msra.mxu0 %v7275
          %7277 = vmatprep.subr.mxu0 0.0
          %v7278 = vand.u32 %v6400, 4294901760
          %v7279 = vsub.f32 %v6400, %v7278
          %7280 = vmatpush1.msra.mxu0 %v7279
          %7281 = vmatprep.subr.mxu0 0.0
          %v7282 = vand.u32 %v6406, 4294901760
          %v7283 = vsub.f32 %v6406, %v7282
          %7284 = vmatpush1.msra.mxu0 %v7283
          %7285 = vmatprep.subr.mxu0 0.0
          %7286 = vmatpush1.msra.mxu0 0.0
          %7287 = vmatprep.subr.mxu0 0.0
          %7288 = vmatpush1.msra.mxu0 0.0
          %7289 = vmatprep.subr.mxu0 0.0
          %7290 = vmatpush1.msra.mxu0 0.0
          %7291 = vmatprep.subr.mxu0 0.0
          %7292 = vmatpush1.msra.mxu0 0.0
          %7293 = vmatprep.subr.mxu0 0.0
          %7294 = vmatpush1.msra.mxu0 0.0
          %7295 = vmatprep.subr.mxu0 0.0
          %7296 = vmatpush1.msra.mxu0 0.0
          %7297 = vmatprep.subr.mxu0 0.0
          %7298 = vmatpush1.msra.mxu0 0.0
          %7299 = vmatprep.subr.mxu0 0.0
          %7300 = vmatpush1.msra.mxu0 0.0
          %7301 = vmatprep.subr.mxu0 0.0
          %7302 = vmatpush1.msra.mxu0 0.0
          %7303 = vmatprep.subr.mxu0 0.0
          %7304 = vmatpush1.msra.mxu0 0.0
          %7305 = vmatprep.subr.mxu0 0.0
          %7306 = vmatpush1.msra.mxu0 0.0
          %7307 = vmatprep.subr.mxu0 0.0
          %7308 = vmatpush1.msra.mxu0 0.0
          %7309 = vmatprep.subr.mxu0 0.0
          %7310 = vmatpush1.msra.mxu0 0.0
          %7311 = vmatprep.subr.mxu0 0.0
          %7312 = vmatpush1.msra.mxu0 0.0
          %7313 = vmatprep.subr.mxu0 0.0
          %7314 = vmatpush1.msra.mxu0 0.0
          %7315 = vmatprep.subr.mxu0 0.0
          %7316 = vmatpush1.msra.mxu0 0.0
          %7317 = vmatprep.subr.mxu0 0.0
          %7318 = vmatpush1.msra.mxu0 0.0
          %7319 = vmatprep.subr.mxu0 0.0
          %7320 = vmatpush1.msra.mxu0 0.0
          %7321 = vmatprep.subr.mxu0 0.0
          %7322 = vmatpush1.msra.mxu0 0.0
          %7323 = vmatprep.subr.mxu0 0.0
          %7324 = vmatpush1.msra.mxu0 0.0
          %7325 = vmatprep.subr.mxu0 0.0
          %7326 = vmatpush1.msra.mxu0 0.0
          %7327 = vmatprep.subr.mxu0 0.0
          %7328 = vmatpush1.msra.mxu0 0.0
          %7329 = vmatprep.subr.mxu0 0.0
          %7330 = vmatpush1.msra.mxu0 0.0
          %7331 = vmatprep.subr.mxu0 0.0
          %7332 = vmatpush1.msra.mxu0 0.0
          %7333 = vmatprep.subr.mxu0 0.0
          %7334 = vmatpush1.msra.mxu0 0.0
          %7335 = vmatprep.subr.mxu0 0.0
          %7336 = vmatpush1.msra.mxu0 0.0
          %7337 = vmatprep.subr.mxu0 0.0
          %7338 = vmatpush1.msra.mxu0 0.0
          %7339 = vmatprep.subr.mxu0 0.0
          %7340 = vmatpush1.msra.mxu0 0.0
          %7341 = vmatprep.mubr.f32.mxu0 0.0
          %v7342 = vand.u32 %v7040, 4294901760
          %v7343 = vsub.f32 %v7040, %v7342
          %7344 = vmatmul.mubr.f32.gmra.mrb[0].mxu0 %v7343
          %v7345 = vpop.f32.mrb[0].mxu0
          %v7346 = vadd.f32 %v7248, %v7345
          %v7347 = vpop.f32.mrb[0].mxu0
          %7348 = vmatprep.mubr.f32.mxu0 0.0
          %v7349 = vand.u32 %v7043, 4294901760
          %v7350 = vsub.f32 %v7043, %v7349
          %7351 = vmatmul.mubr.f32.gmra.mrb[0].mxu0 %v7350
          %v7352 = vpop.f32.mrb[0].mxu0
          %v7353 = vadd.f32 %v7254, %v7352
          %v7354 = vpop.f32.mrb[0].mxu0
          %7355 = vmatprep.mubr.f32.mxu0 0.0
          %v7356 = vand.u32 %v7046, 4294901760
          %v7357 = vsub.f32 %v7046, %v7356
          %7358 = vmatmul.mubr.f32.gmra.mrb[0].mxu0 %v7357
          %v7359 = vpop.f32.mrb[0].mxu0
          %v7360 = vadd.f32 %v7260, %v7359
          %v7361 = vpop.f32.mrb[0].mxu0
          %7362 = vmatprep.mubr.f32.mxu0 0.0
          %v7363 = vand.u32 %v7049, 4294901760
          %v7364 = vsub.f32 %v7049, %v7363
          %7365 = vmatmul.mubr.f32.gmra.mrb[0].mxu0 %v7364
          %v7366 = vpop.f32.mrb[0].mxu0
          %v7367 = vadd.f32 %v7266, %v7366
          %v7368 = vpop.f32.mrb[0].mxu0
          %7369 = vdwg.mxu0
          %7370 = vmatprep.subr.mxu0 0.0
          %v7371 = vand.u32 %v6388, 4294901760
          %7372 = vmatpush1.msra.mxu0 %v7371
          %7373 = vmatprep.subr.mxu0 0.0
          %v7374 = vand.u32 %v6394, 4294901760
          %7375 = vmatpush1.msra.mxu0 %v7374
          %7376 = vmatprep.subr.mxu0 0.0
          %v7377 = vand.u32 %v6400, 4294901760
          %7378 = vmatpush1.msra.mxu0 %v7377
          %7379 = vmatprep.subr.mxu0 0.0
          %v7380 = vand.u32 %v6406, 4294901760
          %7381 = vmatpush1.msra.mxu0 %v7380
          %7382 = vmatprep.subr.mxu0 0.0
          %7383 = vmatpush1.msra.mxu0 0.0
          %7384 = vmatprep.subr.mxu0 0.0
          %7385 = vmatpush1.msra.mxu0 0.0
          %7386 = vmatprep.subr.mxu0 0.0
          %7387 = vmatpush1.msra.mxu0 0.0
          %7388 = vmatprep.subr.mxu0 0.0
          %7389 = vmatpush1.msra.mxu0 0.0
          %7390 = vmatprep.subr.mxu0 0.0
          %7391 = vmatpush1.msra.mxu0 0.0
          %7392 = vmatprep.subr.mxu0 0.0
          %7393 = vmatpush1.msra.mxu0 0.0
          %7394 = vmatprep.subr.mxu0 0.0
          %7395 = vmatpush1.msra.mxu0 0.0
          %7396 = vmatprep.subr.mxu0 0.0
          %7397 = vmatpush1.msra.mxu0 0.0
          %7398 = vmatprep.subr.mxu0 0.0
          %7399 = vmatpush1.msra.mxu0 0.0
          %7400 = vmatprep.subr.mxu0 0.0
          %7401 = vmatpush1.msra.mxu0 0.0
          %7402 = vmatprep.subr.mxu0 0.0
          %7403 = vmatpush1.msra.mxu0 0.0
          %7404 = vmatprep.subr.mxu0 0.0
          %7405 = vmatpush1.msra.mxu0 0.0
          %7406 = vmatprep.subr.mxu0 0.0
          %7407 = vmatpush1.msra.mxu0 0.0
          %7408 = vmatprep.subr.mxu0 0.0
          %7409 = vmatpush1.msra.mxu0 0.0
          %7410 = vmatprep.subr.mxu0 0.0
          %7411 = vmatpush1.msra.mxu0 0.0
          %7412 = vmatprep.subr.mxu0 0.0
          %7413 = vmatpush1.msra.mxu0 0.0
          %7414 = vmatprep.subr.mxu0 0.0
          %7415 = vmatpush1.msra.mxu0 0.0
          %7416 = vmatprep.subr.mxu0 0.0
          %7417 = vmatpush1.msra.mxu0 0.0
          %7418 = vmatprep.subr.mxu0 0.0
          %7419 = vmatpush1.msra.mxu0 0.0
          %7420 = vmatprep.subr.mxu0 0.0
          %7421 = vmatpush1.msra.mxu0 0.0
          %7422 = vmatprep.subr.mxu0 0.0
          %7423 = vmatpush1.msra.mxu0 0.0
          %7424 = vmatprep.subr.mxu0 0.0
          %7425 = vmatpush1.msra.mxu0 0.0
          %7426 = vmatprep.subr.mxu0 0.0
          %7427 = vmatpush1.msra.mxu0 0.0
          %7428 = vmatprep.subr.mxu0 0.0
          %7429 = vmatpush1.msra.mxu0 0.0
          %7430 = vmatprep.subr.mxu0 0.0
          %7431 = vmatpush1.msra.mxu0 0.0
          %7432 = vmatprep.subr.mxu0 0.0
          %7433 = vmatpush1.msra.mxu0 0.0
          %7434 = vmatprep.subr.mxu0 0.0
          %7435 = vmatpush1.msra.mxu0 0.0
          %7436 = vmatprep.subr.mxu0 0.0
          %7437 = vmatpush1.msra.mxu0 0.0
          %7438 = vmatprep.mubr.f32.mxu0 0.0
          %v7439 = vand.u32 %v7040, 4294901760
          %v7440 = vsub.f32 %v7040, %v7439
          %v7441 = vand.u32 %v7440, 4294901760
          %7442 = vmatmul.mubr.f32.gmra.mrb[0].mxu0 %v7441
          %v7443 = vpop.f32.mrb[0].mxu0
          %v7444 = vadd.f32 %v7346, %v7443
          %v7445 = vpop.f32.mrb[0].mxu0
          %7446 = vmatprep.mubr.f32.mxu0 0.0
          %v7447 = vand.u32 %v7043, 4294901760
          %v7448 = vsub.f32 %v7043, %v7447
          %v7449 = vand.u32 %v7448, 4294901760
          %7450 = vmatmul.mubr.f32.gmra.mrb[0].mxu0 %v7449
          %v7451 = vpop.f32.mrb[0].mxu0
          %v7452 = vadd.f32 %v7353, %v7451
          %v7453 = vpop.f32.mrb[0].mxu0
          %7454 = vmatprep.mubr.f32.mxu0 0.0
          %v7455 = vand.u32 %v7046, 4294901760
          %v7456 = vsub.f32 %v7046, %v7455
          %v7457 = vand.u32 %v7456, 4294901760
          %7458 = vmatmul.mubr.f32.gmra.mrb[0].mxu0 %v7457
          %v7459 = vpop.f32.mrb[0].mxu0
          %v7460 = vadd.f32 %v7360, %v7459
          %v7461 = vpop.f32.mrb[0].mxu0
          %7462 = vmatprep.mubr.f32.mxu0 0.0
          %v7463 = vand.u32 %v7049, 4294901760
          %v7464 = vsub.f32 %v7049, %v7463
          %v7465 = vand.u32 %v7464, 4294901760
          %7466 = vmatmul.mubr.f32.gmra.mrb[0].mxu0 %v7465
          %v7467 = vpop.f32.mrb[0].mxu0
          %v7468 = vadd.f32 %v7367, %v7467
          %v7469 = vpop.f32.mrb[0].mxu0
          %7470 = vdwg.mxu0
          %7471 = vmatprep.subr.mxu0 0.0
          %v7472 = vand.u32 %v6388, 4294901760
          %v7473 = vsub.f32 %v6388, %v7472
          %v7474 = vand.u32 %v7473, 4294901760
          %7475 = vmatpush1.msra.mxu0 %v7474
          %7476 = vmatprep.subr.mxu0 0.0
          %v7477 = vand.u32 %v6394, 4294901760
          %v7478 = vsub.f32 %v6394, %v7477
          %v7479 = vand.u32 %v7478, 4294901760
          %7480 = vmatpush1.msra.mxu0 %v7479
          %7481 = vmatprep.subr.mxu0 0.0
          %v7482 = vand.u32 %v6400, 4294901760
          %v7483 = vsub.f32 %v6400, %v7482
          %v7484 = vand.u32 %v7483, 4294901760
          %7485 = vmatpush1.msra.mxu0 %v7484
          %7486 = vmatprep.subr.mxu0 0.0
          %v7487 = vand.u32 %v6406, 4294901760
          %v7488 = vsub.f32 %v6406, %v7487
          %v7489 = vand.u32 %v7488, 4294901760
          %7490 = vmatpush1.msra.mxu0 %v7489
          %7491 = vmatprep.subr.mxu0 0.0
          %7492 = vmatpush1.msra.mxu0 0.0
          %7493 = vmatprep.subr.mxu0 0.0
          %7494 = vmatpush1.msra.mxu0 0.0
          %7495 = vmatprep.subr.mxu0 0.0
          %7496 = vmatpush1.msra.mxu0 0.0
          %7497 = vmatprep.subr.mxu0 0.0
          %7498 = vmatpush1.msra.mxu0 0.0
          %7499 = vmatprep.subr.mxu0 0.0
          %7500 = vmatpush1.msra.mxu0 0.0
          %7501 = vmatprep.subr.mxu0 0.0
          %7502 = vmatpush1.msra.mxu0 0.0
          %7503 = vmatprep.subr.mxu0 0.0
          %7504 = vmatpush1.msra.mxu0 0.0
          %7505 = vmatprep.subr.mxu0 0.0
          %7506 = vmatpush1.msra.mxu0 0.0
          %7507 = vmatprep.subr.mxu0 0.0
          %7508 = vmatpush1.msra.mxu0 0.0
          %7509 = vmatprep.subr.mxu0 0.0
          %7510 = vmatpush1.msra.mxu0 0.0
          %7511 = vmatprep.subr.mxu0 0.0
          %7512 = vmatpush1.msra.mxu0 0.0
          %7513 = vmatprep.subr.mxu0 0.0
          %7514 = vmatpush1.msra.mxu0 0.0
          %7515 = vmatprep.subr.mxu0 0.0
          %7516 = vmatpush1.msra.mxu0 0.0
          %7517 = vmatprep.subr.mxu0 0.0
          %7518 = vmatpush1.msra.mxu0 0.0
          %7519 = vmatprep.subr.mxu0 0.0
          %7520 = vmatpush1.msra.mxu0 0.0
          %7521 = vmatprep.subr.mxu0 0.0
          %7522 = vmatpush1.msra.mxu0 0.0
          %7523 = vmatprep.subr.mxu0 0.0
          %7524 = vmatpush1.msra.mxu0 0.0
          %7525 = vmatprep.subr.mxu0 0.0
          %7526 = vmatpush1.msra.mxu0 0.0
          %7527 = vmatprep.subr.mxu0 0.0
          %7528 = vmatpush1.msra.mxu0 0.0
          %7529 = vmatprep.subr.mxu0 0.0
          %7530 = vmatpush1.msra.mxu0 0.0
          %7531 = vmatprep.subr.mxu0 0.0
          %7532 = vmatpush1.msra.mxu0 0.0
          %7533 = vmatprep.subr.mxu0 0.0
          %7534 = vmatpush1.msra.mxu0 0.0
          %7535 = vmatprep.subr.mxu0 0.0
          %7536 = vmatpush1.msra.mxu0 0.0
          %7537 = vmatprep.subr.mxu0 0.0
          %7538 = vmatpush1.msra.mxu0 0.0
          %7539 = vmatprep.subr.mxu0 0.0
          %7540 = vmatpush1.msra.mxu0 0.0
          %7541 = vmatprep.subr.mxu0 0.0
          %7542 = vmatpush1.msra.mxu0 0.0
          %7543 = vmatprep.subr.mxu0 0.0
          %7544 = vmatpush1.msra.mxu0 0.0
          %7545 = vmatprep.subr.mxu0 0.0
          %7546 = vmatpush1.msra.mxu0 0.0
          %7547 = vmatprep.mubr.f32.mxu0 0.0
          %v7548 = vand.u32 %v7040, 4294901760
          %7549 = vmatmul.mubr.f32.gmra.mrb[0].mxu0 %v7548
          %v7550 = vpop.f32.mrb[0].mxu0
          %v7551 = vadd.f32 %v7444, %v7550
          %v7552 = vpop.f32.mrb[0].mxu0
          %7553 = vmatprep.mubr.f32.mxu0 0.0
          %v7554 = vand.u32 %v7043, 4294901760
          %7555 = vmatmul.mubr.f32.gmra.mrb[0].mxu0 %v7554
          %v7556 = vpop.f32.mrb[0].mxu0
          %v7557 = vadd.f32 %v7452, %v7556
          %v7558 = vpop.f32.mrb[0].mxu0
          %7559 = vmatprep.mubr.f32.mxu0 0.0
          %v7560 = vand.u32 %v7046, 4294901760
          %7561 = vmatmul.mubr.f32.gmra.mrb[0].mxu0 %v7560
          %v7562 = vpop.f32.mrb[0].mxu0
          %v7563 = vadd.f32 %v7460, %v7562
          %v7564 = vpop.f32.mrb[0].mxu0
          %7565 = vmatprep.mubr.f32.mxu0 0.0
          %v7566 = vand.u32 %v7049, 4294901760
          %7567 = vmatmul.mubr.f32.gmra.mrb[0].mxu0 %v7566
          %v7568 = vpop.f32.mrb[0].mxu0
          %v7569 = vadd.f32 %v7468, %v7568
          %v7570 = vpop.f32.mrb[0].mxu0
          %7571 = vdwg.mxu0
          %7572 = vmatprep.subr.mxu0 0.0
          %v7573 = vand.u32 %v6388, 4294901760
          %7574 = vmatpush1.msra.mxu0 %v7573
          %7575 = vmatprep.subr.mxu0 0.0
          %v7576 = vand.u32 %v6394, 4294901760
          %7577 = vmatpush1.msra.mxu0 %v7576
          %7578 = vmatprep.subr.mxu0 0.0
          %v7579 = vand.u32 %v6400, 4294901760
          %7580 = vmatpush1.msra.mxu0 %v7579
          %7581 = vmatprep.subr.mxu0 0.0
          %v7582 = vand.u32 %v6406, 4294901760
          %7583 = vmatpush1.msra.mxu0 %v7582
          %7584 = vmatprep.subr.mxu0 0.0
          %7585 = vmatpush1.msra.mxu0 0.0
          %7586 = vmatprep.subr.mxu0 0.0
          %7587 = vmatpush1.msra.mxu0 0.0
          %7588 = vmatprep.subr.mxu0 0.0
          %7589 = vmatpush1.msra.mxu0 0.0
          %7590 = vmatprep.subr.mxu0 0.0
          %7591 = vmatpush1.msra.mxu0 0.0
          %7592 = vmatprep.subr.mxu0 0.0
          %7593 = vmatpush1.msra.mxu0 0.0
          %7594 = vmatprep.subr.mxu0 0.0
          %7595 = vmatpush1.msra.mxu0 0.0
          %7596 = vmatprep.subr.mxu0 0.0
          %7597 = vmatpush1.msra.mxu0 0.0
          %7598 = vmatprep.subr.mxu0 0.0
          %7599 = vmatpush1.msra.mxu0 0.0
          %7600 = vmatprep.subr.mxu0 0.0
          %7601 = vmatpush1.msra.mxu0 0.0
          %7602 = vmatprep.subr.mxu0 0.0
          %7603 = vmatpush1.msra.mxu0 0.0
          %7604 = vmatprep.subr.mxu0 0.0
          %7605 = vmatpush1.msra.mxu0 0.0
          %7606 = vmatprep.subr.mxu0 0.0
          %7607 = vmatpush1.msra.mxu0 0.0
          %7608 = vmatprep.subr.mxu0 0.0
          %7609 = vmatpush1.msra.mxu0 0.0
          %7610 = vmatprep.subr.mxu0 0.0
          %7611 = vmatpush1.msra.mxu0 0.0
          %7612 = vmatprep.subr.mxu0 0.0
          %7613 = vmatpush1.msra.mxu0 0.0
          %7614 = vmatprep.subr.mxu0 0.0
          %7615 = vmatpush1.msra.mxu0 0.0
          %7616 = vmatprep.subr.mxu0 0.0
          %7617 = vmatpush1.msra.mxu0 0.0
          %7618 = vmatprep.subr.mxu0 0.0
          %7619 = vmatpush1.msra.mxu0 0.0
          %7620 = vmatprep.subr.mxu0 0.0
          %7621 = vmatpush1.msra.mxu0 0.0
          %7622 = vmatprep.subr.mxu0 0.0
          %7623 = vmatpush1.msra.mxu0 0.0
          %7624 = vmatprep.subr.mxu0 0.0
          %7625 = vmatpush1.msra.mxu0 0.0
          %7626 = vmatprep.subr.mxu0 0.0
          %7627 = vmatpush1.msra.mxu0 0.0
          %7628 = vmatprep.subr.mxu0 0.0
          %7629 = vmatpush1.msra.mxu0 0.0
          %7630 = vmatprep.subr.mxu0 0.0
          %7631 = vmatpush1.msra.mxu0 0.0
          %7632 = vmatprep.subr.mxu0 0.0
          %7633 = vmatpush1.msra.mxu0 0.0
          %7634 = vmatprep.subr.mxu0 0.0
          %7635 = vmatpush1.msra.mxu0 0.0
          %7636 = vmatprep.subr.mxu0 0.0
          %7637 = vmatpush1.msra.mxu0 0.0
          %7638 = vmatprep.subr.mxu0 0.0
          %7639 = vmatpush1.msra.mxu0 0.0
          %7640 = vmatprep.mubr.f32.mxu0 0.0
          %v7641 = vand.u32 %v7040, 4294901760
          %7642 = vmatmul.mubr.f32.gmra.mrb[0].mxu0 %v7641
          %v7643 = vpop.f32.mrb[0].mxu0
          %v7644 = vadd.f32 %v7551, %v7643
          %v7645 = vpop.f32.mrb[0].mxu0
          %7646 = vmatprep.mubr.f32.mxu0 0.0
          %v7647 = vand.u32 %v7043, 4294901760
          %7648 = vmatmul.mubr.f32.gmra.mrb[0].mxu0 %v7647
          %v7649 = vpop.f32.mrb[0].mxu0
          %v7650 = vadd.f32 %v7557, %v7649
          %v7651 = vpop.f32.mrb[0].mxu0
          %7652 = vmatprep.mubr.f32.mxu0 0.0
          %v7653 = vand.u32 %v7046, 4294901760
          %7654 = vmatmul.mubr.f32.gmra.mrb[0].mxu0 %v7653
          %v7655 = vpop.f32.mrb[0].mxu0
          %v7656 = vadd.f32 %v7563, %v7655
          %v7657 = vpop.f32.mrb[0].mxu0
          %7658 = vmatprep.mubr.f32.mxu0 0.0
          %v7659 = vand.u32 %v7049, 4294901760
          %7660 = vmatmul.mubr.f32.gmra.mrb[0].mxu0 %v7659
          %v7661 = vpop.f32.mrb[0].mxu0
          %v7662 = vadd.f32 %v7569, %v7661
          %v7663 = vpop.f32.mrb[0].mxu0
          %7664 = vdwg.mxu0
          %v7665 = vadd.f32 %v2254, %v7644
          %v7666 = vadd.f32 %v2255, %v7650
          %v7667 = vadd.f32 %v2256, %v7656
          %v7668 = vadd.f32 %v2257, %v7662
          %v7670 = vsel %vm2355, %v7018, 0
          %v7673 = vsel %vm2355, %v7024, 0
          %v7676 = vsel %vm2355, %v7030, 0
          %v7679 = vsel %vm2355, %v7036, 0
          %7681 = vmatprep.subr.mxu0 0.0
          %v7682 = vand.u32 %v7665, 4294901760
          %7683 = vmatpush1.msra.mxu0 %v7682
          %7684 = vmatprep.subr.mxu0 0.0
          %v7685 = vand.u32 %v7666, 4294901760
          %7686 = vmatpush1.msra.mxu0 %v7685
          %7687 = vmatprep.subr.mxu0 0.0
          %v7688 = vand.u32 %v7667, 4294901760
          %7689 = vmatpush1.msra.mxu0 %v7688
          %7690 = vmatprep.subr.mxu0 0.0
          %v7691 = vand.u32 %v7668, 4294901760
          %7692 = vmatpush1.msra.mxu0 %v7691
          %7693 = vmatprep.subr.mxu0 0.0
          %7694 = vmatpush1.msra.mxu0 0.0
          %7695 = vmatprep.subr.mxu0 0.0
          %7696 = vmatpush1.msra.mxu0 0.0
          %7697 = vmatprep.subr.mxu0 0.0
          %7698 = vmatpush1.msra.mxu0 0.0
          %7699 = vmatprep.subr.mxu0 0.0
          %7700 = vmatpush1.msra.mxu0 0.0
          %7701 = vmatprep.subr.mxu0 0.0
          %7702 = vmatpush1.msra.mxu0 0.0
          %7703 = vmatprep.subr.mxu0 0.0
          %7704 = vmatpush1.msra.mxu0 0.0
          %7705 = vmatprep.subr.mxu0 0.0
          %7706 = vmatpush1.msra.mxu0 0.0
          %7707 = vmatprep.subr.mxu0 0.0
          %7708 = vmatpush1.msra.mxu0 0.0
          %7709 = vmatprep.subr.mxu0 0.0
          %7710 = vmatpush1.msra.mxu0 0.0
          %7711 = vmatprep.subr.mxu0 0.0
          %7712 = vmatpush1.msra.mxu0 0.0
          %7713 = vmatprep.subr.mxu0 0.0
          %7714 = vmatpush1.msra.mxu0 0.0
          %7715 = vmatprep.subr.mxu0 0.0
          %7716 = vmatpush1.msra.mxu0 0.0
          %7717 = vmatprep.subr.mxu0 0.0
          %7718 = vmatpush1.msra.mxu0 0.0
          %7719 = vmatprep.subr.mxu0 0.0
          %7720 = vmatpush1.msra.mxu0 0.0
          %7721 = vmatprep.subr.mxu0 0.0
          %7722 = vmatpush1.msra.mxu0 0.0
          %7723 = vmatprep.subr.mxu0 0.0
          %7724 = vmatpush1.msra.mxu0 0.0
          %7725 = vmatprep.subr.mxu0 0.0
          %7726 = vmatpush1.msra.mxu0 0.0
          %7727 = vmatprep.subr.mxu0 0.0
          %7728 = vmatpush1.msra.mxu0 0.0
          %7729 = vmatprep.subr.mxu0 0.0
          %7730 = vmatpush1.msra.mxu0 0.0
          %7731 = vmatprep.subr.mxu0 0.0
          %7732 = vmatpush1.msra.mxu0 0.0
          %7733 = vmatprep.subr.mxu0 0.0
          %7734 = vmatpush1.msra.mxu0 0.0
          %7735 = vmatprep.subr.mxu0 0.0
          %7736 = vmatpush1.msra.mxu0 0.0
          %7737 = vmatprep.subr.mxu0 0.0
          %7738 = vmatpush1.msra.mxu0 0.0
          %7739 = vmatprep.subr.mxu0 0.0
          %7740 = vmatpush1.msra.mxu0 0.0
          %7741 = vmatprep.subr.mxu0 0.0
          %7742 = vmatpush1.msra.mxu0 0.0
          %7743 = vmatprep.subr.mxu0 0.0
          %7744 = vmatpush1.msra.mxu0 0.0
          %7745 = vmatprep.subr.mxu0 0.0
          %7746 = vmatpush1.msra.mxu0 0.0
          %7747 = vmatprep.subr.mxu0 0.0
          %7748 = vmatpush1.msra.mxu0 0.0
          %7749 = vmatprep.mubr.f32.mxu0 0.0
          %v7750 = vand.u32 %v7670, 4294901760
          %v7751 = vsub.f32 %v7670, %v7750
          %v7752 = vand.u32 %v7751, 4294901760
          %v7753 = vsub.f32 %v7751, %v7752
          %v7754 = vand.u32 %v7753, 4294901760
          %7755 = vmatmul.mubr.f32.gmra.mrb[0].mxu0 %v7754
          %v7756 = vpop.f32.mrb[0].mxu0
          %v7757 = vadd.f32 0.0, %v7756
          %v7758 = vpop.f32.mrb[0].mxu0
          %7759 = vmatprep.mubr.f32.mxu0 0.0
          %v7760 = vand.u32 %v7673, 4294901760
          %v7761 = vsub.f32 %v7673, %v7760
          %v7762 = vand.u32 %v7761, 4294901760
          %v7763 = vsub.f32 %v7761, %v7762
          %v7764 = vand.u32 %v7763, 4294901760
          %7765 = vmatmul.mubr.f32.gmra.mrb[0].mxu0 %v7764
          %v7766 = vpop.f32.mrb[0].mxu0
          %v7767 = vadd.f32 0.0, %v7766
          %v7768 = vpop.f32.mrb[0].mxu0
          %7769 = vmatprep.mubr.f32.mxu0 0.0
          %v7770 = vand.u32 %v7676, 4294901760
          %v7771 = vsub.f32 %v7676, %v7770
          %v7772 = vand.u32 %v7771, 4294901760
          %v7773 = vsub.f32 %v7771, %v7772
          %v7774 = vand.u32 %v7773, 4294901760
          %7775 = vmatmul.mubr.f32.gmra.mrb[0].mxu0 %v7774
          %v7776 = vpop.f32.mrb[0].mxu0
          %v7777 = vadd.f32 0.0, %v7776
          %v7778 = vpop.f32.mrb[0].mxu0
          %7779 = vmatprep.mubr.f32.mxu0 0.0
          %v7780 = vand.u32 %v7679, 4294901760
          %v7781 = vsub.f32 %v7679, %v7780
          %v7782 = vand.u32 %v7781, 4294901760
          %v7783 = vsub.f32 %v7781, %v7782
          %v7784 = vand.u32 %v7783, 4294901760
          %7785 = vmatmul.mubr.f32.gmra.mrb[0].mxu0 %v7784
          %v7786 = vpop.f32.mrb[0].mxu0
          %v7787 = vadd.f32 0.0, %v7786
          %v7788 = vpop.f32.mrb[0].mxu0
          %7789 = vdwg.mxu0
          %7790 = vmatprep.subr.mxu0 0.0
          %v7791 = vand.u32 %v7665, 4294901760
          %v7792 = vsub.f32 %v7665, %v7791
          %v7793 = vand.u32 %v7792, 4294901760
          %v7794 = vsub.f32 %v7792, %v7793
          %v7795 = vand.u32 %v7794, 4294901760
          %7796 = vmatpush1.msra.mxu0 %v7795
          %7797 = vmatprep.subr.mxu0 0.0
          %v7798 = vand.u32 %v7666, 4294901760
          %v7799 = vsub.f32 %v7666, %v7798
          %v7800 = vand.u32 %v7799, 4294901760
          %v7801 = vsub.f32 %v7799, %v7800
          %v7802 = vand.u32 %v7801, 4294901760
          %7803 = vmatpush1.msra.mxu0 %v7802
          %7804 = vmatprep.subr.mxu0 0.0
          %v7805 = vand.u32 %v7667, 4294901760
          %v7806 = vsub.f32 %v7667, %v7805
          %v7807 = vand.u32 %v7806, 4294901760
          %v7808 = vsub.f32 %v7806, %v7807
          %v7809 = vand.u32 %v7808, 4294901760
          %7810 = vmatpush1.msra.mxu0 %v7809
          %7811 = vmatprep.subr.mxu0 0.0
          %v7812 = vand.u32 %v7668, 4294901760
          %v7813 = vsub.f32 %v7668, %v7812
          %v7814 = vand.u32 %v7813, 4294901760
          %v7815 = vsub.f32 %v7813, %v7814
          %v7816 = vand.u32 %v7815, 4294901760
          %7817 = vmatpush1.msra.mxu0 %v7816
          %7818 = vmatprep.subr.mxu0 0.0
          %7819 = vmatpush1.msra.mxu0 0.0
          %7820 = vmatprep.subr.mxu0 0.0
          %7821 = vmatpush1.msra.mxu0 0.0
          %7822 = vmatprep.subr.mxu0 0.0
          %7823 = vmatpush1.msra.mxu0 0.0
          %7824 = vmatprep.subr.mxu0 0.0
          %7825 = vmatpush1.msra.mxu0 0.0
          %7826 = vmatprep.subr.mxu0 0.0
          %7827 = vmatpush1.msra.mxu0 0.0
          %7828 = vmatprep.subr.mxu0 0.0
          %7829 = vmatpush1.msra.mxu0 0.0
          %7830 = vmatprep.subr.mxu0 0.0
          %7831 = vmatpush1.msra.mxu0 0.0
          %7832 = vmatprep.subr.mxu0 0.0
          %7833 = vmatpush1.msra.mxu0 0.0
          %7834 = vmatprep.subr.mxu0 0.0
          %7835 = vmatpush1.msra.mxu0 0.0
          %7836 = vmatprep.subr.mxu0 0.0
          %7837 = vmatpush1.msra.mxu0 0.0
          %7838 = vmatprep.subr.mxu0 0.0
          %7839 = vmatpush1.msra.mxu0 0.0
          %7840 = vmatprep.subr.mxu0 0.0
          %7841 = vmatpush1.msra.mxu0 0.0
          %7842 = vmatprep.subr.mxu0 0.0
          %7843 = vmatpush1.msra.mxu0 0.0
          %7844 = vmatprep.subr.mxu0 0.0
          %7845 = vmatpush1.msra.mxu0 0.0
          %7846 = vmatprep.subr.mxu0 0.0
          %7847 = vmatpush1.msra.mxu0 0.0
          %7848 = vmatprep.subr.mxu0 0.0
          %7849 = vmatpush1.msra.mxu0 0.0
          %7850 = vmatprep.subr.mxu0 0.0
          %7851 = vmatpush1.msra.mxu0 0.0
          %7852 = vmatprep.subr.mxu0 0.0
          %7853 = vmatpush1.msra.mxu0 0.0
          %7854 = vmatprep.subr.mxu0 0.0
          %7855 = vmatpush1.msra.mxu0 0.0
          %7856 = vmatprep.subr.mxu0 0.0
          %7857 = vmatpush1.msra.mxu0 0.0
          %7858 = vmatprep.subr.mxu0 0.0
          %7859 = vmatpush1.msra.mxu0 0.0
          %7860 = vmatprep.subr.mxu0 0.0
          %7861 = vmatpush1.msra.mxu0 0.0
          %7862 = vmatprep.subr.mxu0 0.0
          %7863 = vmatpush1.msra.mxu0 0.0
          %7864 = vmatprep.subr.mxu0 0.0
          %7865 = vmatpush1.msra.mxu0 0.0
          %7866 = vmatprep.subr.mxu0 0.0
          %7867 = vmatpush1.msra.mxu0 0.0
          %7868 = vmatprep.subr.mxu0 0.0
          %7869 = vmatpush1.msra.mxu0 0.0
          %7870 = vmatprep.subr.mxu0 0.0
          %7871 = vmatpush1.msra.mxu0 0.0
          %7872 = vmatprep.subr.mxu0 0.0
          %7873 = vmatpush1.msra.mxu0 0.0
          %7874 = vmatprep.mubr.f32.mxu0 0.0
          %v7875 = vand.u32 %v7670, 4294901760
          %7876 = vmatmul.mubr.f32.gmra.mrb[0].mxu0 %v7875
          %v7877 = vpop.f32.mrb[0].mxu0
          %v7878 = vadd.f32 %v7757, %v7877
          %v7879 = vpop.f32.mrb[0].mxu0
          %7880 = vmatprep.mubr.f32.mxu0 0.0
          %v7881 = vand.u32 %v7673, 4294901760
          %7882 = vmatmul.mubr.f32.gmra.mrb[0].mxu0 %v7881
          %v7883 = vpop.f32.mrb[0].mxu0
          %v7884 = vadd.f32 %v7767, %v7883
          %v7885 = vpop.f32.mrb[0].mxu0
          %7886 = vmatprep.mubr.f32.mxu0 0.0
          %v7887 = vand.u32 %v7676, 4294901760
          %7888 = vmatmul.mubr.f32.gmra.mrb[0].mxu0 %v7887
          %v7889 = vpop.f32.mrb[0].mxu0
          %v7890 = vadd.f32 %v7777, %v7889
          %v7891 = vpop.f32.mrb[0].mxu0
          %7892 = vmatprep.mubr.f32.mxu0 0.0
          %v7893 = vand.u32 %v7679, 4294901760
          %7894 = vmatmul.mubr.f32.gmra.mrb[0].mxu0 %v7893
          %v7895 = vpop.f32.mrb[0].mxu0
          %v7896 = vadd.f32 %v7787, %v7895
          %v7897 = vpop.f32.mrb[0].mxu0
          %7898 = vdwg.mxu0
          %7899 = vmatprep.subr.mxu0 0.0
          %v7900 = vand.u32 %v7665, 4294901760
          %v7901 = vsub.f32 %v7665, %v7900
          %7902 = vmatpush1.msra.mxu0 %v7901
          %7903 = vmatprep.subr.mxu0 0.0
          %v7904 = vand.u32 %v7666, 4294901760
          %v7905 = vsub.f32 %v7666, %v7904
          %7906 = vmatpush1.msra.mxu0 %v7905
          %7907 = vmatprep.subr.mxu0 0.0
          %v7908 = vand.u32 %v7667, 4294901760
          %v7909 = vsub.f32 %v7667, %v7908
          %7910 = vmatpush1.msra.mxu0 %v7909
          %7911 = vmatprep.subr.mxu0 0.0
          %v7912 = vand.u32 %v7668, 4294901760
          %v7913 = vsub.f32 %v7668, %v7912
          %7914 = vmatpush1.msra.mxu0 %v7913
          %7915 = vmatprep.subr.mxu0 0.0
          %7916 = vmatpush1.msra.mxu0 0.0
          %7917 = vmatprep.subr.mxu0 0.0
          %7918 = vmatpush1.msra.mxu0 0.0
          %7919 = vmatprep.subr.mxu0 0.0
          %7920 = vmatpush1.msra.mxu0 0.0
          %7921 = vmatprep.subr.mxu0 0.0
          %7922 = vmatpush1.msra.mxu0 0.0
          %7923 = vmatprep.subr.mxu0 0.0
          %7924 = vmatpush1.msra.mxu0 0.0
          %7925 = vmatprep.subr.mxu0 0.0
          %7926 = vmatpush1.msra.mxu0 0.0
          %7927 = vmatprep.subr.mxu0 0.0
          %7928 = vmatpush1.msra.mxu0 0.0
          %7929 = vmatprep.subr.mxu0 0.0
          %7930 = vmatpush1.msra.mxu0 0.0
          %7931 = vmatprep.subr.mxu0 0.0
          %7932 = vmatpush1.msra.mxu0 0.0
          %7933 = vmatprep.subr.mxu0 0.0
          %7934 = vmatpush1.msra.mxu0 0.0
          %7935 = vmatprep.subr.mxu0 0.0
          %7936 = vmatpush1.msra.mxu0 0.0
          %7937 = vmatprep.subr.mxu0 0.0
          %7938 = vmatpush1.msra.mxu0 0.0
          %7939 = vmatprep.subr.mxu0 0.0
          %7940 = vmatpush1.msra.mxu0 0.0
          %7941 = vmatprep.subr.mxu0 0.0
          %7942 = vmatpush1.msra.mxu0 0.0
          %7943 = vmatprep.subr.mxu0 0.0
          %7944 = vmatpush1.msra.mxu0 0.0
          %7945 = vmatprep.subr.mxu0 0.0
          %7946 = vmatpush1.msra.mxu0 0.0
          %7947 = vmatprep.subr.mxu0 0.0
          %7948 = vmatpush1.msra.mxu0 0.0
          %7949 = vmatprep.subr.mxu0 0.0
          %7950 = vmatpush1.msra.mxu0 0.0
          %7951 = vmatprep.subr.mxu0 0.0
          %7952 = vmatpush1.msra.mxu0 0.0
          %7953 = vmatprep.subr.mxu0 0.0
          %7954 = vmatpush1.msra.mxu0 0.0
          %7955 = vmatprep.subr.mxu0 0.0
          %7956 = vmatpush1.msra.mxu0 0.0
          %7957 = vmatprep.subr.mxu0 0.0
          %7958 = vmatpush1.msra.mxu0 0.0
          %7959 = vmatprep.subr.mxu0 0.0
          %7960 = vmatpush1.msra.mxu0 0.0
          %7961 = vmatprep.subr.mxu0 0.0
          %7962 = vmatpush1.msra.mxu0 0.0
          %7963 = vmatprep.subr.mxu0 0.0
          %7964 = vmatpush1.msra.mxu0 0.0
          %7965 = vmatprep.subr.mxu0 0.0
          %7966 = vmatpush1.msra.mxu0 0.0
          %7967 = vmatprep.subr.mxu0 0.0
          %7968 = vmatpush1.msra.mxu0 0.0
          %7969 = vmatprep.subr.mxu0 0.0
          %7970 = vmatpush1.msra.mxu0 0.0
          %7971 = vmatprep.mubr.f32.mxu0 0.0
          %v7972 = vand.u32 %v7670, 4294901760
          %v7973 = vsub.f32 %v7670, %v7972
          %7974 = vmatmul.mubr.f32.gmra.mrb[0].mxu0 %v7973
          %v7975 = vpop.f32.mrb[0].mxu0
          %v7976 = vadd.f32 %v7878, %v7975
          %v7977 = vpop.f32.mrb[0].mxu0
          %7978 = vmatprep.mubr.f32.mxu0 0.0
          %v7979 = vand.u32 %v7673, 4294901760
          %v7980 = vsub.f32 %v7673, %v7979
          %7981 = vmatmul.mubr.f32.gmra.mrb[0].mxu0 %v7980
          %v7982 = vpop.f32.mrb[0].mxu0
          %v7983 = vadd.f32 %v7884, %v7982
          %v7984 = vpop.f32.mrb[0].mxu0
          %7985 = vmatprep.mubr.f32.mxu0 0.0
          %v7986 = vand.u32 %v7676, 4294901760
          %v7987 = vsub.f32 %v7676, %v7986
          %7988 = vmatmul.mubr.f32.gmra.mrb[0].mxu0 %v7987
          %v7989 = vpop.f32.mrb[0].mxu0
          %v7990 = vadd.f32 %v7890, %v7989
          %v7991 = vpop.f32.mrb[0].mxu0
          %7992 = vmatprep.mubr.f32.mxu0 0.0
          %v7993 = vand.u32 %v7679, 4294901760
          %v7994 = vsub.f32 %v7679, %v7993
          %7995 = vmatmul.mubr.f32.gmra.mrb[0].mxu0 %v7994
          %v7996 = vpop.f32.mrb[0].mxu0
          %v7997 = vadd.f32 %v7896, %v7996
          %v7998 = vpop.f32.mrb[0].mxu0
          %7999 = vdwg.mxu0
          %8000 = vmatprep.subr.mxu0 0.0
          %v8001 = vand.u32 %v7665, 4294901760
          %8002 = vmatpush1.msra.mxu0 %v8001
          %8003 = vmatprep.subr.mxu0 0.0
          %v8004 = vand.u32 %v7666, 4294901760
          %8005 = vmatpush1.msra.mxu0 %v8004
          %8006 = vmatprep.subr.mxu0 0.0
          %v8007 = vand.u32 %v7667, 4294901760
          %8008 = vmatpush1.msra.mxu0 %v8007
          %8009 = vmatprep.subr.mxu0 0.0
          %v8010 = vand.u32 %v7668, 4294901760
          %8011 = vmatpush1.msra.mxu0 %v8010
          %8012 = vmatprep.subr.mxu0 0.0
          %8013 = vmatpush1.msra.mxu0 0.0
          %8014 = vmatprep.subr.mxu0 0.0
          %8015 = vmatpush1.msra.mxu0 0.0
          %8016 = vmatprep.subr.mxu0 0.0
          %8017 = vmatpush1.msra.mxu0 0.0
          %8018 = vmatprep.subr.mxu0 0.0
          %8019 = vmatpush1.msra.mxu0 0.0
          %8020 = vmatprep.subr.mxu0 0.0
          %8021 = vmatpush1.msra.mxu0 0.0
          %8022 = vmatprep.subr.mxu0 0.0
          %8023 = vmatpush1.msra.mxu0 0.0
          %8024 = vmatprep.subr.mxu0 0.0
          %8025 = vmatpush1.msra.mxu0 0.0
          %8026 = vmatprep.subr.mxu0 0.0
          %8027 = vmatpush1.msra.mxu0 0.0
          %8028 = vmatprep.subr.mxu0 0.0
          %8029 = vmatpush1.msra.mxu0 0.0
          %8030 = vmatprep.subr.mxu0 0.0
          %8031 = vmatpush1.msra.mxu0 0.0
          %8032 = vmatprep.subr.mxu0 0.0
          %8033 = vmatpush1.msra.mxu0 0.0
          %8034 = vmatprep.subr.mxu0 0.0
          %8035 = vmatpush1.msra.mxu0 0.0
          %8036 = vmatprep.subr.mxu0 0.0
          %8037 = vmatpush1.msra.mxu0 0.0
          %8038 = vmatprep.subr.mxu0 0.0
          %8039 = vmatpush1.msra.mxu0 0.0
          %8040 = vmatprep.subr.mxu0 0.0
          %8041 = vmatpush1.msra.mxu0 0.0
          %8042 = vmatprep.subr.mxu0 0.0
          %8043 = vmatpush1.msra.mxu0 0.0
          %8044 = vmatprep.subr.mxu0 0.0
          %8045 = vmatpush1.msra.mxu0 0.0
          %8046 = vmatprep.subr.mxu0 0.0
          %8047 = vmatpush1.msra.mxu0 0.0
          %8048 = vmatprep.subr.mxu0 0.0
          %8049 = vmatpush1.msra.mxu0 0.0
          %8050 = vmatprep.subr.mxu0 0.0
          %8051 = vmatpush1.msra.mxu0 0.0
          %8052 = vmatprep.subr.mxu0 0.0
          %8053 = vmatpush1.msra.mxu0 0.0
          %8054 = vmatprep.subr.mxu0 0.0
          %8055 = vmatpush1.msra.mxu0 0.0
          %8056 = vmatprep.subr.mxu0 0.0
          %8057 = vmatpush1.msra.mxu0 0.0
          %8058 = vmatprep.subr.mxu0 0.0
          %8059 = vmatpush1.msra.mxu0 0.0
          %8060 = vmatprep.subr.mxu0 0.0
          %8061 = vmatpush1.msra.mxu0 0.0
          %8062 = vmatprep.subr.mxu0 0.0
          %8063 = vmatpush1.msra.mxu0 0.0
          %8064 = vmatprep.subr.mxu0 0.0
          %8065 = vmatpush1.msra.mxu0 0.0
          %8066 = vmatprep.subr.mxu0 0.0
          %8067 = vmatpush1.msra.mxu0 0.0
          %8068 = vmatprep.mubr.f32.mxu0 0.0
          %v8069 = vand.u32 %v7670, 4294901760
          %v8070 = vsub.f32 %v7670, %v8069
          %v8071 = vand.u32 %v8070, 4294901760
          %8072 = vmatmul.mubr.f32.gmra.mrb[0].mxu0 %v8071
          %v8073 = vpop.f32.mrb[0].mxu0
          %v8074 = vadd.f32 %v7976, %v8073
          %v8075 = vpop.f32.mrb[0].mxu0
          %8076 = vmatprep.mubr.f32.mxu0 0.0
          %v8077 = vand.u32 %v7673, 4294901760
          %v8078 = vsub.f32 %v7673, %v8077
          %v8079 = vand.u32 %v8078, 4294901760
          %8080 = vmatmul.mubr.f32.gmra.mrb[0].mxu0 %v8079
          %v8081 = vpop.f32.mrb[0].mxu0
          %v8082 = vadd.f32 %v7983, %v8081
          %v8083 = vpop.f32.mrb[0].mxu0
          %8084 = vmatprep.mubr.f32.mxu0 0.0
          %v8085 = vand.u32 %v7676, 4294901760
          %v8086 = vsub.f32 %v7676, %v8085
          %v8087 = vand.u32 %v8086, 4294901760
          %8088 = vmatmul.mubr.f32.gmra.mrb[0].mxu0 %v8087
          %v8089 = vpop.f32.mrb[0].mxu0
          %v8090 = vadd.f32 %v7990, %v8089
          %v8091 = vpop.f32.mrb[0].mxu0
          %8092 = vmatprep.mubr.f32.mxu0 0.0
          %v8093 = vand.u32 %v7679, 4294901760
          %v8094 = vsub.f32 %v7679, %v8093
          %v8095 = vand.u32 %v8094, 4294901760
          %8096 = vmatmul.mubr.f32.gmra.mrb[0].mxu0 %v8095
          %v8097 = vpop.f32.mrb[0].mxu0
          %v8098 = vadd.f32 %v7997, %v8097
          %v8099 = vpop.f32.mrb[0].mxu0
          %8100 = vdwg.mxu0
          %8101 = vmatprep.subr.mxu0 0.0
          %v8102 = vand.u32 %v7665, 4294901760
          %v8103 = vsub.f32 %v7665, %v8102
          %v8104 = vand.u32 %v8103, 4294901760
          %8105 = vmatpush1.msra.mxu0 %v8104
          %8106 = vmatprep.subr.mxu0 0.0
          %v8107 = vand.u32 %v7666, 4294901760
          %v8108 = vsub.f32 %v7666, %v8107
          %v8109 = vand.u32 %v8108, 4294901760
          %8110 = vmatpush1.msra.mxu0 %v8109
          %8111 = vmatprep.subr.mxu0 0.0
          %v8112 = vand.u32 %v7667, 4294901760
          %v8113 = vsub.f32 %v7667, %v8112
          %v8114 = vand.u32 %v8113, 4294901760
          %8115 = vmatpush1.msra.mxu0 %v8114
          %8116 = vmatprep.subr.mxu0 0.0
          %v8117 = vand.u32 %v7668, 4294901760
          %v8118 = vsub.f32 %v7668, %v8117
          %v8119 = vand.u32 %v8118, 4294901760
          %8120 = vmatpush1.msra.mxu0 %v8119
          %8121 = vmatprep.subr.mxu0 0.0
          %8122 = vmatpush1.msra.mxu0 0.0
          %8123 = vmatprep.subr.mxu0 0.0
          %8124 = vmatpush1.msra.mxu0 0.0
          %8125 = vmatprep.subr.mxu0 0.0
          %8126 = vmatpush1.msra.mxu0 0.0
          %8127 = vmatprep.subr.mxu0 0.0
          %8128 = vmatpush1.msra.mxu0 0.0
          %8129 = vmatprep.subr.mxu0 0.0
          %8130 = vmatpush1.msra.mxu0 0.0
          %8131 = vmatprep.subr.mxu0 0.0
          %8132 = vmatpush1.msra.mxu0 0.0
          %8133 = vmatprep.subr.mxu0 0.0
          %8134 = vmatpush1.msra.mxu0 0.0
          %8135 = vmatprep.subr.mxu0 0.0
          %8136 = vmatpush1.msra.mxu0 0.0
          %8137 = vmatprep.subr.mxu0 0.0
          %8138 = vmatpush1.msra.mxu0 0.0
          %8139 = vmatprep.subr.mxu0 0.0
          %8140 = vmatpush1.msra.mxu0 0.0
          %8141 = vmatprep.subr.mxu0 0.0
          %8142 = vmatpush1.msra.mxu0 0.0
          %8143 = vmatprep.subr.mxu0 0.0
          %8144 = vmatpush1.msra.mxu0 0.0
          %8145 = vmatprep.subr.mxu0 0.0
          %8146 = vmatpush1.msra.mxu0 0.0
          %8147 = vmatprep.subr.mxu0 0.0
          %8148 = vmatpush1.msra.mxu0 0.0
          %8149 = vmatprep.subr.mxu0 0.0
          %8150 = vmatpush1.msra.mxu0 0.0
          %8151 = vmatprep.subr.mxu0 0.0
          %8152 = vmatpush1.msra.mxu0 0.0
          %8153 = vmatprep.subr.mxu0 0.0
          %8154 = vmatpush1.msra.mxu0 0.0
          %8155 = vmatprep.subr.mxu0 0.0
          %8156 = vmatpush1.msra.mxu0 0.0
          %8157 = vmatprep.subr.mxu0 0.0
          %8158 = vmatpush1.msra.mxu0 0.0
          %8159 = vmatprep.subr.mxu0 0.0
          %8160 = vmatpush1.msra.mxu0 0.0
          %8161 = vmatprep.subr.mxu0 0.0
          %8162 = vmatpush1.msra.mxu0 0.0
          %8163 = vmatprep.subr.mxu0 0.0
          %8164 = vmatpush1.msra.mxu0 0.0
          %8165 = vmatprep.subr.mxu0 0.0
          %8166 = vmatpush1.msra.mxu0 0.0
          %8167 = vmatprep.subr.mxu0 0.0
          %8168 = vmatpush1.msra.mxu0 0.0
          %8169 = vmatprep.subr.mxu0 0.0
          %8170 = vmatpush1.msra.mxu0 0.0
          %8171 = vmatprep.subr.mxu0 0.0
          %8172 = vmatpush1.msra.mxu0 0.0
          %8173 = vmatprep.subr.mxu0 0.0
          %8174 = vmatpush1.msra.mxu0 0.0
          %8175 = vmatprep.subr.mxu0 0.0
          %8176 = vmatpush1.msra.mxu0 0.0
          %8177 = vmatprep.mubr.f32.mxu0 0.0
          %v8178 = vand.u32 %v7670, 4294901760
          %8179 = vmatmul.mubr.f32.gmra.mrb[0].mxu0 %v8178
          %v8180 = vpop.f32.mrb[0].mxu0
          %v8181 = vadd.f32 %v8074, %v8180
          %v8182 = vpop.f32.mrb[0].mxu0
          %8183 = vmatprep.mubr.f32.mxu0 0.0
          %v8184 = vand.u32 %v7673, 4294901760
          %8185 = vmatmul.mubr.f32.gmra.mrb[0].mxu0 %v8184
          %v8186 = vpop.f32.mrb[0].mxu0
          %v8187 = vadd.f32 %v8082, %v8186
          %v8188 = vpop.f32.mrb[0].mxu0
          %8189 = vmatprep.mubr.f32.mxu0 0.0
          %v8190 = vand.u32 %v7676, 4294901760
          %8191 = vmatmul.mubr.f32.gmra.mrb[0].mxu0 %v8190
          %v8192 = vpop.f32.mrb[0].mxu0
          %v8193 = vadd.f32 %v8090, %v8192
          %v8194 = vpop.f32.mrb[0].mxu0
          %8195 = vmatprep.mubr.f32.mxu0 0.0
          %v8196 = vand.u32 %v7679, 4294901760
          %8197 = vmatmul.mubr.f32.gmra.mrb[0].mxu0 %v8196
          %v8198 = vpop.f32.mrb[0].mxu0
          %v8199 = vadd.f32 %v8098, %v8198
          %v8200 = vpop.f32.mrb[0].mxu0
          %8201 = vdwg.mxu0
          %8202 = vmatprep.subr.mxu0 0.0
          %v8203 = vand.u32 %v7665, 4294901760
          %8204 = vmatpush1.msra.mxu0 %v8203
          %8205 = vmatprep.subr.mxu0 0.0
          %v8206 = vand.u32 %v7666, 4294901760
          %8207 = vmatpush1.msra.mxu0 %v8206
          %8208 = vmatprep.subr.mxu0 0.0
          %v8209 = vand.u32 %v7667, 4294901760
          %8210 = vmatpush1.msra.mxu0 %v8209
          %8211 = vmatprep.subr.mxu0 0.0
          %v8212 = vand.u32 %v7668, 4294901760
          %8213 = vmatpush1.msra.mxu0 %v8212
          %8214 = vmatprep.subr.mxu0 0.0
          %8215 = vmatpush1.msra.mxu0 0.0
          %8216 = vmatprep.subr.mxu0 0.0
          %8217 = vmatpush1.msra.mxu0 0.0
          %8218 = vmatprep.subr.mxu0 0.0
          %8219 = vmatpush1.msra.mxu0 0.0
          %8220 = vmatprep.subr.mxu0 0.0
          %8221 = vmatpush1.msra.mxu0 0.0
          %8222 = vmatprep.subr.mxu0 0.0
          %8223 = vmatpush1.msra.mxu0 0.0
          %8224 = vmatprep.subr.mxu0 0.0
          %8225 = vmatpush1.msra.mxu0 0.0
          %8226 = vmatprep.subr.mxu0 0.0
          %8227 = vmatpush1.msra.mxu0 0.0
          %8228 = vmatprep.subr.mxu0 0.0
          %8229 = vmatpush1.msra.mxu0 0.0
          %8230 = vmatprep.subr.mxu0 0.0
          %8231 = vmatpush1.msra.mxu0 0.0
          %8232 = vmatprep.subr.mxu0 0.0
          %8233 = vmatpush1.msra.mxu0 0.0
          %8234 = vmatprep.subr.mxu0 0.0
          %8235 = vmatpush1.msra.mxu0 0.0
          %8236 = vmatprep.subr.mxu0 0.0
          %8237 = vmatpush1.msra.mxu0 0.0
          %8238 = vmatprep.subr.mxu0 0.0
          %8239 = vmatpush1.msra.mxu0 0.0
          %8240 = vmatprep.subr.mxu0 0.0
          %8241 = vmatpush1.msra.mxu0 0.0
          %8242 = vmatprep.subr.mxu0 0.0
          %8243 = vmatpush1.msra.mxu0 0.0
          %8244 = vmatprep.subr.mxu0 0.0
          %8245 = vmatpush1.msra.mxu0 0.0
          %8246 = vmatprep.subr.mxu0 0.0
          %8247 = vmatpush1.msra.mxu0 0.0
          %8248 = vmatprep.subr.mxu0 0.0
          %8249 = vmatpush1.msra.mxu0 0.0
          %8250 = vmatprep.subr.mxu0 0.0
          %8251 = vmatpush1.msra.mxu0 0.0
          %8252 = vmatprep.subr.mxu0 0.0
          %8253 = vmatpush1.msra.mxu0 0.0
          %8254 = vmatprep.subr.mxu0 0.0
          %8255 = vmatpush1.msra.mxu0 0.0
          %8256 = vmatprep.subr.mxu0 0.0
          %8257 = vmatpush1.msra.mxu0 0.0
          %8258 = vmatprep.subr.mxu0 0.0
          %8259 = vmatpush1.msra.mxu0 0.0
          %8260 = vmatprep.subr.mxu0 0.0
          %8261 = vmatpush1.msra.mxu0 0.0
          %8262 = vmatprep.subr.mxu0 0.0
          %8263 = vmatpush1.msra.mxu0 0.0
          %8264 = vmatprep.subr.mxu0 0.0
          %8265 = vmatpush1.msra.mxu0 0.0
          %8266 = vmatprep.subr.mxu0 0.0
          %8267 = vmatpush1.msra.mxu0 0.0
          %8268 = vmatprep.subr.mxu0 0.0
          %8269 = vmatpush1.msra.mxu0 0.0
          %8270 = vmatprep.mubr.f32.mxu0 0.0
          %v8271 = vand.u32 %v7670, 4294901760
          %8272 = vmatmul.mubr.f32.gmra.mrb[0].mxu0 %v8271
          %v8273 = vpop.f32.mrb[0].mxu0
          %v8274 = vadd.f32 %v8181, %v8273
          %v8275 = vpop.f32.mrb[0].mxu0
          %8276 = vmatprep.mubr.f32.mxu0 0.0
          %v8277 = vand.u32 %v7673, 4294901760
          %8278 = vmatmul.mubr.f32.gmra.mrb[0].mxu0 %v8277
          %v8279 = vpop.f32.mrb[0].mxu0
          %v8280 = vadd.f32 %v8187, %v8279
          %v8281 = vpop.f32.mrb[0].mxu0
          %8282 = vmatprep.mubr.f32.mxu0 0.0
          %v8283 = vand.u32 %v7676, 4294901760
          %8284 = vmatmul.mubr.f32.gmra.mrb[0].mxu0 %v8283
          %v8285 = vpop.f32.mrb[0].mxu0
          %v8286 = vadd.f32 %v8193, %v8285
          %v8287 = vpop.f32.mrb[0].mxu0
          %8288 = vmatprep.mubr.f32.mxu0 0.0
          %v8289 = vand.u32 %v7679, 4294901760
          %8290 = vmatmul.mubr.f32.gmra.mrb[0].mxu0 %v8289
          %v8291 = vpop.f32.mrb[0].mxu0
          %v8292 = vadd.f32 %v8199, %v8291
          %v8293 = vpop.f32.mrb[0].mxu0
          %8294 = vdwg.mxu0
          %v8295 = vpack.c.bf16 %v3150, %v3149
          %v8296 = vpack.c.bf16 %v3152, %v3151
          %v8297 = vpack.c.bf16 %v2326, %v2325
          %v8298 = vpack.c.bf16 %v2328, %v2327
          %v8299 = vpack.c.bf16 %v2340, %v2339
          %v8300 = vpack.c.bf16 %v2342, %v2341
          %v8301 = vpack.c.bf16 %v2344, %v2343
          %v8302 = vpack.c.bf16 %v2346, %v2345
          %v8304 = vsel %vm3026, %v8299, 0
          %v8307 = vsel %vm3026, %v8300, 0
          %v8310 = vsel %vm3026, %v8301, 0
          %v8313 = vsel %vm3026, %v8302, 0
          %8315 = vmatprep.subr.bf16.mxu0 0
          %8316 = vmatpush1.bf16.xpose.msra.mxu0 %v8304
          %8317 = vmatprep.subr.bf16.mxu0 0
          %8318 = vmatpush1.bf16.xpose.msra.mxu0 %v8307
          %8319 = vmatprep.subr.bf16.mxu0 0
          %8320 = vmatpush1.bf16.xpose.msra.mxu0 %v8310
          %8321 = vmatprep.subr.bf16.mxu0 0
          %8322 = vmatpush1.bf16.xpose.msra.mxu0 %v8313
          %8323 = vmatprep.subr.bf16.mxu0 0
          %8324 = vmatpush1.bf16.xpose.msra.mxu0 0
          %8325 = vmatprep.subr.bf16.mxu0 0
          %8326 = vmatpush1.bf16.xpose.msra.mxu0 0
          %8327 = vmatprep.subr.bf16.mxu0 0
          %8328 = vmatpush1.bf16.xpose.msra.mxu0 0
          %8329 = vmatprep.subr.bf16.mxu0 0
          %8330 = vmatpush1.bf16.xpose.msra.mxu0 0
          %8331 = vmatprep.subr.bf16.mxu0 0
          %8332 = vmatpush1.bf16.xpose.msra.mxu0 0
          %8333 = vmatprep.subr.bf16.mxu0 0
          %8334 = vmatpush1.bf16.xpose.msra.mxu0 0
          %8335 = vmatprep.subr.bf16.mxu0 0
          %8336 = vmatpush1.bf16.xpose.msra.mxu0 0
          %8337 = vmatprep.subr.bf16.mxu0 0
          %8338 = vmatpush1.bf16.xpose.msra.mxu0 0
          %8339 = vmatprep.subr.bf16.mxu0 0
          %8340 = vmatpush1.bf16.xpose.msra.mxu0 0
          %8341 = vmatprep.subr.bf16.mxu0 0
          %8342 = vmatpush1.bf16.xpose.msra.mxu0 0
          %8343 = vmatprep.subr.bf16.mxu0 0
          %8344 = vmatpush1.bf16.xpose.msra.mxu0 0
          %8345 = vmatprep.subr.bf16.mxu0 0
          %8346 = vmatpush1.bf16.xpose.msra.mxu0 0
          %8347 = vmatprep.mubr.bf16.mxu0 0
          %8348 = vmatmul.mubr.bf16.gmra.mrb[0].mxu0 %v3028
          %v8349 = vpop.f32.mrb[0].mxu0
          %v8350 = vadd.f32 0.0, %v8349
          %v8351 = vpop.f32.mrb[0].mxu0
          %v8352 = vpop.f32.mrb[0].mxu0
          %v8353 = vadd.f32 0.0, %v8352
          %v8354 = vpop.f32.mrb[0].mxu0
          %8355 = vmatprep.mubr.bf16.mxu0 0
          %8356 = vmatmul.mubr.bf16.gmra.mrb[0].mxu0 %v3031
          %v8357 = vpop.f32.mrb[0].mxu0
          %v8358 = vadd.f32 0.0, %v8357
          %v8359 = vpop.f32.mrb[0].mxu0
          %v8360 = vpop.f32.mrb[0].mxu0
          %v8361 = vadd.f32 0.0, %v8360
          %v8362 = vpop.f32.mrb[0].mxu0
          %8363 = vdwg.mxu0
          %v8365 = vsel %vm2355, %v8295, 0
          %v8368 = vsel %vm2355, %v8296, 0
          %8370 = vmatprep.subr.bf16.mxu0 0
          %8371 = vmatpush1.bf16.msra.mxu0 %v8297
          %8372 = vmatprep.subr.bf16.mxu0 0
          %8373 = vmatpush1.bf16.msra.mxu0 %v8298
          %8374 = vmatprep.subr.bf16.mxu0 0
          %8375 = vmatpush1.bf16.msra.mxu0 0
          %8376 = vmatprep.subr.bf16.mxu0 0
          %8377 = vmatpush1.bf16.msra.mxu0 0
          %8378 = vmatprep.subr.bf16.mxu0 0
          %8379 = vmatpush1.bf16.msra.mxu0 0
          %8380 = vmatprep.subr.bf16.mxu0 0
          %8381 = vmatpush1.bf16.msra.mxu0 0
          %8382 = vmatprep.subr.bf16.mxu0 0
          %8383 = vmatpush1.bf16.msra.mxu0 0
          %8384 = vmatprep.subr.bf16.mxu0 0
          %8385 = vmatpush1.bf16.msra.mxu0 0
          %8386 = vmatprep.subr.bf16.mxu0 0
          %8387 = vmatpush1.bf16.msra.mxu0 0
          %8388 = vmatprep.subr.bf16.mxu0 0
          %8389 = vmatpush1.bf16.msra.mxu0 0
          %8390 = vmatprep.subr.bf16.mxu0 0
          %8391 = vmatpush1.bf16.msra.mxu0 0
          %8392 = vmatprep.subr.bf16.mxu0 0
          %8393 = vmatpush1.bf16.msra.mxu0 0
          %8394 = vmatprep.subr.bf16.mxu0 0
          %8395 = vmatpush1.bf16.msra.mxu0 0
          %8396 = vmatprep.subr.bf16.mxu0 0
          %8397 = vmatpush1.bf16.msra.mxu0 0
          %8398 = vmatprep.subr.bf16.mxu0 0
          %8399 = vmatpush1.bf16.msra.mxu0 0
          %8400 = vmatprep.subr.bf16.mxu0 0
          %8401 = vmatpush1.bf16.msra.mxu0 0
          %8402 = vmatprep.mubr.bf16.mxu0 0
          %8403 = vmatmul.mubr.bf16.gmra.mrb[0].mxu0 %v8365
          %v8404 = vpop.f32.mrb[0].mxu0
          %v8405 = vadd.f32 %v8350, %v8404
          %v8406 = vpop.f32.mrb[0].mxu0
          %v8407 = vpop.f32.mrb[0].mxu0
          %v8408 = vadd.f32 %v8353, %v8407
          %v8409 = vpop.f32.mrb[0].mxu0
          %8410 = vmatprep.mubr.bf16.mxu0 0
          %8411 = vmatmul.mubr.bf16.gmra.mrb[0].mxu0 %v8368
          %v8412 = vpop.f32.mrb[0].mxu0
          %v8413 = vadd.f32 %v8358, %v8412
          %v8414 = vpop.f32.mrb[0].mxu0
          %v8415 = vpop.f32.mrb[0].mxu0
          %v8416 = vadd.f32 %v8361, %v8415
          %v8417 = vpop.f32.mrb[0].mxu0
          %8418 = vdwg.mxu0
          %v8419 = vpack.c.bf16 %v8280, %v8274
          %v8420 = vpack.c.bf16 %v8292, %v8286
          %v8421 = vpack.c.bf16 %v8408, %v8405
          %v8422 = vpack.c.bf16 %v8416, %v8413
          %v8424 = vsel %vm2355, %v8419, 0
          %v8427 = vsel %vm2355, %v8420, 0
          %8429 = vmatprep.subr.bf16.mxu0 0
          %8430 = vmatpush1.bf16.msra.mxu0 %v8421
          %8431 = vmatprep.subr.bf16.mxu0 0
          %8432 = vmatpush1.bf16.msra.mxu0 %v8422
          %8433 = vmatprep.subr.bf16.mxu0 0
          %8434 = vmatpush1.bf16.msra.mxu0 0
          %8435 = vmatprep.subr.bf16.mxu0 0
          %8436 = vmatpush1.bf16.msra.mxu0 0
          %8437 = vmatprep.subr.bf16.mxu0 0
          %8438 = vmatpush1.bf16.msra.mxu0 0
          %8439 = vmatprep.subr.bf16.mxu0 0
          %8440 = vmatpush1.bf16.msra.mxu0 0
          %8441 = vmatprep.subr.bf16.mxu0 0
          %8442 = vmatpush1.bf16.msra.mxu0 0
          %8443 = vmatprep.subr.bf16.mxu0 0
          %8444 = vmatpush1.bf16.msra.mxu0 0
          %8445 = vmatprep.subr.bf16.mxu0 0
          %8446 = vmatpush1.bf16.msra.mxu0 0
          %8447 = vmatprep.subr.bf16.mxu0 0
          %8448 = vmatpush1.bf16.msra.mxu0 0
          %8449 = vmatprep.subr.bf16.mxu0 0
          %8450 = vmatpush1.bf16.msra.mxu0 0
          %8451 = vmatprep.subr.bf16.mxu0 0
          %8452 = vmatpush1.bf16.msra.mxu0 0
          %8453 = vmatprep.subr.bf16.mxu0 0
          %8454 = vmatpush1.bf16.msra.mxu0 0
          %8455 = vmatprep.subr.bf16.mxu0 0
          %8456 = vmatpush1.bf16.msra.mxu0 0
          %8457 = vmatprep.subr.bf16.mxu0 0
          %8458 = vmatpush1.bf16.msra.mxu0 0
          %8459 = vmatprep.subr.bf16.mxu0 0
          %8460 = vmatpush1.bf16.msra.mxu0 0
          %8461 = vmatprep.mubr.bf16.mxu0 0
          %8462 = vmatmul.mubr.bf16.gmra.mrb[0].mxu0 %v8424
          %v8463 = vpop.f32.mrb[0].mxu0
          %v8464 = vadd.f32 0.0, %v8463
          %v8465 = vpop.f32.mrb[0].mxu0
          %v8466 = vpop.f32.mrb[0].mxu0
          %v8467 = vadd.f32 0.0, %v8466
          %v8468 = vpop.f32.mrb[0].mxu0
          %8469 = vmatprep.mubr.bf16.mxu0 0
          %8470 = vmatmul.mubr.bf16.gmra.mrb[0].mxu0 %v8427
          %v8471 = vpop.f32.mrb[0].mxu0
          %v8472 = vadd.f32 0.0, %v8471
          %v8473 = vpop.f32.mrb[0].mxu0
          %v8474 = vpop.f32.mrb[0].mxu0
          %v8475 = vadd.f32 0.0, %v8474
          %v8476 = vpop.f32.mrb[0].mxu0
          %8477 = vdwg.mxu0
          %v8478 = vpack.c.bf16 %v3211, %v3210
          %v8479 = vpack.c.bf16 %v3213, %v3212
          %v8480 = vpack.c.bf16 %v8467, %v8464
          %v8481 = vpack.c.bf16 %v8475, %v8472
          %v8483 = vsel %vm2355, %v8478, 0
          %v8486 = vsel %vm2355, %v8479, 0
          %8488 = vmatprep.subr.bf16.mxu0 0
          %8489 = vmatpush1.bf16.msra.mxu0 %v8480
          %8490 = vmatprep.subr.bf16.mxu0 0
          %8491 = vmatpush1.bf16.msra.mxu0 %v8481
          %8492 = vmatprep.subr.bf16.mxu0 0
          %8493 = vmatpush1.bf16.msra.mxu0 0
          %8494 = vmatprep.subr.bf16.mxu0 0
          %8495 = vmatpush1.bf16.msra.mxu0 0
          %8496 = vmatprep.subr.bf16.mxu0 0
          %8497 = vmatpush1.bf16.msra.mxu0 0
          %8498 = vmatprep.subr.bf16.mxu0 0
          %8499 = vmatpush1.bf16.msra.mxu0 0
          %8500 = vmatprep.subr.bf16.mxu0 0
          %8501 = vmatpush1.bf16.msra.mxu0 0
          %8502 = vmatprep.subr.bf16.mxu0 0
          %8503 = vmatpush1.bf16.msra.mxu0 0
          %8504 = vmatprep.subr.bf16.mxu0 0
          %8505 = vmatpush1.bf16.msra.mxu0 0
          %8506 = vmatprep.subr.bf16.mxu0 0
          %8507 = vmatpush1.bf16.msra.mxu0 0
          %8508 = vmatprep.subr.bf16.mxu0 0
          %8509 = vmatpush1.bf16.msra.mxu0 0
          %8510 = vmatprep.subr.bf16.mxu0 0
          %8511 = vmatpush1.bf16.msra.mxu0 0
          %8512 = vmatprep.subr.bf16.mxu0 0
          %8513 = vmatpush1.bf16.msra.mxu0 0
          %8514 = vmatprep.subr.bf16.mxu0 0
          %8515 = vmatpush1.bf16.msra.mxu0 0
          %8516 = vmatprep.subr.bf16.mxu0 0
          %8517 = vmatpush1.bf16.msra.mxu0 0
          %8518 = vmatprep.subr.bf16.mxu0 0
          %8519 = vmatpush1.bf16.msra.mxu0 0
          %8520 = vmatprep.mubr.bf16.mxu0 0
          %8521 = vmatmul.mubr.bf16.gmra.mrb[0].mxu0 %v8483
          %v8522 = vpop.f32.mrb[0].mxu0
          %v8523 = vadd.f32 0.0, %v8522
          %v8524 = vpop.f32.mrb[0].mxu0
          %v8525 = vpop.f32.mrb[0].mxu0
          %v8526 = vadd.f32 0.0, %v8525
          %v8527 = vpop.f32.mrb[0].mxu0
          %8528 = vmatprep.mubr.bf16.mxu0 0
          %8529 = vmatmul.mubr.bf16.gmra.mrb[0].mxu0 %v8486
          %v8530 = vpop.f32.mrb[0].mxu0
          %v8531 = vadd.f32 0.0, %v8530
          %v8532 = vpop.f32.mrb[0].mxu0
          %v8533 = vpop.f32.mrb[0].mxu0
          %v8534 = vadd.f32 0.0, %v8533
          %v8535 = vpop.f32.mrb[0].mxu0
          %8536 = vdwg.mxu0
          %8537 = vmatprep.subr.bf16.mxu0 0
          %8538 = vmatpush1.bf16.xpose.msra.mxu0 %v8304
          %8539 = vmatprep.subr.bf16.mxu0 0
          %8540 = vmatpush1.bf16.xpose.msra.mxu0 %v8307
          %8541 = vmatprep.subr.bf16.mxu0 0
          %8542 = vmatpush1.bf16.xpose.msra.mxu0 %v8310
          %8543 = vmatprep.subr.bf16.mxu0 0
          %8544 = vmatpush1.bf16.xpose.msra.mxu0 %v8313
          %8545 = vmatprep.subr.bf16.mxu0 0
          %8546 = vmatpush1.bf16.xpose.msra.mxu0 0
          %8547 = vmatprep.subr.bf16.mxu0 0
          %8548 = vmatpush1.bf16.xpose.msra.mxu0 0
          %8549 = vmatprep.subr.bf16.mxu0 0
          %8550 = vmatpush1.bf16.xpose.msra.mxu0 0
          %8551 = vmatprep.subr.bf16.mxu0 0
          %8552 = vmatpush1.bf16.xpose.msra.mxu0 0
          %8553 = vmatprep.subr.bf16.mxu0 0
          %8554 = vmatpush1.bf16.xpose.msra.mxu0 0
          %8555 = vmatprep.subr.bf16.mxu0 0
          %8556 = vmatpush1.bf16.xpose.msra.mxu0 0
          %8557 = vmatprep.subr.bf16.mxu0 0
          %8558 = vmatpush1.bf16.xpose.msra.mxu0 0
          %8559 = vmatprep.subr.bf16.mxu0 0
          %8560 = vmatpush1.bf16.xpose.msra.mxu0 0
          %8561 = vmatprep.subr.bf16.mxu0 0
          %8562 = vmatpush1.bf16.xpose.msra.mxu0 0
          %8563 = vmatprep.subr.bf16.mxu0 0
          %8564 = vmatpush1.bf16.xpose.msra.mxu0 0
          %8565 = vmatprep.subr.bf16.mxu0 0
          %8566 = vmatpush1.bf16.xpose.msra.mxu0 0
          %8567 = vmatprep.subr.bf16.mxu0 0
          %8568 = vmatpush1.bf16.xpose.msra.mxu0 0
          %8569 = vmatprep.mubr.bf16.mxu0 0
          %8570 = vmatmul.mubr.bf16.gmra.mrb[0].mxu0 %v3156
          %v8571 = vpop.f32.mrb[0].mxu0
          %v8572 = vadd.f32 %v8523, %v8571
          %v8573 = vpop.f32.mrb[0].mxu0
          %v8574 = vpop.f32.mrb[0].mxu0
          %v8575 = vadd.f32 %v8526, %v8574
          %v8576 = vpop.f32.mrb[0].mxu0
          %8577 = vmatprep.mubr.bf16.mxu0 0
          %8578 = vmatmul.mubr.bf16.gmra.mrb[0].mxu0 %v3159
          %v8579 = vpop.f32.mrb[0].mxu0
          %v8580 = vadd.f32 %v8531, %v8579
          %v8581 = vpop.f32.mrb[0].mxu0
          %v8582 = vpop.f32.mrb[0].mxu0
          %v8583 = vadd.f32 %v8534, %v8582
          %v8584 = vpop.f32.mrb[0].mxu0
          %8585 = vdwg.mxu0
          %v8586 = vpack.c.bf16 %v3264, %v3263
          %v8587 = vpack.c.bf16 %v3266, %v3265
          %v8589 = vsel %vm2355, %v8586, 0
          %v8592 = vsel %vm2355, %v8587, 0
          %8594 = vmatprep.subr.bf16.mxu0 0
          %8595 = vmatpush1.bf16.msra.mxu0 %v8297
          %8596 = vmatprep.subr.bf16.mxu0 0
          %8597 = vmatpush1.bf16.msra.mxu0 %v8298
          %8598 = vmatprep.subr.bf16.mxu0 0
          %8599 = vmatpush1.bf16.msra.mxu0 0
          %8600 = vmatprep.subr.bf16.mxu0 0
          %8601 = vmatpush1.bf16.msra.mxu0 0
          %8602 = vmatprep.subr.bf16.mxu0 0
          %8603 = vmatpush1.bf16.msra.mxu0 0
          %8604 = vmatprep.subr.bf16.mxu0 0
          %8605 = vmatpush1.bf16.msra.mxu0 0
          %8606 = vmatprep.subr.bf16.mxu0 0
          %8607 = vmatpush1.bf16.msra.mxu0 0
          %8608 = vmatprep.subr.bf16.mxu0 0
          %8609 = vmatpush1.bf16.msra.mxu0 0
          %8610 = vmatprep.subr.bf16.mxu0 0
          %8611 = vmatpush1.bf16.msra.mxu0 0
          %8612 = vmatprep.subr.bf16.mxu0 0
          %8613 = vmatpush1.bf16.msra.mxu0 0
          %8614 = vmatprep.subr.bf16.mxu0 0
          %8615 = vmatpush1.bf16.msra.mxu0 0
          %8616 = vmatprep.subr.bf16.mxu0 0
          %8617 = vmatpush1.bf16.msra.mxu0 0
          %8618 = vmatprep.subr.bf16.mxu0 0
          %8619 = vmatpush1.bf16.msra.mxu0 0
          %8620 = vmatprep.subr.bf16.mxu0 0
          %8621 = vmatpush1.bf16.msra.mxu0 0
          %8622 = vmatprep.subr.bf16.mxu0 0
          %8623 = vmatpush1.bf16.msra.mxu0 0
          %8624 = vmatprep.subr.bf16.mxu0 0
          %8625 = vmatpush1.bf16.msra.mxu0 0
          %8626 = vmatprep.mubr.bf16.mxu0 0
          %8627 = vmatmul.mubr.bf16.gmra.mrb[0].mxu0 %v8589
          %v8628 = vpop.f32.mrb[0].mxu0
          %v8629 = vadd.f32 0.0, %v8628
          %v8630 = vpop.f32.mrb[0].mxu0
          %v8631 = vpop.f32.mrb[0].mxu0
          %v8632 = vadd.f32 0.0, %v8631
          %v8633 = vpop.f32.mrb[0].mxu0
          %8634 = vmatprep.mubr.bf16.mxu0 0
          %8635 = vmatmul.mubr.bf16.gmra.mrb[0].mxu0 %v8592
          %v8636 = vpop.f32.mrb[0].mxu0
          %v8637 = vadd.f32 0.0, %v8636
          %v8638 = vpop.f32.mrb[0].mxu0
          %v8639 = vpop.f32.mrb[0].mxu0
          %v8640 = vadd.f32 0.0, %v8639
          %v8641 = vpop.f32.mrb[0].mxu0
          %8642 = vdwg.mxu0
          %v8643 = vadd.f32 %v8572, %v8629
          %v8644 = vadd.f32 %v8575, %v8632
          %v8645 = vadd.f32 %v8580, %v8637
          %v8646 = vadd.f32 %v8583, %v8640
          %s8647 = scalar_lea.vmem %s2031, %s2274 [#allocation8]
          %8648 = vst.msk [vmem:[%s8647] sm:$0xff] %vm3026, %v8643
          %8649 = vst.msk [vmem:[%s8647 + $0x8] sm:$0xff] %vm3026, %v8644
          %8650 = vst.msk [vmem:[%s8647 + $0x10] sm:$0xff] %vm3026, %v8645
          %8651 = vst.msk [vmem:[%s8647 + $0x18] sm:$0xff] %vm3026, %v8646
          %8652 = vxpose.xlu0.c.b16.start [1/8] %v8480, 128
          %8653 = vxpose.xlu0.c.b16.cont [2/8] %v8481, 128
          %8654 = vxpose.xlu0.c.b16.cont [3/8] 0, 128
          %8655 = vxpose.xlu0.c.b16.cont [4/8] 0, 128
          %8656 = vxpose.xlu0.c.b16.cont [5/8] 0, 128
          %8657 = vxpose.xlu0.c.b16.cont [6/8] 0, 128
          %8658 = vxpose.xlu0.c.b16.cont [7/8] 0, 128
          %8659 = vxpose.xlu0.c.b16.end [8/8] 0, 128
          %v8660 = vpop.trf.xlu0
          %v8661 = vpop.trf.xlu0
          %v8662 = vpop.trf.xlu0
          %v8663 = vpop.trf.xlu0
          %v8664 = vpop.trf.xlu0
          %v8665 = vpop.trf.xlu0
          %v8666 = vpop.trf.xlu0
          %v8667 = vpop.trf.xlu0
          %v8669 = vsel %vm2355, %v8660, 0
          %v8672 = vsel %vm2355, %v8661, 0
          %v8675 = vsel %vm2355, %v8662, 0
          %v8678 = vsel %vm2355, %v8663, 0
          %8680 = vmatprep.subr.bf16.mxu0 0
          %8681 = vmatpush1.bf16.msra.mxu0 %v3024
          %8682 = vmatprep.subr.bf16.mxu0 0
          %8683 = vmatpush1.bf16.msra.mxu0 %v3025
          %8684 = vmatprep.subr.bf16.mxu0 0
          %8685 = vmatpush1.bf16.msra.mxu0 0
          %8686 = vmatprep.subr.bf16.mxu0 0
          %8687 = vmatpush1.bf16.msra.mxu0 0
          %8688 = vmatprep.subr.bf16.mxu0 0
          %8689 = vmatpush1.bf16.msra.mxu0 0
          %8690 = vmatprep.subr.bf16.mxu0 0
          %8691 = vmatpush1.bf16.msra.mxu0 0
          %8692 = vmatprep.subr.bf16.mxu0 0
          %8693 = vmatpush1.bf16.msra.mxu0 0
          %8694 = vmatprep.subr.bf16.mxu0 0
          %8695 = vmatpush1.bf16.msra.mxu0 0
          %8696 = vmatprep.subr.bf16.mxu0 0
          %8697 = vmatpush1.bf16.msra.mxu0 0
          %8698 = vmatprep.subr.bf16.mxu0 0
          %8699 = vmatpush1.bf16.msra.mxu0 0
          %8700 = vmatprep.subr.bf16.mxu0 0
          %8701 = vmatpush1.bf16.msra.mxu0 0
          %8702 = vmatprep.subr.bf16.mxu0 0
          %8703 = vmatpush1.bf16.msra.mxu0 0
          %8704 = vmatprep.subr.bf16.mxu0 0
          %8705 = vmatpush1.bf16.msra.mxu0 0
          %8706 = vmatprep.subr.bf16.mxu0 0
          %8707 = vmatpush1.bf16.msra.mxu0 0
          %8708 = vmatprep.subr.bf16.mxu0 0
          %8709 = vmatpush1.bf16.msra.mxu0 0
          %8710 = vmatprep.subr.bf16.mxu0 0
          %8711 = vmatpush1.bf16.msra.mxu0 0
          %8712 = vmatprep.mubr.bf16.mxu0 0
          %8713 = vmatmul.mubr.bf16.gmra.mrb[0].mxu0 %v8669
          %v8714 = vpop.f32.mrb[0].mxu0
          %v8715 = vadd.f32 0.0, %v8714
          %v8716 = vpop.f32.mrb[0].mxu0
          %v8717 = vpop.f32.mrb[0].mxu0
          %v8718 = vadd.f32 0.0, %v8717
          %v8719 = vpop.f32.mrb[0].mxu0
          %8720 = vmatprep.mubr.bf16.mxu0 0
          %8721 = vmatmul.mubr.bf16.gmra.mrb[0].mxu0 %v8672
          %v8722 = vpop.f32.mrb[0].mxu0
          %v8723 = vadd.f32 0.0, %v8722
          %v8724 = vpop.f32.mrb[0].mxu0
          %v8725 = vpop.f32.mrb[0].mxu0
          %v8726 = vadd.f32 0.0, %v8725
          %v8727 = vpop.f32.mrb[0].mxu0
          %8728 = vmatprep.mubr.bf16.mxu0 0
          %8729 = vmatmul.mubr.bf16.gmra.mrb[0].mxu0 %v8675
          %v8730 = vpop.f32.mrb[0].mxu0
          %v8731 = vadd.f32 0.0, %v8730
          %v8732 = vpop.f32.mrb[0].mxu0
          %v8733 = vpop.f32.mrb[0].mxu0
          %v8734 = vadd.f32 0.0, %v8733
          %v8735 = vpop.f32.mrb[0].mxu0
          %8736 = vmatprep.mubr.bf16.mxu0 0
          %8737 = vmatmul.mubr.bf16.gmra.mrb[0].mxu0 %v8678
          %v8738 = vpop.f32.mrb[0].mxu0
          %v8739 = vadd.f32 0.0, %v8738
          %v8740 = vpop.f32.mrb[0].mxu0
          %v8741 = vpop.f32.mrb[0].mxu0
          %v8742 = vadd.f32 0.0, %v8741
          %v8743 = vpop.f32.mrb[0].mxu0
          %8744 = vdwg.mxu0
          %v8745 = vadd.f32 %v2339, %v8715
          %v8746 = vadd.f32 %v2340, %v8718
          %v8747 = vadd.f32 %v2341, %v8723
          %v8748 = vadd.f32 %v2342, %v8726
          %v8749 = vadd.f32 %v2343, %v8731
          %v8750 = vadd.f32 %v2344, %v8734
          %v8751 = vadd.f32 %v2345, %v8739
          %v8752 = vadd.f32 %v2346, %v8742
          %8753 = vxpose.xlu0.c.b16.start [1/8] %v8297, 128
          %8754 = vxpose.xlu0.c.b16.cont [2/8] %v8298, 128
          %8755 = vxpose.xlu0.c.b16.cont [3/8] 0, 128
          %8756 = vxpose.xlu0.c.b16.cont [4/8] 0, 128
          %8757 = vxpose.xlu0.c.b16.cont [5/8] 0, 128
          %8758 = vxpose.xlu0.c.b16.cont [6/8] 0, 128
          %8759 = vxpose.xlu0.c.b16.cont [7/8] 0, 128
          %8760 = vxpose.xlu0.c.b16.end [8/8] 0, 128
          %v8761 = vpop.trf.xlu0
          %v8762 = vpop.trf.xlu0
          %v8763 = vpop.trf.xlu0
          %v8764 = vpop.trf.xlu0
          %v8765 = vpop.trf.xlu0
          %v8766 = vpop.trf.xlu0
          %v8767 = vpop.trf.xlu0
          %v8768 = vpop.trf.xlu0
          %v8770 = vsel %vm2355, %v8761, 0
          %v8773 = vsel %vm2355, %v8762, 0
          %v8776 = vsel %vm2355, %v8763, 0
          %v8779 = vsel %vm2355, %v8764, 0
          %8781 = vmatprep.subr.bf16.mxu0 0
          %8782 = vmatpush1.bf16.msra.mxu0 %v3092
          %8783 = vmatprep.subr.bf16.mxu0 0
          %8784 = vmatpush1.bf16.msra.mxu0 %v3093
          %8785 = vmatprep.subr.bf16.mxu0 0
          %8786 = vmatpush1.bf16.msra.mxu0 0
          %8787 = vmatprep.subr.bf16.mxu0 0
          %8788 = vmatpush1.bf16.msra.mxu0 0
          %8789 = vmatprep.subr.bf16.mxu0 0
          %8790 = vmatpush1.bf16.msra.mxu0 0
          %8791 = vmatprep.subr.bf16.mxu0 0
          %8792 = vmatpush1.bf16.msra.mxu0 0
          %8793 = vmatprep.subr.bf16.mxu0 0
          %8794 = vmatpush1.bf16.msra.mxu0 0
          %8795 = vmatprep.subr.bf16.mxu0 0
          %8796 = vmatpush1.bf16.msra.mxu0 0
          %8797 = vmatprep.subr.bf16.mxu0 0
          %8798 = vmatpush1.bf16.msra.mxu0 0
          %8799 = vmatprep.subr.bf16.mxu0 0
          %8800 = vmatpush1.bf16.msra.mxu0 0
          %8801 = vmatprep.subr.bf16.mxu0 0
          %8802 = vmatpush1.bf16.msra.mxu0 0
          %8803 = vmatprep.subr.bf16.mxu0 0
          %8804 = vmatpush1.bf16.msra.mxu0 0
          %8805 = vmatprep.subr.bf16.mxu0 0
          %8806 = vmatpush1.bf16.msra.mxu0 0
          %8807 = vmatprep.subr.bf16.mxu0 0
          %8808 = vmatpush1.bf16.msra.mxu0 0
          %8809 = vmatprep.subr.bf16.mxu0 0
          %8810 = vmatpush1.bf16.msra.mxu0 0
          %8811 = vmatprep.subr.bf16.mxu0 0
          %8812 = vmatpush1.bf16.msra.mxu0 0
          %8813 = vmatprep.mubr.bf16.mxu0 0
          %8814 = vmatmul.mubr.bf16.gmra.mrb[0].mxu0 %v8770
          %v8815 = vpop.f32.mrb[0].mxu0
          %v8816 = vadd.f32 0.0, %v8815
          %v8817 = vpop.f32.mrb[0].mxu0
          %v8818 = vpop.f32.mrb[0].mxu0
          %v8819 = vadd.f32 0.0, %v8818
          %v8820 = vpop.f32.mrb[0].mxu0
          %8821 = vmatprep.mubr.bf16.mxu0 0
          %8822 = vmatmul.mubr.bf16.gmra.mrb[0].mxu0 %v8773
          %v8823 = vpop.f32.mrb[0].mxu0
          %v8824 = vadd.f32 0.0, %v8823
          %v8825 = vpop.f32.mrb[0].mxu0
          %v8826 = vpop.f32.mrb[0].mxu0
          %v8827 = vadd.f32 0.0, %v8826
          %v8828 = vpop.f32.mrb[0].mxu0
          %8829 = vmatprep.mubr.bf16.mxu0 0
          %8830 = vmatmul.mubr.bf16.gmra.mrb[0].mxu0 %v8776
          %v8831 = vpop.f32.mrb[0].mxu0
          %v8832 = vadd.f32 0.0, %v8831
          %v8833 = vpop.f32.mrb[0].mxu0
          %v8834 = vpop.f32.mrb[0].mxu0
          %v8835 = vadd.f32 0.0, %v8834
          %v8836 = vpop.f32.mrb[0].mxu0
          %8837 = vmatprep.mubr.bf16.mxu0 0
          %8838 = vmatmul.mubr.bf16.gmra.mrb[0].mxu0 %v8779
          %v8839 = vpop.f32.mrb[0].mxu0
          %v8840 = vadd.f32 0.0, %v8839
          %v8841 = vpop.f32.mrb[0].mxu0
          %v8842 = vpop.f32.mrb[0].mxu0
          %v8843 = vadd.f32 0.0, %v8842
          %v8844 = vpop.f32.mrb[0].mxu0
          %8845 = vdwg.mxu0
          %v8846 = vadd.f32 %v8745, %v8816
          %v8847 = vadd.f32 %v8746, %v8819
          %v8848 = vadd.f32 %v8747, %v8824
          %v8849 = vadd.f32 %v8748, %v8827
          %v8850 = vadd.f32 %v8749, %v8832
          %v8851 = vadd.f32 %v8750, %v8835
          %v8852 = vadd.f32 %v8751, %v8840
          %v8853 = vadd.f32 %v8752, %v8843
          %v8854 = vlaneseq
          %v8855 = vshrl.u32 %v8854, 7
          %v8856 = vsub.s32 7, %v8855
          %v8857 = vrot.slane %v2993, %v8856
          %v8858 = vmul.f32 %v8846, %v8857
          %v8859 = vmul.f32 %v8847, %v8857
          %v8860 = vmul.f32 %v8848, %v8857
          %v8861 = vmul.f32 %v8849, %v8857
          %v8862 = vmul.f32 %v8850, %v8857
          %v8863 = vmul.f32 %v8851, %v8857
          %v8864 = vmul.f32 %v8852, %v8857
          %v8865 = vmul.f32 %v8853, %v8857
          %8866 = vst.msk [vmem:[%s2338] sm:$0xff] %vm3026, %v8858
          %8867 = vst.msk [vmem:[%s2338 + $0x8] sm:$0xff] %vm3026, %v8859
          %8868 = vst.msk [vmem:[%s2338 + $0x10] sm:$0xff] %vm3026, %v8860
          %8869 = vst.msk [vmem:[%s2338 + $0x18] sm:$0xff] %vm3026, %v8861
          %8870 = vst.msk [vmem:[%s2338 + $0x20] sm:$0xff] %vm3026, %v8862
          %8871 = vst.msk [vmem:[%s2338 + $0x28] sm:$0xff] %vm3026, %v8863
          %8872 = vst.msk [vmem:[%s2338 + $0x30] sm:$0xff] %vm3026, %v8864
          %8873 = vst.msk [vmem:[%s2338 + $0x38] sm:$0xff] %vm3026, %v8865
        $region369: #{wkv7.1} parent=335 // loop_footer
          %s2273 = sadd.s32 1, %s2269
        $region370: #{wkv7.1} parent=335 // loop_footer_branch
          %2268 = sbr.rel target = $region366
        $region371: #{wkv7.1} parent=335 // loop_exit
          _
        %s8874 = sand.u32 %s239, 1
        %s8875 = sand.u32 %s239, 1
        %s8876 = smul.addr %s8875, 256
        %s8877 = scalar_lea.vmem [#allocation8], %s8876
        %s8878 = sand.u32 %s265, 1
        %s8879 = scalar_lea.sflag [#allocation10], %s8878
        %s8880 = sand.u32 %s265, 1
        %s8881 = smul.addr %s8880, 512
        %s8882 = scalar_lea.vmem [#allocation9], %s8881
        // Predicated region
        $region372: #{wkv7.1} parent=335 // pred_check
          %p8883 = pneg %p249
        $region373: #{wkv7.1} parent=335 // pred_check_branch
          %8885 = sbr.rel (%p8883) target = $region375
        $region374: #{wkv7.1} parent=335 // pred_region
          %s8886 = smul.u32 8, %s27
          %s8887 = smul.u32 4, %s28
          %s8888 = ssub.s32 9, %s8887
          %p8889 = scmp.lt.s32.totalorder %s8888, 4
          %s8890 = scalar_select %p8889, %s8888, 4
          %s8891 = smul.u32 1024, %s8890
          %p8892 = scmp.ne.s32.totalorder 0, %s8891
          %s8893 = smul.addr %s8886, 9
          %s8894 = sadd.s32 %s8887, %s8893
          %s8895 = smul.addr %s8894, 8
          %s8896 = scalar_lea.vmem %s7, %s8895
          // Predicated region
          $region376: #{wkv7.1} parent=374 // pred_check
            %p8897 = pneg %p8892
          $region377: #{wkv7.1} parent=374 // pred_check_branch
            %8899 = sbr.rel (%p8897) target = $region379
          $region378: #{wkv7.1} parent=374 // pred_region
            // Predicated region
            $region380: #{wkv7.1} parent=378 // pred_check
              _
            $region381: #{wkv7.1} parent=378 // pred_check_branch
              %8901 = sbr.rel (0) target = $region383
            $region382: #{wkv7.1} parent=378 // pred_region
              // Predicated region
              $region402: #{wkv7.1} parent=382 // pred_check
                _
              $region403: #{wkv7.1} parent=382 // pred_check_branch
                %9026 = sbr.rel (0) target = $region405
              $region404: #{wkv7.1} parent=382 // pred_region
                %s9027 = sshrl.u32 %s8890, 2
                // While loop
                $region406: #{wkv7.1} parent=404 // loop_pre_header
                  _
                $region407: #{wkv7.1} parent=404 // loop_header
                  %s9029 = sphi 0, %s9031
                  %p9030 = scmp.ge.s32.totalorder %s9029, %s9027
                  %s9034 = sphi 0, %s9103
                  %s9035 = sphi %s8877, %s9106
                  %s9036 = sphi %s8896, %s9107
                $region408: #{wkv7.1} parent=404 // loop_header_branch
                  %9033 = sbr.rel (%p9030) target = $region412
                $region409: #{wkv7.1} parent=404 // loop_body
                  %v9037 = vld [vmem:[%s9035] sm:$0xff]
                  %9038 = vst [vmem:[%s9036] sm:$0xff] %v9037
                  %v9039 = vld [vmem:[%s9035 + $0x8] sm:$0xff]
                  %9040 = vst [vmem:[%s9036 + $0x8] sm:$0xff] %v9039
                  %v9041 = vld [vmem:[%s9035 + $0x10] sm:$0xff]
                  %9042 = vst [vmem:[%s9036 + $0x10] sm:$0xff] %v9041
                  %v9043 = vld [vmem:[%s9035 + $0x18] sm:$0xff]
                  %9044 = vst [vmem:[%s9036 + $0x18] sm:$0xff] %v9043
                  %v9045 = vld [vmem:[%s9035 + $0x20] sm:$0xff]
                  %9046 = vst [vmem:[%s9036 + $0x48] sm:$0xff] %v9045
                  %v9047 = vld [vmem:[%s9035 + $0x28] sm:$0xff]
                  %9048 = vst [vmem:[%s9036 + $0x50] sm:$0xff] %v9047
                  %v9049 = vld [vmem:[%s9035 + $0x30] sm:$0xff]
                  %9050 = vst [vmem:[%s9036 + $0x58] sm:$0xff] %v9049
                  %v9051 = vld [vmem:[%s9035 + $0x38] sm:$0xff]
                  %9052 = vst [vmem:[%s9036 + $0x60] sm:$0xff] %v9051
                  %v9053 = vld [vmem:[%s9035 + $0x40] sm:$0xff]
                  %9054 = vst [vmem:[%s9036 + $0x90] sm:$0xff] %v9053
                  %v9055 = vld [vmem:[%s9035 + $0x48] sm:$0xff]
                  %9056 = vst [vmem:[%s9036 + $0x98] sm:$0xff] %v9055
                  %v9057 = vld [vmem:[%s9035 + $0x50] sm:$0xff]
                  %9058 = vst [vmem:[%s9036 + $0xa0] sm:$0xff] %v9057
                  %v9059 = vld [vmem:[%s9035 + $0x58] sm:$0xff]
                  %9060 = vst [vmem:[%s9036 + $0xa8] sm:$0xff] %v9059
                  %v9061 = vld [vmem:[%s9035 + $0x60] sm:$0xff]
                  %9062 = vst [vmem:[%s9036 + $0xd8] sm:$0xff] %v9061
                  %v9063 = vld [vmem:[%s9035 + $0x68] sm:$0xff]
                  %9064 = vst [vmem:[%s9036 + $0xe0] sm:$0xff] %v9063
                  %v9065 = vld [vmem:[%s9035 + $0x70] sm:$0xff]
                  %9066 = vst [vmem:[%s9036 + $0xe8] sm:$0xff] %v9065
                  %v9067 = vld [vmem:[%s9035 + $0x78] sm:$0xff]
                  %9068 = vst [vmem:[%s9036 + $0xf0] sm:$0xff] %v9067
                  %v9069 = vld [vmem:[%s9035 + $0x80] sm:$0xff]
                  %9070 = vst [vmem:[%s9036 + $0x120] sm:$0xff] %v9069
                  %v9071 = vld [vmem:[%s9035 + $0x88] sm:$0xff]
                  %9072 = vst [vmem:[%s9036 + $0x128] sm:$0xff] %v9071
                  %v9073 = vld [vmem:[%s9035 + $0x90] sm:$0xff]
                  %9074 = vst [vmem:[%s9036 + $0x130] sm:$0xff] %v9073
                  %v9075 = vld [vmem:[%s9035 + $0x98] sm:$0xff]
                  %9076 = vst [vmem:[%s9036 + $0x138] sm:$0xff] %v9075
                  %v9077 = vld [vmem:[%s9035 + $0xa0] sm:$0xff]
                  %9078 = vst [vmem:[%s9036 + $0x168] sm:$0xff] %v9077
                  %v9079 = vld [vmem:[%s9035 + $0xa8] sm:$0xff]
                  %9080 = vst [vmem:[%s9036 + $0x170] sm:$0xff] %v9079
                  %v9081 = vld [vmem:[%s9035 + $0xb0] sm:$0xff]
                  %9082 = vst [vmem:[%s9036 + $0x178] sm:$0xff] %v9081
                  %v9083 = vld [vmem:[%s9035 + $0xb8] sm:$0xff]
                  %9084 = vst [vmem:[%s9036 + $0x180] sm:$0xff] %v9083
                  %v9085 = vld [vmem:[%s9035 + $0xc0] sm:$0xff]
                  %9086 = vst [vmem:[%s9036 + $0x1b0] sm:$0xff] %v9085
                  %v9087 = vld [vmem:[%s9035 + $0xc8] sm:$0xff]
                  %9088 = vst [vmem:[%s9036 + $0x1b8] sm:$0xff] %v9087
                  %v9089 = vld [vmem:[%s9035 + $0xd0] sm:$0xff]
                  %9090 = vst [vmem:[%s9036 + $0x1c0] sm:$0xff] %v9089
                  %v9091 = vld [vmem:[%s9035 + $0xd8] sm:$0xff]
                  %9092 = vst [vmem:[%s9036 + $0x1c8] sm:$0xff] %v9091
                  %v9093 = vld [vmem:[%s9035 + $0xe0] sm:$0xff]
                  %9094 = vst [vmem:[%s9036 + $0x1f8] sm:$0xff] %v9093
                  %v9095 = vld [vmem:[%s9035 + $0xe8] sm:$0xff]
                  %9096 = vst [vmem:[%s9036 + $0x200] sm:$0xff] %v9095
                  %v9097 = vld [vmem:[%s9035 + $0xf0] sm:$0xff]
                  %9098 = vst [vmem:[%s9036 + $0x208] sm:$0xff] %v9097
                  %v9099 = vld [vmem:[%s9035 + $0xf8] sm:$0xff]
                  %9100 = vst [vmem:[%s9036 + $0x210] sm:$0xff] %v9099
                  %s9101 = sadd.s32 1, %s9034
                  %p9102 = scmp.ge.s32.totalorder %s9101, %s9027
                  %s9103 = scalar_select %p9102, 0, %s9101
                  %s9104 = smul.u32 %s9103, 32
                  %s9105 = smul.u32 %s9103, 32
                  %s9106 = scalar_lea.vmem %s8877, %s9104 [#allocation8]
                  %s9107 = scalar_lea.vmem %s8896, %s9105
                $region410: #{wkv7.1} parent=404 // loop_footer
                  %s9031 = sadd.s32 %s9029, 1
                $region411: #{wkv7.1} parent=404 // loop_footer_branch
                  %9028 = sbr.rel target = $region407
                $region412: #{wkv7.1} parent=404 // loop_exit
                  _
                %s9108 = sshrl.u32 %s8890, 2
                %s9109 = sand.u32 %s8890, 3
                %s9110 = smul.u32 %s9108, 4
                %s9111 = smul.u32 8, %s9110
                %s9112 = scalar_lea.vmem %s8877, %s9111 [#allocation8]
                %s9113 = smul.u32 8, %s9110
                %s9114 = scalar_lea.vmem %s8896, %s9113
                // While loop
                $region413: #{wkv7.1} parent=404 // loop_pre_header
                  _
                $region414: #{wkv7.1} parent=404 // loop_header
                  %s9116 = sphi 0, %s9118
                  %p9117 = scmp.ge.s32.totalorder %s9116, %s9109
                  %s9121 = sphi 0, %s9142
                  %s9122 = sphi %s9112, %s9145
                  %s9123 = sphi %s9114, %s9146
                $region415: #{wkv7.1} parent=404 // loop_header_branch
                  %9120 = sbr.rel (%p9117) target = $region419
                $region416: #{wkv7.1} parent=404 // loop_body
                  %v9124 = vld [vmem:[%s9122] sm:$0xff]
                  %9125 = vst [vmem:[%s9123] sm:$0xff] %v9124
                  %v9126 = vld [vmem:[%s9122 + $0x20] sm:$0xff]
                  %9127 = vst [vmem:[%s9123 + $0x48] sm:$0xff] %v9126
                  %v9128 = vld [vmem:[%s9122 + $0x40] sm:$0xff]
                  %9129 = vst [vmem:[%s9123 + $0x90] sm:$0xff] %v9128
                  %v9130 = vld [vmem:[%s9122 + $0x60] sm:$0xff]
                  %9131 = vst [vmem:[%s9123 + $0xd8] sm:$0xff] %v9130
                  %v9132 = vld [vmem:[%s9122 + $0x80] sm:$0xff]
                  %9133 = vst [vmem:[%s9123 + $0x120] sm:$0xff] %v9132
                  %v9134 = vld [vmem:[%s9122 + $0xa0] sm:$0xff]
                  %9135 = vst [vmem:[%s9123 + $0x168] sm:$0xff] %v9134
                  %v9136 = vld [vmem:[%s9122 + $0xc0] sm:$0xff]
                  %9137 = vst [vmem:[%s9123 + $0x1b0] sm:$0xff] %v9136
                  %v9138 = vld [vmem:[%s9122 + $0xe0] sm:$0xff]
                  %9139 = vst [vmem:[%s9123 + $0x1f8] sm:$0xff] %v9138
                  %s9140 = sadd.s32 1, %s9121
                  %p9141 = scmp.ge.s32.totalorder %s9140, %s9109
                  %s9142 = scalar_select %p9141, 0, %s9140
                  %s9143 = smul.u32 %s9142, 8
                  %s9144 = smul.u32 %s9142, 8
                  %s9145 = scalar_lea.vmem %s9112, %s9143 [#allocation8]
                  %s9146 = scalar_lea.vmem %s9114, %s9144
                $region417: #{wkv7.1} parent=404 // loop_footer
                  %s9118 = sadd.s32 %s9116, 1
                $region418: #{wkv7.1} parent=404 // loop_footer_branch
                  %9115 = sbr.rel target = $region414
                $region419: #{wkv7.1} parent=404 // loop_exit
                  _
              $region405: #{wkv7.1} parent=382 // pred_fallthru
                _
              // Predicated region
              $region420: #{wkv7.1} parent=382 // pred_check
                _
              $region421: #{wkv7.1} parent=382 // pred_check_branch
                %9148 = sbr.rel target = $region423
              $region422: #{wkv7.1} parent=382 // pred_region
                _
              $region423: #{wkv7.1} parent=382 // pred_fallthru
                _
            $region383: #{wkv7.1} parent=378 // pred_fallthru
              _
            // Predicated region
            $region384: #{wkv7.1} parent=378 // pred_check
              _
            $region385: #{wkv7.1} parent=378 // pred_check_branch
              %8903 = sbr.rel target = $region387
            $region386: #{wkv7.1} parent=378 // pred_region
              %s8905 = sshrl.u32 %s8890, 2
              // While loop
              $region388: #{wkv7.1} parent=386 // loop_pre_header
                _
              $region389: #{wkv7.1} parent=386 // loop_header
                %s8907 = sphi 0, %s8909
                %p8908 = scmp.ge.s32.totalorder %s8907, %s8905
                %s8912 = sphi 0, %s8981
                %s8913 = sphi %s8877, %s8984
                %s8914 = sphi %s8896, %s8985
              $region390: #{wkv7.1} parent=386 // loop_header_branch
                %8911 = sbr.rel (%p8908) target = $region394
              $region391: #{wkv7.1} parent=386 // loop_body
                %v8915 = vld [vmem:[%s8913] sm:$0xff]
                %8916 = vst [vmem:[%s8914] sm:$0xff] %v8915
                %v8917 = vld [vmem:[%s8913 + $0x8] sm:$0xff]
                %8918 = vst [vmem:[%s8914 + $0x8] sm:$0xff] %v8917
                %v8919 = vld [vmem:[%s8913 + $0x10] sm:$0xff]
                %8920 = vst [vmem:[%s8914 + $0x10] sm:$0xff] %v8919
                %v8921 = vld [vmem:[%s8913 + $0x18] sm:$0xff]
                %8922 = vst [vmem:[%s8914 + $0x18] sm:$0xff] %v8921
                %v8923 = vld [vmem:[%s8913 + $0x20] sm:$0xff]
                %8924 = vst [vmem:[%s8914 + $0x48] sm:$0xff] %v8923
                %v8925 = vld [vmem:[%s8913 + $0x28] sm:$0xff]
                %8926 = vst [vmem:[%s8914 + $0x50] sm:$0xff] %v8925
                %v8927 = vld [vmem:[%s8913 + $0x30] sm:$0xff]
                %8928 = vst [vmem:[%s8914 + $0x58] sm:$0xff] %v8927
                %v8929 = vld [vmem:[%s8913 + $0x38] sm:$0xff]
                %8930 = vst [vmem:[%s8914 + $0x60] sm:$0xff] %v8929
                %v8931 = vld [vmem:[%s8913 + $0x40] sm:$0xff]
                %8932 = vst [vmem:[%s8914 + $0x90] sm:$0xff] %v8931
                %v8933 = vld [vmem:[%s8913 + $0x48] sm:$0xff]
                %8934 = vst [vmem:[%s8914 + $0x98] sm:$0xff] %v8933
                %v8935 = vld [vmem:[%s8913 + $0x50] sm:$0xff]
                %8936 = vst [vmem:[%s8914 + $0xa0] sm:$0xff] %v8935
                %v8937 = vld [vmem:[%s8913 + $0x58] sm:$0xff]
                %8938 = vst [vmem:[%s8914 + $0xa8] sm:$0xff] %v8937
                %v8939 = vld [vmem:[%s8913 + $0x60] sm:$0xff]
                %8940 = vst [vmem:[%s8914 + $0xd8] sm:$0xff] %v8939
                %v8941 = vld [vmem:[%s8913 + $0x68] sm:$0xff]
                %8942 = vst [vmem:[%s8914 + $0xe0] sm:$0xff] %v8941
                %v8943 = vld [vmem:[%s8913 + $0x70] sm:$0xff]
                %8944 = vst [vmem:[%s8914 + $0xe8] sm:$0xff] %v8943
                %v8945 = vld [vmem:[%s8913 + $0x78] sm:$0xff]
                %8946 = vst [vmem:[%s8914 + $0xf0] sm:$0xff] %v8945
                %v8947 = vld [vmem:[%s8913 + $0x80] sm:$0xff]
                %8948 = vst [vmem:[%s8914 + $0x120] sm:$0xff] %v8947
                %v8949 = vld [vmem:[%s8913 + $0x88] sm:$0xff]
                %8950 = vst [vmem:[%s8914 + $0x128] sm:$0xff] %v8949
                %v8951 = vld [vmem:[%s8913 + $0x90] sm:$0xff]
                %8952 = vst [vmem:[%s8914 + $0x130] sm:$0xff] %v8951
                %v8953 = vld [vmem:[%s8913 + $0x98] sm:$0xff]
                %8954 = vst [vmem:[%s8914 + $0x138] sm:$0xff] %v8953
                %v8955 = vld [vmem:[%s8913 + $0xa0] sm:$0xff]
                %8956 = vst [vmem:[%s8914 + $0x168] sm:$0xff] %v8955
                %v8957 = vld [vmem:[%s8913 + $0xa8] sm:$0xff]
                %8958 = vst [vmem:[%s8914 + $0x170] sm:$0xff] %v8957
                %v8959 = vld [vmem:[%s8913 + $0xb0] sm:$0xff]
                %8960 = vst [vmem:[%s8914 + $0x178] sm:$0xff] %v8959
                %v8961 = vld [vmem:[%s8913 + $0xb8] sm:$0xff]
                %8962 = vst [vmem:[%s8914 + $0x180] sm:$0xff] %v8961
                %v8963 = vld [vmem:[%s8913 + $0xc0] sm:$0xff]
                %8964 = vst [vmem:[%s8914 + $0x1b0] sm:$0xff] %v8963
                %v8965 = vld [vmem:[%s8913 + $0xc8] sm:$0xff]
                %8966 = vst [vmem:[%s8914 + $0x1b8] sm:$0xff] %v8965
                %v8967 = vld [vmem:[%s8913 + $0xd0] sm:$0xff]
                %8968 = vst [vmem:[%s8914 + $0x1c0] sm:$0xff] %v8967
                %v8969 = vld [vmem:[%s8913 + $0xd8] sm:$0xff]
                %8970 = vst [vmem:[%s8914 + $0x1c8] sm:$0xff] %v8969
                %v8971 = vld [vmem:[%s8913 + $0xe0] sm:$0xff]
                %8972 = vst [vmem:[%s8914 + $0x1f8] sm:$0xff] %v8971
                %v8973 = vld [vmem:[%s8913 + $0xe8] sm:$0xff]
                %8974 = vst [vmem:[%s8914 + $0x200] sm:$0xff] %v8973
                %v8975 = vld [vmem:[%s8913 + $0xf0] sm:$0xff]
                %8976 = vst [vmem:[%s8914 + $0x208] sm:$0xff] %v8975
                %v8977 = vld [vmem:[%s8913 + $0xf8] sm:$0xff]
                %8978 = vst [vmem:[%s8914 + $0x210] sm:$0xff] %v8977
                %s8979 = sadd.s32 1, %s8912
                %p8980 = scmp.ge.s32.totalorder %s8979, %s8905
                %s8981 = scalar_select %p8980, 0, %s8979
                %s8982 = smul.u32 %s8981, 32
                %s8983 = smul.u32 %s8981, 32
                %s8984 = scalar_lea.vmem %s8877, %s8982 [#allocation8]
                %s8985 = scalar_lea.vmem %s8896, %s8983
              $region392: #{wkv7.1} parent=386 // loop_footer
                %s8909 = sadd.s32 %s8907, 1
              $region393: #{wkv7.1} parent=386 // loop_footer_branch
                %8906 = sbr.rel target = $region389
              $region394: #{wkv7.1} parent=386 // loop_exit
                _
              %s8986 = sshrl.u32 %s8890, 2
              %s8987 = sand.u32 %s8890, 3
              %s8988 = smul.u32 %s8986, 4
              %s8989 = smul.u32 8, %s8988
              %s8990 = scalar_lea.vmem %s8877, %s8989 [#allocation8]
              %s8991 = smul.u32 8, %s8988
              %s8992 = scalar_lea.vmem %s8896, %s8991
              // While loop
              $region395: #{wkv7.1} parent=386 // loop_pre_header
                _
              $region396: #{wkv7.1} parent=386 // loop_header
                %s8994 = sphi 0, %s8996
                %p8995 = scmp.ge.s32.totalorder %s8994, %s8987
                %s8999 = sphi 0, %s9020
                %s9000 = sphi %s8990, %s9023
                %s9001 = sphi %s8992, %s9024
              $region397: #{wkv7.1} parent=386 // loop_header_branch
                %8998 = sbr.rel (%p8995) target = $region401
              $region398: #{wkv7.1} parent=386 // loop_body
                %v9002 = vld [vmem:[%s9000] sm:$0xff]
                %9003 = vst [vmem:[%s9001] sm:$0xff] %v9002
                %v9004 = vld [vmem:[%s9000 + $0x20] sm:$0xff]
                %9005 = vst [vmem:[%s9001 + $0x48] sm:$0xff] %v9004
                %v9006 = vld [vmem:[%s9000 + $0x40] sm:$0xff]
                %9007 = vst [vmem:[%s9001 + $0x90] sm:$0xff] %v9006
                %v9008 = vld [vmem:[%s9000 + $0x60] sm:$0xff]
                %9009 = vst [vmem:[%s9001 + $0xd8] sm:$0xff] %v9008
                %v9010 = vld [vmem:[%s9000 + $0x80] sm:$0xff]
                %9011 = vst [vmem:[%s9001 + $0x120] sm:$0xff] %v9010
                %v9012 = vld [vmem:[%s9000 + $0xa0] sm:$0xff]
                %9013 = vst [vmem:[%s9001 + $0x168] sm:$0xff] %v9012
                %v9014 = vld [vmem:[%s9000 + $0xc0] sm:$0xff]
                %9015 = vst [vmem:[%s9001 + $0x1b0] sm:$0xff] %v9014
                %v9016 = vld [vmem:[%s9000 + $0xe0] sm:$0xff]
                %9017 = vst [vmem:[%s9001 + $0x1f8] sm:$0xff] %v9016
                %s9018 = sadd.s32 1, %s8999
                %p9019 = scmp.ge.s32.totalorder %s9018, %s8987
                %s9020 = scalar_select %p9019, 0, %s9018
                %s9021 = smul.u32 %s9020, 8
                %s9022 = smul.u32 %s9020, 8
                %s9023 = scalar_lea.vmem %s8990, %s9021 [#allocation8]
                %s9024 = scalar_lea.vmem %s8992, %s9022
              $region399: #{wkv7.1} parent=386 // loop_footer
                %s8996 = sadd.s32 %s8994, 1
              $region400: #{wkv7.1} parent=386 // loop_footer_branch
                %8993 = sbr.rel target = $region396
              $region401: #{wkv7.1} parent=386 // loop_exit
                _
            $region387: #{wkv7.1} parent=378 // pred_fallthru
              _
          $region379: #{wkv7.1} parent=374 // pred_fallthru
            _
          %9149 = vnop
        $region375: #{wkv7.1} parent=335 // pred_fallthru
          _
        // Predicated region
        $region424: #{wkv7.1} parent=335 // pred_check
          %p9150 = pneg %p275
        $region425: #{wkv7.1} parent=335 // pred_check_branch
          %9152 = sbr.rel (%p9150) target = $region427
        $region426: #{wkv7.1} parent=335 // pred_region
          %s9153 = smul.u32 8, %s27
          %s9155 = ssub.s32 8192, 8192
          %9156 = vsyncadd %s8879, %s9155
          %s9157 = smul.addr %s9153, 8
          %s9158 = smul.addr %s9157, 128
          %s9159 = scalar_lea.hbm %s8, %s9158
          %s9160 = sshll.u32 %s8882, 4
          %s9161 = int_to_ptr.vmem [resolvable:$true] %s9160
          %9166 = dma.vmem_to_hbm [thread:$0]  %s9161, 8192, %s9159, %s8879, 128, 128, 8
        $region427: #{wkv7.1} parent=335 // pred_fallthru
          _
      $region336: #{wkv7.1} parent=5 // pred_fallthru
        _
      %p9167 = scmp.le.s32.totalorder 2, %s18
      // Predicated region
      $region428: #{wkv7.1} parent=5 // pred_check
        %p9168 = pneg %p9167
      $region429: #{wkv7.1} parent=5 // pred_check_branch
        %9170 = sbr.rel (%p9168) target = $region431
      $region430: #{wkv7.1} parent=5 // pred_region
        %s9171 = ssub.s32 %s18, 2
        // Predicated region
        $region432: #{wkv7.1} parent=430 // pred_check
          %p9172 = pneg %p255
        $region433: #{wkv7.1} parent=430 // pred_check_branch
          %9174 = sbr.rel (%p9172) target = $region435
        $region434: #{wkv7.1} parent=430 // pred_region
          %s9175 = sand.u32 %s240, 1
          %s9176 = sand.u32 %s240, 1
          %s9177 = smul.addr %s9176, 256
          %s9178 = scalar_lea.vmem [#allocation8], %s9177
        $region435: #{wkv7.1} parent=430 // pred_fallthru
          _
        // Predicated region
        $region436: #{wkv7.1} parent=430 // pred_check
          %p9179 = pneg %p281
        $region437: #{wkv7.1} parent=430 // pred_check_branch
          %9181 = sbr.rel (%p9179) target = $region439
        $region438: #{wkv7.1} parent=430 // pred_region
          %s9182 = sand.u32 %s266, 1
          %s9183 = scalar_lea.sflag [#allocation10], %s9182
          %s9184 = sand.u32 %s266, 1
          %s9185 = smul.addr %s9184, 512
          %s9186 = scalar_lea.vmem [#allocation9], %s9185
          %9187 = dma.done %s9183, 8192
        $region439: #{wkv7.1} parent=430 // pred_fallthru
          _
      $region431: #{wkv7.1} parent=5 // pred_fallthru
        _
    $region6: #{wkv7.1} parent=1 // loop_footer
      %s22 = sadd.s32 1, %s18
    $region7: #{wkv7.1} parent=1 // loop_footer_branch
      %17 = sbr.rel target = $region3
    $region8: #{wkv7.1} parent=1 // loop_exit
      _
    %9188 = vsyncpa [#allocation10], 1
    %s9189 = scalar_lea.sflag [#allocation10], 1
    %9190 = vsyncpa %s9189, 1

</llo_original>
